<compile_context>
chip_gen: v7x
topology: tpu7x:2x2x1
jax: 0.10.0
libtpu: 0.0.40
codegen_flags: <defaults>
</compile_context>

<pallas_src>
import jax
import jax.numpy as jnp
from jax.experimental import pallas as pl
from jax.experimental.pallas import tpu as pltpu


def basic_block_kernel(xp_ref, w1_ref, s1_ref, b1_ref, w2_ref, s2_ref, b2_ref,
                       o_ref, hpad_ref):
    # xp_ref  : (1, H+2, W+2, Cin)  zero-padded input image (NHWC, one batch row)
    # w1_ref  : (9, Cin, C)         conv1 taps, tap-major (kh*3 + kw)
    # w2_ref  : (9, C,   C)         conv2 taps
    # s*/b*   : (1, C)              folded BatchNorm scale / bias
    # o_ref   : (1, H, W, C)
    # hpad_ref: VMEM scratch (H+2, W+2, C) -- padded intermediate for conv2
    _, Hp, Wp, Cin = xp_ref.shape
    H, W = Hp - 2, Wp - 2
    C = o_ref.shape[-1]

    xp = xp_ref[0]                                   # (H+2, W+2, Cin)

    # ---- conv1: 9 shifted MXU matmuls, f32 accumulation ----
    acc = jnp.zeros((H * W, C), jnp.float32)
    for kh in range(3):
        for kw in range(3):
            win = xp[kh:kh + H, kw:kw + W, :].reshape(H * W, Cin)
            acc = acc + jnp.dot(win, w1_ref[kh * 3 + kw],
                                preferred_element_type=jnp.float32)
    # BN1 (folded affine) + ReLU
    h = jnp.maximum(acc * s1_ref[...] + b1_ref[...], 0.0)

    # Stage the zero-padded intermediate in VMEM for conv2 (border stays zero).
    hpad_ref[...] = jnp.zeros_like(hpad_ref)
    hpad_ref[1:H + 1, 1:W + 1, :] = h.reshape(H, W, C)

    # ---- conv2: 9 shifted MXU matmuls, f32 accumulation ----
    acc2 = jnp.zeros((H * W, C), jnp.float32)
    for kh in range(3):
        for kw in range(3):
            win = hpad_ref[kh:kh + H, kw:kw + W, :].reshape(H * W, C)
            acc2 = acc2 + jnp.dot(win, w2_ref[kh * 3 + kw],
                                  preferred_element_type=jnp.float32)
    out = acc2 * s2_ref[...] + b2_ref[...]

    # Residual add: identity = interior of the padded input (stride=1, no downsample).
    identity = xp[1:H + 1, 1:W + 1, :].reshape(H * W, Cin)
    out = jnp.maximum(out + identity, 0.0)
    o_ref[0] = out.reshape(H, W, C).astype(o_ref.dtype)


def basic_block(x_nchw, params, *, eps=1e-5):
    """Fused BasicBlock forward.  x is NCHW (PyTorch layout); returns NCHW."""
    (w1, g1, be1, m1, v1, w2, g2, be2, m2, v2) = params
    N, Cin, H, W = x_nchw.shape
    C = w1.shape[0]
    assert Cin == C, "identity path requires inplanes == planes (downsample=None)"

    # NHWC (channels on lanes) + spatial zero-pad of 1 (padding=1 of conv3x3).
    x_nhwc = jnp.transpose(x_nchw, (0, 2, 3, 1)).astype(jnp.float32)
    x_pad = jnp.pad(x_nhwc, ((0, 0), (1, 1), (1, 1), (0, 0)))

    # PyTorch OIHW conv weights -> tap-major (kh*3+kw, I, O).
    w1_t = jnp.transpose(w1, (2, 3, 1, 0)).reshape(9, Cin, C)
    w2_t = jnp.transpose(w2, (2, 3, 1, 0)).reshape(9, C, C)

    # Fold BatchNorm (inference form) into per-channel scale / bias.
    inv1 = g1 / jnp.sqrt(v1 + eps)
    inv2 = g2 / jnp.sqrt(v2 + eps)
    s1 = inv1.reshape(1, C)
    b1 = (be1 - m1 * inv1).reshape(1, C)
    s2 = inv2.reshape(1, C)
    b2 = (be2 - m2 * inv2).reshape(1, C)

    conv_flops = 2 * N * H * W * 9 * Cin * C            # per conv
    cost = pl.CostEstimate(
        flops=2 * conv_flops + 4 * N * H * W * C,
        transcendentals=0,
        bytes_accessed=4 * (x_pad.size + w1_t.size + w2_t.size
                            + N * H * W * C + 4 * C),
    )

    out_nhwc = pl.pallas_call(
        basic_block_kernel,
        out_shape=jax.ShapeDtypeStruct((N, H, W, C), jnp.float32),
        grid=(N,),
        in_specs=[
            pl.BlockSpec((1, H + 2, W + 2, Cin), lambda n: (n, 0, 0, 0)),  # x (per image)
            pl.BlockSpec((9, Cin, C), lambda n: (0, 0, 0)),                # w1 (VMEM resident)
            pl.BlockSpec((1, C), lambda n: (0, 0)),                        # bn1 scale
            pl.BlockSpec((1, C), lambda n: (0, 0)),                        # bn1 bias
            pl.BlockSpec((9, C, C), lambda n: (0, 0, 0)),                  # w2 (VMEM resident)
            pl.BlockSpec((1, C), lambda n: (0, 0)),                        # bn2 scale
            pl.BlockSpec((1, C), lambda n: (0, 0)),                        # bn2 bias
        ],
        out_specs=pl.BlockSpec((1, H, W, C), lambda n: (n, 0, 0, 0)),
        scratch_shapes=[pltpu.VMEM((H + 2, W + 2, C), jnp.float32)],
        compiler_params=pltpu.CompilerParams(
            dimension_semantics=("parallel",)),          # pipelined; 2 TCs on v7x
        cost_estimate=cost,
    )(x_pad, w1_t, s1, b1, w2_t, s2, b2)

    return jnp.transpose(out_nhwc, (0, 3, 1, 2))          # back to NCHW


def basic_block_ref(x, params, *, eps=1e-5):
    """Pure-JAX reference with the same (inference-mode BN) semantics."""
    (w1, g1, be1, m1, v1, w2, g2, be2, m2, v2) = params

    def bn(y, g, b, m, v):
        inv = g / jnp.sqrt(v + eps)
        return y * inv[None, :, None, None] + (b - m * inv)[None, :, None, None]

    dn = ("NCHW", "OIHW", "NCHW")
    out = jax.lax.conv_general_dilated(x, w1, (1, 1), ((1, 1), (1, 1)),
                                       dimension_numbers=dn)
    out = jnp.maximum(bn(out, g1, be1, m1, v1), 0.0)
    out = jax.lax.conv_general_dilated(out, w2, (1, 1), ((1, 1), (1, 1)),
                                       dimension_numbers=dn)
    out = bn(out, g2, be2, m2, v2)
    return jnp.maximum(out + x, 0.0)


if __name__ == "__main__":
    key = jax.random.PRNGKey(0)
    ks = jax.random.split(key, 11)

    # Small shapes consistent with the module: NCHW input, inplanes == planes.
    N, C, H, W = 2, 4, 16, 16
    wstd = (2.0 / (9 * C)) ** 0.5                     # kaiming-like conv init

    x = jax.random.normal(ks[0], (N, C, H, W), jnp.float32)
    w1 = jax.random.normal(ks[1], (C, C, 3, 3), jnp.float32) * wstd
    w2 = jax.random.normal(ks[2], (C, C, 3, 3), jnp.float32) * wstd
    g1 = jax.random.uniform(ks[3], (C,), jnp.float32, 0.5, 1.5)
    be1 = jax.random.normal(ks[4], (C,), jnp.float32) * 0.1
    m1 = jax.random.normal(ks[5], (C,), jnp.float32) * 0.1
    v1 = jax.random.uniform(ks[6], (C,), jnp.float32, 0.5, 1.5)
    g2 = jax.random.uniform(ks[7], (C,), jnp.float32, 0.5, 1.5)
    be2 = jax.random.normal(ks[8], (C,), jnp.float32) * 0.1
    m2 = jax.random.normal(ks[9], (C,), jnp.float32) * 0.1
    v2 = jax.random.uniform(ks[10], (C,), jnp.float32, 0.5, 1.5)

    params = (w1, g1, be1, m1, v1, w2, g2, be2, m2, v2)

    out = jax.block_until_ready(basic_block(x, params))
    ref = basic_block_ref(x, params)

    assert out.shape == (N, C, H, W)
    # Both the kernel's MXU matmuls and XLA's reference conv use the TPU default
    # matmul precision (bf16 passes), so allow a few 1e-2 of slack; structural
    # bugs would produce O(1) errors and still fail this check.
    assert jnp.allclose(out, ref, atol=5e-2, rtol=5e-2), \
        float(jnp.max(jnp.abs(out - ref)))

    print("KERNEL_OK")
</pallas_src>

<mosaic_0001>
module attributes {stable_mosaic.version = 11 : i64} {
  func.func @basic_block_kernel(%arg0: i32, %arg1: memref<1x18x18x4xf32, #tpu.memory_space<vmem>>, %arg2: memref<9x4x4xf32, #tpu.memory_space<vmem>>, %arg3: memref<1x4xf32, #tpu.memory_space<vmem>>, %arg4: memref<1x4xf32, #tpu.memory_space<vmem>>, %arg5: memref<9x4x4xf32, #tpu.memory_space<vmem>>, %arg6: memref<1x4xf32, #tpu.memory_space<vmem>>, %arg7: memref<1x4xf32, #tpu.memory_space<vmem>>, %arg8: memref<1x16x16x4xf32, #tpu.memory_space<vmem>>, %arg9: memref<18x18x4xf32, #tpu.memory_space<vmem>>) attributes {dimension_semantics = [#tpu.dimension_semantics<parallel>], iteration_bounds = array<i64: 2>, scalar_prefetch = 0 : i64, scratch_operands = 1 : i64, tpu.core_type = #tpu.core_type<tc>, window_params = [{transform_indices = @transform_0, window_bounds = array<i64: 1, 18, 18, 4>}, {pipeline_mode = #tpu.pipeline_mode<synchronous>, transform_indices = @transform_1, window_bounds = array<i64: 9, 4, 4>}, {pipeline_mode = #tpu.pipeline_mode<synchronous>, transform_indices = @transform_2, window_bounds = array<i64: 1, 4>}, {pipeline_mode = #tpu.pipeline_mode<synchronous>, transform_indices = @transform_3, window_bounds = array<i64: 1, 4>}, {pipeline_mode = #tpu.pipeline_mode<synchronous>, transform_indices = @transform_4, window_bounds = array<i64: 9, 4, 4>}, {pipeline_mode = #tpu.pipeline_mode<synchronous>, transform_indices = @transform_5, window_bounds = array<i64: 1, 4>}, {pipeline_mode = #tpu.pipeline_mode<synchronous>, transform_indices = @transform_6, window_bounds = array<i64: 1, 4>}, {transform_indices = @transform_7, window_bounds = array<i64: 1, 16, 16, 4>}]} {
    %c0 = arith.constant 0 : index
    %c0_0 = arith.constant 0 : index
    %c0_1 = arith.constant 0 : index
    %c0_2 = arith.constant 0 : index
    %0 = vector.load %arg1[%c0, %c0_0, %c0_1, %c0_2] : memref<1x18x18x4xf32, #tpu.memory_space<vmem>>, vector<1x18x18x4xf32>
    %1 = vector.shape_cast %0 : vector<1x18x18x4xf32> to vector<18x18x4xf32>
    %cst = arith.constant 0.000000e+00 : f32
    %2 = vector.broadcast %cst : f32 to vector<256x4xf32>
    %3 = vector.extract_strided_slice %1 {offsets = [0, 0, 0], sizes = [16, 16, 4], strides = [1, 1, 1]} : vector<18x18x4xf32> to vector<16x16x4xf32>
    %4 = vector.shape_cast %3 : vector<16x16x4xf32> to vector<256x4xf32>
    %c0_3 = arith.constant 0 : index
    %c0_4 = arith.constant 0 : index
    %c0_5 = arith.constant 0 : index
    %5 = vector.load %arg2[%c0_3, %c0_4, %c0_5] : memref<9x4x4xf32, #tpu.memory_space<vmem>>, vector<1x4x4xf32>
    %6 = vector.shape_cast %5 : vector<1x4x4xf32> to vector<4x4xf32>
    %cst_6 = arith.constant dense<0.000000e+00> : vector<256x4xf32>
    %7 = tpu.matmul %4, %6, %cst_6 {dimension_numbers = #tpu.dot_dimension_numbers<[1], [0], [0], [1], [0, 0, 1, 1], [], []>} : vector<256x4xf32>, vector<4x4xf32>, vector<256x4xf32> -> vector<256x4xf32>
    %8 = arith.addf %2, %7 : vector<256x4xf32>
    %9 = vector.extract_strided_slice %1 {offsets = [0, 1, 0], sizes = [16, 16, 4], strides = [1, 1, 1]} : vector<18x18x4xf32> to vector<16x16x4xf32>
    %10 = vector.shape_cast %9 : vector<16x16x4xf32> to vector<256x4xf32>
    %c1 = arith.constant 1 : index
    %c0_7 = arith.constant 0 : index
    %c0_8 = arith.constant 0 : index
    %11 = vector.load %arg2[%c1, %c0_7, %c0_8] : memref<9x4x4xf32, #tpu.memory_space<vmem>>, vector<1x4x4xf32>
    %12 = vector.shape_cast %11 : vector<1x4x4xf32> to vector<4x4xf32>
    %cst_9 = arith.constant dense<0.000000e+00> : vector<256x4xf32>
    %13 = tpu.matmul %10, %12, %cst_9 {dimension_numbers = #tpu.dot_dimension_numbers<[1], [0], [0], [1], [0, 0, 1, 1], [], []>} : vector<256x4xf32>, vector<4x4xf32>, vector<256x4xf32> -> vector<256x4xf32>
    %14 = arith.addf %8, %13 : vector<256x4xf32>
    %15 = vector.extract_strided_slice %1 {offsets = [0, 2, 0], sizes = [16, 16, 4], strides = [1, 1, 1]} : vector<18x18x4xf32> to vector<16x16x4xf32>
    %16 = vector.shape_cast %15 : vector<16x16x4xf32> to vector<256x4xf32>
    %c2 = arith.constant 2 : index
    %c0_10 = arith.constant 0 : index
    %c0_11 = arith.constant 0 : index
    %17 = vector.load %arg2[%c2, %c0_10, %c0_11] : memref<9x4x4xf32, #tpu.memory_space<vmem>>, vector<1x4x4xf32>
    %18 = vector.shape_cast %17 : vector<1x4x4xf32> to vector<4x4xf32>
    %cst_12 = arith.constant dense<0.000000e+00> : vector<256x4xf32>
    %19 = tpu.matmul %16, %18, %cst_12 {dimension_numbers = #tpu.dot_dimension_numbers<[1], [0], [0], [1], [0, 0, 1, 1], [], []>} : vector<256x4xf32>, vector<4x4xf32>, vector<256x4xf32> -> vector<256x4xf32>
    %20 = arith.addf %14, %19 : vector<256x4xf32>
    %21 = vector.extract_strided_slice %1 {offsets = [1, 0, 0], sizes = [16, 16, 4], strides = [1, 1, 1]} : vector<18x18x4xf32> to vector<16x16x4xf32>
    %22 = vector.shape_cast %21 : vector<16x16x4xf32> to vector<256x4xf32>
    %c3 = arith.constant 3 : index
    %c0_13 = arith.constant 0 : index
    %c0_14 = arith.constant 0 : index
    %23 = vector.load %arg2[%c3, %c0_13, %c0_14] : memref<9x4x4xf32, #tpu.memory_space<vmem>>, vector<1x4x4xf32>
    %24 = vector.shape_cast %23 : vector<1x4x4xf32> to vector<4x4xf32>
    %cst_15 = arith.constant dense<0.000000e+00> : vector<256x4xf32>
    %25 = tpu.matmul %22, %24, %cst_15 {dimension_numbers = #tpu.dot_dimension_numbers<[1], [0], [0], [1], [0, 0, 1, 1], [], []>} : vector<256x4xf32>, vector<4x4xf32>, vector<256x4xf32> -> vector<256x4xf32>
    %26 = arith.addf %20, %25 : vector<256x4xf32>
    %27 = vector.extract_strided_slice %1 {offsets = [1, 1, 0], sizes = [16, 16, 4], strides = [1, 1, 1]} : vector<18x18x4xf32> to vector<16x16x4xf32>
    %28 = vector.shape_cast %27 : vector<16x16x4xf32> to vector<256x4xf32>
    %c4 = arith.constant 4 : index
    %c0_16 = arith.constant 0 : index
    %c0_17 = arith.constant 0 : index
    %29 = vector.load %arg2[%c4, %c0_16, %c0_17] : memref<9x4x4xf32, #tpu.memory_space<vmem>>, vector<1x4x4xf32>
    %30 = vector.shape_cast %29 : vector<1x4x4xf32> to vector<4x4xf32>
    %cst_18 = arith.constant dense<0.000000e+00> : vector<256x4xf32>
    %31 = tpu.matmul %28, %30, %cst_18 {dimension_numbers = #tpu.dot_dimension_numbers<[1], [0], [0], [1], [0, 0, 1, 1], [], []>} : vector<256x4xf32>, vector<4x4xf32>, vector<256x4xf32> -> vector<256x4xf32>
    %32 = arith.addf %26, %31 : vector<256x4xf32>
    %33 = vector.extract_strided_slice %1 {offsets = [1, 2, 0], sizes = [16, 16, 4], strides = [1, 1, 1]} : vector<18x18x4xf32> to vector<16x16x4xf32>
    %34 = vector.shape_cast %33 : vector<16x16x4xf32> to vector<256x4xf32>
    %c5 = arith.constant 5 : index
    %c0_19 = arith.constant 0 : index
    %c0_20 = arith.constant 0 : index
    %35 = vector.load %arg2[%c5, %c0_19, %c0_20] : memref<9x4x4xf32, #tpu.memory_space<vmem>>, vector<1x4x4xf32>
    %36 = vector.shape_cast %35 : vector<1x4x4xf32> to vector<4x4xf32>
    %cst_21 = arith.constant dense<0.000000e+00> : vector<256x4xf32>
    %37 = tpu.matmul %34, %36, %cst_21 {dimension_numbers = #tpu.dot_dimension_numbers<[1], [0], [0], [1], [0, 0, 1, 1], [], []>} : vector<256x4xf32>, vector<4x4xf32>, vector<256x4xf32> -> vector<256x4xf32>
    %38 = arith.addf %32, %37 : vector<256x4xf32>
    %39 = vector.extract_strided_slice %1 {offsets = [2, 0, 0], sizes = [16, 16, 4], strides = [1, 1, 1]} : vector<18x18x4xf32> to vector<16x16x4xf32>
    %40 = vector.shape_cast %39 : vector<16x16x4xf32> to vector<256x4xf32>
    %c6 = arith.constant 6 : index
    %c0_22 = arith.constant 0 : index
    %c0_23 = arith.constant 0 : index
    %41 = vector.load %arg2[%c6, %c0_22, %c0_23] : memref<9x4x4xf32, #tpu.memory_space<vmem>>, vector<1x4x4xf32>
    %42 = vector.shape_cast %41 : vector<1x4x4xf32> to vector<4x4xf32>
    %cst_24 = arith.constant dense<0.000000e+00> : vector<256x4xf32>
    %43 = tpu.matmul %40, %42, %cst_24 {dimension_numbers = #tpu.dot_dimension_numbers<[1], [0], [0], [1], [0, 0, 1, 1], [], []>} : vector<256x4xf32>, vector<4x4xf32>, vector<256x4xf32> -> vector<256x4xf32>
    %44 = arith.addf %38, %43 : vector<256x4xf32>
    %45 = vector.extract_strided_slice %1 {offsets = [2, 1, 0], sizes = [16, 16, 4], strides = [1, 1, 1]} : vector<18x18x4xf32> to vector<16x16x4xf32>
    %46 = vector.shape_cast %45 : vector<16x16x4xf32> to vector<256x4xf32>
    %c7 = arith.constant 7 : index
    %c0_25 = arith.constant 0 : index
    %c0_26 = arith.constant 0 : index
    %47 = vector.load %arg2[%c7, %c0_25, %c0_26] : memref<9x4x4xf32, #tpu.memory_space<vmem>>, vector<1x4x4xf32>
    %48 = vector.shape_cast %47 : vector<1x4x4xf32> to vector<4x4xf32>
    %cst_27 = arith.constant dense<0.000000e+00> : vector<256x4xf32>
    %49 = tpu.matmul %46, %48, %cst_27 {dimension_numbers = #tpu.dot_dimension_numbers<[1], [0], [0], [1], [0, 0, 1, 1], [], []>} : vector<256x4xf32>, vector<4x4xf32>, vector<256x4xf32> -> vector<256x4xf32>
    %50 = arith.addf %44, %49 : vector<256x4xf32>
    %51 = vector.extract_strided_slice %1 {offsets = [2, 2, 0], sizes = [16, 16, 4], strides = [1, 1, 1]} : vector<18x18x4xf32> to vector<16x16x4xf32>
    %52 = vector.shape_cast %51 : vector<16x16x4xf32> to vector<256x4xf32>
    %c8 = arith.constant 8 : index
    %c0_28 = arith.constant 0 : index
    %c0_29 = arith.constant 0 : index
    %53 = vector.load %arg2[%c8, %c0_28, %c0_29] : memref<9x4x4xf32, #tpu.memory_space<vmem>>, vector<1x4x4xf32>
    %54 = vector.shape_cast %53 : vector<1x4x4xf32> to vector<4x4xf32>
    %cst_30 = arith.constant dense<0.000000e+00> : vector<256x4xf32>
    %55 = tpu.matmul %52, %54, %cst_30 {dimension_numbers = #tpu.dot_dimension_numbers<[1], [0], [0], [1], [0, 0, 1, 1], [], []>} : vector<256x4xf32>, vector<4x4xf32>, vector<256x4xf32> -> vector<256x4xf32>
    %56 = arith.addf %50, %55 : vector<256x4xf32>
    %c0_31 = arith.constant 0 : index
    %c0_32 = arith.constant 0 : index
    %57 = vector.load %arg3[%c0_31, %c0_32] : memref<1x4xf32, #tpu.memory_space<vmem>>, vector<1x4xf32>
    %58 = vector.broadcast %57 : vector<1x4xf32> to vector<256x4xf32>
    %59 = arith.mulf %56, %58 : vector<256x4xf32>
    %c0_33 = arith.constant 0 : index
    %c0_34 = arith.constant 0 : index
    %60 = vector.load %arg4[%c0_33, %c0_34] : memref<1x4xf32, #tpu.memory_space<vmem>>, vector<1x4xf32>
    %61 = vector.broadcast %60 : vector<1x4xf32> to vector<256x4xf32>
    %62 = arith.addf %59, %61 : vector<256x4xf32>
    %cst_35 = arith.constant 0.000000e+00 : f32
    %63 = vector.broadcast %cst_35 : f32 to vector<256x4xf32>
    %64 = arith.maximumf %62, %63 : vector<256x4xf32>
    %cst_36 = arith.constant 0.000000e+00 : f32
    %65 = vector.broadcast %cst_36 : f32 to vector<18x18x4xf32>
    %c0_37 = arith.constant 0 : index
    %c0_38 = arith.constant 0 : index
    %c0_39 = arith.constant 0 : index
    %66 = vector.load %arg9[%c0_37, %c0_38, %c0_39] : memref<18x18x4xf32, #tpu.memory_space<vmem>>, vector<18x18x4xf32>
    tpu.vector_store %arg9[%c0_37, %c0_38, %c0_39], %65 {strides = array<i32>} : memref<18x18x4xf32, #tpu.memory_space<vmem>>, vector<18x18x4xf32>,
    %67 = vector.shape_cast %64 : vector<256x4xf32> to vector<16x16x4xf32>
    %c1_40 = arith.constant 1 : index
    %c1_41 = arith.constant 1 : index
    %c0_42 = arith.constant 0 : index
    %68 = vector.load %arg9[%c1_40, %c1_41, %c0_42] : memref<18x18x4xf32, #tpu.memory_space<vmem>>, vector<16x16x4xf32>
    tpu.vector_store %arg9[%c1_40, %c1_41, %c0_42], %67 {strides = array<i32>} : memref<18x18x4xf32, #tpu.memory_space<vmem>>, vector<16x16x4xf32>,
    %cst_43 = arith.constant 0.000000e+00 : f32
    %69 = vector.broadcast %cst_43 : f32 to vector<256x4xf32>
    %c0_44 = arith.constant 0 : index
    %c0_45 = arith.constant 0 : index
    %c0_46 = arith.constant 0 : index
    %70 = vector.load %arg9[%c0_44, %c0_45, %c0_46] : memref<18x18x4xf32, #tpu.memory_space<vmem>>, vector<16x16x4xf32>
    %71 = vector.shape_cast %70 : vector<16x16x4xf32> to vector<256x4xf32>
    %c0_47 = arith.constant 0 : index
    %c0_48 = arith.constant 0 : index
    %c0_49 = arith.constant 0 : index
    %72 = vector.load %arg5[%c0_47, %c0_48, %c0_49] : memref<9x4x4xf32, #tpu.memory_space<vmem>>, vector<1x4x4xf32>
    %73 = vector.shape_cast %72 : vector<1x4x4xf32> to vector<4x4xf32>
    %cst_50 = arith.constant dense<0.000000e+00> : vector<256x4xf32>
    %74 = tpu.matmul %71, %73, %cst_50 {dimension_numbers = #tpu.dot_dimension_numbers<[1], [0], [0], [1], [0, 0, 1, 1], [], []>} : vector<256x4xf32>, vector<4x4xf32>, vector<256x4xf32> -> vector<256x4xf32>
    %75 = arith.addf %69, %74 : vector<256x4xf32>
    %c0_51 = arith.constant 0 : index
    %c1_52 = arith.constant 1 : index
    %c0_53 = arith.constant 0 : index
    %76 = vector.load %arg9[%c0_51, %c1_52, %c0_53] : memref<18x18x4xf32, #tpu.memory_space<vmem>>, vector<16x16x4xf32>
    %77 = vector.shape_cast %76 : vector<16x16x4xf32> to vector<256x4xf32>
    %c1_54 = arith.constant 1 : index
    %c0_55 = arith.constant 0 : index
    %c0_56 = arith.constant 0 : index
    %78 = vector.load %arg5[%c1_54, %c0_55, %c0_56] : memref<9x4x4xf32, #tpu.memory_space<vmem>>, vector<1x4x4xf32>
    %79 = vector.shape_cast %78 : vector<1x4x4xf32> to vector<4x4xf32>
    %cst_57 = arith.constant dense<0.000000e+00> : vector<256x4xf32>
    %80 = tpu.matmul %77, %79, %cst_57 {dimension_numbers = #tpu.dot_dimension_numbers<[1], [0], [0], [1], [0, 0, 1, 1], [], []>} : vector<256x4xf32>, vector<4x4xf32>, vector<256x4xf32> -> vector<256x4xf32>
    %81 = arith.addf %75, %80 : vector<256x4xf32>
    %c0_58 = arith.constant 0 : index
    %c2_59 = arith.constant 2 : index
    %c0_60 = arith.constant 0 : index
    %82 = vector.load %arg9[%c0_58, %c2_59, %c0_60] : memref<18x18x4xf32, #tpu.memory_space<vmem>>, vector<16x16x4xf32>
    %83 = vector.shape_cast %82 : vector<16x16x4xf32> to vector<256x4xf32>
    %c2_61 = arith.constant 2 : index
    %c0_62 = arith.constant 0 : index
    %c0_63 = arith.constant 0 : index
    %84 = vector.load %arg5[%c2_61, %c0_62, %c0_63] : memref<9x4x4xf32, #tpu.memory_space<vmem>>, vector<1x4x4xf32>
    %85 = vector.shape_cast %84 : vector<1x4x4xf32> to vector<4x4xf32>
    %cst_64 = arith.constant dense<0.000000e+00> : vector<256x4xf32>
    %86 = tpu.matmul %83, %85, %cst_64 {dimension_numbers = #tpu.dot_dimension_numbers<[1], [0], [0], [1], [0, 0, 1, 1], [], []>} : vector<256x4xf32>, vector<4x4xf32>, vector<256x4xf32> -> vector<256x4xf32>
    %87 = arith.addf %81, %86 : vector<256x4xf32>
    %c1_65 = arith.constant 1 : index
    %c0_66 = arith.constant 0 : index
    %c0_67 = arith.constant 0 : index
    %88 = vector.load %arg9[%c1_65, %c0_66, %c0_67] : memref<18x18x4xf32, #tpu.memory_space<vmem>>, vector<16x16x4xf32>
    %89 = vector.shape_cast %88 : vector<16x16x4xf32> to vector<256x4xf32>
    %c3_68 = arith.constant 3 : index
    %c0_69 = arith.constant 0 : index
    %c0_70 = arith.constant 0 : index
    %90 = vector.load %arg5[%c3_68, %c0_69, %c0_70] : memref<9x4x4xf32, #tpu.memory_space<vmem>>, vector<1x4x4xf32>
    %91 = vector.shape_cast %90 : vector<1x4x4xf32> to vector<4x4xf32>
    %cst_71 = arith.constant dense<0.000000e+00> : vector<256x4xf32>
    %92 = tpu.matmul %89, %91, %cst_71 {dimension_numbers = #tpu.dot_dimension_numbers<[1], [0], [0], [1], [0, 0, 1, 1], [], []>} : vector<256x4xf32>, vector<4x4xf32>, vector<256x4xf32> -> vector<256x4xf32>
    %93 = arith.addf %87, %92 : vector<256x4xf32>
    %c1_72 = arith.constant 1 : index
    %c1_73 = arith.constant 1 : index
    %c0_74 = arith.constant 0 : index
    %94 = vector.load %arg9[%c1_72, %c1_73, %c0_74] : memref<18x18x4xf32, #tpu.memory_space<vmem>>, vector<16x16x4xf32>
    %95 = vector.shape_cast %94 : vector<16x16x4xf32> to vector<256x4xf32>
    %c4_75 = arith.constant 4 : index
    %c0_76 = arith.constant 0 : index
    %c0_77 = arith.constant 0 : index
    %96 = vector.load %arg5[%c4_75, %c0_76, %c0_77] : memref<9x4x4xf32, #tpu.memory_space<vmem>>, vector<1x4x4xf32>
    %97 = vector.shape_cast %96 : vector<1x4x4xf32> to vector<4x4xf32>
    %cst_78 = arith.constant dense<0.000000e+00> : vector<256x4xf32>
    %98 = tpu.matmul %95, %97, %cst_78 {dimension_numbers = #tpu.dot_dimension_numbers<[1], [0], [0], [1], [0, 0, 1, 1], [], []>} : vector<256x4xf32>, vector<4x4xf32>, vector<256x4xf32> -> vector<256x4xf32>
    %99 = arith.addf %93, %98 : vector<256x4xf32>
    %c1_79 = arith.constant 1 : index
    %c2_80 = arith.constant 2 : index
    %c0_81 = arith.constant 0 : index
    %100 = vector.load %arg9[%c1_79, %c2_80, %c0_81] : memref<18x18x4xf32, #tpu.memory_space<vmem>>, vector<16x16x4xf32>
    %101 = vector.shape_cast %100 : vector<16x16x4xf32> to vector<256x4xf32>
    %c5_82 = arith.constant 5 : index
    %c0_83 = arith.constant 0 : index
    %c0_84 = arith.constant 0 : index
    %102 = vector.load %arg5[%c5_82, %c0_83, %c0_84] : memref<9x4x4xf32, #tpu.memory_space<vmem>>, vector<1x4x4xf32>
    %103 = vector.shape_cast %102 : vector<1x4x4xf32> to vector<4x4xf32>
    %cst_85 = arith.constant dense<0.000000e+00> : vector<256x4xf32>
    %104 = tpu.matmul %101, %103, %cst_85 {dimension_numbers = #tpu.dot_dimension_numbers<[1], [0], [0], [1], [0, 0, 1, 1], [], []>} : vector<256x4xf32>, vector<4x4xf32>, vector<256x4xf32> -> vector<256x4xf32>
    %105 = arith.addf %99, %104 : vector<256x4xf32>
    %c2_86 = arith.constant 2 : index
    %c0_87 = arith.constant 0 : index
    %c0_88 = arith.constant 0 : index
    %106 = vector.load %arg9[%c2_86, %c0_87, %c0_88] : memref<18x18x4xf32, #tpu.memory_space<vmem>>, vector<16x16x4xf32>
    %107 = vector.shape_cast %106 : vector<16x16x4xf32> to vector<256x4xf32>
    %c6_89 = arith.constant 6 : index
    %c0_90 = arith.constant 0 : index
    %c0_91 = arith.constant 0 : index
    %108 = vector.load %arg5[%c6_89, %c0_90, %c0_91] : memref<9x4x4xf32, #tpu.memory_space<vmem>>, vector<1x4x4xf32>
    %109 = vector.shape_cast %108 : vector<1x4x4xf32> to vector<4x4xf32>
    %cst_92 = arith.constant dense<0.000000e+00> : vector<256x4xf32>
    %110 = tpu.matmul %107, %109, %cst_92 {dimension_numbers = #tpu.dot_dimension_numbers<[1], [0], [0], [1], [0, 0, 1, 1], [], []>} : vector<256x4xf32>, vector<4x4xf32>, vector<256x4xf32> -> vector<256x4xf32>
    %111 = arith.addf %105, %110 : vector<256x4xf32>
    %c2_93 = arith.constant 2 : index
    %c1_94 = arith.constant 1 : index
    %c0_95 = arith.constant 0 : index
    %112 = vector.load %arg9[%c2_93, %c1_94, %c0_95] : memref<18x18x4xf32, #tpu.memory_space<vmem>>, vector<16x16x4xf32>
    %113 = vector.shape_cast %112 : vector<16x16x4xf32> to vector<256x4xf32>
    %c7_96 = arith.constant 7 : index
    %c0_97 = arith.constant 0 : index
    %c0_98 = arith.constant 0 : index
    %114 = vector.load %arg5[%c7_96, %c0_97, %c0_98] : memref<9x4x4xf32, #tpu.memory_space<vmem>>, vector<1x4x4xf32>
    %115 = vector.shape_cast %114 : vector<1x4x4xf32> to vector<4x4xf32>
    %cst_99 = arith.constant dense<0.000000e+00> : vector<256x4xf32>
    %116 = tpu.matmul %113, %115, %cst_99 {dimension_numbers = #tpu.dot_dimension_numbers<[1], [0], [0], [1], [0, 0, 1, 1], [], []>} : vector<256x4xf32>, vector<4x4xf32>, vector<256x4xf32> -> vector<256x4xf32>
    %117 = arith.addf %111, %116 : vector<256x4xf32>
    %c2_100 = arith.constant 2 : index
    %c2_101 = arith.constant 2 : index
    %c0_102 = arith.constant 0 : index
    %118 = vector.load %arg9[%c2_100, %c2_101, %c0_102] : memref<18x18x4xf32, #tpu.memory_space<vmem>>, vector<16x16x4xf32>
    %119 = vector.shape_cast %118 : vector<16x16x4xf32> to vector<256x4xf32>
    %c8_103 = arith.constant 8 : index
    %c0_104 = arith.constant 0 : index
    %c0_105 = arith.constant 0 : index
    %120 = vector.load %arg5[%c8_103, %c0_104, %c0_105] : memref<9x4x4xf32, #tpu.memory_space<vmem>>, vector<1x4x4xf32>
    %121 = vector.shape_cast %120 : vector<1x4x4xf32> to vector<4x4xf32>
    %cst_106 = arith.constant dense<0.000000e+00> : vector<256x4xf32>
    %122 = tpu.matmul %119, %121, %cst_106 {dimension_numbers = #tpu.dot_dimension_numbers<[1], [0], [0], [1], [0, 0, 1, 1], [], []>} : vector<256x4xf32>, vector<4x4xf32>, vector<256x4xf32> -> vector<256x4xf32>
    %123 = arith.addf %117, %122 : vector<256x4xf32>
    %c0_107 = arith.constant 0 : index
    %c0_108 = arith.constant 0 : index
    %124 = vector.load %arg6[%c0_107, %c0_108] : memref<1x4xf32, #tpu.memory_space<vmem>>, vector<1x4xf32>
    %125 = vector.broadcast %124 : vector<1x4xf32> to vector<256x4xf32>
    %126 = arith.mulf %123, %125 : vector<256x4xf32>
    %c0_109 = arith.constant 0 : index
    %c0_110 = arith.constant 0 : index
    %127 = vector.load %arg7[%c0_109, %c0_110] : memref<1x4xf32, #tpu.memory_space<vmem>>, vector<1x4xf32>
    %128 = vector.broadcast %127 : vector<1x4xf32> to vector<256x4xf32>
    %129 = arith.addf %126, %128 : vector<256x4xf32>
    %130 = vector.extract_strided_slice %1 {offsets = [1, 1, 0], sizes = [16, 16, 4], strides = [1, 1, 1]} : vector<18x18x4xf32> to vector<16x16x4xf32>
    %131 = vector.shape_cast %130 : vector<16x16x4xf32> to vector<256x4xf32>
    %132 = arith.addf %129, %131 : vector<256x4xf32>
    %cst_111 = arith.constant 0.000000e+00 : f32
    %133 = vector.broadcast %cst_111 : f32 to vector<256x4xf32>
    %134 = arith.maximumf %132, %133 : vector<256x4xf32>
    %135 = vector.shape_cast %134 : vector<256x4xf32> to vector<16x16x4xf32>
    %c0_112 = arith.constant 0 : index
    %c0_113 = arith.constant 0 : index
    %c0_114 = arith.constant 0 : index
    %c0_115 = arith.constant 0 : index
    %136 = vector.load %arg8[%c0_112, %c0_113, %c0_114, %c0_115] : memref<1x16x16x4xf32, #tpu.memory_space<vmem>>, vector<1x16x16x4xf32>
    %137 = vector.shape_cast %136 : vector<1x16x16x4xf32> to vector<16x16x4xf32>
    %138 = vector.shape_cast %135 : vector<16x16x4xf32> to vector<1x16x16x4xf32>
    tpu.vector_store %arg8[%c0_112, %c0_113, %c0_114, %c0_115], %138 {strides = array<i32>} : memref<1x16x16x4xf32, #tpu.memory_space<vmem>>, vector<1x16x16x4xf32>,
    return
  }
  func.func @transform_0(%arg0: i32) -> (i32, i32, i32, i32) {
    %c0_i32 = arith.constant 0 : i32
    %c0_i32_0 = arith.constant 0 : i32
    %c0_i32_1 = arith.constant 0 : i32
    %c0_i32_2 = arith.constant 0 : i32
    return %arg0, %c0_i32, %c0_i32_0, %c0_i32_1 : i32, i32, i32, i32
  }
  func.func @transform_1(%arg0: i32) -> (i32, i32, i32) {
    %c0_i32 = arith.constant 0 : i32
    %c0_i32_0 = arith.constant 0 : i32
    %c0_i32_1 = arith.constant 0 : i32
    %c0_i32_2 = arith.constant 0 : i32
    return %c0_i32, %c0_i32_0, %c0_i32_1 : i32, i32, i32
  }
  func.func @transform_2(%arg0: i32) -> (i32, i32) {
    %c0_i32 = arith.constant 0 : i32
    %c0_i32_0 = arith.constant 0 : i32
    %c0_i32_1 = arith.constant 0 : i32
    return %c0_i32, %c0_i32_0 : i32, i32
  }
  func.func @transform_3(%arg0: i32) -> (i32, i32) {
    %c0_i32 = arith.constant 0 : i32
    %c0_i32_0 = arith.constant 0 : i32
    %c0_i32_1 = arith.constant 0 : i32
    return %c0_i32, %c0_i32_0 : i32, i32
  }
  func.func @transform_4(%arg0: i32) -> (i32, i32, i32) {
    %c0_i32 = arith.constant 0 : i32
    %c0_i32_0 = arith.constant 0 : i32
    %c0_i32_1 = arith.constant 0 : i32
    %c0_i32_2 = arith.constant 0 : i32
    return %c0_i32, %c0_i32_0, %c0_i32_1 : i32, i32, i32
  }
  func.func @transform_5(%arg0: i32) -> (i32, i32) {
    %c0_i32 = arith.constant 0 : i32
    %c0_i32_0 = arith.constant 0 : i32
    %c0_i32_1 = arith.constant 0 : i32
    return %c0_i32, %c0_i32_0 : i32, i32
  }
  func.func @transform_6(%arg0: i32) -> (i32, i32) {
    %c0_i32 = arith.constant 0 : i32
    %c0_i32_0 = arith.constant 0 : i32
    %c0_i32_1 = arith.constant 0 : i32
    return %c0_i32, %c0_i32_0 : i32, i32
  }
  func.func @transform_7(%arg0: i32) -> (i32, i32, i32, i32) {
    %c0_i32 = arith.constant 0 : i32
    %c0_i32_0 = arith.constant 0 : i32
    %c0_i32_1 = arith.constant 0 : i32
    %c0_i32_2 = arith.constant 0 : i32
    return %arg0, %c0_i32, %c0_i32_0, %c0_i32_1 : i32, i32, i32, i32
  }
}

</mosaic_0001>

<llo_original>
// kernel: tpu_custom_call.1
$region0: #{tpu_custom_call.1}
  #allocation0 [shape = 'u32[]', space=smem, size = 0x4, offset = 0x4, fixed_abs, tag = 'smem constant byte address 0x4 - core index']
  #allocation1 [shape = 'u32[144,128]{1,0:T(1,128)}', space=vmem, size = 0x12000, scoped, tag = 'internal scratch']
  #allocation2 [shape = 'f32[18,18,4]{2,1,0:T(8,128)}', space=vmem, size = 0x36000, scoped, tag = 'scratch operand']
  %s0 = inlined_call_operand.vmem [shape: f32[2,18,18,4], index: 0, kind: input, shape index: {}]
  %s1 = inlined_call_operand.vmem [shape: f32[9,4,4], index: 1, kind: input, shape index: {}]
  %s2 = inlined_call_operand.vmem [shape: f32[1,4], index: 2, kind: input, shape index: {}]
  %s3 = inlined_call_operand.vmem [shape: f32[1,4], index: 3, kind: input, shape index: {}]
  %s4 = inlined_call_operand.vmem [shape: f32[9,4,4], index: 4, kind: input, shape index: {}]
  %s5 = inlined_call_operand.vmem [shape: f32[1,4], index: 5, kind: input, shape index: {}]
  %s6 = inlined_call_operand.vmem [shape: f32[1,4], index: 6, kind: input, shape index: {}]
  %s7 = inlined_call_operand.vmem [shape: f32[2,16,16,4], index: 7, kind: output, shape index: {}]
  %s8 = sld [smem:[#allocation0]]
  $region61: #{tpu_custom_call.1} parent=0
    _
  %s10 = ssub.s32 1, %s8
  %s11 = scalar_select 0, %s10, %s8
  loop: start=0, step=1, limit=4
  $region2: #{tpu_custom_call.1} parent=0 // loop_pre_header
    _
  $region3: #{tpu_custom_call.1} parent=0 // loop_header
    %s13 = sphi 0, %s17
    %p14 = scmp.ge.s32.totalorder %s13, 4
    %s23 = sphi 0, %s25
    %s26 = sphi 0, %s23
    %s27 = sphi 0, %s26
    %s43 = sphi 0, %s27
    %s47 = sphi 0, %s47
    %s49 = sphi 0, %s47
    %s50 = sphi 0, %s49
    %s64 = sphi 0, %s50
    %s68 = sphi 0, %s68
    %s70 = sphi 0, %s68
    %s71 = sphi 0, %s70
    %s85 = sphi 0, %s71
    %s89 = sphi 0, %s89
    %s91 = sphi 0, %s89
    %s92 = sphi 0, %s91
    %s106 = sphi 0, %s92
    %s110 = sphi 0, %s110
    %s112 = sphi 0, %s110
    %s113 = sphi 0, %s112
    %s127 = sphi 0, %s113
    %s131 = sphi 0, %s131
    %s133 = sphi 0, %s131
    %s134 = sphi 0, %s133
    %s148 = sphi 0, %s134
    %s152 = sphi 0, %s152
    %s154 = sphi 0, %s152
    %s155 = sphi 0, %s154
    %s169 = sphi 0, %s155
    %s175 = sphi 0, %s177
    %s178 = sphi 0, %s175
    %s179 = sphi 0, %s178
    %s195 = sphi 0, %s179
  $region4: #{tpu_custom_call.1} parent=0 // loop_header_branch
    %16 = sbr.rel (%p14) target = $region8
  $region5: #{tpu_custom_call.1} parent=0 // loop_body
    %s18 = ssub.s32 %s13, 1
    %s19 = ssub.s32 %s13, 2
    %s20 = sadd.s32 %s13, 1
    %s21 = ssub.s32 %s13, %s20
    %p22 = scmp.eq.s32.totalorder %s21, 0
    %s24 = sadd.s32 %s23, 1
    %s25 = scalar_select %p22, %s23, %s24
    %p28 = pneg %p22
    %p29 = scmp.eq.s32.totalorder %s13, 1
    %p30 = por %p28, %p29
    %p31 = scmp.ne.s32.totalorder %s23, %s26
    %p32 = scmp.eq.s32.totalorder %s13, 0
    %p33 = por %p31, %p32
    %p34 = scmp.ne.s32.totalorder %s23, %s26
    %p35 = scmp.eq.s32.totalorder %s18, 1
    %p36 = por %p34, %p35
    %p37 = scmp.ne.s32.totalorder %s26, %s27
    %p38 = scmp.eq.s32.totalorder %s18, 0
    %p39 = por %p37, %p38
    %p40 = scmp.ne.s32.totalorder %s26, %s27
    %p41 = scmp.eq.s32.totalorder %s19, 1
    %p42 = por %p40, %p41
    %p44 = scmp.ne.s32.totalorder %s27, %s43
    %p45 = scmp.eq.s32.totalorder %s19, 0
    %p46 = por %p44, %p45
    %s48 = sadd.s32 %s47, 1
    %p51 = scmp.eq.s32.totalorder %s13, 1
    %p52 = scmp.ne.s32.totalorder %s47, %s49
    %p53 = scmp.eq.s32.totalorder %s13, 0
    %p54 = por %p52, %p53
    %p55 = scmp.ne.s32.totalorder %s47, %s49
    %p56 = scmp.eq.s32.totalorder %s18, 1
    %p57 = por %p55, %p56
    %p58 = scmp.ne.s32.totalorder %s49, %s50
    %p59 = scmp.eq.s32.totalorder %s18, 0
    %p60 = por %p58, %p59
    %p61 = scmp.ne.s32.totalorder %s49, %s50
    %p62 = scmp.eq.s32.totalorder %s19, 1
    %p63 = por %p61, %p62
    %p65 = scmp.ne.s32.totalorder %s50, %s64
    %p66 = scmp.eq.s32.totalorder %s19, 0
    %p67 = por %p65, %p66
    %s69 = sadd.s32 %s68, 1
    %p72 = scmp.eq.s32.totalorder %s13, 1
    %p73 = scmp.ne.s32.totalorder %s68, %s70
    %p74 = scmp.eq.s32.totalorder %s13, 0
    %p75 = por %p73, %p74
    %p76 = scmp.ne.s32.totalorder %s68, %s70
    %p77 = scmp.eq.s32.totalorder %s18, 1
    %p78 = por %p76, %p77
    %p79 = scmp.ne.s32.totalorder %s70, %s71
    %p80 = scmp.eq.s32.totalorder %s18, 0
    %p81 = por %p79, %p80
    %p82 = scmp.ne.s32.totalorder %s70, %s71
    %p83 = scmp.eq.s32.totalorder %s19, 1
    %p84 = por %p82, %p83
    %p86 = scmp.ne.s32.totalorder %s71, %s85
    %p87 = scmp.eq.s32.totalorder %s19, 0
    %p88 = por %p86, %p87
    %s90 = sadd.s32 %s89, 1
    %p93 = scmp.eq.s32.totalorder %s13, 1
    %p94 = scmp.ne.s32.totalorder %s89, %s91
    %p95 = scmp.eq.s32.totalorder %s13, 0
    %p96 = por %p94, %p95
    %p97 = scmp.ne.s32.totalorder %s89, %s91
    %p98 = scmp.eq.s32.totalorder %s18, 1
    %p99 = por %p97, %p98
    %p100 = scmp.ne.s32.totalorder %s91, %s92
    %p101 = scmp.eq.s32.totalorder %s18, 0
    %p102 = por %p100, %p101
    %p103 = scmp.ne.s32.totalorder %s91, %s92
    %p104 = scmp.eq.s32.totalorder %s19, 1
    %p105 = por %p103, %p104
    %p107 = scmp.ne.s32.totalorder %s92, %s106
    %p108 = scmp.eq.s32.totalorder %s19, 0
    %p109 = por %p107, %p108
    %s111 = sadd.s32 %s110, 1
    %p114 = scmp.eq.s32.totalorder %s13, 1
    %p115 = scmp.ne.s32.totalorder %s110, %s112
    %p116 = scmp.eq.s32.totalorder %s13, 0
    %p117 = por %p115, %p116
    %p118 = scmp.ne.s32.totalorder %s110, %s112
    %p119 = scmp.eq.s32.totalorder %s18, 1
    %p120 = por %p118, %p119
    %p121 = scmp.ne.s32.totalorder %s112, %s113
    %p122 = scmp.eq.s32.totalorder %s18, 0
    %p123 = por %p121, %p122
    %p124 = scmp.ne.s32.totalorder %s112, %s113
    %p125 = scmp.eq.s32.totalorder %s19, 1
    %p126 = por %p124, %p125
    %p128 = scmp.ne.s32.totalorder %s113, %s127
    %p129 = scmp.eq.s32.totalorder %s19, 0
    %p130 = por %p128, %p129
    %s132 = sadd.s32 %s131, 1
    %p135 = scmp.eq.s32.totalorder %s13, 1
    %p136 = scmp.ne.s32.totalorder %s131, %s133
    %p137 = scmp.eq.s32.totalorder %s13, 0
    %p138 = por %p136, %p137
    %p139 = scmp.ne.s32.totalorder %s131, %s133
    %p140 = scmp.eq.s32.totalorder %s18, 1
    %p141 = por %p139, %p140
    %p142 = scmp.ne.s32.totalorder %s133, %s134
    %p143 = scmp.eq.s32.totalorder %s18, 0
    %p144 = por %p142, %p143
    %p145 = scmp.ne.s32.totalorder %s133, %s134
    %p146 = scmp.eq.s32.totalorder %s19, 1
    %p147 = por %p145, %p146
    %p149 = scmp.ne.s32.totalorder %s134, %s148
    %p150 = scmp.eq.s32.totalorder %s19, 0
    %p151 = por %p149, %p150
    %s153 = sadd.s32 %s152, 1
    %p156 = scmp.eq.s32.totalorder %s13, 1
    %p157 = scmp.ne.s32.totalorder %s152, %s154
    %p158 = scmp.eq.s32.totalorder %s13, 0
    %p159 = por %p157, %p158
    %p160 = scmp.ne.s32.totalorder %s152, %s154
    %p161 = scmp.eq.s32.totalorder %s18, 1
    %p162 = por %p160, %p161
    %p163 = scmp.ne.s32.totalorder %s154, %s155
    %p164 = scmp.eq.s32.totalorder %s18, 0
    %p165 = por %p163, %p164
    %p166 = scmp.ne.s32.totalorder %s154, %s155
    %p167 = scmp.eq.s32.totalorder %s19, 1
    %p168 = por %p166, %p167
    %p170 = scmp.ne.s32.totalorder %s155, %s169
    %p171 = scmp.eq.s32.totalorder %s19, 0
    %p172 = por %p170, %p171
    %s173 = ssub.s32 %s13, %s20
    %p174 = scmp.eq.s32.totalorder %s173, 0
    %s176 = sadd.s32 %s175, 1
    %s177 = scalar_select %p174, %s175, %s176
    %p180 = pneg %p174
    %p181 = scmp.eq.s32.totalorder %s13, 1
    %p182 = por %p180, %p181
    %p183 = scmp.ne.s32.totalorder %s175, %s178
    %p184 = scmp.eq.s32.totalorder %s13, 0
    %p185 = por %p183, %p184
    %p186 = scmp.ne.s32.totalorder %s175, %s178
    %p187 = scmp.eq.s32.totalorder %s18, 1
    %p188 = por %p186, %p187
    %p189 = scmp.ne.s32.totalorder %s178, %s179
    %p190 = scmp.eq.s32.totalorder %s18, 0
    %p191 = por %p189, %p190
    %p192 = scmp.ne.s32.totalorder %s178, %s179
    %p193 = scmp.eq.s32.totalorder %s19, 1
    %p194 = por %p192, %p193
    %p196 = scmp.ne.s32.totalorder %s179, %s195
    %p197 = scmp.eq.s32.totalorder %s19, 0
    %p198 = por %p196, %p197
    %p199 = scmp.le.s32.totalorder 1, %s13
    %p200 = scmp.lt.s32.totalorder %s13, 3
    %p201 = pnand %p199, %p200
    %p202 = pneg %p201
    // Predicated region
    $region9: #{tpu_custom_call.1} parent=5 // pred_check
      _
    $region10: #{tpu_custom_call.1} parent=5 // pred_check_branch
      %204 = sbr.rel (%p201) target = $region12
    $region11: #{tpu_custom_call.1} parent=5 // pred_region
      %s205 = ssub.s32 %s13, 1
      // Predicated region
      $region13: #{tpu_custom_call.1} parent=11 // pred_check
        %p206 = pneg %p60
      $region14: #{tpu_custom_call.1} parent=11 // pred_check_branch
        %208 = sbr.rel (%p206) target = $region16
      $region15: #{tpu_custom_call.1} parent=11 // pred_region
        _
      $region16: #{tpu_custom_call.1} parent=11 // pred_fallthru
        _
      // Predicated region
      $region17: #{tpu_custom_call.1} parent=11 // pred_check
        %p209 = pneg %p81
      $region18: #{tpu_custom_call.1} parent=11 // pred_check_branch
        %211 = sbr.rel (%p209) target = $region20
      $region19: #{tpu_custom_call.1} parent=11 // pred_region
        _
      $region20: #{tpu_custom_call.1} parent=11 // pred_fallthru
        _
      // Predicated region
      $region21: #{tpu_custom_call.1} parent=11 // pred_check
        %p212 = pneg %p102
      $region22: #{tpu_custom_call.1} parent=11 // pred_check_branch
        %214 = sbr.rel (%p212) target = $region24
      $region23: #{tpu_custom_call.1} parent=11 // pred_region
        _
      $region24: #{tpu_custom_call.1} parent=11 // pred_fallthru
        _
      // Predicated region
      $region25: #{tpu_custom_call.1} parent=11 // pred_check
        %p215 = pneg %p123
      $region26: #{tpu_custom_call.1} parent=11 // pred_check_branch
        %217 = sbr.rel (%p215) target = $region28
      $region27: #{tpu_custom_call.1} parent=11 // pred_region
        _
      $region28: #{tpu_custom_call.1} parent=11 // pred_fallthru
        _
      // Predicated region
      $region29: #{tpu_custom_call.1} parent=11 // pred_check
        %p218 = pneg %p144
      $region30: #{tpu_custom_call.1} parent=11 // pred_check_branch
        %220 = sbr.rel (%p218) target = $region32
      $region31: #{tpu_custom_call.1} parent=11 // pred_region
        _
      $region32: #{tpu_custom_call.1} parent=11 // pred_fallthru
        _
      // Predicated region
      $region33: #{tpu_custom_call.1} parent=11 // pred_check
        %p221 = pneg %p165
      $region34: #{tpu_custom_call.1} parent=11 // pred_check_branch
        %223 = sbr.rel (%p221) target = $region36
      $region35: #{tpu_custom_call.1} parent=11 // pred_region
        _
      $region36: #{tpu_custom_call.1} parent=11 // pred_fallthru
        _
    $region12: #{tpu_custom_call.1} parent=5 // pred_fallthru
      _
    %p224 = scmp.lt.s32.totalorder %s13, 2
    // Predicated region
    $region37: #{tpu_custom_call.1} parent=5 // pred_check
      %p225 = pneg %p224
    $region38: #{tpu_custom_call.1} parent=5 // pred_check_branch
      %227 = sbr.rel (%p225) target = $region40
    $region39: #{tpu_custom_call.1} parent=5 // pred_region
      // Predicated region
      $region41: #{tpu_custom_call.1} parent=39 // pred_check
        %p228 = pneg %p33
      $region42: #{tpu_custom_call.1} parent=39 // pred_check_branch
        %230 = sbr.rel (%p228) target = $region44
      $region43: #{tpu_custom_call.1} parent=39 // pred_region
        %p231 = scmp.lt.s32.totalorder %s13, 1
        %s232 = scalar_select %p231, %s13, 1
        %s233 = smul.addr %s232, 54
        %s234 = smul.addr %s233, 8
        %s235 = scalar_lea.vmem %s0, %s234
      $region44: #{tpu_custom_call.1} parent=39 // pred_fallthru
        _
    $region40: #{tpu_custom_call.1} parent=5 // pred_fallthru
      _
    %p236 = scmp.le.s32.totalorder 1, %s13
    %p237 = scmp.lt.s32.totalorder %s13, 3
    %p238 = pnand %p236, %p237
    %p239 = pneg %p238
    // Predicated region
    $region45: #{tpu_custom_call.1} parent=5 // pred_check
      _
    $region46: #{tpu_custom_call.1} parent=5 // pred_check_branch
      %241 = sbr.rel (%p238) target = $region48
    $region47: #{tpu_custom_call.1} parent=5 // pred_region
      %s242 = ssub.s32 %s13, 1
      %p243 = scmp.lt.s32.totalorder %s18, 1
      %s244 = scalar_select %p243, %s18, 1
      %s245 = smul.addr %s244, 54
      %s246 = smul.addr %s245, 8
      %s247 = scalar_lea.vmem %s0, %s246
      %p248 = pneg %p39
      %p249 = pneg %p36
      %p250 = pneg %p60
      %p251 = pneg %p57
      %p252 = pneg %p81
      %p253 = pneg %p78
      %p254 = pneg %p102
      %p255 = pneg %p99
      %p256 = pneg %p123
      %p257 = pneg %p120
      %p258 = pneg %p144
      %p259 = pneg %p141
      %p260 = pneg %p165
      %p261 = pneg %p162
      %p262 = pneg %p191
      %p263 = pneg %p188
      %p264 = scmp.lt.s32.totalorder %s18, 1
      %s265 = scalar_select %p264, %s18, 1
      %s266 = smul.addr %s265, 32
      %s267 = smul.addr %s266, 8
      %s268 = scalar_lea.vmem %s7, %s267
      %p269 = scmp.lt.s32.totalorder %s18, 1
      %s270 = scalar_select %p269, %s18, 1
      %s271 = smul.addr %s270, 54
      %s272 = smul.addr %s271, 8
      %s273 = scalar_lea.vmem %s0, %s272
      %p274 = scmp.lt.s32.totalorder %s18, 1
      %s275 = scalar_select %p274, %s18, 1
      %s276 = smul.addr %s275, 32
      %s277 = smul.addr %s276, 8
      %s278 = scalar_lea.vmem %s7, %s277
      %v279 = vld [vmem:[%s273] sm:$0xff]
      %v280 = vld [vmem:[%s273 + $0x8] sm:$0xff]
      %v281 = vld [vmem:[%s273 + $0x10] sm:$0x3]
      %v282 = vld [vmem:[%s273 + $0x18] sm:$0xff]
      %v283 = vld [vmem:[%s273 + $0x20] sm:$0xff]
      %v284 = vld [vmem:[%s273 + $0x28] sm:$0x3]
      %v285 = vld [vmem:[%s273 + $0x30] sm:$0xff]
      %v286 = vld [vmem:[%s273 + $0x38] sm:$0xff]
      %v287 = vld [vmem:[%s273 + $0x40] sm:$0x3]
      %v288 = vld [vmem:[%s273 + $0x48] sm:$0xff]
      %v289 = vld [vmem:[%s273 + $0x50] sm:$0xff]
      %v290 = vld [vmem:[%s273 + $0x58] sm:$0x3]
      %v291 = vld [vmem:[%s273 + $0x60] sm:$0xff]
      %v292 = vld [vmem:[%s273 + $0x68] sm:$0xff]
      %v293 = vld [vmem:[%s273 + $0x70] sm:$0x3]
      %v294 = vld [vmem:[%s273 + $0x78] sm:$0xff]
      %v295 = vld [vmem:[%s273 + $0x80] sm:$0xff]
      %v296 = vld [vmem:[%s273 + $0x88] sm:$0x3]
      %v297 = vld [vmem:[%s273 + $0x90] sm:$0xff]
      %v298 = vld [vmem:[%s273 + $0x98] sm:$0xff]
      %v299 = vld [vmem:[%s273 + $0xa0] sm:$0x3]
      %v300 = vld [vmem:[%s273 + $0xa8] sm:$0xff]
      %v301 = vld [vmem:[%s273 + $0xb0] sm:$0xff]
      %v302 = vld [vmem:[%s273 + $0xb8] sm:$0x3]
      %v303 = vld [vmem:[%s273 + $0xc0] sm:$0xff]
      %v304 = vld [vmem:[%s273 + $0xc8] sm:$0xff]
      %v305 = vld [vmem:[%s273 + $0xd0] sm:$0x3]
      %v306 = vld [vmem:[%s273 + $0xd8] sm:$0xff]
      %v307 = vld [vmem:[%s273 + $0xe0] sm:$0xff]
      %v308 = vld [vmem:[%s273 + $0xe8] sm:$0x3]
      %v309 = vld [vmem:[%s273 + $0xf0] sm:$0xff]
      %v310 = vld [vmem:[%s273 + $0xf8] sm:$0xff]
      %v311 = vld [vmem:[%s273 + $0x100] sm:$0x3]
      %v312 = vld [vmem:[%s273 + $0x108] sm:$0xff]
      %v313 = vld [vmem:[%s273 + $0x110] sm:$0xff]
      %v314 = vld [vmem:[%s273 + $0x118] sm:$0x3]
      %v315 = vld [vmem:[%s273 + $0x120] sm:$0xff]
      %v316 = vld [vmem:[%s273 + $0x128] sm:$0xff]
      %v317 = vld [vmem:[%s273 + $0x130] sm:$0x3]
      %v318 = vld [vmem:[%s273 + $0x138] sm:$0xff]
      %v319 = vld [vmem:[%s273 + $0x140] sm:$0xff]
      %v320 = vld [vmem:[%s273 + $0x148] sm:$0x3]
      %v321 = vld [vmem:[%s273 + $0x150] sm:$0xff]
      %v322 = vld [vmem:[%s273 + $0x158] sm:$0xff]
      %v323 = vld [vmem:[%s273 + $0x160] sm:$0x3]
      %v324 = vld [vmem:[%s273 + $0x168] sm:$0xff]
      %v325 = vld [vmem:[%s273 + $0x170] sm:$0xff]
      %v326 = vld [vmem:[%s273 + $0x178] sm:$0x3]
      %v327 = vld [vmem:[%s273 + $0x180] sm:$0xff]
      %v328 = vld [vmem:[%s273 + $0x188] sm:$0xff]
      %v329 = vld [vmem:[%s273 + $0x190] sm:$0x3]
      %v330 = vld [vmem:[%s273 + $0x198] sm:$0xff]
      %v331 = vld [vmem:[%s273 + $0x1a0] sm:$0xff]
      %v332 = vld [vmem:[%s273 + $0x1a8] sm:$0x3]
      %v333 = vld [vmem:[%s1] sm:$0xf]
      %vm382 = vcmask 1046528
      %v383 = vrot.slane %v279, 1
      %v384 = vrot.slane %v280, 1
      %v385 = vsel %vm382, %v383, %v384
      %v386 = vrot.slane %v281, 1
      %v387 = vsel %vm382, %v384, %v386
      %v388 = vrot.slane %v282, 1
      %v389 = vrot.slane %v283, 1
      %v390 = vsel %vm382, %v388, %v389
      %v391 = vrot.slane %v284, 1
      %v392 = vsel %vm382, %v389, %v391
      %v393 = vrot.slane %v285, 1
      %v394 = vrot.slane %v286, 1
      %v395 = vsel %vm382, %v393, %v394
      %v396 = vrot.slane %v287, 1
      %v397 = vsel %vm382, %v394, %v396
      %v398 = vrot.slane %v288, 1
      %v399 = vrot.slane %v289, 1
      %v400 = vsel %vm382, %v398, %v399
      %v401 = vrot.slane %v290, 1
      %v402 = vsel %vm382, %v399, %v401
      %v403 = vrot.slane %v291, 1
      %v404 = vrot.slane %v292, 1
      %v405 = vsel %vm382, %v403, %v404
      %v406 = vrot.slane %v293, 1
      %v407 = vsel %vm382, %v404, %v406
      %v408 = vrot.slane %v294, 1
      %v409 = vrot.slane %v295, 1
      %v410 = vsel %vm382, %v408, %v409
      %v411 = vrot.slane %v296, 1
      %v412 = vsel %vm382, %v409, %v411
      %v413 = vrot.slane %v297, 1
      %v414 = vrot.slane %v298, 1
      %v415 = vsel %vm382, %v413, %v414
      %v416 = vrot.slane %v299, 1
      %v417 = vsel %vm382, %v414, %v416
      %v418 = vrot.slane %v300, 1
      %v419 = vrot.slane %v301, 1
      %v420 = vsel %vm382, %v418, %v419
      %v421 = vrot.slane %v302, 1
      %v422 = vsel %vm382, %v419, %v421
      %v423 = vrot.slane %v303, 1
      %v424 = vrot.slane %v304, 1
      %v425 = vsel %vm382, %v423, %v424
      %v426 = vrot.slane %v305, 1
      %v427 = vsel %vm382, %v424, %v426
      %v428 = vrot.slane %v306, 1
      %v429 = vrot.slane %v307, 1
      %v430 = vsel %vm382, %v428, %v429
      %v431 = vrot.slane %v308, 1
      %v432 = vsel %vm382, %v429, %v431
      %v433 = vrot.slane %v309, 1
      %v434 = vrot.slane %v310, 1
      %v435 = vsel %vm382, %v433, %v434
      %v436 = vrot.slane %v311, 1
      %v437 = vsel %vm382, %v434, %v436
      %v438 = vrot.slane %v312, 1
      %v439 = vrot.slane %v313, 1
      %v440 = vsel %vm382, %v438, %v439
      %v441 = vrot.slane %v314, 1
      %v442 = vsel %vm382, %v439, %v441
      %v443 = vrot.slane %v315, 1
      %v444 = vrot.slane %v316, 1
      %v445 = vsel %vm382, %v443, %v444
      %v446 = vrot.slane %v317, 1
      %v447 = vsel %vm382, %v444, %v446
      %v448 = vrot.slane %v318, 1
      %v449 = vrot.slane %v319, 1
      %v450 = vsel %vm382, %v448, %v449
      %v451 = vrot.slane %v320, 1
      %v452 = vsel %vm382, %v449, %v451
      %v453 = vrot.slane %v321, 1
      %v454 = vrot.slane %v322, 1
      %v455 = vsel %vm382, %v453, %v454
      %v456 = vrot.slane %v323, 1
      %v457 = vsel %vm382, %v454, %v456
      %v458 = vrot.slane %v324, 1
      %v459 = vrot.slane %v325, 1
      %v460 = vsel %vm382, %v458, %v459
      %v461 = vrot.slane %v326, 1
      %v462 = vsel %vm382, %v459, %v461
      %s463 = scalar_lea.vmem %s1, 4
      %v464 = vld [vmem:[%s463] sm:$0xf]
      %vm465 = vcmask 31744
      %v466 = vsel %vm465, %v385, 0
      %v468 = vsel %vm465, %v387, 0
      %v470 = vsel %vm465, %v390, 0
      %v472 = vsel %vm465, %v392, 0
      %v474 = vsel %vm465, %v395, 0
      %v476 = vsel %vm465, %v397, 0
      %v478 = vsel %vm465, %v400, 0
      %v480 = vsel %vm465, %v402, 0
      %v482 = vsel %vm465, %v405, 0
      %v484 = vsel %vm465, %v407, 0
      %v486 = vsel %vm465, %v410, 0
      %v488 = vsel %vm465, %v412, 0
      %v490 = vsel %vm465, %v415, 0
      %v492 = vsel %vm465, %v417, 0
      %v494 = vsel %vm465, %v420, 0
      %v496 = vsel %vm465, %v422, 0
      %v498 = vsel %vm465, %v425, 0
      %v500 = vsel %vm465, %v427, 0
      %v502 = vsel %vm465, %v430, 0
      %v504 = vsel %vm465, %v432, 0
      %v506 = vsel %vm465, %v435, 0
      %v508 = vsel %vm465, %v437, 0
      %v510 = vsel %vm465, %v440, 0
      %v512 = vsel %vm465, %v442, 0
      %v514 = vsel %vm465, %v445, 0
      %v516 = vsel %vm465, %v447, 0
      %v518 = vsel %vm465, %v450, 0
      %v520 = vsel %vm465, %v452, 0
      %v522 = vsel %vm465, %v455, 0
      %v524 = vsel %vm465, %v457, 0
      %v526 = vsel %vm465, %v460, 0
      %v528 = vsel %vm465, %v462, 0
      %vm530 = vcmask 1043456
      %v532 = vsel %vm530, %v464, 0
      %534 = vmatprep.subr.mxu0 0.0
      %535 = vmatpush1.msra.mxu0 %v532
      %536 = vmatprep.subr.mxu0 0.0
      %537 = vmatpush1.msra.mxu0 0.0
      %538 = vmatprep.subr.mxu0 0.0
      %539 = vmatpush1.msra.mxu0 0.0
      %540 = vmatprep.subr.mxu0 0.0
      %541 = vmatpush1.msra.mxu0 0.0
      %542 = vmatprep.subr.mxu0 0.0
      %543 = vmatpush1.msra.mxu0 0.0
      %544 = vmatprep.subr.mxu0 0.0
      %545 = vmatpush1.msra.mxu0 0.0
      %546 = vmatprep.subr.mxu0 0.0
      %547 = vmatpush1.msra.mxu0 0.0
      %548 = vmatprep.subr.mxu0 0.0
      %549 = vmatpush1.msra.mxu0 0.0
      %550 = vmatprep.subr.mxu0 0.0
      %551 = vmatpush1.msra.mxu0 0.0
      %552 = vmatprep.subr.mxu0 0.0
      %553 = vmatpush1.msra.mxu0 0.0
      %554 = vmatprep.subr.mxu0 0.0
      %555 = vmatpush1.msra.mxu0 0.0
      %556 = vmatprep.subr.mxu0 0.0
      %557 = vmatpush1.msra.mxu0 0.0
      %558 = vmatprep.subr.mxu0 0.0
      %559 = vmatpush1.msra.mxu0 0.0
      %560 = vmatprep.subr.mxu0 0.0
      %561 = vmatpush1.msra.mxu0 0.0
      %562 = vmatprep.subr.mxu0 0.0
      %563 = vmatpush1.msra.mxu0 0.0
      %564 = vmatprep.subr.mxu0 0.0
      %565 = vmatpush1.msra.mxu0 0.0
      %566 = vmatprep.subr.mxu0 0.0
      %567 = vmatpush1.msra.mxu0 0.0
      %568 = vmatprep.subr.mxu0 0.0
      %569 = vmatpush1.msra.mxu0 0.0
      %570 = vmatprep.subr.mxu0 0.0
      %571 = vmatpush1.msra.mxu0 0.0
      %572 = vmatprep.subr.mxu0 0.0
      %573 = vmatpush1.msra.mxu0 0.0
      %574 = vmatprep.subr.mxu0 0.0
      %575 = vmatpush1.msra.mxu0 0.0
      %576 = vmatprep.subr.mxu0 0.0
      %577 = vmatpush1.msra.mxu0 0.0
      %578 = vmatprep.subr.mxu0 0.0
      %579 = vmatpush1.msra.mxu0 0.0
      %580 = vmatprep.subr.mxu0 0.0
      %581 = vmatpush1.msra.mxu0 0.0
      %582 = vmatprep.subr.mxu0 0.0
      %583 = vmatpush1.msra.mxu0 0.0
      %584 = vmatprep.subr.mxu0 0.0
      %585 = vmatpush1.msra.mxu0 0.0
      %586 = vmatprep.subr.mxu0 0.0
      %587 = vmatpush1.msra.mxu0 0.0
      %588 = vmatprep.subr.mxu0 0.0
      %589 = vmatpush1.msra.mxu0 0.0
      %590 = vmatprep.subr.mxu0 0.0
      %591 = vmatpush1.msra.mxu0 0.0
      %592 = vmatprep.subr.mxu0 0.0
      %593 = vmatpush1.msra.mxu0 0.0
      %594 = vmatprep.subr.mxu0 0.0
      %595 = vmatpush1.msra.mxu0 0.0
      %596 = vmatprep.subr.mxu0 0.0
      %597 = vmatpush1.msra.mxu0 0.0
      %598 = vmatprep.mubr.f32.mxu0 0.0
      %599 = vmatmul.mubr.f32.gmra.mrb[0].mxu0 %v466
      %v600 = vpop.f32.mrb[0].mxu0
      %v601 = vadd.f32 0.0, %v600
      %v602 = vpop.f32.mrb[0].mxu0
      %603 = vmatprep.mubr.f32.mxu0 0.0
      %604 = vmatmul.mubr.f32.gmra.mrb[0].mxu0 %v468
      %v605 = vpop.f32.mrb[0].mxu0
      %v606 = vadd.f32 0.0, %v605
      %v607 = vpop.f32.mrb[0].mxu0
      %608 = vmatprep.mubr.f32.mxu0 0.0
      %609 = vmatmul.mubr.f32.gmra.mrb[0].mxu0 %v470
      %v610 = vpop.f32.mrb[0].mxu0
      %v611 = vadd.f32 0.0, %v610
      %v612 = vpop.f32.mrb[0].mxu0
      %613 = vmatprep.mubr.f32.mxu0 0.0
      %614 = vmatmul.mubr.f32.gmra.mrb[0].mxu0 %v472
      %v615 = vpop.f32.mrb[0].mxu0
      %v616 = vadd.f32 0.0, %v615
      %v617 = vpop.f32.mrb[0].mxu0
      %618 = vmatprep.mubr.f32.mxu0 0.0
      %619 = vmatmul.mubr.f32.gmra.mrb[0].mxu0 %v474
      %v620 = vpop.f32.mrb[0].mxu0
      %v621 = vadd.f32 0.0, %v620
      %v622 = vpop.f32.mrb[0].mxu0
      %623 = vmatprep.mubr.f32.mxu0 0.0
      %624 = vmatmul.mubr.f32.gmra.mrb[0].mxu0 %v476
      %v625 = vpop.f32.mrb[0].mxu0
      %v626 = vadd.f32 0.0, %v625
      %v627 = vpop.f32.mrb[0].mxu0
      %628 = vmatprep.mubr.f32.mxu0 0.0
      %629 = vmatmul.mubr.f32.gmra.mrb[0].mxu0 %v478
      %v630 = vpop.f32.mrb[0].mxu0
      %v631 = vadd.f32 0.0, %v630
      %v632 = vpop.f32.mrb[0].mxu0
      %633 = vmatprep.mubr.f32.mxu0 0.0
      %634 = vmatmul.mubr.f32.gmra.mrb[0].mxu0 %v480
      %v635 = vpop.f32.mrb[0].mxu0
      %v636 = vadd.f32 0.0, %v635
      %v637 = vpop.f32.mrb[0].mxu0
      %638 = vmatprep.mubr.f32.mxu0 0.0
      %639 = vmatmul.mubr.f32.gmra.mrb[0].mxu0 %v482
      %v640 = vpop.f32.mrb[0].mxu0
      %v641 = vadd.f32 0.0, %v640
      %v642 = vpop.f32.mrb[0].mxu0
      %643 = vmatprep.mubr.f32.mxu0 0.0
      %644 = vmatmul.mubr.f32.gmra.mrb[0].mxu0 %v484
      %v645 = vpop.f32.mrb[0].mxu0
      %v646 = vadd.f32 0.0, %v645
      %v647 = vpop.f32.mrb[0].mxu0
      %648 = vmatprep.mubr.f32.mxu0 0.0
      %649 = vmatmul.mubr.f32.gmra.mrb[0].mxu0 %v486
      %v650 = vpop.f32.mrb[0].mxu0
      %v651 = vadd.f32 0.0, %v650
      %v652 = vpop.f32.mrb[0].mxu0
      %653 = vmatprep.mubr.f32.mxu0 0.0
      %654 = vmatmul.mubr.f32.gmra.mrb[0].mxu0 %v488
      %v655 = vpop.f32.mrb[0].mxu0
      %v656 = vadd.f32 0.0, %v655
      %v657 = vpop.f32.mrb[0].mxu0
      %658 = vmatprep.mubr.f32.mxu0 0.0
      %659 = vmatmul.mubr.f32.gmra.mrb[0].mxu0 %v490
      %v660 = vpop.f32.mrb[0].mxu0
      %v661 = vadd.f32 0.0, %v660
      %v662 = vpop.f32.mrb[0].mxu0
      %663 = vmatprep.mubr.f32.mxu0 0.0
      %664 = vmatmul.mubr.f32.gmra.mrb[0].mxu0 %v492
      %v665 = vpop.f32.mrb[0].mxu0
      %v666 = vadd.f32 0.0, %v665
      %v667 = vpop.f32.mrb[0].mxu0
      %668 = vmatprep.mubr.f32.mxu0 0.0
      %669 = vmatmul.mubr.f32.gmra.mrb[0].mxu0 %v494
      %v670 = vpop.f32.mrb[0].mxu0
      %v671 = vadd.f32 0.0, %v670
      %v672 = vpop.f32.mrb[0].mxu0
      %673 = vmatprep.mubr.f32.mxu0 0.0
      %674 = vmatmul.mubr.f32.gmra.mrb[0].mxu0 %v496
      %v675 = vpop.f32.mrb[0].mxu0
      %v676 = vadd.f32 0.0, %v675
      %v677 = vpop.f32.mrb[0].mxu0
      %678 = vmatprep.mubr.f32.mxu0 0.0
      %679 = vmatmul.mubr.f32.gmra.mrb[0].mxu0 %v498
      %v680 = vpop.f32.mrb[0].mxu0
      %v681 = vadd.f32 0.0, %v680
      %v682 = vpop.f32.mrb[0].mxu0
      %683 = vmatprep.mubr.f32.mxu0 0.0
      %684 = vmatmul.mubr.f32.gmra.mrb[0].mxu0 %v500
      %v685 = vpop.f32.mrb[0].mxu0
      %v686 = vadd.f32 0.0, %v685
      %v687 = vpop.f32.mrb[0].mxu0
      %688 = vmatprep.mubr.f32.mxu0 0.0
      %689 = vmatmul.mubr.f32.gmra.mrb[0].mxu0 %v502
      %v690 = vpop.f32.mrb[0].mxu0
      %v691 = vadd.f32 0.0, %v690
      %v692 = vpop.f32.mrb[0].mxu0
      %693 = vmatprep.mubr.f32.mxu0 0.0
      %694 = vmatmul.mubr.f32.gmra.mrb[0].mxu0 %v504
      %v695 = vpop.f32.mrb[0].mxu0
      %v696 = vadd.f32 0.0, %v695
      %v697 = vpop.f32.mrb[0].mxu0
      %698 = vmatprep.mubr.f32.mxu0 0.0
      %699 = vmatmul.mubr.f32.gmra.mrb[0].mxu0 %v506
      %v700 = vpop.f32.mrb[0].mxu0
      %v701 = vadd.f32 0.0, %v700
      %v702 = vpop.f32.mrb[0].mxu0
      %703 = vmatprep.mubr.f32.mxu0 0.0
      %704 = vmatmul.mubr.f32.gmra.mrb[0].mxu0 %v508
      %v705 = vpop.f32.mrb[0].mxu0
      %v706 = vadd.f32 0.0, %v705
      %v707 = vpop.f32.mrb[0].mxu0
      %708 = vmatprep.mubr.f32.mxu0 0.0
      %709 = vmatmul.mubr.f32.gmra.mrb[0].mxu0 %v510
      %v710 = vpop.f32.mrb[0].mxu0
      %v711 = vadd.f32 0.0, %v710
      %v712 = vpop.f32.mrb[0].mxu0
      %713 = vmatprep.mubr.f32.mxu0 0.0
      %714 = vmatmul.mubr.f32.gmra.mrb[0].mxu0 %v512
      %v715 = vpop.f32.mrb[0].mxu0
      %v716 = vadd.f32 0.0, %v715
      %v717 = vpop.f32.mrb[0].mxu0
      %718 = vmatprep.mubr.f32.mxu0 0.0
      %719 = vmatmul.mubr.f32.gmra.mrb[0].mxu0 %v514
      %v720 = vpop.f32.mrb[0].mxu0
      %v721 = vadd.f32 0.0, %v720
      %v722 = vpop.f32.mrb[0].mxu0
      %723 = vmatprep.mubr.f32.mxu0 0.0
      %724 = vmatmul.mubr.f32.gmra.mrb[0].mxu0 %v516
      %v725 = vpop.f32.mrb[0].mxu0
      %v726 = vadd.f32 0.0, %v725
      %v727 = vpop.f32.mrb[0].mxu0
      %728 = vmatprep.mubr.f32.mxu0 0.0
      %729 = vmatmul.mubr.f32.gmra.mrb[0].mxu0 %v518
      %v730 = vpop.f32.mrb[0].mxu0
      %v731 = vadd.f32 0.0, %v730
      %v732 = vpop.f32.mrb[0].mxu0
      %733 = vmatprep.mubr.f32.mxu0 0.0
      %734 = vmatmul.mubr.f32.gmra.mrb[0].mxu0 %v520
      %v735 = vpop.f32.mrb[0].mxu0
      %v736 = vadd.f32 0.0, %v735
      %v737 = vpop.f32.mrb[0].mxu0
      %738 = vmatprep.mubr.f32.mxu0 0.0
      %739 = vmatmul.mubr.f32.gmra.mrb[0].mxu0 %v522
      %v740 = vpop.f32.mrb[0].mxu0
      %v741 = vadd.f32 0.0, %v740
      %v742 = vpop.f32.mrb[0].mxu0
      %743 = vmatprep.mubr.f32.mxu0 0.0
      %744 = vmatmul.mubr.f32.gmra.mrb[0].mxu0 %v524
      %v745 = vpop.f32.mrb[0].mxu0
      %v746 = vadd.f32 0.0, %v745
      %v747 = vpop.f32.mrb[0].mxu0
      %748 = vmatprep.mubr.f32.mxu0 0.0
      %749 = vmatmul.mubr.f32.gmra.mrb[0].mxu0 %v526
      %v750 = vpop.f32.mrb[0].mxu0
      %v751 = vadd.f32 0.0, %v750
      %v752 = vpop.f32.mrb[0].mxu0
      %753 = vmatprep.mubr.f32.mxu0 0.0
      %754 = vmatmul.mubr.f32.gmra.mrb[0].mxu0 %v528
      %v755 = vpop.f32.mrb[0].mxu0
      %v756 = vadd.f32 0.0, %v755
      %v757 = vpop.f32.mrb[0].mxu0
      %758 = vdwg.mxu0
      %v759 = vsel %vm465, %v279, 0
      %v761 = vsel %vm465, %v280, 0
      %v763 = vsel %vm465, %v282, 0
      %v765 = vsel %vm465, %v283, 0
      %v767 = vsel %vm465, %v285, 0
      %v769 = vsel %vm465, %v286, 0
      %v771 = vsel %vm465, %v288, 0
      %v773 = vsel %vm465, %v289, 0
      %v775 = vsel %vm465, %v291, 0
      %v777 = vsel %vm465, %v292, 0
      %v779 = vsel %vm465, %v294, 0
      %v781 = vsel %vm465, %v295, 0
      %v783 = vsel %vm465, %v297, 0
      %v785 = vsel %vm465, %v298, 0
      %v787 = vsel %vm465, %v300, 0
      %v789 = vsel %vm465, %v301, 0
      %v791 = vsel %vm465, %v303, 0
      %v793 = vsel %vm465, %v304, 0
      %v795 = vsel %vm465, %v306, 0
      %v797 = vsel %vm465, %v307, 0
      %v799 = vsel %vm465, %v309, 0
      %v801 = vsel %vm465, %v310, 0
      %v803 = vsel %vm465, %v312, 0
      %v805 = vsel %vm465, %v313, 0
      %v807 = vsel %vm465, %v315, 0
      %v809 = vsel %vm465, %v316, 0
      %v811 = vsel %vm465, %v318, 0
      %v813 = vsel %vm465, %v319, 0
      %v815 = vsel %vm465, %v321, 0
      %v817 = vsel %vm465, %v322, 0
      %v819 = vsel %vm465, %v324, 0
      %v821 = vsel %vm465, %v325, 0
      %v824 = vsel %vm530, %v333, 0
      %826 = vmatprep.subr.mxu0 0.0
      %827 = vmatpush1.msra.mxu0 %v824
      %828 = vmatprep.subr.mxu0 0.0
      %829 = vmatpush1.msra.mxu0 0.0
      %830 = vmatprep.subr.mxu0 0.0
      %831 = vmatpush1.msra.mxu0 0.0
      %832 = vmatprep.subr.mxu0 0.0
      %833 = vmatpush1.msra.mxu0 0.0
      %834 = vmatprep.subr.mxu0 0.0
      %835 = vmatpush1.msra.mxu0 0.0
      %836 = vmatprep.subr.mxu0 0.0
      %837 = vmatpush1.msra.mxu0 0.0
      %838 = vmatprep.subr.mxu0 0.0
      %839 = vmatpush1.msra.mxu0 0.0
      %840 = vmatprep.subr.mxu0 0.0
      %841 = vmatpush1.msra.mxu0 0.0
      %842 = vmatprep.subr.mxu0 0.0
      %843 = vmatpush1.msra.mxu0 0.0
      %844 = vmatprep.subr.mxu0 0.0
      %845 = vmatpush1.msra.mxu0 0.0
      %846 = vmatprep.subr.mxu0 0.0
      %847 = vmatpush1.msra.mxu0 0.0
      %848 = vmatprep.subr.mxu0 0.0
      %849 = vmatpush1.msra.mxu0 0.0
      %850 = vmatprep.subr.mxu0 0.0
      %851 = vmatpush1.msra.mxu0 0.0
      %852 = vmatprep.subr.mxu0 0.0
      %853 = vmatpush1.msra.mxu0 0.0
      %854 = vmatprep.subr.mxu0 0.0
      %855 = vmatpush1.msra.mxu0 0.0
      %856 = vmatprep.subr.mxu0 0.0
      %857 = vmatpush1.msra.mxu0 0.0
      %858 = vmatprep.subr.mxu0 0.0
      %859 = vmatpush1.msra.mxu0 0.0
      %860 = vmatprep.subr.mxu0 0.0
      %861 = vmatpush1.msra.mxu0 0.0
      %862 = vmatprep.subr.mxu0 0.0
      %863 = vmatpush1.msra.mxu0 0.0
      %864 = vmatprep.subr.mxu0 0.0
      %865 = vmatpush1.msra.mxu0 0.0
      %866 = vmatprep.subr.mxu0 0.0
      %867 = vmatpush1.msra.mxu0 0.0
      %868 = vmatprep.subr.mxu0 0.0
      %869 = vmatpush1.msra.mxu0 0.0
      %870 = vmatprep.subr.mxu0 0.0
      %871 = vmatpush1.msra.mxu0 0.0
      %872 = vmatprep.subr.mxu0 0.0
      %873 = vmatpush1.msra.mxu0 0.0
      %874 = vmatprep.subr.mxu0 0.0
      %875 = vmatpush1.msra.mxu0 0.0
      %876 = vmatprep.subr.mxu0 0.0
      %877 = vmatpush1.msra.mxu0 0.0
      %878 = vmatprep.subr.mxu0 0.0
      %879 = vmatpush1.msra.mxu0 0.0
      %880 = vmatprep.subr.mxu0 0.0
      %881 = vmatpush1.msra.mxu0 0.0
      %882 = vmatprep.subr.mxu0 0.0
      %883 = vmatpush1.msra.mxu0 0.0
      %884 = vmatprep.subr.mxu0 0.0
      %885 = vmatpush1.msra.mxu0 0.0
      %886 = vmatprep.subr.mxu0 0.0
      %887 = vmatpush1.msra.mxu0 0.0
      %888 = vmatprep.subr.mxu0 0.0
      %889 = vmatpush1.msra.mxu0 0.0
      %890 = vmatprep.mubr.f32.mxu0 0.0
      %891 = vmatmul.mubr.f32.gmra.mrb[0].mxu0 %v759
      %v892 = vpop.f32.mrb[0].mxu0
      %v893 = vadd.f32 %v601, %v892
      %v894 = vpop.f32.mrb[0].mxu0
      %895 = vmatprep.mubr.f32.mxu0 0.0
      %896 = vmatmul.mubr.f32.gmra.mrb[0].mxu0 %v761
      %v897 = vpop.f32.mrb[0].mxu0
      %v898 = vadd.f32 %v606, %v897
      %v899 = vpop.f32.mrb[0].mxu0
      %900 = vmatprep.mubr.f32.mxu0 0.0
      %901 = vmatmul.mubr.f32.gmra.mrb[0].mxu0 %v763
      %v902 = vpop.f32.mrb[0].mxu0
      %v903 = vadd.f32 %v611, %v902
      %v904 = vpop.f32.mrb[0].mxu0
      %905 = vmatprep.mubr.f32.mxu0 0.0
      %906 = vmatmul.mubr.f32.gmra.mrb[0].mxu0 %v765
      %v907 = vpop.f32.mrb[0].mxu0
      %v908 = vadd.f32 %v616, %v907
      %v909 = vpop.f32.mrb[0].mxu0
      %910 = vmatprep.mubr.f32.mxu0 0.0
      %911 = vmatmul.mubr.f32.gmra.mrb[0].mxu0 %v767
      %v912 = vpop.f32.mrb[0].mxu0
      %v913 = vadd.f32 %v621, %v912
      %v914 = vpop.f32.mrb[0].mxu0
      %915 = vmatprep.mubr.f32.mxu0 0.0
      %916 = vmatmul.mubr.f32.gmra.mrb[0].mxu0 %v769
      %v917 = vpop.f32.mrb[0].mxu0
      %v918 = vadd.f32 %v626, %v917
      %v919 = vpop.f32.mrb[0].mxu0
      %920 = vmatprep.mubr.f32.mxu0 0.0
      %921 = vmatmul.mubr.f32.gmra.mrb[0].mxu0 %v771
      %v922 = vpop.f32.mrb[0].mxu0
      %v923 = vadd.f32 %v631, %v922
      %v924 = vpop.f32.mrb[0].mxu0
      %925 = vmatprep.mubr.f32.mxu0 0.0
      %926 = vmatmul.mubr.f32.gmra.mrb[0].mxu0 %v773
      %v927 = vpop.f32.mrb[0].mxu0
      %v928 = vadd.f32 %v636, %v927
      %v929 = vpop.f32.mrb[0].mxu0
      %930 = vmatprep.mubr.f32.mxu0 0.0
      %931 = vmatmul.mubr.f32.gmra.mrb[0].mxu0 %v775
      %v932 = vpop.f32.mrb[0].mxu0
      %v933 = vadd.f32 %v641, %v932
      %v934 = vpop.f32.mrb[0].mxu0
      %935 = vmatprep.mubr.f32.mxu0 0.0
      %936 = vmatmul.mubr.f32.gmra.mrb[0].mxu0 %v777
      %v937 = vpop.f32.mrb[0].mxu0
      %v938 = vadd.f32 %v646, %v937
      %v939 = vpop.f32.mrb[0].mxu0
      %940 = vmatprep.mubr.f32.mxu0 0.0
      %941 = vmatmul.mubr.f32.gmra.mrb[0].mxu0 %v779
      %v942 = vpop.f32.mrb[0].mxu0
      %v943 = vadd.f32 %v651, %v942
      %v944 = vpop.f32.mrb[0].mxu0
      %945 = vmatprep.mubr.f32.mxu0 0.0
      %946 = vmatmul.mubr.f32.gmra.mrb[0].mxu0 %v781
      %v947 = vpop.f32.mrb[0].mxu0
      %v948 = vadd.f32 %v656, %v947
      %v949 = vpop.f32.mrb[0].mxu0
      %950 = vmatprep.mubr.f32.mxu0 0.0
      %951 = vmatmul.mubr.f32.gmra.mrb[0].mxu0 %v783
      %v952 = vpop.f32.mrb[0].mxu0
      %v953 = vadd.f32 %v661, %v952
      %v954 = vpop.f32.mrb[0].mxu0
      %955 = vmatprep.mubr.f32.mxu0 0.0
      %956 = vmatmul.mubr.f32.gmra.mrb[0].mxu0 %v785
      %v957 = vpop.f32.mrb[0].mxu0
      %v958 = vadd.f32 %v666, %v957
      %v959 = vpop.f32.mrb[0].mxu0
      %960 = vmatprep.mubr.f32.mxu0 0.0
      %961 = vmatmul.mubr.f32.gmra.mrb[0].mxu0 %v787
      %v962 = vpop.f32.mrb[0].mxu0
      %v963 = vadd.f32 %v671, %v962
      %v964 = vpop.f32.mrb[0].mxu0
      %965 = vmatprep.mubr.f32.mxu0 0.0
      %966 = vmatmul.mubr.f32.gmra.mrb[0].mxu0 %v789
      %v967 = vpop.f32.mrb[0].mxu0
      %v968 = vadd.f32 %v676, %v967
      %v969 = vpop.f32.mrb[0].mxu0
      %970 = vmatprep.mubr.f32.mxu0 0.0
      %971 = vmatmul.mubr.f32.gmra.mrb[0].mxu0 %v791
      %v972 = vpop.f32.mrb[0].mxu0
      %v973 = vadd.f32 %v681, %v972
      %v974 = vpop.f32.mrb[0].mxu0
      %975 = vmatprep.mubr.f32.mxu0 0.0
      %976 = vmatmul.mubr.f32.gmra.mrb[0].mxu0 %v793
      %v977 = vpop.f32.mrb[0].mxu0
      %v978 = vadd.f32 %v686, %v977
      %v979 = vpop.f32.mrb[0].mxu0
      %980 = vmatprep.mubr.f32.mxu0 0.0
      %981 = vmatmul.mubr.f32.gmra.mrb[0].mxu0 %v795
      %v982 = vpop.f32.mrb[0].mxu0
      %v983 = vadd.f32 %v691, %v982
      %v984 = vpop.f32.mrb[0].mxu0
      %985 = vmatprep.mubr.f32.mxu0 0.0
      %986 = vmatmul.mubr.f32.gmra.mrb[0].mxu0 %v797
      %v987 = vpop.f32.mrb[0].mxu0
      %v988 = vadd.f32 %v696, %v987
      %v989 = vpop.f32.mrb[0].mxu0
      %990 = vmatprep.mubr.f32.mxu0 0.0
      %991 = vmatmul.mubr.f32.gmra.mrb[0].mxu0 %v799
      %v992 = vpop.f32.mrb[0].mxu0
      %v993 = vadd.f32 %v701, %v992
      %v994 = vpop.f32.mrb[0].mxu0
      %995 = vmatprep.mubr.f32.mxu0 0.0
      %996 = vmatmul.mubr.f32.gmra.mrb[0].mxu0 %v801
      %v997 = vpop.f32.mrb[0].mxu0
      %v998 = vadd.f32 %v706, %v997
      %v999 = vpop.f32.mrb[0].mxu0
      %1000 = vmatprep.mubr.f32.mxu0 0.0
      %1001 = vmatmul.mubr.f32.gmra.mrb[0].mxu0 %v803
      %v1002 = vpop.f32.mrb[0].mxu0
      %v1003 = vadd.f32 %v711, %v1002
      %v1004 = vpop.f32.mrb[0].mxu0
      %1005 = vmatprep.mubr.f32.mxu0 0.0
      %1006 = vmatmul.mubr.f32.gmra.mrb[0].mxu0 %v805
      %v1007 = vpop.f32.mrb[0].mxu0
      %v1008 = vadd.f32 %v716, %v1007
      %v1009 = vpop.f32.mrb[0].mxu0
      %1010 = vmatprep.mubr.f32.mxu0 0.0
      %1011 = vmatmul.mubr.f32.gmra.mrb[0].mxu0 %v807
      %v1012 = vpop.f32.mrb[0].mxu0
      %v1013 = vadd.f32 %v721, %v1012
      %v1014 = vpop.f32.mrb[0].mxu0
      %1015 = vmatprep.mubr.f32.mxu0 0.0
      %1016 = vmatmul.mubr.f32.gmra.mrb[0].mxu0 %v809
      %v1017 = vpop.f32.mrb[0].mxu0
      %v1018 = vadd.f32 %v726, %v1017
      %v1019 = vpop.f32.mrb[0].mxu0
      %1020 = vmatprep.mubr.f32.mxu0 0.0
      %1021 = vmatmul.mubr.f32.gmra.mrb[0].mxu0 %v811
      %v1022 = vpop.f32.mrb[0].mxu0
      %v1023 = vadd.f32 %v731, %v1022
      %v1024 = vpop.f32.mrb[0].mxu0
      %1025 = vmatprep.mubr.f32.mxu0 0.0
      %1026 = vmatmul.mubr.f32.gmra.mrb[0].mxu0 %v813
      %v1027 = vpop.f32.mrb[0].mxu0
      %v1028 = vadd.f32 %v736, %v1027
      %v1029 = vpop.f32.mrb[0].mxu0
      %1030 = vmatprep.mubr.f32.mxu0 0.0
      %1031 = vmatmul.mubr.f32.gmra.mrb[0].mxu0 %v815
      %v1032 = vpop.f32.mrb[0].mxu0
      %v1033 = vadd.f32 %v741, %v1032
      %v1034 = vpop.f32.mrb[0].mxu0
      %1035 = vmatprep.mubr.f32.mxu0 0.0
      %1036 = vmatmul.mubr.f32.gmra.mrb[0].mxu0 %v817
      %v1037 = vpop.f32.mrb[0].mxu0
      %v1038 = vadd.f32 %v746, %v1037
      %v1039 = vpop.f32.mrb[0].mxu0
      %1040 = vmatprep.mubr.f32.mxu0 0.0
      %1041 = vmatmul.mubr.f32.gmra.mrb[0].mxu0 %v819
      %v1042 = vpop.f32.mrb[0].mxu0
      %v1043 = vadd.f32 %v751, %v1042
      %v1044 = vpop.f32.mrb[0].mxu0
      %1045 = vmatprep.mubr.f32.mxu0 0.0
      %1046 = vmatmul.mubr.f32.gmra.mrb[0].mxu0 %v821
      %v1047 = vpop.f32.mrb[0].mxu0
      %v1048 = vadd.f32 %v756, %v1047
      %v1049 = vpop.f32.mrb[0].mxu0
      %1050 = vdwg.mxu0
      %vm1051 = vcmask 1045504
      %v1052 = vrot.slane %v279, 2
      %v1053 = vrot.slane %v280, 2
      %v1054 = vsel %vm1051, %v1052, %v1053
      %v1055 = vrot.slane %v281, 2
      %v1056 = vsel %vm1051, %v1053, %v1055
      %v1057 = vrot.slane %v282, 2
      %v1058 = vrot.slane %v283, 2
      %v1059 = vsel %vm1051, %v1057, %v1058
      %v1060 = vrot.slane %v284, 2
      %v1061 = vsel %vm1051, %v1058, %v1060
      %v1062 = vrot.slane %v285, 2
      %v1063 = vrot.slane %v286, 2
      %v1064 = vsel %vm1051, %v1062, %v1063
      %v1065 = vrot.slane %v287, 2
      %v1066 = vsel %vm1051, %v1063, %v1065
      %v1067 = vrot.slane %v288, 2
      %v1068 = vrot.slane %v289, 2
      %v1069 = vsel %vm1051, %v1067, %v1068
      %v1070 = vrot.slane %v290, 2
      %v1071 = vsel %vm1051, %v1068, %v1070
      %v1072 = vrot.slane %v291, 2
      %v1073 = vrot.slane %v292, 2
      %v1074 = vsel %vm1051, %v1072, %v1073
      %v1075 = vrot.slane %v293, 2
      %v1076 = vsel %vm1051, %v1073, %v1075
      %v1077 = vrot.slane %v294, 2
      %v1078 = vrot.slane %v295, 2
      %v1079 = vsel %vm1051, %v1077, %v1078
      %v1080 = vrot.slane %v296, 2
      %v1081 = vsel %vm1051, %v1078, %v1080
      %v1082 = vrot.slane %v297, 2
      %v1083 = vrot.slane %v298, 2
      %v1084 = vsel %vm1051, %v1082, %v1083
      %v1085 = vrot.slane %v299, 2
      %v1086 = vsel %vm1051, %v1083, %v1085
      %v1087 = vrot.slane %v300, 2
      %v1088 = vrot.slane %v301, 2
      %v1089 = vsel %vm1051, %v1087, %v1088
      %v1090 = vrot.slane %v302, 2
      %v1091 = vsel %vm1051, %v1088, %v1090
      %v1092 = vrot.slane %v303, 2
      %v1093 = vrot.slane %v304, 2
      %v1094 = vsel %vm1051, %v1092, %v1093
      %v1095 = vrot.slane %v305, 2
      %v1096 = vsel %vm1051, %v1093, %v1095
      %v1097 = vrot.slane %v306, 2
      %v1098 = vrot.slane %v307, 2
      %v1099 = vsel %vm1051, %v1097, %v1098
      %v1100 = vrot.slane %v308, 2
      %v1101 = vsel %vm1051, %v1098, %v1100
      %v1102 = vrot.slane %v309, 2
      %v1103 = vrot.slane %v310, 2
      %v1104 = vsel %vm1051, %v1102, %v1103
      %v1105 = vrot.slane %v311, 2
      %v1106 = vsel %vm1051, %v1103, %v1105
      %v1107 = vrot.slane %v312, 2
      %v1108 = vrot.slane %v313, 2
      %v1109 = vsel %vm1051, %v1107, %v1108
      %v1110 = vrot.slane %v314, 2
      %v1111 = vsel %vm1051, %v1108, %v1110
      %v1112 = vrot.slane %v315, 2
      %v1113 = vrot.slane %v316, 2
      %v1114 = vsel %vm1051, %v1112, %v1113
      %v1115 = vrot.slane %v317, 2
      %v1116 = vsel %vm1051, %v1113, %v1115
      %v1117 = vrot.slane %v318, 2
      %v1118 = vrot.slane %v319, 2
      %v1119 = vsel %vm1051, %v1117, %v1118
      %v1120 = vrot.slane %v320, 2
      %v1121 = vsel %vm1051, %v1118, %v1120
      %v1122 = vrot.slane %v321, 2
      %v1123 = vrot.slane %v322, 2
      %v1124 = vsel %vm1051, %v1122, %v1123
      %v1125 = vrot.slane %v323, 2
      %v1126 = vsel %vm1051, %v1123, %v1125
      %v1127 = vrot.slane %v324, 2
      %v1128 = vrot.slane %v325, 2
      %v1129 = vsel %vm1051, %v1127, %v1128
      %v1130 = vrot.slane %v326, 2
      %v1131 = vsel %vm1051, %v1128, %v1130
      %s1132 = scalar_lea.vmem %s1, 8
      %v1133 = vld [vmem:[%s1132] sm:$0xf]
      %v1134 = vsel %vm465, %v1054, 0
      %v1136 = vsel %vm465, %v1056, 0
      %v1138 = vsel %vm465, %v1059, 0
      %v1140 = vsel %vm465, %v1061, 0
      %v1142 = vsel %vm465, %v1064, 0
      %v1144 = vsel %vm465, %v1066, 0
      %v1146 = vsel %vm465, %v1069, 0
      %v1148 = vsel %vm465, %v1071, 0
      %v1150 = vsel %vm465, %v1074, 0
      %v1152 = vsel %vm465, %v1076, 0
      %v1154 = vsel %vm465, %v1079, 0
      %v1156 = vsel %vm465, %v1081, 0
      %v1158 = vsel %vm465, %v1084, 0
      %v1160 = vsel %vm465, %v1086, 0
      %v1162 = vsel %vm465, %v1089, 0
      %v1164 = vsel %vm465, %v1091, 0
      %v1166 = vsel %vm465, %v1094, 0
      %v1168 = vsel %vm465, %v1096, 0
      %v1170 = vsel %vm465, %v1099, 0
      %v1172 = vsel %vm465, %v1101, 0
      %v1174 = vsel %vm465, %v1104, 0
      %v1176 = vsel %vm465, %v1106, 0
      %v1178 = vsel %vm465, %v1109, 0
      %v1180 = vsel %vm465, %v1111, 0
      %v1182 = vsel %vm465, %v1114, 0
      %v1184 = vsel %vm465, %v1116, 0
      %v1186 = vsel %vm465, %v1119, 0
      %v1188 = vsel %vm465, %v1121, 0
      %v1190 = vsel %vm465, %v1124, 0
      %v1192 = vsel %vm465, %v1126, 0
      %v1194 = vsel %vm465, %v1129, 0
      %v1196 = vsel %vm465, %v1131, 0
      %v1199 = vsel %vm530, %v1133, 0
      %1201 = vmatprep.subr.mxu0 0.0
      %1202 = vmatpush1.msra.mxu0 %v1199
      %1203 = vmatprep.subr.mxu0 0.0
      %1204 = vmatpush1.msra.mxu0 0.0
      %1205 = vmatprep.subr.mxu0 0.0
      %1206 = vmatpush1.msra.mxu0 0.0
      %1207 = vmatprep.subr.mxu0 0.0
      %1208 = vmatpush1.msra.mxu0 0.0
      %1209 = vmatprep.subr.mxu0 0.0
      %1210 = vmatpush1.msra.mxu0 0.0
      %1211 = vmatprep.subr.mxu0 0.0
      %1212 = vmatpush1.msra.mxu0 0.0
      %1213 = vmatprep.subr.mxu0 0.0
      %1214 = vmatpush1.msra.mxu0 0.0
      %1215 = vmatprep.subr.mxu0 0.0
      %1216 = vmatpush1.msra.mxu0 0.0
      %1217 = vmatprep.subr.mxu0 0.0
      %1218 = vmatpush1.msra.mxu0 0.0
      %1219 = vmatprep.subr.mxu0 0.0
      %1220 = vmatpush1.msra.mxu0 0.0
      %1221 = vmatprep.subr.mxu0 0.0
      %1222 = vmatpush1.msra.mxu0 0.0
      %1223 = vmatprep.subr.mxu0 0.0
      %1224 = vmatpush1.msra.mxu0 0.0
      %1225 = vmatprep.subr.mxu0 0.0
      %1226 = vmatpush1.msra.mxu0 0.0
      %1227 = vmatprep.subr.mxu0 0.0
      %1228 = vmatpush1.msra.mxu0 0.0
      %1229 = vmatprep.subr.mxu0 0.0
      %1230 = vmatpush1.msra.mxu0 0.0
      %1231 = vmatprep.subr.mxu0 0.0
      %1232 = vmatpush1.msra.mxu0 0.0
      %1233 = vmatprep.subr.mxu0 0.0
      %1234 = vmatpush1.msra.mxu0 0.0
      %1235 = vmatprep.subr.mxu0 0.0
      %1236 = vmatpush1.msra.mxu0 0.0
      %1237 = vmatprep.subr.mxu0 0.0
      %1238 = vmatpush1.msra.mxu0 0.0
      %1239 = vmatprep.subr.mxu0 0.0
      %1240 = vmatpush1.msra.mxu0 0.0
      %1241 = vmatprep.subr.mxu0 0.0
      %1242 = vmatpush1.msra.mxu0 0.0
      %1243 = vmatprep.subr.mxu0 0.0
      %1244 = vmatpush1.msra.mxu0 0.0
      %1245 = vmatprep.subr.mxu0 0.0
      %1246 = vmatpush1.msra.mxu0 0.0
      %1247 = vmatprep.subr.mxu0 0.0
      %1248 = vmatpush1.msra.mxu0 0.0
      %1249 = vmatprep.subr.mxu0 0.0
      %1250 = vmatpush1.msra.mxu0 0.0
      %1251 = vmatprep.subr.mxu0 0.0
      %1252 = vmatpush1.msra.mxu0 0.0
      %1253 = vmatprep.subr.mxu0 0.0
      %1254 = vmatpush1.msra.mxu0 0.0
      %1255 = vmatprep.subr.mxu0 0.0
      %1256 = vmatpush1.msra.mxu0 0.0
      %1257 = vmatprep.subr.mxu0 0.0
      %1258 = vmatpush1.msra.mxu0 0.0
      %1259 = vmatprep.subr.mxu0 0.0
      %1260 = vmatpush1.msra.mxu0 0.0
      %1261 = vmatprep.subr.mxu0 0.0
      %1262 = vmatpush1.msra.mxu0 0.0
      %1263 = vmatprep.subr.mxu0 0.0
      %1264 = vmatpush1.msra.mxu0 0.0
      %1265 = vmatprep.mubr.f32.mxu0 0.0
      %1266 = vmatmul.mubr.f32.gmra.mrb[0].mxu0 %v1134
      %v1267 = vpop.f32.mrb[0].mxu0
      %v1268 = vadd.f32 0.0, %v1267
      %v1269 = vpop.f32.mrb[0].mxu0
      %1270 = vmatprep.mubr.f32.mxu0 0.0
      %1271 = vmatmul.mubr.f32.gmra.mrb[0].mxu0 %v1136
      %v1272 = vpop.f32.mrb[0].mxu0
      %v1273 = vadd.f32 0.0, %v1272
      %v1274 = vpop.f32.mrb[0].mxu0
      %1275 = vmatprep.mubr.f32.mxu0 0.0
      %1276 = vmatmul.mubr.f32.gmra.mrb[0].mxu0 %v1138
      %v1277 = vpop.f32.mrb[0].mxu0
      %v1278 = vadd.f32 0.0, %v1277
      %v1279 = vpop.f32.mrb[0].mxu0
      %1280 = vmatprep.mubr.f32.mxu0 0.0
      %1281 = vmatmul.mubr.f32.gmra.mrb[0].mxu0 %v1140
      %v1282 = vpop.f32.mrb[0].mxu0
      %v1283 = vadd.f32 0.0, %v1282
      %v1284 = vpop.f32.mrb[0].mxu0
      %1285 = vmatprep.mubr.f32.mxu0 0.0
      %1286 = vmatmul.mubr.f32.gmra.mrb[0].mxu0 %v1142
      %v1287 = vpop.f32.mrb[0].mxu0
      %v1288 = vadd.f32 0.0, %v1287
      %v1289 = vpop.f32.mrb[0].mxu0
      %1290 = vmatprep.mubr.f32.mxu0 0.0
      %1291 = vmatmul.mubr.f32.gmra.mrb[0].mxu0 %v1144
      %v1292 = vpop.f32.mrb[0].mxu0
      %v1293 = vadd.f32 0.0, %v1292
      %v1294 = vpop.f32.mrb[0].mxu0
      %1295 = vmatprep.mubr.f32.mxu0 0.0
      %1296 = vmatmul.mubr.f32.gmra.mrb[0].mxu0 %v1146
      %v1297 = vpop.f32.mrb[0].mxu0
      %v1298 = vadd.f32 0.0, %v1297
      %v1299 = vpop.f32.mrb[0].mxu0
      %1300 = vmatprep.mubr.f32.mxu0 0.0
      %1301 = vmatmul.mubr.f32.gmra.mrb[0].mxu0 %v1148
      %v1302 = vpop.f32.mrb[0].mxu0
      %v1303 = vadd.f32 0.0, %v1302
      %v1304 = vpop.f32.mrb[0].mxu0
      %1305 = vmatprep.mubr.f32.mxu0 0.0
      %1306 = vmatmul.mubr.f32.gmra.mrb[0].mxu0 %v1150
      %v1307 = vpop.f32.mrb[0].mxu0
      %v1308 = vadd.f32 0.0, %v1307
      %v1309 = vpop.f32.mrb[0].mxu0
      %1310 = vmatprep.mubr.f32.mxu0 0.0
      %1311 = vmatmul.mubr.f32.gmra.mrb[0].mxu0 %v1152
      %v1312 = vpop.f32.mrb[0].mxu0
      %v1313 = vadd.f32 0.0, %v1312
      %v1314 = vpop.f32.mrb[0].mxu0
      %1315 = vmatprep.mubr.f32.mxu0 0.0
      %1316 = vmatmul.mubr.f32.gmra.mrb[0].mxu0 %v1154
      %v1317 = vpop.f32.mrb[0].mxu0
      %v1318 = vadd.f32 0.0, %v1317
      %v1319 = vpop.f32.mrb[0].mxu0
      %1320 = vmatprep.mubr.f32.mxu0 0.0
      %1321 = vmatmul.mubr.f32.gmra.mrb[0].mxu0 %v1156
      %v1322 = vpop.f32.mrb[0].mxu0
      %v1323 = vadd.f32 0.0, %v1322
      %v1324 = vpop.f32.mrb[0].mxu0
      %1325 = vmatprep.mubr.f32.mxu0 0.0
      %1326 = vmatmul.mubr.f32.gmra.mrb[0].mxu0 %v1158
      %v1327 = vpop.f32.mrb[0].mxu0
      %v1328 = vadd.f32 0.0, %v1327
      %v1329 = vpop.f32.mrb[0].mxu0
      %1330 = vmatprep.mubr.f32.mxu0 0.0
      %1331 = vmatmul.mubr.f32.gmra.mrb[0].mxu0 %v1160
      %v1332 = vpop.f32.mrb[0].mxu0
      %v1333 = vadd.f32 0.0, %v1332
      %v1334 = vpop.f32.mrb[0].mxu0
      %1335 = vmatprep.mubr.f32.mxu0 0.0
      %1336 = vmatmul.mubr.f32.gmra.mrb[0].mxu0 %v1162
      %v1337 = vpop.f32.mrb[0].mxu0
      %v1338 = vadd.f32 0.0, %v1337
      %v1339 = vpop.f32.mrb[0].mxu0
      %1340 = vmatprep.mubr.f32.mxu0 0.0
      %1341 = vmatmul.mubr.f32.gmra.mrb[0].mxu0 %v1164
      %v1342 = vpop.f32.mrb[0].mxu0
      %v1343 = vadd.f32 0.0, %v1342
      %v1344 = vpop.f32.mrb[0].mxu0
      %1345 = vmatprep.mubr.f32.mxu0 0.0
      %1346 = vmatmul.mubr.f32.gmra.mrb[0].mxu0 %v1166
      %v1347 = vpop.f32.mrb[0].mxu0
      %v1348 = vadd.f32 0.0, %v1347
      %v1349 = vpop.f32.mrb[0].mxu0
      %1350 = vmatprep.mubr.f32.mxu0 0.0
      %1351 = vmatmul.mubr.f32.gmra.mrb[0].mxu0 %v1168
      %v1352 = vpop.f32.mrb[0].mxu0
      %v1353 = vadd.f32 0.0, %v1352
      %v1354 = vpop.f32.mrb[0].mxu0
      %1355 = vmatprep.mubr.f32.mxu0 0.0
      %1356 = vmatmul.mubr.f32.gmra.mrb[0].mxu0 %v1170
      %v1357 = vpop.f32.mrb[0].mxu0
      %v1358 = vadd.f32 0.0, %v1357
      %v1359 = vpop.f32.mrb[0].mxu0
      %1360 = vmatprep.mubr.f32.mxu0 0.0
      %1361 = vmatmul.mubr.f32.gmra.mrb[0].mxu0 %v1172
      %v1362 = vpop.f32.mrb[0].mxu0
      %v1363 = vadd.f32 0.0, %v1362
      %v1364 = vpop.f32.mrb[0].mxu0
      %1365 = vmatprep.mubr.f32.mxu0 0.0
      %1366 = vmatmul.mubr.f32.gmra.mrb[0].mxu0 %v1174
      %v1367 = vpop.f32.mrb[0].mxu0
      %v1368 = vadd.f32 0.0, %v1367
      %v1369 = vpop.f32.mrb[0].mxu0
      %1370 = vmatprep.mubr.f32.mxu0 0.0
      %1371 = vmatmul.mubr.f32.gmra.mrb[0].mxu0 %v1176
      %v1372 = vpop.f32.mrb[0].mxu0
      %v1373 = vadd.f32 0.0, %v1372
      %v1374 = vpop.f32.mrb[0].mxu0
      %1375 = vmatprep.mubr.f32.mxu0 0.0
      %1376 = vmatmul.mubr.f32.gmra.mrb[0].mxu0 %v1178
      %v1377 = vpop.f32.mrb[0].mxu0
      %v1378 = vadd.f32 0.0, %v1377
      %v1379 = vpop.f32.mrb[0].mxu0
      %1380 = vmatprep.mubr.f32.mxu0 0.0
      %1381 = vmatmul.mubr.f32.gmra.mrb[0].mxu0 %v1180
      %v1382 = vpop.f32.mrb[0].mxu0
      %v1383 = vadd.f32 0.0, %v1382
      %v1384 = vpop.f32.mrb[0].mxu0
      %1385 = vmatprep.mubr.f32.mxu0 0.0
      %1386 = vmatmul.mubr.f32.gmra.mrb[0].mxu0 %v1182
      %v1387 = vpop.f32.mrb[0].mxu0
      %v1388 = vadd.f32 0.0, %v1387
      %v1389 = vpop.f32.mrb[0].mxu0
      %1390 = vmatprep.mubr.f32.mxu0 0.0
      %1391 = vmatmul.mubr.f32.gmra.mrb[0].mxu0 %v1184
      %v1392 = vpop.f32.mrb[0].mxu0
      %v1393 = vadd.f32 0.0, %v1392
      %v1394 = vpop.f32.mrb[0].mxu0
      %1395 = vmatprep.mubr.f32.mxu0 0.0
      %1396 = vmatmul.mubr.f32.gmra.mrb[0].mxu0 %v1186
      %v1397 = vpop.f32.mrb[0].mxu0
      %v1398 = vadd.f32 0.0, %v1397
      %v1399 = vpop.f32.mrb[0].mxu0
      %1400 = vmatprep.mubr.f32.mxu0 0.0
      %1401 = vmatmul.mubr.f32.gmra.mrb[0].mxu0 %v1188
      %v1402 = vpop.f32.mrb[0].mxu0
      %v1403 = vadd.f32 0.0, %v1402
      %v1404 = vpop.f32.mrb[0].mxu0
      %1405 = vmatprep.mubr.f32.mxu0 0.0
      %1406 = vmatmul.mubr.f32.gmra.mrb[0].mxu0 %v1190
      %v1407 = vpop.f32.mrb[0].mxu0
      %v1408 = vadd.f32 0.0, %v1407
      %v1409 = vpop.f32.mrb[0].mxu0
      %1410 = vmatprep.mubr.f32.mxu0 0.0
      %1411 = vmatmul.mubr.f32.gmra.mrb[0].mxu0 %v1192
      %v1412 = vpop.f32.mrb[0].mxu0
      %v1413 = vadd.f32 0.0, %v1412
      %v1414 = vpop.f32.mrb[0].mxu0
      %1415 = vmatprep.mubr.f32.mxu0 0.0
      %1416 = vmatmul.mubr.f32.gmra.mrb[0].mxu0 %v1194
      %v1417 = vpop.f32.mrb[0].mxu0
      %v1418 = vadd.f32 0.0, %v1417
      %v1419 = vpop.f32.mrb[0].mxu0
      %1420 = vmatprep.mubr.f32.mxu0 0.0
      %1421 = vmatmul.mubr.f32.gmra.mrb[0].mxu0 %v1196
      %v1422 = vpop.f32.mrb[0].mxu0
      %v1423 = vadd.f32 0.0, %v1422
      %v1424 = vpop.f32.mrb[0].mxu0
      %1425 = vdwg.mxu0
      %v1426 = vadd.f32 %v893, %v1268
      %v1427 = vadd.f32 %v898, %v1273
      %v1428 = vadd.f32 %v903, %v1278
      %v1429 = vadd.f32 %v908, %v1283
      %v1430 = vadd.f32 %v913, %v1288
      %v1431 = vadd.f32 %v918, %v1293
      %v1432 = vadd.f32 %v923, %v1298
      %v1433 = vadd.f32 %v928, %v1303
      %v1434 = vadd.f32 %v933, %v1308
      %v1435 = vadd.f32 %v938, %v1313
      %v1436 = vadd.f32 %v943, %v1318
      %v1437 = vadd.f32 %v948, %v1323
      %v1438 = vadd.f32 %v953, %v1328
      %v1439 = vadd.f32 %v958, %v1333
      %v1440 = vadd.f32 %v963, %v1338
      %v1441 = vadd.f32 %v968, %v1343
      %v1442 = vadd.f32 %v973, %v1348
      %v1443 = vadd.f32 %v978, %v1353
      %v1444 = vadd.f32 %v983, %v1358
      %v1445 = vadd.f32 %v988, %v1363
      %v1446 = vadd.f32 %v993, %v1368
      %v1447 = vadd.f32 %v998, %v1373
      %v1448 = vadd.f32 %v1003, %v1378
      %v1449 = vadd.f32 %v1008, %v1383
      %v1450 = vadd.f32 %v1013, %v1388
      %v1451 = vadd.f32 %v1018, %v1393
      %v1452 = vadd.f32 %v1023, %v1398
      %v1453 = vadd.f32 %v1028, %v1403
      %v1454 = vadd.f32 %v1033, %v1408
      %v1455 = vadd.f32 %v1038, %v1413
      %v1456 = vadd.f32 %v1043, %v1418
      %v1457 = vadd.f32 %v1048, %v1423
      %s1458 = scalar_lea.vmem %s1, 12
      %v1459 = vld [vmem:[%s1458] sm:$0xf]
      %v1461 = vsel %vm465, %v327, 0
      %v1464 = vsel %vm465, %v328, 0
      %v1467 = vsel %vm530, %v1459, 0
      %1469 = vmatprep.subr.mxu0 0.0
      %1470 = vmatpush1.msra.mxu0 %v1467
      %1471 = vmatprep.subr.mxu0 0.0
      %1472 = vmatpush1.msra.mxu0 0.0
      %1473 = vmatprep.subr.mxu0 0.0
      %1474 = vmatpush1.msra.mxu0 0.0
      %1475 = vmatprep.subr.mxu0 0.0
      %1476 = vmatpush1.msra.mxu0 0.0
      %1477 = vmatprep.subr.mxu0 0.0
      %1478 = vmatpush1.msra.mxu0 0.0
      %1479 = vmatprep.subr.mxu0 0.0
      %1480 = vmatpush1.msra.mxu0 0.0
      %1481 = vmatprep.subr.mxu0 0.0
      %1482 = vmatpush1.msra.mxu0 0.0
      %1483 = vmatprep.subr.mxu0 0.0
      %1484 = vmatpush1.msra.mxu0 0.0
      %1485 = vmatprep.subr.mxu0 0.0
      %1486 = vmatpush1.msra.mxu0 0.0
      %1487 = vmatprep.subr.mxu0 0.0
      %1488 = vmatpush1.msra.mxu0 0.0
      %1489 = vmatprep.subr.mxu0 0.0
      %1490 = vmatpush1.msra.mxu0 0.0
      %1491 = vmatprep.subr.mxu0 0.0
      %1492 = vmatpush1.msra.mxu0 0.0
      %1493 = vmatprep.subr.mxu0 0.0
      %1494 = vmatpush1.msra.mxu0 0.0
      %1495 = vmatprep.subr.mxu0 0.0
      %1496 = vmatpush1.msra.mxu0 0.0
      %1497 = vmatprep.subr.mxu0 0.0
      %1498 = vmatpush1.msra.mxu0 0.0
      %1499 = vmatprep.subr.mxu0 0.0
      %1500 = vmatpush1.msra.mxu0 0.0
      %1501 = vmatprep.subr.mxu0 0.0
      %1502 = vmatpush1.msra.mxu0 0.0
      %1503 = vmatprep.subr.mxu0 0.0
      %1504 = vmatpush1.msra.mxu0 0.0
      %1505 = vmatprep.subr.mxu0 0.0
      %1506 = vmatpush1.msra.mxu0 0.0
      %1507 = vmatprep.subr.mxu0 0.0
      %1508 = vmatpush1.msra.mxu0 0.0
      %1509 = vmatprep.subr.mxu0 0.0
      %1510 = vmatpush1.msra.mxu0 0.0
      %1511 = vmatprep.subr.mxu0 0.0
      %1512 = vmatpush1.msra.mxu0 0.0
      %1513 = vmatprep.subr.mxu0 0.0
      %1514 = vmatpush1.msra.mxu0 0.0
      %1515 = vmatprep.subr.mxu0 0.0
      %1516 = vmatpush1.msra.mxu0 0.0
      %1517 = vmatprep.subr.mxu0 0.0
      %1518 = vmatpush1.msra.mxu0 0.0
      %1519 = vmatprep.subr.mxu0 0.0
      %1520 = vmatpush1.msra.mxu0 0.0
      %1521 = vmatprep.subr.mxu0 0.0
      %1522 = vmatpush1.msra.mxu0 0.0
      %1523 = vmatprep.subr.mxu0 0.0
      %1524 = vmatpush1.msra.mxu0 0.0
      %1525 = vmatprep.subr.mxu0 0.0
      %1526 = vmatpush1.msra.mxu0 0.0
      %1527 = vmatprep.subr.mxu0 0.0
      %1528 = vmatpush1.msra.mxu0 0.0
      %1529 = vmatprep.subr.mxu0 0.0
      %1530 = vmatpush1.msra.mxu0 0.0
      %1531 = vmatprep.subr.mxu0 0.0
      %1532 = vmatpush1.msra.mxu0 0.0
      %1533 = vmatprep.mubr.f32.mxu0 0.0
      %1534 = vmatmul.mubr.f32.gmra.mrb[0].mxu0 %v763
      %v1535 = vpop.f32.mrb[0].mxu0
      %v1536 = vadd.f32 0.0, %v1535
      %v1537 = vpop.f32.mrb[0].mxu0
      %1538 = vmatprep.mubr.f32.mxu0 0.0
      %1539 = vmatmul.mubr.f32.gmra.mrb[0].mxu0 %v765
      %v1540 = vpop.f32.mrb[0].mxu0
      %v1541 = vadd.f32 0.0, %v1540
      %v1542 = vpop.f32.mrb[0].mxu0
      %1543 = vmatprep.mubr.f32.mxu0 0.0
      %1544 = vmatmul.mubr.f32.gmra.mrb[0].mxu0 %v767
      %v1545 = vpop.f32.mrb[0].mxu0
      %v1546 = vadd.f32 0.0, %v1545
      %v1547 = vpop.f32.mrb[0].mxu0
      %1548 = vmatprep.mubr.f32.mxu0 0.0
      %1549 = vmatmul.mubr.f32.gmra.mrb[0].mxu0 %v769
      %v1550 = vpop.f32.mrb[0].mxu0
      %v1551 = vadd.f32 0.0, %v1550
      %v1552 = vpop.f32.mrb[0].mxu0
      %1553 = vmatprep.mubr.f32.mxu0 0.0
      %1554 = vmatmul.mubr.f32.gmra.mrb[0].mxu0 %v771
      %v1555 = vpop.f32.mrb[0].mxu0
      %v1556 = vadd.f32 0.0, %v1555
      %v1557 = vpop.f32.mrb[0].mxu0
      %1558 = vmatprep.mubr.f32.mxu0 0.0
      %1559 = vmatmul.mubr.f32.gmra.mrb[0].mxu0 %v773
      %v1560 = vpop.f32.mrb[0].mxu0
      %v1561 = vadd.f32 0.0, %v1560
      %v1562 = vpop.f32.mrb[0].mxu0
      %1563 = vmatprep.mubr.f32.mxu0 0.0
      %1564 = vmatmul.mubr.f32.gmra.mrb[0].mxu0 %v775
      %v1565 = vpop.f32.mrb[0].mxu0
      %v1566 = vadd.f32 0.0, %v1565
      %v1567 = vpop.f32.mrb[0].mxu0
      %1568 = vmatprep.mubr.f32.mxu0 0.0
      %1569 = vmatmul.mubr.f32.gmra.mrb[0].mxu0 %v777
      %v1570 = vpop.f32.mrb[0].mxu0
      %v1571 = vadd.f32 0.0, %v1570
      %v1572 = vpop.f32.mrb[0].mxu0
      %1573 = vmatprep.mubr.f32.mxu0 0.0
      %1574 = vmatmul.mubr.f32.gmra.mrb[0].mxu0 %v779
      %v1575 = vpop.f32.mrb[0].mxu0
      %v1576 = vadd.f32 0.0, %v1575
      %v1577 = vpop.f32.mrb[0].mxu0
      %1578 = vmatprep.mubr.f32.mxu0 0.0
      %1579 = vmatmul.mubr.f32.gmra.mrb[0].mxu0 %v781
      %v1580 = vpop.f32.mrb[0].mxu0
      %v1581 = vadd.f32 0.0, %v1580
      %v1582 = vpop.f32.mrb[0].mxu0
      %1583 = vmatprep.mubr.f32.mxu0 0.0
      %1584 = vmatmul.mubr.f32.gmra.mrb[0].mxu0 %v783
      %v1585 = vpop.f32.mrb[0].mxu0
      %v1586 = vadd.f32 0.0, %v1585
      %v1587 = vpop.f32.mrb[0].mxu0
      %1588 = vmatprep.mubr.f32.mxu0 0.0
      %1589 = vmatmul.mubr.f32.gmra.mrb[0].mxu0 %v785
      %v1590 = vpop.f32.mrb[0].mxu0
      %v1591 = vadd.f32 0.0, %v1590
      %v1592 = vpop.f32.mrb[0].mxu0
      %1593 = vmatprep.mubr.f32.mxu0 0.0
      %1594 = vmatmul.mubr.f32.gmra.mrb[0].mxu0 %v787
      %v1595 = vpop.f32.mrb[0].mxu0
      %v1596 = vadd.f32 0.0, %v1595
      %v1597 = vpop.f32.mrb[0].mxu0
      %1598 = vmatprep.mubr.f32.mxu0 0.0
      %1599 = vmatmul.mubr.f32.gmra.mrb[0].mxu0 %v789
      %v1600 = vpop.f32.mrb[0].mxu0
      %v1601 = vadd.f32 0.0, %v1600
      %v1602 = vpop.f32.mrb[0].mxu0
      %1603 = vmatprep.mubr.f32.mxu0 0.0
      %1604 = vmatmul.mubr.f32.gmra.mrb[0].mxu0 %v791
      %v1605 = vpop.f32.mrb[0].mxu0
      %v1606 = vadd.f32 0.0, %v1605
      %v1607 = vpop.f32.mrb[0].mxu0
      %1608 = vmatprep.mubr.f32.mxu0 0.0
      %1609 = vmatmul.mubr.f32.gmra.mrb[0].mxu0 %v793
      %v1610 = vpop.f32.mrb[0].mxu0
      %v1611 = vadd.f32 0.0, %v1610
      %v1612 = vpop.f32.mrb[0].mxu0
      %1613 = vmatprep.mubr.f32.mxu0 0.0
      %1614 = vmatmul.mubr.f32.gmra.mrb[0].mxu0 %v795
      %v1615 = vpop.f32.mrb[0].mxu0
      %v1616 = vadd.f32 0.0, %v1615
      %v1617 = vpop.f32.mrb[0].mxu0
      %1618 = vmatprep.mubr.f32.mxu0 0.0
      %1619 = vmatmul.mubr.f32.gmra.mrb[0].mxu0 %v797
      %v1620 = vpop.f32.mrb[0].mxu0
      %v1621 = vadd.f32 0.0, %v1620
      %v1622 = vpop.f32.mrb[0].mxu0
      %1623 = vmatprep.mubr.f32.mxu0 0.0
      %1624 = vmatmul.mubr.f32.gmra.mrb[0].mxu0 %v799
      %v1625 = vpop.f32.mrb[0].mxu0
      %v1626 = vadd.f32 0.0, %v1625
      %v1627 = vpop.f32.mrb[0].mxu0
      %1628 = vmatprep.mubr.f32.mxu0 0.0
      %1629 = vmatmul.mubr.f32.gmra.mrb[0].mxu0 %v801
      %v1630 = vpop.f32.mrb[0].mxu0
      %v1631 = vadd.f32 0.0, %v1630
      %v1632 = vpop.f32.mrb[0].mxu0
      %1633 = vmatprep.mubr.f32.mxu0 0.0
      %1634 = vmatmul.mubr.f32.gmra.mrb[0].mxu0 %v803
      %v1635 = vpop.f32.mrb[0].mxu0
      %v1636 = vadd.f32 0.0, %v1635
      %v1637 = vpop.f32.mrb[0].mxu0
      %1638 = vmatprep.mubr.f32.mxu0 0.0
      %1639 = vmatmul.mubr.f32.gmra.mrb[0].mxu0 %v805
      %v1640 = vpop.f32.mrb[0].mxu0
      %v1641 = vadd.f32 0.0, %v1640
      %v1642 = vpop.f32.mrb[0].mxu0
      %1643 = vmatprep.mubr.f32.mxu0 0.0
      %1644 = vmatmul.mubr.f32.gmra.mrb[0].mxu0 %v807
      %v1645 = vpop.f32.mrb[0].mxu0
      %v1646 = vadd.f32 0.0, %v1645
      %v1647 = vpop.f32.mrb[0].mxu0
      %1648 = vmatprep.mubr.f32.mxu0 0.0
      %1649 = vmatmul.mubr.f32.gmra.mrb[0].mxu0 %v809
      %v1650 = vpop.f32.mrb[0].mxu0
      %v1651 = vadd.f32 0.0, %v1650
      %v1652 = vpop.f32.mrb[0].mxu0
      %1653 = vmatprep.mubr.f32.mxu0 0.0
      %1654 = vmatmul.mubr.f32.gmra.mrb[0].mxu0 %v811
      %v1655 = vpop.f32.mrb[0].mxu0
      %v1656 = vadd.f32 0.0, %v1655
      %v1657 = vpop.f32.mrb[0].mxu0
      %1658 = vmatprep.mubr.f32.mxu0 0.0
      %1659 = vmatmul.mubr.f32.gmra.mrb[0].mxu0 %v813
      %v1660 = vpop.f32.mrb[0].mxu0
      %v1661 = vadd.f32 0.0, %v1660
      %v1662 = vpop.f32.mrb[0].mxu0
      %1663 = vmatprep.mubr.f32.mxu0 0.0
      %1664 = vmatmul.mubr.f32.gmra.mrb[0].mxu0 %v815
      %v1665 = vpop.f32.mrb[0].mxu0
      %v1666 = vadd.f32 0.0, %v1665
      %v1667 = vpop.f32.mrb[0].mxu0
      %1668 = vmatprep.mubr.f32.mxu0 0.0
      %1669 = vmatmul.mubr.f32.gmra.mrb[0].mxu0 %v817
      %v1670 = vpop.f32.mrb[0].mxu0
      %v1671 = vadd.f32 0.0, %v1670
      %v1672 = vpop.f32.mrb[0].mxu0
      %1673 = vmatprep.mubr.f32.mxu0 0.0
      %1674 = vmatmul.mubr.f32.gmra.mrb[0].mxu0 %v819
      %v1675 = vpop.f32.mrb[0].mxu0
      %v1676 = vadd.f32 0.0, %v1675
      %v1677 = vpop.f32.mrb[0].mxu0
      %1678 = vmatprep.mubr.f32.mxu0 0.0
      %1679 = vmatmul.mubr.f32.gmra.mrb[0].mxu0 %v821
      %v1680 = vpop.f32.mrb[0].mxu0
      %v1681 = vadd.f32 0.0, %v1680
      %v1682 = vpop.f32.mrb[0].mxu0
      %1683 = vmatprep.mubr.f32.mxu0 0.0
      %1684 = vmatmul.mubr.f32.gmra.mrb[0].mxu0 %v1461
      %v1685 = vpop.f32.mrb[0].mxu0
      %v1686 = vadd.f32 0.0, %v1685
      %v1687 = vpop.f32.mrb[0].mxu0
      %1688 = vmatprep.mubr.f32.mxu0 0.0
      %1689 = vmatmul.mubr.f32.gmra.mrb[0].mxu0 %v1464
      %v1690 = vpop.f32.mrb[0].mxu0
      %v1691 = vadd.f32 0.0, %v1690
      %v1692 = vpop.f32.mrb[0].mxu0
      %1693 = vdwg.mxu0
      %v1694 = vadd.f32 %v1426, %v1536
      %v1695 = vadd.f32 %v1427, %v1541
      %v1696 = vadd.f32 %v1428, %v1546
      %v1697 = vadd.f32 %v1429, %v1551
      %v1698 = vadd.f32 %v1430, %v1556
      %v1699 = vadd.f32 %v1431, %v1561
      %v1700 = vadd.f32 %v1432, %v1566
      %v1701 = vadd.f32 %v1433, %v1571
      %v1702 = vadd.f32 %v1434, %v1576
      %v1703 = vadd.f32 %v1435, %v1581
      %v1704 = vadd.f32 %v1436, %v1586
      %v1705 = vadd.f32 %v1437, %v1591
      %v1706 = vadd.f32 %v1438, %v1596
      %v1707 = vadd.f32 %v1439, %v1601
      %v1708 = vadd.f32 %v1440, %v1606
      %v1709 = vadd.f32 %v1441, %v1611
      %v1710 = vadd.f32 %v1442, %v1616
      %v1711 = vadd.f32 %v1443, %v1621
      %v1712 = vadd.f32 %v1444, %v1626
      %v1713 = vadd.f32 %v1445, %v1631
      %v1714 = vadd.f32 %v1446, %v1636
      %v1715 = vadd.f32 %v1447, %v1641
      %v1716 = vadd.f32 %v1448, %v1646
      %v1717 = vadd.f32 %v1449, %v1651
      %v1718 = vadd.f32 %v1450, %v1656
      %v1719 = vadd.f32 %v1451, %v1661
      %v1720 = vadd.f32 %v1452, %v1666
      %v1721 = vadd.f32 %v1453, %v1671
      %v1722 = vadd.f32 %v1454, %v1676
      %v1723 = vadd.f32 %v1455, %v1681
      %v1724 = vadd.f32 %v1456, %v1686
      %v1725 = vadd.f32 %v1457, %v1691
      %v1727 = vrot.slane %v327, 1
      %v1728 = vrot.slane %v328, 1
      %v1729 = vsel %vm382, %v1727, %v1728
      %v1730 = vrot.slane %v329, 1
      %v1731 = vsel %vm382, %v1728, %v1730
      %s1764 = scalar_lea.vmem %s1, 16
      %v1765 = vld [vmem:[%s1764] sm:$0xf]
      %v1766 = vsel %vm465, %v1729, 0
      %v1768 = vsel %vm465, %v1731, 0
      %v1771 = vsel %vm530, %v1765, 0
      %1773 = vmatprep.subr.mxu0 0.0
      %1774 = vmatpush1.msra.mxu0 %v1771
      %1775 = vmatprep.subr.mxu0 0.0
      %1776 = vmatpush1.msra.mxu0 0.0
      %1777 = vmatprep.subr.mxu0 0.0
      %1778 = vmatpush1.msra.mxu0 0.0
      %1779 = vmatprep.subr.mxu0 0.0
      %1780 = vmatpush1.msra.mxu0 0.0
      %1781 = vmatprep.subr.mxu0 0.0
      %1782 = vmatpush1.msra.mxu0 0.0
      %1783 = vmatprep.subr.mxu0 0.0
      %1784 = vmatpush1.msra.mxu0 0.0
      %1785 = vmatprep.subr.mxu0 0.0
      %1786 = vmatpush1.msra.mxu0 0.0
      %1787 = vmatprep.subr.mxu0 0.0
      %1788 = vmatpush1.msra.mxu0 0.0
      %1789 = vmatprep.subr.mxu0 0.0
      %1790 = vmatpush1.msra.mxu0 0.0
      %1791 = vmatprep.subr.mxu0 0.0
      %1792 = vmatpush1.msra.mxu0 0.0
      %1793 = vmatprep.subr.mxu0 0.0
      %1794 = vmatpush1.msra.mxu0 0.0
      %1795 = vmatprep.subr.mxu0 0.0
      %1796 = vmatpush1.msra.mxu0 0.0
      %1797 = vmatprep.subr.mxu0 0.0
      %1798 = vmatpush1.msra.mxu0 0.0
      %1799 = vmatprep.subr.mxu0 0.0
      %1800 = vmatpush1.msra.mxu0 0.0
      %1801 = vmatprep.subr.mxu0 0.0
      %1802 = vmatpush1.msra.mxu0 0.0
      %1803 = vmatprep.subr.mxu0 0.0
      %1804 = vmatpush1.msra.mxu0 0.0
      %1805 = vmatprep.subr.mxu0 0.0
      %1806 = vmatpush1.msra.mxu0 0.0
      %1807 = vmatprep.subr.mxu0 0.0
      %1808 = vmatpush1.msra.mxu0 0.0
      %1809 = vmatprep.subr.mxu0 0.0
      %1810 = vmatpush1.msra.mxu0 0.0
      %1811 = vmatprep.subr.mxu0 0.0
      %1812 = vmatpush1.msra.mxu0 0.0
      %1813 = vmatprep.subr.mxu0 0.0
      %1814 = vmatpush1.msra.mxu0 0.0
      %1815 = vmatprep.subr.mxu0 0.0
      %1816 = vmatpush1.msra.mxu0 0.0
      %1817 = vmatprep.subr.mxu0 0.0
      %1818 = vmatpush1.msra.mxu0 0.0
      %1819 = vmatprep.subr.mxu0 0.0
      %1820 = vmatpush1.msra.mxu0 0.0
      %1821 = vmatprep.subr.mxu0 0.0
      %1822 = vmatpush1.msra.mxu0 0.0
      %1823 = vmatprep.subr.mxu0 0.0
      %1824 = vmatpush1.msra.mxu0 0.0
      %1825 = vmatprep.subr.mxu0 0.0
      %1826 = vmatpush1.msra.mxu0 0.0
      %1827 = vmatprep.subr.mxu0 0.0
      %1828 = vmatpush1.msra.mxu0 0.0
      %1829 = vmatprep.subr.mxu0 0.0
      %1830 = vmatpush1.msra.mxu0 0.0
      %1831 = vmatprep.subr.mxu0 0.0
      %1832 = vmatpush1.msra.mxu0 0.0
      %1833 = vmatprep.subr.mxu0 0.0
      %1834 = vmatpush1.msra.mxu0 0.0
      %1835 = vmatprep.subr.mxu0 0.0
      %1836 = vmatpush1.msra.mxu0 0.0
      %1837 = vmatprep.mubr.f32.mxu0 0.0
      %1838 = vmatmul.mubr.f32.gmra.mrb[0].mxu0 %v470
      %v1839 = vpop.f32.mrb[0].mxu0
      %v1840 = vadd.f32 0.0, %v1839
      %v1841 = vpop.f32.mrb[0].mxu0
      %1842 = vmatprep.mubr.f32.mxu0 0.0
      %1843 = vmatmul.mubr.f32.gmra.mrb[0].mxu0 %v472
      %v1844 = vpop.f32.mrb[0].mxu0
      %v1845 = vadd.f32 0.0, %v1844
      %v1846 = vpop.f32.mrb[0].mxu0
      %1847 = vmatprep.mubr.f32.mxu0 0.0
      %1848 = vmatmul.mubr.f32.gmra.mrb[0].mxu0 %v474
      %v1849 = vpop.f32.mrb[0].mxu0
      %v1850 = vadd.f32 0.0, %v1849
      %v1851 = vpop.f32.mrb[0].mxu0
      %1852 = vmatprep.mubr.f32.mxu0 0.0
      %1853 = vmatmul.mubr.f32.gmra.mrb[0].mxu0 %v476
      %v1854 = vpop.f32.mrb[0].mxu0
      %v1855 = vadd.f32 0.0, %v1854
      %v1856 = vpop.f32.mrb[0].mxu0
      %1857 = vmatprep.mubr.f32.mxu0 0.0
      %1858 = vmatmul.mubr.f32.gmra.mrb[0].mxu0 %v478
      %v1859 = vpop.f32.mrb[0].mxu0
      %v1860 = vadd.f32 0.0, %v1859
      %v1861 = vpop.f32.mrb[0].mxu0
      %1862 = vmatprep.mubr.f32.mxu0 0.0
      %1863 = vmatmul.mubr.f32.gmra.mrb[0].mxu0 %v480
      %v1864 = vpop.f32.mrb[0].mxu0
      %v1865 = vadd.f32 0.0, %v1864
      %v1866 = vpop.f32.mrb[0].mxu0
      %1867 = vmatprep.mubr.f32.mxu0 0.0
      %1868 = vmatmul.mubr.f32.gmra.mrb[0].mxu0 %v482
      %v1869 = vpop.f32.mrb[0].mxu0
      %v1870 = vadd.f32 0.0, %v1869
      %v1871 = vpop.f32.mrb[0].mxu0
      %1872 = vmatprep.mubr.f32.mxu0 0.0
      %1873 = vmatmul.mubr.f32.gmra.mrb[0].mxu0 %v484
      %v1874 = vpop.f32.mrb[0].mxu0
      %v1875 = vadd.f32 0.0, %v1874
      %v1876 = vpop.f32.mrb[0].mxu0
      %1877 = vmatprep.mubr.f32.mxu0 0.0
      %1878 = vmatmul.mubr.f32.gmra.mrb[0].mxu0 %v486
      %v1879 = vpop.f32.mrb[0].mxu0
      %v1880 = vadd.f32 0.0, %v1879
      %v1881 = vpop.f32.mrb[0].mxu0
      %1882 = vmatprep.mubr.f32.mxu0 0.0
      %1883 = vmatmul.mubr.f32.gmra.mrb[0].mxu0 %v488
      %v1884 = vpop.f32.mrb[0].mxu0
      %v1885 = vadd.f32 0.0, %v1884
      %v1886 = vpop.f32.mrb[0].mxu0
      %1887 = vmatprep.mubr.f32.mxu0 0.0
      %1888 = vmatmul.mubr.f32.gmra.mrb[0].mxu0 %v490
      %v1889 = vpop.f32.mrb[0].mxu0
      %v1890 = vadd.f32 0.0, %v1889
      %v1891 = vpop.f32.mrb[0].mxu0
      %1892 = vmatprep.mubr.f32.mxu0 0.0
      %1893 = vmatmul.mubr.f32.gmra.mrb[0].mxu0 %v492
      %v1894 = vpop.f32.mrb[0].mxu0
      %v1895 = vadd.f32 0.0, %v1894
      %v1896 = vpop.f32.mrb[0].mxu0
      %1897 = vmatprep.mubr.f32.mxu0 0.0
      %1898 = vmatmul.mubr.f32.gmra.mrb[0].mxu0 %v494
      %v1899 = vpop.f32.mrb[0].mxu0
      %v1900 = vadd.f32 0.0, %v1899
      %v1901 = vpop.f32.mrb[0].mxu0
      %1902 = vmatprep.mubr.f32.mxu0 0.0
      %1903 = vmatmul.mubr.f32.gmra.mrb[0].mxu0 %v496
      %v1904 = vpop.f32.mrb[0].mxu0
      %v1905 = vadd.f32 0.0, %v1904
      %v1906 = vpop.f32.mrb[0].mxu0
      %1907 = vmatprep.mubr.f32.mxu0 0.0
      %1908 = vmatmul.mubr.f32.gmra.mrb[0].mxu0 %v498
      %v1909 = vpop.f32.mrb[0].mxu0
      %v1910 = vadd.f32 0.0, %v1909
      %v1911 = vpop.f32.mrb[0].mxu0
      %1912 = vmatprep.mubr.f32.mxu0 0.0
      %1913 = vmatmul.mubr.f32.gmra.mrb[0].mxu0 %v500
      %v1914 = vpop.f32.mrb[0].mxu0
      %v1915 = vadd.f32 0.0, %v1914
      %v1916 = vpop.f32.mrb[0].mxu0
      %1917 = vmatprep.mubr.f32.mxu0 0.0
      %1918 = vmatmul.mubr.f32.gmra.mrb[0].mxu0 %v502
      %v1919 = vpop.f32.mrb[0].mxu0
      %v1920 = vadd.f32 0.0, %v1919
      %v1921 = vpop.f32.mrb[0].mxu0
      %1922 = vmatprep.mubr.f32.mxu0 0.0
      %1923 = vmatmul.mubr.f32.gmra.mrb[0].mxu0 %v504
      %v1924 = vpop.f32.mrb[0].mxu0
      %v1925 = vadd.f32 0.0, %v1924
      %v1926 = vpop.f32.mrb[0].mxu0
      %1927 = vmatprep.mubr.f32.mxu0 0.0
      %1928 = vmatmul.mubr.f32.gmra.mrb[0].mxu0 %v506
      %v1929 = vpop.f32.mrb[0].mxu0
      %v1930 = vadd.f32 0.0, %v1929
      %v1931 = vpop.f32.mrb[0].mxu0
      %1932 = vmatprep.mubr.f32.mxu0 0.0
      %1933 = vmatmul.mubr.f32.gmra.mrb[0].mxu0 %v508
      %v1934 = vpop.f32.mrb[0].mxu0
      %v1935 = vadd.f32 0.0, %v1934
      %v1936 = vpop.f32.mrb[0].mxu0
      %1937 = vmatprep.mubr.f32.mxu0 0.0
      %1938 = vmatmul.mubr.f32.gmra.mrb[0].mxu0 %v510
      %v1939 = vpop.f32.mrb[0].mxu0
      %v1940 = vadd.f32 0.0, %v1939
      %v1941 = vpop.f32.mrb[0].mxu0
      %1942 = vmatprep.mubr.f32.mxu0 0.0
      %1943 = vmatmul.mubr.f32.gmra.mrb[0].mxu0 %v512
      %v1944 = vpop.f32.mrb[0].mxu0
      %v1945 = vadd.f32 0.0, %v1944
      %v1946 = vpop.f32.mrb[0].mxu0
      %1947 = vmatprep.mubr.f32.mxu0 0.0
      %1948 = vmatmul.mubr.f32.gmra.mrb[0].mxu0 %v514
      %v1949 = vpop.f32.mrb[0].mxu0
      %v1950 = vadd.f32 0.0, %v1949
      %v1951 = vpop.f32.mrb[0].mxu0
      %1952 = vmatprep.mubr.f32.mxu0 0.0
      %1953 = vmatmul.mubr.f32.gmra.mrb[0].mxu0 %v516
      %v1954 = vpop.f32.mrb[0].mxu0
      %v1955 = vadd.f32 0.0, %v1954
      %v1956 = vpop.f32.mrb[0].mxu0
      %1957 = vmatprep.mubr.f32.mxu0 0.0
      %1958 = vmatmul.mubr.f32.gmra.mrb[0].mxu0 %v518
      %v1959 = vpop.f32.mrb[0].mxu0
      %v1960 = vadd.f32 0.0, %v1959
      %v1961 = vpop.f32.mrb[0].mxu0
      %1962 = vmatprep.mubr.f32.mxu0 0.0
      %1963 = vmatmul.mubr.f32.gmra.mrb[0].mxu0 %v520
      %v1964 = vpop.f32.mrb[0].mxu0
      %v1965 = vadd.f32 0.0, %v1964
      %v1966 = vpop.f32.mrb[0].mxu0
      %1967 = vmatprep.mubr.f32.mxu0 0.0
      %1968 = vmatmul.mubr.f32.gmra.mrb[0].mxu0 %v522
      %v1969 = vpop.f32.mrb[0].mxu0
      %v1970 = vadd.f32 0.0, %v1969
      %v1971 = vpop.f32.mrb[0].mxu0
      %1972 = vmatprep.mubr.f32.mxu0 0.0
      %1973 = vmatmul.mubr.f32.gmra.mrb[0].mxu0 %v524
      %v1974 = vpop.f32.mrb[0].mxu0
      %v1975 = vadd.f32 0.0, %v1974
      %v1976 = vpop.f32.mrb[0].mxu0
      %1977 = vmatprep.mubr.f32.mxu0 0.0
      %1978 = vmatmul.mubr.f32.gmra.mrb[0].mxu0 %v526
      %v1979 = vpop.f32.mrb[0].mxu0
      %v1980 = vadd.f32 0.0, %v1979
      %v1981 = vpop.f32.mrb[0].mxu0
      %1982 = vmatprep.mubr.f32.mxu0 0.0
      %1983 = vmatmul.mubr.f32.gmra.mrb[0].mxu0 %v528
      %v1984 = vpop.f32.mrb[0].mxu0
      %v1985 = vadd.f32 0.0, %v1984
      %v1986 = vpop.f32.mrb[0].mxu0
      %1987 = vmatprep.mubr.f32.mxu0 0.0
      %1988 = vmatmul.mubr.f32.gmra.mrb[0].mxu0 %v1766
      %v1989 = vpop.f32.mrb[0].mxu0
      %v1990 = vadd.f32 0.0, %v1989
      %v1991 = vpop.f32.mrb[0].mxu0
      %1992 = vmatprep.mubr.f32.mxu0 0.0
      %1993 = vmatmul.mubr.f32.gmra.mrb[0].mxu0 %v1768
      %v1994 = vpop.f32.mrb[0].mxu0
      %v1995 = vadd.f32 0.0, %v1994
      %v1996 = vpop.f32.mrb[0].mxu0
      %1997 = vdwg.mxu0
      %v1998 = vadd.f32 %v1694, %v1840
      %v1999 = vadd.f32 %v1695, %v1845
      %v2000 = vadd.f32 %v1696, %v1850
      %v2001 = vadd.f32 %v1697, %v1855
      %v2002 = vadd.f32 %v1698, %v1860
      %v2003 = vadd.f32 %v1699, %v1865
      %v2004 = vadd.f32 %v1700, %v1870
      %v2005 = vadd.f32 %v1701, %v1875
      %v2006 = vadd.f32 %v1702, %v1880
      %v2007 = vadd.f32 %v1703, %v1885
      %v2008 = vadd.f32 %v1704, %v1890
      %v2009 = vadd.f32 %v1705, %v1895
      %v2010 = vadd.f32 %v1706, %v1900
      %v2011 = vadd.f32 %v1707, %v1905
      %v2012 = vadd.f32 %v1708, %v1910
      %v2013 = vadd.f32 %v1709, %v1915
      %v2014 = vadd.f32 %v1710, %v1920
      %v2015 = vadd.f32 %v1711, %v1925
      %v2016 = vadd.f32 %v1712, %v1930
      %v2017 = vadd.f32 %v1713, %v1935
      %v2018 = vadd.f32 %v1714, %v1940
      %v2019 = vadd.f32 %v1715, %v1945
      %v2020 = vadd.f32 %v1716, %v1950
      %v2021 = vadd.f32 %v1717, %v1955
      %v2022 = vadd.f32 %v1718, %v1960
      %v2023 = vadd.f32 %v1719, %v1965
      %v2024 = vadd.f32 %v1720, %v1970
      %v2025 = vadd.f32 %v1721, %v1975
      %v2026 = vadd.f32 %v1722, %v1980
      %v2027 = vadd.f32 %v1723, %v1985
      %v2028 = vadd.f32 %v1724, %v1990
      %v2029 = vadd.f32 %v1725, %v1995
      %v2030 = vrot.slane %v327, 2
      %v2031 = vrot.slane %v328, 2
      %v2032 = vsel %vm1051, %v2030, %v2031
      %v2033 = vrot.slane %v329, 2
      %v2034 = vsel %vm1051, %v2031, %v2033
      %s2035 = scalar_lea.vmem %s1, 20
      %v2036 = vld [vmem:[%s2035] sm:$0xf]
      %v2037 = vsel %vm465, %v2032, 0
      %v2039 = vsel %vm465, %v2034, 0
      %v2042 = vsel %vm530, %v2036, 0
      %2044 = vmatprep.subr.mxu0 0.0
      %2045 = vmatpush1.msra.mxu0 %v2042
      %2046 = vmatprep.subr.mxu0 0.0
      %2047 = vmatpush1.msra.mxu0 0.0
      %2048 = vmatprep.subr.mxu0 0.0
      %2049 = vmatpush1.msra.mxu0 0.0
      %2050 = vmatprep.subr.mxu0 0.0
      %2051 = vmatpush1.msra.mxu0 0.0
      %2052 = vmatprep.subr.mxu0 0.0
      %2053 = vmatpush1.msra.mxu0 0.0
      %2054 = vmatprep.subr.mxu0 0.0
      %2055 = vmatpush1.msra.mxu0 0.0
      %2056 = vmatprep.subr.mxu0 0.0
      %2057 = vmatpush1.msra.mxu0 0.0
      %2058 = vmatprep.subr.mxu0 0.0
      %2059 = vmatpush1.msra.mxu0 0.0
      %2060 = vmatprep.subr.mxu0 0.0
      %2061 = vmatpush1.msra.mxu0 0.0
      %2062 = vmatprep.subr.mxu0 0.0
      %2063 = vmatpush1.msra.mxu0 0.0
      %2064 = vmatprep.subr.mxu0 0.0
      %2065 = vmatpush1.msra.mxu0 0.0
      %2066 = vmatprep.subr.mxu0 0.0
      %2067 = vmatpush1.msra.mxu0 0.0
      %2068 = vmatprep.subr.mxu0 0.0
      %2069 = vmatpush1.msra.mxu0 0.0
      %2070 = vmatprep.subr.mxu0 0.0
      %2071 = vmatpush1.msra.mxu0 0.0
      %2072 = vmatprep.subr.mxu0 0.0
      %2073 = vmatpush1.msra.mxu0 0.0
      %2074 = vmatprep.subr.mxu0 0.0
      %2075 = vmatpush1.msra.mxu0 0.0
      %2076 = vmatprep.subr.mxu0 0.0
      %2077 = vmatpush1.msra.mxu0 0.0
      %2078 = vmatprep.subr.mxu0 0.0
      %2079 = vmatpush1.msra.mxu0 0.0
      %2080 = vmatprep.subr.mxu0 0.0
      %2081 = vmatpush1.msra.mxu0 0.0
      %2082 = vmatprep.subr.mxu0 0.0
      %2083 = vmatpush1.msra.mxu0 0.0
      %2084 = vmatprep.subr.mxu0 0.0
      %2085 = vmatpush1.msra.mxu0 0.0
      %2086 = vmatprep.subr.mxu0 0.0
      %2087 = vmatpush1.msra.mxu0 0.0
      %2088 = vmatprep.subr.mxu0 0.0
      %2089 = vmatpush1.msra.mxu0 0.0
      %2090 = vmatprep.subr.mxu0 0.0
      %2091 = vmatpush1.msra.mxu0 0.0
      %2092 = vmatprep.subr.mxu0 0.0
      %2093 = vmatpush1.msra.mxu0 0.0
      %2094 = vmatprep.subr.mxu0 0.0
      %2095 = vmatpush1.msra.mxu0 0.0
      %2096 = vmatprep.subr.mxu0 0.0
      %2097 = vmatpush1.msra.mxu0 0.0
      %2098 = vmatprep.subr.mxu0 0.0
      %2099 = vmatpush1.msra.mxu0 0.0
      %2100 = vmatprep.subr.mxu0 0.0
      %2101 = vmatpush1.msra.mxu0 0.0
      %2102 = vmatprep.subr.mxu0 0.0
      %2103 = vmatpush1.msra.mxu0 0.0
      %2104 = vmatprep.subr.mxu0 0.0
      %2105 = vmatpush1.msra.mxu0 0.0
      %2106 = vmatprep.subr.mxu0 0.0
      %2107 = vmatpush1.msra.mxu0 0.0
      %2108 = vmatprep.mubr.f32.mxu0 0.0
      %2109 = vmatmul.mubr.f32.gmra.mrb[0].mxu0 %v1138
      %v2110 = vpop.f32.mrb[0].mxu0
      %v2111 = vadd.f32 0.0, %v2110
      %v2112 = vpop.f32.mrb[0].mxu0
      %2113 = vmatprep.mubr.f32.mxu0 0.0
      %2114 = vmatmul.mubr.f32.gmra.mrb[0].mxu0 %v1140
      %v2115 = vpop.f32.mrb[0].mxu0
      %v2116 = vadd.f32 0.0, %v2115
      %v2117 = vpop.f32.mrb[0].mxu0
      %2118 = vmatprep.mubr.f32.mxu0 0.0
      %2119 = vmatmul.mubr.f32.gmra.mrb[0].mxu0 %v1142
      %v2120 = vpop.f32.mrb[0].mxu0
      %v2121 = vadd.f32 0.0, %v2120
      %v2122 = vpop.f32.mrb[0].mxu0
      %2123 = vmatprep.mubr.f32.mxu0 0.0
      %2124 = vmatmul.mubr.f32.gmra.mrb[0].mxu0 %v1144
      %v2125 = vpop.f32.mrb[0].mxu0
      %v2126 = vadd.f32 0.0, %v2125
      %v2127 = vpop.f32.mrb[0].mxu0
      %2128 = vmatprep.mubr.f32.mxu0 0.0
      %2129 = vmatmul.mubr.f32.gmra.mrb[0].mxu0 %v1146
      %v2130 = vpop.f32.mrb[0].mxu0
      %v2131 = vadd.f32 0.0, %v2130
      %v2132 = vpop.f32.mrb[0].mxu0
      %2133 = vmatprep.mubr.f32.mxu0 0.0
      %2134 = vmatmul.mubr.f32.gmra.mrb[0].mxu0 %v1148
      %v2135 = vpop.f32.mrb[0].mxu0
      %v2136 = vadd.f32 0.0, %v2135
      %v2137 = vpop.f32.mrb[0].mxu0
      %2138 = vmatprep.mubr.f32.mxu0 0.0
      %2139 = vmatmul.mubr.f32.gmra.mrb[0].mxu0 %v1150
      %v2140 = vpop.f32.mrb[0].mxu0
      %v2141 = vadd.f32 0.0, %v2140
      %v2142 = vpop.f32.mrb[0].mxu0
      %2143 = vmatprep.mubr.f32.mxu0 0.0
      %2144 = vmatmul.mubr.f32.gmra.mrb[0].mxu0 %v1152
      %v2145 = vpop.f32.mrb[0].mxu0
      %v2146 = vadd.f32 0.0, %v2145
      %v2147 = vpop.f32.mrb[0].mxu0
      %2148 = vmatprep.mubr.f32.mxu0 0.0
      %2149 = vmatmul.mubr.f32.gmra.mrb[0].mxu0 %v1154
      %v2150 = vpop.f32.mrb[0].mxu0
      %v2151 = vadd.f32 0.0, %v2150
      %v2152 = vpop.f32.mrb[0].mxu0
      %2153 = vmatprep.mubr.f32.mxu0 0.0
      %2154 = vmatmul.mubr.f32.gmra.mrb[0].mxu0 %v1156
      %v2155 = vpop.f32.mrb[0].mxu0
      %v2156 = vadd.f32 0.0, %v2155
      %v2157 = vpop.f32.mrb[0].mxu0
      %2158 = vmatprep.mubr.f32.mxu0 0.0
      %2159 = vmatmul.mubr.f32.gmra.mrb[0].mxu0 %v1158
      %v2160 = vpop.f32.mrb[0].mxu0
      %v2161 = vadd.f32 0.0, %v2160
      %v2162 = vpop.f32.mrb[0].mxu0
      %2163 = vmatprep.mubr.f32.mxu0 0.0
      %2164 = vmatmul.mubr.f32.gmra.mrb[0].mxu0 %v1160
      %v2165 = vpop.f32.mrb[0].mxu0
      %v2166 = vadd.f32 0.0, %v2165
      %v2167 = vpop.f32.mrb[0].mxu0
      %2168 = vmatprep.mubr.f32.mxu0 0.0
      %2169 = vmatmul.mubr.f32.gmra.mrb[0].mxu0 %v1162
      %v2170 = vpop.f32.mrb[0].mxu0
      %v2171 = vadd.f32 0.0, %v2170
      %v2172 = vpop.f32.mrb[0].mxu0
      %2173 = vmatprep.mubr.f32.mxu0 0.0
      %2174 = vmatmul.mubr.f32.gmra.mrb[0].mxu0 %v1164
      %v2175 = vpop.f32.mrb[0].mxu0
      %v2176 = vadd.f32 0.0, %v2175
      %v2177 = vpop.f32.mrb[0].mxu0
      %2178 = vmatprep.mubr.f32.mxu0 0.0
      %2179 = vmatmul.mubr.f32.gmra.mrb[0].mxu0 %v1166
      %v2180 = vpop.f32.mrb[0].mxu0
      %v2181 = vadd.f32 0.0, %v2180
      %v2182 = vpop.f32.mrb[0].mxu0
      %2183 = vmatprep.mubr.f32.mxu0 0.0
      %2184 = vmatmul.mubr.f32.gmra.mrb[0].mxu0 %v1168
      %v2185 = vpop.f32.mrb[0].mxu0
      %v2186 = vadd.f32 0.0, %v2185
      %v2187 = vpop.f32.mrb[0].mxu0
      %2188 = vmatprep.mubr.f32.mxu0 0.0
      %2189 = vmatmul.mubr.f32.gmra.mrb[0].mxu0 %v1170
      %v2190 = vpop.f32.mrb[0].mxu0
      %v2191 = vadd.f32 0.0, %v2190
      %v2192 = vpop.f32.mrb[0].mxu0
      %2193 = vmatprep.mubr.f32.mxu0 0.0
      %2194 = vmatmul.mubr.f32.gmra.mrb[0].mxu0 %v1172
      %v2195 = vpop.f32.mrb[0].mxu0
      %v2196 = vadd.f32 0.0, %v2195
      %v2197 = vpop.f32.mrb[0].mxu0
      %2198 = vmatprep.mubr.f32.mxu0 0.0
      %2199 = vmatmul.mubr.f32.gmra.mrb[0].mxu0 %v1174
      %v2200 = vpop.f32.mrb[0].mxu0
      %v2201 = vadd.f32 0.0, %v2200
      %v2202 = vpop.f32.mrb[0].mxu0
      %2203 = vmatprep.mubr.f32.mxu0 0.0
      %2204 = vmatmul.mubr.f32.gmra.mrb[0].mxu0 %v1176
      %v2205 = vpop.f32.mrb[0].mxu0
      %v2206 = vadd.f32 0.0, %v2205
      %v2207 = vpop.f32.mrb[0].mxu0
      %2208 = vmatprep.mubr.f32.mxu0 0.0
      %2209 = vmatmul.mubr.f32.gmra.mrb[0].mxu0 %v1178
      %v2210 = vpop.f32.mrb[0].mxu0
      %v2211 = vadd.f32 0.0, %v2210
      %v2212 = vpop.f32.mrb[0].mxu0
      %2213 = vmatprep.mubr.f32.mxu0 0.0
      %2214 = vmatmul.mubr.f32.gmra.mrb[0].mxu0 %v1180
      %v2215 = vpop.f32.mrb[0].mxu0
      %v2216 = vadd.f32 0.0, %v2215
      %v2217 = vpop.f32.mrb[0].mxu0
      %2218 = vmatprep.mubr.f32.mxu0 0.0
      %2219 = vmatmul.mubr.f32.gmra.mrb[0].mxu0 %v1182
      %v2220 = vpop.f32.mrb[0].mxu0
      %v2221 = vadd.f32 0.0, %v2220
      %v2222 = vpop.f32.mrb[0].mxu0
      %2223 = vmatprep.mubr.f32.mxu0 0.0
      %2224 = vmatmul.mubr.f32.gmra.mrb[0].mxu0 %v1184
      %v2225 = vpop.f32.mrb[0].mxu0
      %v2226 = vadd.f32 0.0, %v2225
      %v2227 = vpop.f32.mrb[0].mxu0
      %2228 = vmatprep.mubr.f32.mxu0 0.0
      %2229 = vmatmul.mubr.f32.gmra.mrb[0].mxu0 %v1186
      %v2230 = vpop.f32.mrb[0].mxu0
      %v2231 = vadd.f32 0.0, %v2230
      %v2232 = vpop.f32.mrb[0].mxu0
      %2233 = vmatprep.mubr.f32.mxu0 0.0
      %2234 = vmatmul.mubr.f32.gmra.mrb[0].mxu0 %v1188
      %v2235 = vpop.f32.mrb[0].mxu0
      %v2236 = vadd.f32 0.0, %v2235
      %v2237 = vpop.f32.mrb[0].mxu0
      %2238 = vmatprep.mubr.f32.mxu0 0.0
      %2239 = vmatmul.mubr.f32.gmra.mrb[0].mxu0 %v1190
      %v2240 = vpop.f32.mrb[0].mxu0
      %v2241 = vadd.f32 0.0, %v2240
      %v2242 = vpop.f32.mrb[0].mxu0
      %2243 = vmatprep.mubr.f32.mxu0 0.0
      %2244 = vmatmul.mubr.f32.gmra.mrb[0].mxu0 %v1192
      %v2245 = vpop.f32.mrb[0].mxu0
      %v2246 = vadd.f32 0.0, %v2245
      %v2247 = vpop.f32.mrb[0].mxu0
      %2248 = vmatprep.mubr.f32.mxu0 0.0
      %2249 = vmatmul.mubr.f32.gmra.mrb[0].mxu0 %v1194
      %v2250 = vpop.f32.mrb[0].mxu0
      %v2251 = vadd.f32 0.0, %v2250
      %v2252 = vpop.f32.mrb[0].mxu0
      %2253 = vmatprep.mubr.f32.mxu0 0.0
      %2254 = vmatmul.mubr.f32.gmra.mrb[0].mxu0 %v1196
      %v2255 = vpop.f32.mrb[0].mxu0
      %v2256 = vadd.f32 0.0, %v2255
      %v2257 = vpop.f32.mrb[0].mxu0
      %2258 = vmatprep.mubr.f32.mxu0 0.0
      %2259 = vmatmul.mubr.f32.gmra.mrb[0].mxu0 %v2037
      %v2260 = vpop.f32.mrb[0].mxu0
      %v2261 = vadd.f32 0.0, %v2260
      %v2262 = vpop.f32.mrb[0].mxu0
      %2263 = vmatprep.mubr.f32.mxu0 0.0
      %2264 = vmatmul.mubr.f32.gmra.mrb[0].mxu0 %v2039
      %v2265 = vpop.f32.mrb[0].mxu0
      %v2266 = vadd.f32 0.0, %v2265
      %v2267 = vpop.f32.mrb[0].mxu0
      %2268 = vdwg.mxu0
      %v2269 = vadd.f32 %v1998, %v2111
      %v2270 = vadd.f32 %v1999, %v2116
      %v2271 = vadd.f32 %v2000, %v2121
      %v2272 = vadd.f32 %v2001, %v2126
      %v2273 = vadd.f32 %v2002, %v2131
      %v2274 = vadd.f32 %v2003, %v2136
      %v2275 = vadd.f32 %v2004, %v2141
      %v2276 = vadd.f32 %v2005, %v2146
      %v2277 = vadd.f32 %v2006, %v2151
      %v2278 = vadd.f32 %v2007, %v2156
      %v2279 = vadd.f32 %v2008, %v2161
      %v2280 = vadd.f32 %v2009, %v2166
      %v2281 = vadd.f32 %v2010, %v2171
      %v2282 = vadd.f32 %v2011, %v2176
      %v2283 = vadd.f32 %v2012, %v2181
      %v2284 = vadd.f32 %v2013, %v2186
      %v2285 = vadd.f32 %v2014, %v2191
      %v2286 = vadd.f32 %v2015, %v2196
      %v2287 = vadd.f32 %v2016, %v2201
      %v2288 = vadd.f32 %v2017, %v2206
      %v2289 = vadd.f32 %v2018, %v2211
      %v2290 = vadd.f32 %v2019, %v2216
      %v2291 = vadd.f32 %v2020, %v2221
      %v2292 = vadd.f32 %v2021, %v2226
      %v2293 = vadd.f32 %v2022, %v2231
      %v2294 = vadd.f32 %v2023, %v2236
      %v2295 = vadd.f32 %v2024, %v2241
      %v2296 = vadd.f32 %v2025, %v2246
      %v2297 = vadd.f32 %v2026, %v2251
      %v2298 = vadd.f32 %v2027, %v2256
      %v2299 = vadd.f32 %v2028, %v2261
      %v2300 = vadd.f32 %v2029, %v2266
      %s2301 = scalar_lea.vmem %s1, 24
      %v2302 = vld [vmem:[%s2301] sm:$0xf]
      %v2304 = vsel %vm465, %v330, 0
      %v2307 = vsel %vm465, %v331, 0
      %v2310 = vsel %vm530, %v2302, 0
      %2312 = vmatprep.subr.mxu0 0.0
      %2313 = vmatpush1.msra.mxu0 %v2310
      %2314 = vmatprep.subr.mxu0 0.0
      %2315 = vmatpush1.msra.mxu0 0.0
      %2316 = vmatprep.subr.mxu0 0.0
      %2317 = vmatpush1.msra.mxu0 0.0
      %2318 = vmatprep.subr.mxu0 0.0
      %2319 = vmatpush1.msra.mxu0 0.0
      %2320 = vmatprep.subr.mxu0 0.0
      %2321 = vmatpush1.msra.mxu0 0.0
      %2322 = vmatprep.subr.mxu0 0.0
      %2323 = vmatpush1.msra.mxu0 0.0
      %2324 = vmatprep.subr.mxu0 0.0
      %2325 = vmatpush1.msra.mxu0 0.0
      %2326 = vmatprep.subr.mxu0 0.0
      %2327 = vmatpush1.msra.mxu0 0.0
      %2328 = vmatprep.subr.mxu0 0.0
      %2329 = vmatpush1.msra.mxu0 0.0
      %2330 = vmatprep.subr.mxu0 0.0
      %2331 = vmatpush1.msra.mxu0 0.0
      %2332 = vmatprep.subr.mxu0 0.0
      %2333 = vmatpush1.msra.mxu0 0.0
      %2334 = vmatprep.subr.mxu0 0.0
      %2335 = vmatpush1.msra.mxu0 0.0
      %2336 = vmatprep.subr.mxu0 0.0
      %2337 = vmatpush1.msra.mxu0 0.0
      %2338 = vmatprep.subr.mxu0 0.0
      %2339 = vmatpush1.msra.mxu0 0.0
      %2340 = vmatprep.subr.mxu0 0.0
      %2341 = vmatpush1.msra.mxu0 0.0
      %2342 = vmatprep.subr.mxu0 0.0
      %2343 = vmatpush1.msra.mxu0 0.0
      %2344 = vmatprep.subr.mxu0 0.0
      %2345 = vmatpush1.msra.mxu0 0.0
      %2346 = vmatprep.subr.mxu0 0.0
      %2347 = vmatpush1.msra.mxu0 0.0
      %2348 = vmatprep.subr.mxu0 0.0
      %2349 = vmatpush1.msra.mxu0 0.0
      %2350 = vmatprep.subr.mxu0 0.0
      %2351 = vmatpush1.msra.mxu0 0.0
      %2352 = vmatprep.subr.mxu0 0.0
      %2353 = vmatpush1.msra.mxu0 0.0
      %2354 = vmatprep.subr.mxu0 0.0
      %2355 = vmatpush1.msra.mxu0 0.0
      %2356 = vmatprep.subr.mxu0 0.0
      %2357 = vmatpush1.msra.mxu0 0.0
      %2358 = vmatprep.subr.mxu0 0.0
      %2359 = vmatpush1.msra.mxu0 0.0
      %2360 = vmatprep.subr.mxu0 0.0
      %2361 = vmatpush1.msra.mxu0 0.0
      %2362 = vmatprep.subr.mxu0 0.0
      %2363 = vmatpush1.msra.mxu0 0.0
      %2364 = vmatprep.subr.mxu0 0.0
      %2365 = vmatpush1.msra.mxu0 0.0
      %2366 = vmatprep.subr.mxu0 0.0
      %2367 = vmatpush1.msra.mxu0 0.0
      %2368 = vmatprep.subr.mxu0 0.0
      %2369 = vmatpush1.msra.mxu0 0.0
      %2370 = vmatprep.subr.mxu0 0.0
      %2371 = vmatpush1.msra.mxu0 0.0
      %2372 = vmatprep.subr.mxu0 0.0
      %2373 = vmatpush1.msra.mxu0 0.0
      %2374 = vmatprep.subr.mxu0 0.0
      %2375 = vmatpush1.msra.mxu0 0.0
      %2376 = vmatprep.mubr.f32.mxu0 0.0
      %2377 = vmatmul.mubr.f32.gmra.mrb[0].mxu0 %v767
      %v2378 = vpop.f32.mrb[0].mxu0
      %v2379 = vadd.f32 0.0, %v2378
      %v2380 = vpop.f32.mrb[0].mxu0
      %2381 = vmatprep.mubr.f32.mxu0 0.0
      %2382 = vmatmul.mubr.f32.gmra.mrb[0].mxu0 %v769
      %v2383 = vpop.f32.mrb[0].mxu0
      %v2384 = vadd.f32 0.0, %v2383
      %v2385 = vpop.f32.mrb[0].mxu0
      %2386 = vmatprep.mubr.f32.mxu0 0.0
      %2387 = vmatmul.mubr.f32.gmra.mrb[0].mxu0 %v771
      %v2388 = vpop.f32.mrb[0].mxu0
      %v2389 = vadd.f32 0.0, %v2388
      %v2390 = vpop.f32.mrb[0].mxu0
      %2391 = vmatprep.mubr.f32.mxu0 0.0
      %2392 = vmatmul.mubr.f32.gmra.mrb[0].mxu0 %v773
      %v2393 = vpop.f32.mrb[0].mxu0
      %v2394 = vadd.f32 0.0, %v2393
      %v2395 = vpop.f32.mrb[0].mxu0
      %2396 = vmatprep.mubr.f32.mxu0 0.0
      %2397 = vmatmul.mubr.f32.gmra.mrb[0].mxu0 %v775
      %v2398 = vpop.f32.mrb[0].mxu0
      %v2399 = vadd.f32 0.0, %v2398
      %v2400 = vpop.f32.mrb[0].mxu0
      %2401 = vmatprep.mubr.f32.mxu0 0.0
      %2402 = vmatmul.mubr.f32.gmra.mrb[0].mxu0 %v777
      %v2403 = vpop.f32.mrb[0].mxu0
      %v2404 = vadd.f32 0.0, %v2403
      %v2405 = vpop.f32.mrb[0].mxu0
      %2406 = vmatprep.mubr.f32.mxu0 0.0
      %2407 = vmatmul.mubr.f32.gmra.mrb[0].mxu0 %v779
      %v2408 = vpop.f32.mrb[0].mxu0
      %v2409 = vadd.f32 0.0, %v2408
      %v2410 = vpop.f32.mrb[0].mxu0
      %2411 = vmatprep.mubr.f32.mxu0 0.0
      %2412 = vmatmul.mubr.f32.gmra.mrb[0].mxu0 %v781
      %v2413 = vpop.f32.mrb[0].mxu0
      %v2414 = vadd.f32 0.0, %v2413
      %v2415 = vpop.f32.mrb[0].mxu0
      %2416 = vmatprep.mubr.f32.mxu0 0.0
      %2417 = vmatmul.mubr.f32.gmra.mrb[0].mxu0 %v783
      %v2418 = vpop.f32.mrb[0].mxu0
      %v2419 = vadd.f32 0.0, %v2418
      %v2420 = vpop.f32.mrb[0].mxu0
      %2421 = vmatprep.mubr.f32.mxu0 0.0
      %2422 = vmatmul.mubr.f32.gmra.mrb[0].mxu0 %v785
      %v2423 = vpop.f32.mrb[0].mxu0
      %v2424 = vadd.f32 0.0, %v2423
      %v2425 = vpop.f32.mrb[0].mxu0
      %2426 = vmatprep.mubr.f32.mxu0 0.0
      %2427 = vmatmul.mubr.f32.gmra.mrb[0].mxu0 %v787
      %v2428 = vpop.f32.mrb[0].mxu0
      %v2429 = vadd.f32 0.0, %v2428
      %v2430 = vpop.f32.mrb[0].mxu0
      %2431 = vmatprep.mubr.f32.mxu0 0.0
      %2432 = vmatmul.mubr.f32.gmra.mrb[0].mxu0 %v789
      %v2433 = vpop.f32.mrb[0].mxu0
      %v2434 = vadd.f32 0.0, %v2433
      %v2435 = vpop.f32.mrb[0].mxu0
      %2436 = vmatprep.mubr.f32.mxu0 0.0
      %2437 = vmatmul.mubr.f32.gmra.mrb[0].mxu0 %v791
      %v2438 = vpop.f32.mrb[0].mxu0
      %v2439 = vadd.f32 0.0, %v2438
      %v2440 = vpop.f32.mrb[0].mxu0
      %2441 = vmatprep.mubr.f32.mxu0 0.0
      %2442 = vmatmul.mubr.f32.gmra.mrb[0].mxu0 %v793
      %v2443 = vpop.f32.mrb[0].mxu0
      %v2444 = vadd.f32 0.0, %v2443
      %v2445 = vpop.f32.mrb[0].mxu0
      %2446 = vmatprep.mubr.f32.mxu0 0.0
      %2447 = vmatmul.mubr.f32.gmra.mrb[0].mxu0 %v795
      %v2448 = vpop.f32.mrb[0].mxu0
      %v2449 = vadd.f32 0.0, %v2448
      %v2450 = vpop.f32.mrb[0].mxu0
      %2451 = vmatprep.mubr.f32.mxu0 0.0
      %2452 = vmatmul.mubr.f32.gmra.mrb[0].mxu0 %v797
      %v2453 = vpop.f32.mrb[0].mxu0
      %v2454 = vadd.f32 0.0, %v2453
      %v2455 = vpop.f32.mrb[0].mxu0
      %2456 = vmatprep.mubr.f32.mxu0 0.0
      %2457 = vmatmul.mubr.f32.gmra.mrb[0].mxu0 %v799
      %v2458 = vpop.f32.mrb[0].mxu0
      %v2459 = vadd.f32 0.0, %v2458
      %v2460 = vpop.f32.mrb[0].mxu0
      %2461 = vmatprep.mubr.f32.mxu0 0.0
      %2462 = vmatmul.mubr.f32.gmra.mrb[0].mxu0 %v801
      %v2463 = vpop.f32.mrb[0].mxu0
      %v2464 = vadd.f32 0.0, %v2463
      %v2465 = vpop.f32.mrb[0].mxu0
      %2466 = vmatprep.mubr.f32.mxu0 0.0
      %2467 = vmatmul.mubr.f32.gmra.mrb[0].mxu0 %v803
      %v2468 = vpop.f32.mrb[0].mxu0
      %v2469 = vadd.f32 0.0, %v2468
      %v2470 = vpop.f32.mrb[0].mxu0
      %2471 = vmatprep.mubr.f32.mxu0 0.0
      %2472 = vmatmul.mubr.f32.gmra.mrb[0].mxu0 %v805
      %v2473 = vpop.f32.mrb[0].mxu0
      %v2474 = vadd.f32 0.0, %v2473
      %v2475 = vpop.f32.mrb[0].mxu0
      %2476 = vmatprep.mubr.f32.mxu0 0.0
      %2477 = vmatmul.mubr.f32.gmra.mrb[0].mxu0 %v807
      %v2478 = vpop.f32.mrb[0].mxu0
      %v2479 = vadd.f32 0.0, %v2478
      %v2480 = vpop.f32.mrb[0].mxu0
      %2481 = vmatprep.mubr.f32.mxu0 0.0
      %2482 = vmatmul.mubr.f32.gmra.mrb[0].mxu0 %v809
      %v2483 = vpop.f32.mrb[0].mxu0
      %v2484 = vadd.f32 0.0, %v2483
      %v2485 = vpop.f32.mrb[0].mxu0
      %2486 = vmatprep.mubr.f32.mxu0 0.0
      %2487 = vmatmul.mubr.f32.gmra.mrb[0].mxu0 %v811
      %v2488 = vpop.f32.mrb[0].mxu0
      %v2489 = vadd.f32 0.0, %v2488
      %v2490 = vpop.f32.mrb[0].mxu0
      %2491 = vmatprep.mubr.f32.mxu0 0.0
      %2492 = vmatmul.mubr.f32.gmra.mrb[0].mxu0 %v813
      %v2493 = vpop.f32.mrb[0].mxu0
      %v2494 = vadd.f32 0.0, %v2493
      %v2495 = vpop.f32.mrb[0].mxu0
      %2496 = vmatprep.mubr.f32.mxu0 0.0
      %2497 = vmatmul.mubr.f32.gmra.mrb[0].mxu0 %v815
      %v2498 = vpop.f32.mrb[0].mxu0
      %v2499 = vadd.f32 0.0, %v2498
      %v2500 = vpop.f32.mrb[0].mxu0
      %2501 = vmatprep.mubr.f32.mxu0 0.0
      %2502 = vmatmul.mubr.f32.gmra.mrb[0].mxu0 %v817
      %v2503 = vpop.f32.mrb[0].mxu0
      %v2504 = vadd.f32 0.0, %v2503
      %v2505 = vpop.f32.mrb[0].mxu0
      %2506 = vmatprep.mubr.f32.mxu0 0.0
      %2507 = vmatmul.mubr.f32.gmra.mrb[0].mxu0 %v819
      %v2508 = vpop.f32.mrb[0].mxu0
      %v2509 = vadd.f32 0.0, %v2508
      %v2510 = vpop.f32.mrb[0].mxu0
      %2511 = vmatprep.mubr.f32.mxu0 0.0
      %2512 = vmatmul.mubr.f32.gmra.mrb[0].mxu0 %v821
      %v2513 = vpop.f32.mrb[0].mxu0
      %v2514 = vadd.f32 0.0, %v2513
      %v2515 = vpop.f32.mrb[0].mxu0
      %2516 = vmatprep.mubr.f32.mxu0 0.0
      %2517 = vmatmul.mubr.f32.gmra.mrb[0].mxu0 %v1461
      %v2518 = vpop.f32.mrb[0].mxu0
      %v2519 = vadd.f32 0.0, %v2518
      %v2520 = vpop.f32.mrb[0].mxu0
      %2521 = vmatprep.mubr.f32.mxu0 0.0
      %2522 = vmatmul.mubr.f32.gmra.mrb[0].mxu0 %v1464
      %v2523 = vpop.f32.mrb[0].mxu0
      %v2524 = vadd.f32 0.0, %v2523
      %v2525 = vpop.f32.mrb[0].mxu0
      %2526 = vmatprep.mubr.f32.mxu0 0.0
      %2527 = vmatmul.mubr.f32.gmra.mrb[0].mxu0 %v2304
      %v2528 = vpop.f32.mrb[0].mxu0
      %v2529 = vadd.f32 0.0, %v2528
      %v2530 = vpop.f32.mrb[0].mxu0
      %2531 = vmatprep.mubr.f32.mxu0 0.0
      %2532 = vmatmul.mubr.f32.gmra.mrb[0].mxu0 %v2307
      %v2533 = vpop.f32.mrb[0].mxu0
      %v2534 = vadd.f32 0.0, %v2533
      %v2535 = vpop.f32.mrb[0].mxu0
      %2536 = vdwg.mxu0
      %v2537 = vadd.f32 %v2269, %v2379
      %v2538 = vadd.f32 %v2270, %v2384
      %v2539 = vadd.f32 %v2271, %v2389
      %v2540 = vadd.f32 %v2272, %v2394
      %v2541 = vadd.f32 %v2273, %v2399
      %v2542 = vadd.f32 %v2274, %v2404
      %v2543 = vadd.f32 %v2275, %v2409
      %v2544 = vadd.f32 %v2276, %v2414
      %v2545 = vadd.f32 %v2277, %v2419
      %v2546 = vadd.f32 %v2278, %v2424
      %v2547 = vadd.f32 %v2279, %v2429
      %v2548 = vadd.f32 %v2280, %v2434
      %v2549 = vadd.f32 %v2281, %v2439
      %v2550 = vadd.f32 %v2282, %v2444
      %v2551 = vadd.f32 %v2283, %v2449
      %v2552 = vadd.f32 %v2284, %v2454
      %v2553 = vadd.f32 %v2285, %v2459
      %v2554 = vadd.f32 %v2286, %v2464
      %v2555 = vadd.f32 %v2287, %v2469
      %v2556 = vadd.f32 %v2288, %v2474
      %v2557 = vadd.f32 %v2289, %v2479
      %v2558 = vadd.f32 %v2290, %v2484
      %v2559 = vadd.f32 %v2291, %v2489
      %v2560 = vadd.f32 %v2292, %v2494
      %v2561 = vadd.f32 %v2293, %v2499
      %v2562 = vadd.f32 %v2294, %v2504
      %v2563 = vadd.f32 %v2295, %v2509
      %v2564 = vadd.f32 %v2296, %v2514
      %v2565 = vadd.f32 %v2297, %v2519
      %v2566 = vadd.f32 %v2298, %v2524
      %v2567 = vadd.f32 %v2299, %v2529
      %v2568 = vadd.f32 %v2300, %v2534
      %v2570 = vrot.slane %v330, 1
      %v2571 = vrot.slane %v331, 1
      %v2572 = vsel %vm382, %v2570, %v2571
      %v2573 = vrot.slane %v332, 1
      %v2574 = vsel %vm382, %v2571, %v2573
      %s2575 = scalar_lea.vmem %s1, 28
      %v2576 = vld [vmem:[%s2575] sm:$0xf]
      %v2577 = vsel %vm465, %v2572, 0
      %v2579 = vsel %vm465, %v2574, 0
      %v2582 = vsel %vm530, %v2576, 0
      %2584 = vmatprep.subr.mxu0 0.0
      %2585 = vmatpush1.msra.mxu0 %v2582
      %2586 = vmatprep.subr.mxu0 0.0
      %2587 = vmatpush1.msra.mxu0 0.0
      %2588 = vmatprep.subr.mxu0 0.0
      %2589 = vmatpush1.msra.mxu0 0.0
      %2590 = vmatprep.subr.mxu0 0.0
      %2591 = vmatpush1.msra.mxu0 0.0
      %2592 = vmatprep.subr.mxu0 0.0
      %2593 = vmatpush1.msra.mxu0 0.0
      %2594 = vmatprep.subr.mxu0 0.0
      %2595 = vmatpush1.msra.mxu0 0.0
      %2596 = vmatprep.subr.mxu0 0.0
      %2597 = vmatpush1.msra.mxu0 0.0
      %2598 = vmatprep.subr.mxu0 0.0
      %2599 = vmatpush1.msra.mxu0 0.0
      %2600 = vmatprep.subr.mxu0 0.0
      %2601 = vmatpush1.msra.mxu0 0.0
      %2602 = vmatprep.subr.mxu0 0.0
      %2603 = vmatpush1.msra.mxu0 0.0
      %2604 = vmatprep.subr.mxu0 0.0
      %2605 = vmatpush1.msra.mxu0 0.0
      %2606 = vmatprep.subr.mxu0 0.0
      %2607 = vmatpush1.msra.mxu0 0.0
      %2608 = vmatprep.subr.mxu0 0.0
      %2609 = vmatpush1.msra.mxu0 0.0
      %2610 = vmatprep.subr.mxu0 0.0
      %2611 = vmatpush1.msra.mxu0 0.0
      %2612 = vmatprep.subr.mxu0 0.0
      %2613 = vmatpush1.msra.mxu0 0.0
      %2614 = vmatprep.subr.mxu0 0.0
      %2615 = vmatpush1.msra.mxu0 0.0
      %2616 = vmatprep.subr.mxu0 0.0
      %2617 = vmatpush1.msra.mxu0 0.0
      %2618 = vmatprep.subr.mxu0 0.0
      %2619 = vmatpush1.msra.mxu0 0.0
      %2620 = vmatprep.subr.mxu0 0.0
      %2621 = vmatpush1.msra.mxu0 0.0
      %2622 = vmatprep.subr.mxu0 0.0
      %2623 = vmatpush1.msra.mxu0 0.0
      %2624 = vmatprep.subr.mxu0 0.0
      %2625 = vmatpush1.msra.mxu0 0.0
      %2626 = vmatprep.subr.mxu0 0.0
      %2627 = vmatpush1.msra.mxu0 0.0
      %2628 = vmatprep.subr.mxu0 0.0
      %2629 = vmatpush1.msra.mxu0 0.0
      %2630 = vmatprep.subr.mxu0 0.0
      %2631 = vmatpush1.msra.mxu0 0.0
      %2632 = vmatprep.subr.mxu0 0.0
      %2633 = vmatpush1.msra.mxu0 0.0
      %2634 = vmatprep.subr.mxu0 0.0
      %2635 = vmatpush1.msra.mxu0 0.0
      %2636 = vmatprep.subr.mxu0 0.0
      %2637 = vmatpush1.msra.mxu0 0.0
      %2638 = vmatprep.subr.mxu0 0.0
      %2639 = vmatpush1.msra.mxu0 0.0
      %2640 = vmatprep.subr.mxu0 0.0
      %2641 = vmatpush1.msra.mxu0 0.0
      %2642 = vmatprep.subr.mxu0 0.0
      %2643 = vmatpush1.msra.mxu0 0.0
      %2644 = vmatprep.subr.mxu0 0.0
      %2645 = vmatpush1.msra.mxu0 0.0
      %2646 = vmatprep.subr.mxu0 0.0
      %2647 = vmatpush1.msra.mxu0 0.0
      %2648 = vmatprep.mubr.f32.mxu0 0.0
      %2649 = vmatmul.mubr.f32.gmra.mrb[0].mxu0 %v474
      %v2650 = vpop.f32.mrb[0].mxu0
      %v2651 = vadd.f32 0.0, %v2650
      %v2652 = vpop.f32.mrb[0].mxu0
      %2653 = vmatprep.mubr.f32.mxu0 0.0
      %2654 = vmatmul.mubr.f32.gmra.mrb[0].mxu0 %v476
      %v2655 = vpop.f32.mrb[0].mxu0
      %v2656 = vadd.f32 0.0, %v2655
      %v2657 = vpop.f32.mrb[0].mxu0
      %2658 = vmatprep.mubr.f32.mxu0 0.0
      %2659 = vmatmul.mubr.f32.gmra.mrb[0].mxu0 %v478
      %v2660 = vpop.f32.mrb[0].mxu0
      %v2661 = vadd.f32 0.0, %v2660
      %v2662 = vpop.f32.mrb[0].mxu0
      %2663 = vmatprep.mubr.f32.mxu0 0.0
      %2664 = vmatmul.mubr.f32.gmra.mrb[0].mxu0 %v480
      %v2665 = vpop.f32.mrb[0].mxu0
      %v2666 = vadd.f32 0.0, %v2665
      %v2667 = vpop.f32.mrb[0].mxu0
      %2668 = vmatprep.mubr.f32.mxu0 0.0
      %2669 = vmatmul.mubr.f32.gmra.mrb[0].mxu0 %v482
      %v2670 = vpop.f32.mrb[0].mxu0
      %v2671 = vadd.f32 0.0, %v2670
      %v2672 = vpop.f32.mrb[0].mxu0
      %2673 = vmatprep.mubr.f32.mxu0 0.0
      %2674 = vmatmul.mubr.f32.gmra.mrb[0].mxu0 %v484
      %v2675 = vpop.f32.mrb[0].mxu0
      %v2676 = vadd.f32 0.0, %v2675
      %v2677 = vpop.f32.mrb[0].mxu0
      %2678 = vmatprep.mubr.f32.mxu0 0.0
      %2679 = vmatmul.mubr.f32.gmra.mrb[0].mxu0 %v486
      %v2680 = vpop.f32.mrb[0].mxu0
      %v2681 = vadd.f32 0.0, %v2680
      %v2682 = vpop.f32.mrb[0].mxu0
      %2683 = vmatprep.mubr.f32.mxu0 0.0
      %2684 = vmatmul.mubr.f32.gmra.mrb[0].mxu0 %v488
      %v2685 = vpop.f32.mrb[0].mxu0
      %v2686 = vadd.f32 0.0, %v2685
      %v2687 = vpop.f32.mrb[0].mxu0
      %2688 = vmatprep.mubr.f32.mxu0 0.0
      %2689 = vmatmul.mubr.f32.gmra.mrb[0].mxu0 %v490
      %v2690 = vpop.f32.mrb[0].mxu0
      %v2691 = vadd.f32 0.0, %v2690
      %v2692 = vpop.f32.mrb[0].mxu0
      %2693 = vmatprep.mubr.f32.mxu0 0.0
      %2694 = vmatmul.mubr.f32.gmra.mrb[0].mxu0 %v492
      %v2695 = vpop.f32.mrb[0].mxu0
      %v2696 = vadd.f32 0.0, %v2695
      %v2697 = vpop.f32.mrb[0].mxu0
      %2698 = vmatprep.mubr.f32.mxu0 0.0
      %2699 = vmatmul.mubr.f32.gmra.mrb[0].mxu0 %v494
      %v2700 = vpop.f32.mrb[0].mxu0
      %v2701 = vadd.f32 0.0, %v2700
      %v2702 = vpop.f32.mrb[0].mxu0
      %2703 = vmatprep.mubr.f32.mxu0 0.0
      %2704 = vmatmul.mubr.f32.gmra.mrb[0].mxu0 %v496
      %v2705 = vpop.f32.mrb[0].mxu0
      %v2706 = vadd.f32 0.0, %v2705
      %v2707 = vpop.f32.mrb[0].mxu0
      %2708 = vmatprep.mubr.f32.mxu0 0.0
      %2709 = vmatmul.mubr.f32.gmra.mrb[0].mxu0 %v498
      %v2710 = vpop.f32.mrb[0].mxu0
      %v2711 = vadd.f32 0.0, %v2710
      %v2712 = vpop.f32.mrb[0].mxu0
      %2713 = vmatprep.mubr.f32.mxu0 0.0
      %2714 = vmatmul.mubr.f32.gmra.mrb[0].mxu0 %v500
      %v2715 = vpop.f32.mrb[0].mxu0
      %v2716 = vadd.f32 0.0, %v2715
      %v2717 = vpop.f32.mrb[0].mxu0
      %2718 = vmatprep.mubr.f32.mxu0 0.0
      %2719 = vmatmul.mubr.f32.gmra.mrb[0].mxu0 %v502
      %v2720 = vpop.f32.mrb[0].mxu0
      %v2721 = vadd.f32 0.0, %v2720
      %v2722 = vpop.f32.mrb[0].mxu0
      %2723 = vmatprep.mubr.f32.mxu0 0.0
      %2724 = vmatmul.mubr.f32.gmra.mrb[0].mxu0 %v504
      %v2725 = vpop.f32.mrb[0].mxu0
      %v2726 = vadd.f32 0.0, %v2725
      %v2727 = vpop.f32.mrb[0].mxu0
      %2728 = vmatprep.mubr.f32.mxu0 0.0
      %2729 = vmatmul.mubr.f32.gmra.mrb[0].mxu0 %v506
      %v2730 = vpop.f32.mrb[0].mxu0
      %v2731 = vadd.f32 0.0, %v2730
      %v2732 = vpop.f32.mrb[0].mxu0
      %2733 = vmatprep.mubr.f32.mxu0 0.0
      %2734 = vmatmul.mubr.f32.gmra.mrb[0].mxu0 %v508
      %v2735 = vpop.f32.mrb[0].mxu0
      %v2736 = vadd.f32 0.0, %v2735
      %v2737 = vpop.f32.mrb[0].mxu0
      %2738 = vmatprep.mubr.f32.mxu0 0.0
      %2739 = vmatmul.mubr.f32.gmra.mrb[0].mxu0 %v510
      %v2740 = vpop.f32.mrb[0].mxu0
      %v2741 = vadd.f32 0.0, %v2740
      %v2742 = vpop.f32.mrb[0].mxu0
      %2743 = vmatprep.mubr.f32.mxu0 0.0
      %2744 = vmatmul.mubr.f32.gmra.mrb[0].mxu0 %v512
      %v2745 = vpop.f32.mrb[0].mxu0
      %v2746 = vadd.f32 0.0, %v2745
      %v2747 = vpop.f32.mrb[0].mxu0
      %2748 = vmatprep.mubr.f32.mxu0 0.0
      %2749 = vmatmul.mubr.f32.gmra.mrb[0].mxu0 %v514
      %v2750 = vpop.f32.mrb[0].mxu0
      %v2751 = vadd.f32 0.0, %v2750
      %v2752 = vpop.f32.mrb[0].mxu0
      %2753 = vmatprep.mubr.f32.mxu0 0.0
      %2754 = vmatmul.mubr.f32.gmra.mrb[0].mxu0 %v516
      %v2755 = vpop.f32.mrb[0].mxu0
      %v2756 = vadd.f32 0.0, %v2755
      %v2757 = vpop.f32.mrb[0].mxu0
      %2758 = vmatprep.mubr.f32.mxu0 0.0
      %2759 = vmatmul.mubr.f32.gmra.mrb[0].mxu0 %v518
      %v2760 = vpop.f32.mrb[0].mxu0
      %v2761 = vadd.f32 0.0, %v2760
      %v2762 = vpop.f32.mrb[0].mxu0
      %2763 = vmatprep.mubr.f32.mxu0 0.0
      %2764 = vmatmul.mubr.f32.gmra.mrb[0].mxu0 %v520
      %v2765 = vpop.f32.mrb[0].mxu0
      %v2766 = vadd.f32 0.0, %v2765
      %v2767 = vpop.f32.mrb[0].mxu0
      %2768 = vmatprep.mubr.f32.mxu0 0.0
      %2769 = vmatmul.mubr.f32.gmra.mrb[0].mxu0 %v522
      %v2770 = vpop.f32.mrb[0].mxu0
      %v2771 = vadd.f32 0.0, %v2770
      %v2772 = vpop.f32.mrb[0].mxu0
      %2773 = vmatprep.mubr.f32.mxu0 0.0
      %2774 = vmatmul.mubr.f32.gmra.mrb[0].mxu0 %v524
      %v2775 = vpop.f32.mrb[0].mxu0
      %v2776 = vadd.f32 0.0, %v2775
      %v2777 = vpop.f32.mrb[0].mxu0
      %2778 = vmatprep.mubr.f32.mxu0 0.0
      %2779 = vmatmul.mubr.f32.gmra.mrb[0].mxu0 %v526
      %v2780 = vpop.f32.mrb[0].mxu0
      %v2781 = vadd.f32 0.0, %v2780
      %v2782 = vpop.f32.mrb[0].mxu0
      %2783 = vmatprep.mubr.f32.mxu0 0.0
      %2784 = vmatmul.mubr.f32.gmra.mrb[0].mxu0 %v528
      %v2785 = vpop.f32.mrb[0].mxu0
      %v2786 = vadd.f32 0.0, %v2785
      %v2787 = vpop.f32.mrb[0].mxu0
      %2788 = vmatprep.mubr.f32.mxu0 0.0
      %2789 = vmatmul.mubr.f32.gmra.mrb[0].mxu0 %v1766
      %v2790 = vpop.f32.mrb[0].mxu0
      %v2791 = vadd.f32 0.0, %v2790
      %v2792 = vpop.f32.mrb[0].mxu0
      %2793 = vmatprep.mubr.f32.mxu0 0.0
      %2794 = vmatmul.mubr.f32.gmra.mrb[0].mxu0 %v1768
      %v2795 = vpop.f32.mrb[0].mxu0
      %v2796 = vadd.f32 0.0, %v2795
      %v2797 = vpop.f32.mrb[0].mxu0
      %2798 = vmatprep.mubr.f32.mxu0 0.0
      %2799 = vmatmul.mubr.f32.gmra.mrb[0].mxu0 %v2577
      %v2800 = vpop.f32.mrb[0].mxu0
      %v2801 = vadd.f32 0.0, %v2800
      %v2802 = vpop.f32.mrb[0].mxu0
      %2803 = vmatprep.mubr.f32.mxu0 0.0
      %2804 = vmatmul.mubr.f32.gmra.mrb[0].mxu0 %v2579
      %v2805 = vpop.f32.mrb[0].mxu0
      %v2806 = vadd.f32 0.0, %v2805
      %v2807 = vpop.f32.mrb[0].mxu0
      %2808 = vdwg.mxu0
      %v2809 = vadd.f32 %v2537, %v2651
      %v2810 = vadd.f32 %v2538, %v2656
      %v2811 = vadd.f32 %v2539, %v2661
      %v2812 = vadd.f32 %v2540, %v2666
      %v2813 = vadd.f32 %v2541, %v2671
      %v2814 = vadd.f32 %v2542, %v2676
      %v2815 = vadd.f32 %v2543, %v2681
      %v2816 = vadd.f32 %v2544, %v2686
      %v2817 = vadd.f32 %v2545, %v2691
      %v2818 = vadd.f32 %v2546, %v2696
      %v2819 = vadd.f32 %v2547, %v2701
      %v2820 = vadd.f32 %v2548, %v2706
      %v2821 = vadd.f32 %v2549, %v2711
      %v2822 = vadd.f32 %v2550, %v2716
      %v2823 = vadd.f32 %v2551, %v2721
      %v2824 = vadd.f32 %v2552, %v2726
      %v2825 = vadd.f32 %v2553, %v2731
      %v2826 = vadd.f32 %v2554, %v2736
      %v2827 = vadd.f32 %v2555, %v2741
      %v2828 = vadd.f32 %v2556, %v2746
      %v2829 = vadd.f32 %v2557, %v2751
      %v2830 = vadd.f32 %v2558, %v2756
      %v2831 = vadd.f32 %v2559, %v2761
      %v2832 = vadd.f32 %v2560, %v2766
      %v2833 = vadd.f32 %v2561, %v2771
      %v2834 = vadd.f32 %v2562, %v2776
      %v2835 = vadd.f32 %v2563, %v2781
      %v2836 = vadd.f32 %v2564, %v2786
      %v2837 = vadd.f32 %v2565, %v2791
      %v2838 = vadd.f32 %v2566, %v2796
      %v2839 = vadd.f32 %v2567, %v2801
      %v2840 = vadd.f32 %v2568, %v2806
      %v2841 = vrot.slane %v330, 2
      %v2842 = vrot.slane %v331, 2
      %v2843 = vsel %vm1051, %v2841, %v2842
      %v2844 = vrot.slane %v332, 2
      %v2845 = vsel %vm1051, %v2842, %v2844
      %s2846 = scalar_lea.vmem %s1, 32
      %v2847 = vld [vmem:[%s2846] sm:$0xf]
      %v2848 = vsel %vm465, %v2843, 0
      %v2850 = vsel %vm465, %v2845, 0
      %v2853 = vsel %vm530, %v2847, 0
      %2855 = vmatprep.subr.mxu0 0.0
      %2856 = vmatpush1.msra.mxu0 %v2853
      %2857 = vmatprep.subr.mxu0 0.0
      %2858 = vmatpush1.msra.mxu0 0.0
      %2859 = vmatprep.subr.mxu0 0.0
      %2860 = vmatpush1.msra.mxu0 0.0
      %2861 = vmatprep.subr.mxu0 0.0
      %2862 = vmatpush1.msra.mxu0 0.0
      %2863 = vmatprep.subr.mxu0 0.0
      %2864 = vmatpush1.msra.mxu0 0.0
      %2865 = vmatprep.subr.mxu0 0.0
      %2866 = vmatpush1.msra.mxu0 0.0
      %2867 = vmatprep.subr.mxu0 0.0
      %2868 = vmatpush1.msra.mxu0 0.0
      %2869 = vmatprep.subr.mxu0 0.0
      %2870 = vmatpush1.msra.mxu0 0.0
      %2871 = vmatprep.subr.mxu0 0.0
      %2872 = vmatpush1.msra.mxu0 0.0
      %2873 = vmatprep.subr.mxu0 0.0
      %2874 = vmatpush1.msra.mxu0 0.0
      %2875 = vmatprep.subr.mxu0 0.0
      %2876 = vmatpush1.msra.mxu0 0.0
      %2877 = vmatprep.subr.mxu0 0.0
      %2878 = vmatpush1.msra.mxu0 0.0
      %2879 = vmatprep.subr.mxu0 0.0
      %2880 = vmatpush1.msra.mxu0 0.0
      %2881 = vmatprep.subr.mxu0 0.0
      %2882 = vmatpush1.msra.mxu0 0.0
      %2883 = vmatprep.subr.mxu0 0.0
      %2884 = vmatpush1.msra.mxu0 0.0
      %2885 = vmatprep.subr.mxu0 0.0
      %2886 = vmatpush1.msra.mxu0 0.0
      %2887 = vmatprep.subr.mxu0 0.0
      %2888 = vmatpush1.msra.mxu0 0.0
      %2889 = vmatprep.subr.mxu0 0.0
      %2890 = vmatpush1.msra.mxu0 0.0
      %2891 = vmatprep.subr.mxu0 0.0
      %2892 = vmatpush1.msra.mxu0 0.0
      %2893 = vmatprep.subr.mxu0 0.0
      %2894 = vmatpush1.msra.mxu0 0.0
      %2895 = vmatprep.subr.mxu0 0.0
      %2896 = vmatpush1.msra.mxu0 0.0
      %2897 = vmatprep.subr.mxu0 0.0
      %2898 = vmatpush1.msra.mxu0 0.0
      %2899 = vmatprep.subr.mxu0 0.0
      %2900 = vmatpush1.msra.mxu0 0.0
      %2901 = vmatprep.subr.mxu0 0.0
      %2902 = vmatpush1.msra.mxu0 0.0
      %2903 = vmatprep.subr.mxu0 0.0
      %2904 = vmatpush1.msra.mxu0 0.0
      %2905 = vmatprep.subr.mxu0 0.0
      %2906 = vmatpush1.msra.mxu0 0.0
      %2907 = vmatprep.subr.mxu0 0.0
      %2908 = vmatpush1.msra.mxu0 0.0
      %2909 = vmatprep.subr.mxu0 0.0
      %2910 = vmatpush1.msra.mxu0 0.0
      %2911 = vmatprep.subr.mxu0 0.0
      %2912 = vmatpush1.msra.mxu0 0.0
      %2913 = vmatprep.subr.mxu0 0.0
      %2914 = vmatpush1.msra.mxu0 0.0
      %2915 = vmatprep.subr.mxu0 0.0
      %2916 = vmatpush1.msra.mxu0 0.0
      %2917 = vmatprep.subr.mxu0 0.0
      %2918 = vmatpush1.msra.mxu0 0.0
      %2919 = vmatprep.mubr.f32.mxu0 0.0
      %2920 = vmatmul.mubr.f32.gmra.mrb[0].mxu0 %v1142
      %v2921 = vpop.f32.mrb[0].mxu0
      %v2922 = vadd.f32 0.0, %v2921
      %v2923 = vpop.f32.mrb[0].mxu0
      %2924 = vmatprep.mubr.f32.mxu0 0.0
      %2925 = vmatmul.mubr.f32.gmra.mrb[0].mxu0 %v1144
      %v2926 = vpop.f32.mrb[0].mxu0
      %v2927 = vadd.f32 0.0, %v2926
      %v2928 = vpop.f32.mrb[0].mxu0
      %2929 = vmatprep.mubr.f32.mxu0 0.0
      %2930 = vmatmul.mubr.f32.gmra.mrb[0].mxu0 %v1146
      %v2931 = vpop.f32.mrb[0].mxu0
      %v2932 = vadd.f32 0.0, %v2931
      %v2933 = vpop.f32.mrb[0].mxu0
      %2934 = vmatprep.mubr.f32.mxu0 0.0
      %2935 = vmatmul.mubr.f32.gmra.mrb[0].mxu0 %v1148
      %v2936 = vpop.f32.mrb[0].mxu0
      %v2937 = vadd.f32 0.0, %v2936
      %v2938 = vpop.f32.mrb[0].mxu0
      %2939 = vmatprep.mubr.f32.mxu0 0.0
      %2940 = vmatmul.mubr.f32.gmra.mrb[0].mxu0 %v1150
      %v2941 = vpop.f32.mrb[0].mxu0
      %v2942 = vadd.f32 0.0, %v2941
      %v2943 = vpop.f32.mrb[0].mxu0
      %2944 = vmatprep.mubr.f32.mxu0 0.0
      %2945 = vmatmul.mubr.f32.gmra.mrb[0].mxu0 %v1152
      %v2946 = vpop.f32.mrb[0].mxu0
      %v2947 = vadd.f32 0.0, %v2946
      %v2948 = vpop.f32.mrb[0].mxu0
      %2949 = vmatprep.mubr.f32.mxu0 0.0
      %2950 = vmatmul.mubr.f32.gmra.mrb[0].mxu0 %v1154
      %v2951 = vpop.f32.mrb[0].mxu0
      %v2952 = vadd.f32 0.0, %v2951
      %v2953 = vpop.f32.mrb[0].mxu0
      %2954 = vmatprep.mubr.f32.mxu0 0.0
      %2955 = vmatmul.mubr.f32.gmra.mrb[0].mxu0 %v1156
      %v2956 = vpop.f32.mrb[0].mxu0
      %v2957 = vadd.f32 0.0, %v2956
      %v2958 = vpop.f32.mrb[0].mxu0
      %2959 = vmatprep.mubr.f32.mxu0 0.0
      %2960 = vmatmul.mubr.f32.gmra.mrb[0].mxu0 %v1158
      %v2961 = vpop.f32.mrb[0].mxu0
      %v2962 = vadd.f32 0.0, %v2961
      %v2963 = vpop.f32.mrb[0].mxu0
      %2964 = vmatprep.mubr.f32.mxu0 0.0
      %2965 = vmatmul.mubr.f32.gmra.mrb[0].mxu0 %v1160
      %v2966 = vpop.f32.mrb[0].mxu0
      %v2967 = vadd.f32 0.0, %v2966
      %v2968 = vpop.f32.mrb[0].mxu0
      %2969 = vmatprep.mubr.f32.mxu0 0.0
      %2970 = vmatmul.mubr.f32.gmra.mrb[0].mxu0 %v1162
      %v2971 = vpop.f32.mrb[0].mxu0
      %v2972 = vadd.f32 0.0, %v2971
      %v2973 = vpop.f32.mrb[0].mxu0
      %2974 = vmatprep.mubr.f32.mxu0 0.0
      %2975 = vmatmul.mubr.f32.gmra.mrb[0].mxu0 %v1164
      %v2976 = vpop.f32.mrb[0].mxu0
      %v2977 = vadd.f32 0.0, %v2976
      %v2978 = vpop.f32.mrb[0].mxu0
      %2979 = vmatprep.mubr.f32.mxu0 0.0
      %2980 = vmatmul.mubr.f32.gmra.mrb[0].mxu0 %v1166
      %v2981 = vpop.f32.mrb[0].mxu0
      %v2982 = vadd.f32 0.0, %v2981
      %v2983 = vpop.f32.mrb[0].mxu0
      %2984 = vmatprep.mubr.f32.mxu0 0.0
      %2985 = vmatmul.mubr.f32.gmra.mrb[0].mxu0 %v1168
      %v2986 = vpop.f32.mrb[0].mxu0
      %v2987 = vadd.f32 0.0, %v2986
      %v2988 = vpop.f32.mrb[0].mxu0
      %2989 = vmatprep.mubr.f32.mxu0 0.0
      %2990 = vmatmul.mubr.f32.gmra.mrb[0].mxu0 %v1170
      %v2991 = vpop.f32.mrb[0].mxu0
      %v2992 = vadd.f32 0.0, %v2991
      %v2993 = vpop.f32.mrb[0].mxu0
      %2994 = vmatprep.mubr.f32.mxu0 0.0
      %2995 = vmatmul.mubr.f32.gmra.mrb[0].mxu0 %v1172
      %v2996 = vpop.f32.mrb[0].mxu0
      %v2997 = vadd.f32 0.0, %v2996
      %v2998 = vpop.f32.mrb[0].mxu0
      %2999 = vmatprep.mubr.f32.mxu0 0.0
      %3000 = vmatmul.mubr.f32.gmra.mrb[0].mxu0 %v1174
      %v3001 = vpop.f32.mrb[0].mxu0
      %v3002 = vadd.f32 0.0, %v3001
      %v3003 = vpop.f32.mrb[0].mxu0
      %3004 = vmatprep.mubr.f32.mxu0 0.0
      %3005 = vmatmul.mubr.f32.gmra.mrb[0].mxu0 %v1176
      %v3006 = vpop.f32.mrb[0].mxu0
      %v3007 = vadd.f32 0.0, %v3006
      %v3008 = vpop.f32.mrb[0].mxu0
      %3009 = vmatprep.mubr.f32.mxu0 0.0
      %3010 = vmatmul.mubr.f32.gmra.mrb[0].mxu0 %v1178
      %v3011 = vpop.f32.mrb[0].mxu0
      %v3012 = vadd.f32 0.0, %v3011
      %v3013 = vpop.f32.mrb[0].mxu0
      %3014 = vmatprep.mubr.f32.mxu0 0.0
      %3015 = vmatmul.mubr.f32.gmra.mrb[0].mxu0 %v1180
      %v3016 = vpop.f32.mrb[0].mxu0
      %v3017 = vadd.f32 0.0, %v3016
      %v3018 = vpop.f32.mrb[0].mxu0
      %3019 = vmatprep.mubr.f32.mxu0 0.0
      %3020 = vmatmul.mubr.f32.gmra.mrb[0].mxu0 %v1182
      %v3021 = vpop.f32.mrb[0].mxu0
      %v3022 = vadd.f32 0.0, %v3021
      %v3023 = vpop.f32.mrb[0].mxu0
      %3024 = vmatprep.mubr.f32.mxu0 0.0
      %3025 = vmatmul.mubr.f32.gmra.mrb[0].mxu0 %v1184
      %v3026 = vpop.f32.mrb[0].mxu0
      %v3027 = vadd.f32 0.0, %v3026
      %v3028 = vpop.f32.mrb[0].mxu0
      %3029 = vmatprep.mubr.f32.mxu0 0.0
      %3030 = vmatmul.mubr.f32.gmra.mrb[0].mxu0 %v1186
      %v3031 = vpop.f32.mrb[0].mxu0
      %v3032 = vadd.f32 0.0, %v3031
      %v3033 = vpop.f32.mrb[0].mxu0
      %3034 = vmatprep.mubr.f32.mxu0 0.0
      %3035 = vmatmul.mubr.f32.gmra.mrb[0].mxu0 %v1188
      %v3036 = vpop.f32.mrb[0].mxu0
      %v3037 = vadd.f32 0.0, %v3036
      %v3038 = vpop.f32.mrb[0].mxu0
      %3039 = vmatprep.mubr.f32.mxu0 0.0
      %3040 = vmatmul.mubr.f32.gmra.mrb[0].mxu0 %v1190
      %v3041 = vpop.f32.mrb[0].mxu0
      %v3042 = vadd.f32 0.0, %v3041
      %v3043 = vpop.f32.mrb[0].mxu0
      %3044 = vmatprep.mubr.f32.mxu0 0.0
      %3045 = vmatmul.mubr.f32.gmra.mrb[0].mxu0 %v1192
      %v3046 = vpop.f32.mrb[0].mxu0
      %v3047 = vadd.f32 0.0, %v3046
      %v3048 = vpop.f32.mrb[0].mxu0
      %3049 = vmatprep.mubr.f32.mxu0 0.0
      %3050 = vmatmul.mubr.f32.gmra.mrb[0].mxu0 %v1194
      %v3051 = vpop.f32.mrb[0].mxu0
      %v3052 = vadd.f32 0.0, %v3051
      %v3053 = vpop.f32.mrb[0].mxu0
      %3054 = vmatprep.mubr.f32.mxu0 0.0
      %3055 = vmatmul.mubr.f32.gmra.mrb[0].mxu0 %v1196
      %v3056 = vpop.f32.mrb[0].mxu0
      %v3057 = vadd.f32 0.0, %v3056
      %v3058 = vpop.f32.mrb[0].mxu0
      %3059 = vmatprep.mubr.f32.mxu0 0.0
      %3060 = vmatmul.mubr.f32.gmra.mrb[0].mxu0 %v2037
      %v3061 = vpop.f32.mrb[0].mxu0
      %v3062 = vadd.f32 0.0, %v3061
      %v3063 = vpop.f32.mrb[0].mxu0
      %3064 = vmatprep.mubr.f32.mxu0 0.0
      %3065 = vmatmul.mubr.f32.gmra.mrb[0].mxu0 %v2039
      %v3066 = vpop.f32.mrb[0].mxu0
      %v3067 = vadd.f32 0.0, %v3066
      %v3068 = vpop.f32.mrb[0].mxu0
      %3069 = vmatprep.mubr.f32.mxu0 0.0
      %3070 = vmatmul.mubr.f32.gmra.mrb[0].mxu0 %v2848
      %v3071 = vpop.f32.mrb[0].mxu0
      %v3072 = vadd.f32 0.0, %v3071
      %v3073 = vpop.f32.mrb[0].mxu0
      %3074 = vmatprep.mubr.f32.mxu0 0.0
      %3075 = vmatmul.mubr.f32.gmra.mrb[0].mxu0 %v2850
      %v3076 = vpop.f32.mrb[0].mxu0
      %v3077 = vadd.f32 0.0, %v3076
      %v3078 = vpop.f32.mrb[0].mxu0
      %3079 = vdwg.mxu0
      %v3080 = vadd.f32 %v2809, %v2922
      %v3081 = vadd.f32 %v2810, %v2927
      %v3082 = vadd.f32 %v2811, %v2932
      %v3083 = vadd.f32 %v2812, %v2937
      %v3084 = vadd.f32 %v2813, %v2942
      %v3085 = vadd.f32 %v2814, %v2947
      %v3086 = vadd.f32 %v2815, %v2952
      %v3087 = vadd.f32 %v2816, %v2957
      %v3088 = vadd.f32 %v2817, %v2962
      %v3089 = vadd.f32 %v2818, %v2967
      %v3090 = vadd.f32 %v2819, %v2972
      %v3091 = vadd.f32 %v2820, %v2977
      %v3092 = vadd.f32 %v2821, %v2982
      %v3093 = vadd.f32 %v2822, %v2987
      %v3094 = vadd.f32 %v2823, %v2992
      %v3095 = vadd.f32 %v2824, %v2997
      %v3096 = vadd.f32 %v2825, %v3002
      %v3097 = vadd.f32 %v2826, %v3007
      %v3098 = vadd.f32 %v2827, %v3012
      %v3099 = vadd.f32 %v2828, %v3017
      %v3100 = vadd.f32 %v2829, %v3022
      %v3101 = vadd.f32 %v2830, %v3027
      %v3102 = vadd.f32 %v2831, %v3032
      %v3103 = vadd.f32 %v2832, %v3037
      %v3104 = vadd.f32 %v2833, %v3042
      %v3105 = vadd.f32 %v2834, %v3047
      %v3106 = vadd.f32 %v2835, %v3052
      %v3107 = vadd.f32 %v2836, %v3057
      %v3108 = vadd.f32 %v2837, %v3062
      %v3109 = vadd.f32 %v2838, %v3067
      %v3110 = vadd.f32 %v2839, %v3072
      %v3111 = vadd.f32 %v2840, %v3077
      %v3112 = vld [vmem:[%s2] sm:$0x1]
      %v3114 = vlaneseq
      %v3115 = vshrl.u32 %v3114, 7
      %v3116 = vsub.s32 0, %v3115
      %v3117 = vrot.slane %v3112, %v3116
      %v3119 = vmul.f32 %v3080, %v3117
      %v3120 = vmul.f32 %v3081, %v3117
      %v3121 = vmul.f32 %v3082, %v3117
      %v3122 = vmul.f32 %v3083, %v3117
      %v3123 = vmul.f32 %v3084, %v3117
      %v3124 = vmul.f32 %v3085, %v3117
      %v3125 = vmul.f32 %v3086, %v3117
      %v3126 = vmul.f32 %v3087, %v3117
      %v3127 = vmul.f32 %v3088, %v3117
      %v3128 = vmul.f32 %v3089, %v3117
      %v3129 = vmul.f32 %v3090, %v3117
      %v3130 = vmul.f32 %v3091, %v3117
      %v3131 = vmul.f32 %v3092, %v3117
      %v3132 = vmul.f32 %v3093, %v3117
      %v3133 = vmul.f32 %v3094, %v3117
      %v3134 = vmul.f32 %v3095, %v3117
      %v3135 = vmul.f32 %v3096, %v3117
      %v3136 = vmul.f32 %v3097, %v3117
      %v3137 = vmul.f32 %v3098, %v3117
      %v3138 = vmul.f32 %v3099, %v3117
      %v3139 = vmul.f32 %v3100, %v3117
      %v3140 = vmul.f32 %v3101, %v3117
      %v3141 = vmul.f32 %v3102, %v3117
      %v3142 = vmul.f32 %v3103, %v3117
      %v3143 = vmul.f32 %v3104, %v3117
      %v3144 = vmul.f32 %v3105, %v3117
      %v3145 = vmul.f32 %v3106, %v3117
      %v3146 = vmul.f32 %v3107, %v3117
      %v3147 = vmul.f32 %v3108, %v3117
      %v3148 = vmul.f32 %v3109, %v3117
      %v3149 = vmul.f32 %v3110, %v3117
      %v3150 = vmul.f32 %v3111, %v3117
      %v3151 = vld [vmem:[%s3] sm:$0x1]
      %v3153 = vlaneseq
      %v3154 = vshrl.u32 %v3153, 7
      %v3155 = vsub.s32 0, %v3154
      %v3156 = vrot.slane %v3151, %v3155
      %v3158 = vadd.f32 %v3119, %v3156
      %v3159 = vadd.f32 %v3120, %v3156
      %v3160 = vadd.f32 %v3121, %v3156
      %v3161 = vadd.f32 %v3122, %v3156
      %v3162 = vadd.f32 %v3123, %v3156
      %v3163 = vadd.f32 %v3124, %v3156
      %v3164 = vadd.f32 %v3125, %v3156
      %v3165 = vadd.f32 %v3126, %v3156
      %v3166 = vadd.f32 %v3127, %v3156
      %v3167 = vadd.f32 %v3128, %v3156
      %v3168 = vadd.f32 %v3129, %v3156
      %v3169 = vadd.f32 %v3130, %v3156
      %v3170 = vadd.f32 %v3131, %v3156
      %v3171 = vadd.f32 %v3132, %v3156
      %v3172 = vadd.f32 %v3133, %v3156
      %v3173 = vadd.f32 %v3134, %v3156
      %v3174 = vadd.f32 %v3135, %v3156
      %v3175 = vadd.f32 %v3136, %v3156
      %v3176 = vadd.f32 %v3137, %v3156
      %v3177 = vadd.f32 %v3138, %v3156
      %v3178 = vadd.f32 %v3139, %v3156
      %v3179 = vadd.f32 %v3140, %v3156
      %v3180 = vadd.f32 %v3141, %v3156
      %v3181 = vadd.f32 %v3142, %v3156
      %v3182 = vadd.f32 %v3143, %v3156
      %v3183 = vadd.f32 %v3144, %v3156
      %v3184 = vadd.f32 %v3145, %v3156
      %v3185 = vadd.f32 %v3146, %v3156
      %v3186 = vadd.f32 %v3147, %v3156
      %v3187 = vadd.f32 %v3148, %v3156
      %v3188 = vadd.f32 %v3149, %v3156
      %v3189 = vadd.f32 %v3150, %v3156
      %v3190 = vmax.f32 %v3158, 0.0
      %v3191 = vmax.f32 %v3159, 0.0
      %v3192 = vmax.f32 %v3160, 0.0
      %v3193 = vmax.f32 %v3161, 0.0
      %v3194 = vmax.f32 %v3162, 0.0
      %v3195 = vmax.f32 %v3163, 0.0
      %v3196 = vmax.f32 %v3164, 0.0
      %v3197 = vmax.f32 %v3165, 0.0
      %v3198 = vmax.f32 %v3166, 0.0
      %v3199 = vmax.f32 %v3167, 0.0
      %v3200 = vmax.f32 %v3168, 0.0
      %v3201 = vmax.f32 %v3169, 0.0
      %v3202 = vmax.f32 %v3170, 0.0
      %v3203 = vmax.f32 %v3171, 0.0
      %v3204 = vmax.f32 %v3172, 0.0
      %v3205 = vmax.f32 %v3173, 0.0
      %v3206 = vmax.f32 %v3174, 0.0
      %v3207 = vmax.f32 %v3175, 0.0
      %v3208 = vmax.f32 %v3176, 0.0
      %v3209 = vmax.f32 %v3177, 0.0
      %v3210 = vmax.f32 %v3178, 0.0
      %v3211 = vmax.f32 %v3179, 0.0
      %v3212 = vmax.f32 %v3180, 0.0
      %v3213 = vmax.f32 %v3181, 0.0
      %v3214 = vmax.f32 %v3182, 0.0
      %v3215 = vmax.f32 %v3183, 0.0
      %v3216 = vmax.f32 %v3184, 0.0
      %v3217 = vmax.f32 %v3185, 0.0
      %v3218 = vmax.f32 %v3186, 0.0
      %v3219 = vmax.f32 %v3187, 0.0
      %v3220 = vmax.f32 %v3188, 0.0
      %v3221 = vmax.f32 %v3189, 0.0
      %3222 = vst.msk [vmem:[#allocation2] sm:$0xff] %vm465, 0.0
      %3223 = vst.msk [vmem:[#allocation2 + $0x8] sm:$0xff] %vm465, 0.0
      %vm3224 = vcmask 25600
      %3225 = vst.msk [vmem:[#allocation2 + $0x10] sm:$0x3] %vm3224, 0.0
      %3226 = vst.msk [vmem:[#allocation2 + $0x18] sm:$0xff] %vm465, 0.0
      %3227 = vst.msk [vmem:[#allocation2 + $0x20] sm:$0xff] %vm465, 0.0
      %3228 = vst.msk [vmem:[#allocation2 + $0x28] sm:$0x3] %vm3224, 0.0
      %3229 = vst.msk [vmem:[#allocation2 + $0x30] sm:$0xff] %vm465, 0.0
      %3230 = vst.msk [vmem:[#allocation2 + $0x38] sm:$0xff] %vm465, 0.0
      %3231 = vst.msk [vmem:[#allocation2 + $0x40] sm:$0x3] %vm3224, 0.0
      %3232 = vst.msk [vmem:[#allocation2 + $0x48] sm:$0xff] %vm465, 0.0
      %3233 = vst.msk [vmem:[#allocation2 + $0x50] sm:$0xff] %vm465, 0.0
      %3234 = vst.msk [vmem:[#allocation2 + $0x58] sm:$0x3] %vm3224, 0.0
      %3235 = vst.msk [vmem:[#allocation2 + $0x60] sm:$0xff] %vm465, 0.0
      %3236 = vst.msk [vmem:[#allocation2 + $0x68] sm:$0xff] %vm465, 0.0
      %3237 = vst.msk [vmem:[#allocation2 + $0x70] sm:$0x3] %vm3224, 0.0
      %3238 = vst.msk [vmem:[#allocation2 + $0x78] sm:$0xff] %vm465, 0.0
      %3239 = vst.msk [vmem:[#allocation2 + $0x80] sm:$0xff] %vm465, 0.0
      %3240 = vst.msk [vmem:[#allocation2 + $0x88] sm:$0x3] %vm3224, 0.0
      %3241 = vst.msk [vmem:[#allocation2 + $0x90] sm:$0xff] %vm465, 0.0
      %3242 = vst.msk [vmem:[#allocation2 + $0x98] sm:$0xff] %vm465, 0.0
      %3243 = vst.msk [vmem:[#allocation2 + $0xa0] sm:$0x3] %vm3224, 0.0
      %3244 = vst.msk [vmem:[#allocation2 + $0xa8] sm:$0xff] %vm465, 0.0
      %3245 = vst.msk [vmem:[#allocation2 + $0xb0] sm:$0xff] %vm465, 0.0
      %3246 = vst.msk [vmem:[#allocation2 + $0xb8] sm:$0x3] %vm3224, 0.0
      %3247 = vst.msk [vmem:[#allocation2 + $0xc0] sm:$0xff] %vm465, 0.0
      %3248 = vst.msk [vmem:[#allocation2 + $0xc8] sm:$0xff] %vm465, 0.0
      %3249 = vst.msk [vmem:[#allocation2 + $0xd0] sm:$0x3] %vm3224, 0.0
      %3250 = vst.msk [vmem:[#allocation2 + $0xd8] sm:$0xff] %vm465, 0.0
      %3251 = vst.msk [vmem:[#allocation2 + $0xe0] sm:$0xff] %vm465, 0.0
      %3252 = vst.msk [vmem:[#allocation2 + $0xe8] sm:$0x3] %vm3224, 0.0
      %3253 = vst.msk [vmem:[#allocation2 + $0xf0] sm:$0xff] %vm465, 0.0
      %3254 = vst.msk [vmem:[#allocation2 + $0xf8] sm:$0xff] %vm465, 0.0
      %3255 = vst.msk [vmem:[#allocation2 + $0x100] sm:$0x3] %vm3224, 0.0
      %3256 = vst.msk [vmem:[#allocation2 + $0x108] sm:$0xff] %vm465, 0.0
      %3257 = vst.msk [vmem:[#allocation2 + $0x110] sm:$0xff] %vm465, 0.0
      %3258 = vst.msk [vmem:[#allocation2 + $0x118] sm:$0x3] %vm3224, 0.0
      %3259 = vst.msk [vmem:[#allocation2 + $0x120] sm:$0xff] %vm465, 0.0
      %3260 = vst.msk [vmem:[#allocation2 + $0x128] sm:$0xff] %vm465, 0.0
      %3261 = vst.msk [vmem:[#allocation2 + $0x130] sm:$0x3] %vm3224, 0.0
      %3262 = vst.msk [vmem:[#allocation2 + $0x138] sm:$0xff] %vm465, 0.0
      %3263 = vst.msk [vmem:[#allocation2 + $0x140] sm:$0xff] %vm465, 0.0
      %3264 = vst.msk [vmem:[#allocation2 + $0x148] sm:$0x3] %vm3224, 0.0
      %3265 = vst.msk [vmem:[#allocation2 + $0x150] sm:$0xff] %vm465, 0.0
      %3266 = vst.msk [vmem:[#allocation2 + $0x158] sm:$0xff] %vm465, 0.0
      %3267 = vst.msk [vmem:[#allocation2 + $0x160] sm:$0x3] %vm3224, 0.0
      %3268 = vst.msk [vmem:[#allocation2 + $0x168] sm:$0xff] %vm465, 0.0
      %3269 = vst.msk [vmem:[#allocation2 + $0x170] sm:$0xff] %vm465, 0.0
      %3270 = vst.msk [vmem:[#allocation2 + $0x178] sm:$0x3] %vm3224, 0.0
      %3271 = vst.msk [vmem:[#allocation2 + $0x180] sm:$0xff] %vm465, 0.0
      %3272 = vst.msk [vmem:[#allocation2 + $0x188] sm:$0xff] %vm465, 0.0
      %3273 = vst.msk [vmem:[#allocation2 + $0x190] sm:$0x3] %vm3224, 0.0
      %3274 = vst.msk [vmem:[#allocation2 + $0x198] sm:$0xff] %vm465, 0.0
      %3275 = vst.msk [vmem:[#allocation2 + $0x1a0] sm:$0xff] %vm465, 0.0
      %3276 = vst.msk [vmem:[#allocation2 + $0x1a8] sm:$0x3] %vm3224, 0.0
      %s3277 = scalar_lea.vmem [#allocation2], 24
      %3278 = vst.msk [vmem:[%s3277 + $0x1] sm:$0xff] %vm465, %v3190
      %3279 = vst.msk [vmem:[%s3277 + $0x9] sm:$0xff] %vm465, %v3191
      %3280 = vst.msk [vmem:[%s3277 + $0x19] sm:$0xff] %vm465, %v3192
      %3281 = vst.msk [vmem:[%s3277 + $0x21] sm:$0xff] %vm465, %v3193
      %3282 = vst.msk [vmem:[%s3277 + $0x31] sm:$0xff] %vm465, %v3194
      %3283 = vst.msk [vmem:[%s3277 + $0x39] sm:$0xff] %vm465, %v3195
      %3284 = vst.msk [vmem:[%s3277 + $0x49] sm:$0xff] %vm465, %v3196
      %3285 = vst.msk [vmem:[%s3277 + $0x51] sm:$0xff] %vm465, %v3197
      %3286 = vst.msk [vmem:[%s3277 + $0x61] sm:$0xff] %vm465, %v3198
      %3287 = vst.msk [vmem:[%s3277 + $0x69] sm:$0xff] %vm465, %v3199
      %3288 = vst.msk [vmem:[%s3277 + $0x79] sm:$0xff] %vm465, %v3200
      %3289 = vst.msk [vmem:[%s3277 + $0x81] sm:$0xff] %vm465, %v3201
      %3290 = vst.msk [vmem:[%s3277 + $0x91] sm:$0xff] %vm465, %v3202
      %3291 = vst.msk [vmem:[%s3277 + $0x99] sm:$0xff] %vm465, %v3203
      %3292 = vst.msk [vmem:[%s3277 + $0xa9] sm:$0xff] %vm465, %v3204
      %3293 = vst.msk [vmem:[%s3277 + $0xb1] sm:$0xff] %vm465, %v3205
      %3294 = vst.msk [vmem:[%s3277 + $0xc1] sm:$0xff] %vm465, %v3206
      %3295 = vst.msk [vmem:[%s3277 + $0xc9] sm:$0xff] %vm465, %v3207
      %3296 = vst.msk [vmem:[%s3277 + $0xd9] sm:$0xff] %vm465, %v3208
      %3297 = vst.msk [vmem:[%s3277 + $0xe1] sm:$0xff] %vm465, %v3209
      %3298 = vst.msk [vmem:[%s3277 + $0xf1] sm:$0xff] %vm465, %v3210
      %3299 = vst.msk [vmem:[%s3277 + $0xf9] sm:$0xff] %vm465, %v3211
      %3300 = vst.msk [vmem:[%s3277 + $0x109] sm:$0xff] %vm465, %v3212
      %3301 = vst.msk [vmem:[%s3277 + $0x111] sm:$0xff] %vm465, %v3213
      %3302 = vst.msk [vmem:[%s3277 + $0x121] sm:$0xff] %vm465, %v3214
      %3303 = vst.msk [vmem:[%s3277 + $0x129] sm:$0xff] %vm465, %v3215
      %3304 = vst.msk [vmem:[%s3277 + $0x139] sm:$0xff] %vm465, %v3216
      %3305 = vst.msk [vmem:[%s3277 + $0x141] sm:$0xff] %vm465, %v3217
      %3306 = vst.msk [vmem:[%s3277 + $0x151] sm:$0xff] %vm465, %v3218
      %3307 = vst.msk [vmem:[%s3277 + $0x159] sm:$0xff] %vm465, %v3219
      %3308 = vst.msk [vmem:[%s3277 + $0x169] sm:$0xff] %vm465, %v3220
      %3309 = vst.msk [vmem:[%s3277 + $0x171] sm:$0xff] %vm465, %v3221
      %v3310 = vld [vmem:[#allocation2] sm:$0xff]
      %v3311 = vld [vmem:[#allocation2 + $0x8] sm:$0xff]
      %v3312 = vld [vmem:[#allocation2 + $0x18] sm:$0xff]
      %v3313 = vld [vmem:[#allocation2 + $0x20] sm:$0xff]
      %v3314 = vld [vmem:[#allocation2 + $0x30] sm:$0xff]
      %v3315 = vld [vmem:[#allocation2 + $0x38] sm:$0xff]
      %v3316 = vld [vmem:[#allocation2 + $0x48] sm:$0xff]
      %v3317 = vld [vmem:[#allocation2 + $0x50] sm:$0xff]
      %v3318 = vld [vmem:[#allocation2 + $0x60] sm:$0xff]
      %v3319 = vld [vmem:[#allocation2 + $0x68] sm:$0xff]
      %v3320 = vld [vmem:[#allocation2 + $0x78] sm:$0xff]
      %v3321 = vld [vmem:[#allocation2 + $0x80] sm:$0xff]
      %v3322 = vld [vmem:[#allocation2 + $0x90] sm:$0xff]
      %v3323 = vld [vmem:[#allocation2 + $0x98] sm:$0xff]
      %v3324 = vld [vmem:[#allocation2 + $0xa8] sm:$0xff]
      %v3325 = vld [vmem:[#allocation2 + $0xb0] sm:$0xff]
      %v3326 = vld [vmem:[#allocation2 + $0xc0] sm:$0xff]
      %v3327 = vld [vmem:[#allocation2 + $0xc8] sm:$0xff]
      %v3328 = vld [vmem:[#allocation2 + $0xd8] sm:$0xff]
      %v3329 = vld [vmem:[#allocation2 + $0xe0] sm:$0xff]
      %v3330 = vld [vmem:[#allocation2 + $0xf0] sm:$0xff]
      %v3331 = vld [vmem:[#allocation2 + $0xf8] sm:$0xff]
      %v3332 = vld [vmem:[#allocation2 + $0x108] sm:$0xff]
      %v3333 = vld [vmem:[#allocation2 + $0x110] sm:$0xff]
      %v3334 = vld [vmem:[#allocation2 + $0x120] sm:$0xff]
      %v3335 = vld [vmem:[#allocation2 + $0x128] sm:$0xff]
      %v3336 = vld [vmem:[#allocation2 + $0x138] sm:$0xff]
      %v3337 = vld [vmem:[#allocation2 + $0x140] sm:$0xff]
      %v3338 = vld [vmem:[#allocation2 + $0x150] sm:$0xff]
      %v3339 = vld [vmem:[#allocation2 + $0x158] sm:$0xff]
      %v3340 = vld [vmem:[#allocation2 + $0x168] sm:$0xff]
      %v3341 = vld [vmem:[#allocation2 + $0x170] sm:$0xff]
      %v3342 = vld [vmem:[%s4] sm:$0xf]
      %v3343 = vld [vmem:[#allocation2 + $0x1] sm:$0xff]
      %v3344 = vld [vmem:[#allocation2 + $0x9] sm:$0xff]
      %v3345 = vld [vmem:[#allocation2 + $0x19] sm:$0xff]
      %v3346 = vld [vmem:[#allocation2 + $0x21] sm:$0xff]
      %v3347 = vld [vmem:[#allocation2 + $0x31] sm:$0xff]
      %v3348 = vld [vmem:[#allocation2 + $0x39] sm:$0xff]
      %v3349 = vld [vmem:[#allocation2 + $0x49] sm:$0xff]
      %v3350 = vld [vmem:[#allocation2 + $0x51] sm:$0xff]
      %v3351 = vld [vmem:[#allocation2 + $0x61] sm:$0xff]
      %v3352 = vld [vmem:[#allocation2 + $0x69] sm:$0xff]
      %v3353 = vld [vmem:[#allocation2 + $0x79] sm:$0xff]
      %v3354 = vld [vmem:[#allocation2 + $0x81] sm:$0xff]
      %v3355 = vld [vmem:[#allocation2 + $0x91] sm:$0xff]
      %v3356 = vld [vmem:[#allocation2 + $0x99] sm:$0xff]
      %v3357 = vld [vmem:[#allocation2 + $0xa9] sm:$0xff]
      %v3358 = vld [vmem:[#allocation2 + $0xb1] sm:$0xff]
      %v3359 = vld [vmem:[#allocation2 + $0xc1] sm:$0xff]
      %v3360 = vld [vmem:[#allocation2 + $0xc9] sm:$0xff]
      %v3361 = vld [vmem:[#allocation2 + $0xd9] sm:$0xff]
      %v3362 = vld [vmem:[#allocation2 + $0xe1] sm:$0xff]
      %v3363 = vld [vmem:[#allocation2 + $0xf1] sm:$0xff]
      %v3364 = vld [vmem:[#allocation2 + $0xf9] sm:$0xff]
      %v3365 = vld [vmem:[#allocation2 + $0x109] sm:$0xff]
      %v3366 = vld [vmem:[#allocation2 + $0x111] sm:$0xff]
      %v3367 = vld [vmem:[#allocation2 + $0x121] sm:$0xff]
      %v3368 = vld [vmem:[#allocation2 + $0x129] sm:$0xff]
      %v3369 = vld [vmem:[#allocation2 + $0x139] sm:$0xff]
      %v3370 = vld [vmem:[#allocation2 + $0x141] sm:$0xff]
      %v3371 = vld [vmem:[#allocation2 + $0x151] sm:$0xff]
      %v3372 = vld [vmem:[#allocation2 + $0x159] sm:$0xff]
      %v3373 = vld [vmem:[#allocation2 + $0x169] sm:$0xff]
      %v3374 = vld [vmem:[#allocation2 + $0x171] sm:$0xff]
      %s3375 = scalar_lea.vmem %s4, 4
      %v3376 = vld [vmem:[%s3375] sm:$0xf]
      %v3378 = vsel %vm465, %v3343, 0
      %v3381 = vsel %vm465, %v3344, 0
      %v3384 = vsel %vm465, %v3345, 0
      %v3387 = vsel %vm465, %v3346, 0
      %v3390 = vsel %vm465, %v3347, 0
      %v3393 = vsel %vm465, %v3348, 0
      %v3396 = vsel %vm465, %v3349, 0
      %v3399 = vsel %vm465, %v3350, 0
      %v3402 = vsel %vm465, %v3351, 0
      %v3405 = vsel %vm465, %v3352, 0
      %v3408 = vsel %vm465, %v3353, 0
      %v3411 = vsel %vm465, %v3354, 0
      %v3414 = vsel %vm465, %v3355, 0
      %v3417 = vsel %vm465, %v3356, 0
      %v3420 = vsel %vm465, %v3357, 0
      %v3423 = vsel %vm465, %v3358, 0
      %v3426 = vsel %vm465, %v3359, 0
      %v3429 = vsel %vm465, %v3360, 0
      %v3432 = vsel %vm465, %v3361, 0
      %v3435 = vsel %vm465, %v3362, 0
      %v3438 = vsel %vm465, %v3363, 0
      %v3441 = vsel %vm465, %v3364, 0
      %v3444 = vsel %vm465, %v3365, 0
      %v3447 = vsel %vm465, %v3366, 0
      %v3450 = vsel %vm465, %v3367, 0
      %v3453 = vsel %vm465, %v3368, 0
      %v3456 = vsel %vm465, %v3369, 0
      %v3459 = vsel %vm465, %v3370, 0
      %v3462 = vsel %vm465, %v3371, 0
      %v3465 = vsel %vm465, %v3372, 0
      %v3468 = vsel %vm465, %v3373, 0
      %v3471 = vsel %vm465, %v3374, 0
      %v3474 = vsel %vm530, %v3376, 0
      %3476 = vmatprep.subr.mxu0 0.0
      %3477 = vmatpush1.msra.mxu0 %v3474
      %3478 = vmatprep.subr.mxu0 0.0
      %3479 = vmatpush1.msra.mxu0 0.0
      %3480 = vmatprep.subr.mxu0 0.0
      %3481 = vmatpush1.msra.mxu0 0.0
      %3482 = vmatprep.subr.mxu0 0.0
      %3483 = vmatpush1.msra.mxu0 0.0
      %3484 = vmatprep.subr.mxu0 0.0
      %3485 = vmatpush1.msra.mxu0 0.0
      %3486 = vmatprep.subr.mxu0 0.0
      %3487 = vmatpush1.msra.mxu0 0.0
      %3488 = vmatprep.subr.mxu0 0.0
      %3489 = vmatpush1.msra.mxu0 0.0
      %3490 = vmatprep.subr.mxu0 0.0
      %3491 = vmatpush1.msra.mxu0 0.0
      %3492 = vmatprep.subr.mxu0 0.0
      %3493 = vmatpush1.msra.mxu0 0.0
      %3494 = vmatprep.subr.mxu0 0.0
      %3495 = vmatpush1.msra.mxu0 0.0
      %3496 = vmatprep.subr.mxu0 0.0
      %3497 = vmatpush1.msra.mxu0 0.0
      %3498 = vmatprep.subr.mxu0 0.0
      %3499 = vmatpush1.msra.mxu0 0.0
      %3500 = vmatprep.subr.mxu0 0.0
      %3501 = vmatpush1.msra.mxu0 0.0
      %3502 = vmatprep.subr.mxu0 0.0
      %3503 = vmatpush1.msra.mxu0 0.0
      %3504 = vmatprep.subr.mxu0 0.0
      %3505 = vmatpush1.msra.mxu0 0.0
      %3506 = vmatprep.subr.mxu0 0.0
      %3507 = vmatpush1.msra.mxu0 0.0
      %3508 = vmatprep.subr.mxu0 0.0
      %3509 = vmatpush1.msra.mxu0 0.0
      %3510 = vmatprep.subr.mxu0 0.0
      %3511 = vmatpush1.msra.mxu0 0.0
      %3512 = vmatprep.subr.mxu0 0.0
      %3513 = vmatpush1.msra.mxu0 0.0
      %3514 = vmatprep.subr.mxu0 0.0
      %3515 = vmatpush1.msra.mxu0 0.0
      %3516 = vmatprep.subr.mxu0 0.0
      %3517 = vmatpush1.msra.mxu0 0.0
      %3518 = vmatprep.subr.mxu0 0.0
      %3519 = vmatpush1.msra.mxu0 0.0
      %3520 = vmatprep.subr.mxu0 0.0
      %3521 = vmatpush1.msra.mxu0 0.0
      %3522 = vmatprep.subr.mxu0 0.0
      %3523 = vmatpush1.msra.mxu0 0.0
      %3524 = vmatprep.subr.mxu0 0.0
      %3525 = vmatpush1.msra.mxu0 0.0
      %3526 = vmatprep.subr.mxu0 0.0
      %3527 = vmatpush1.msra.mxu0 0.0
      %3528 = vmatprep.subr.mxu0 0.0
      %3529 = vmatpush1.msra.mxu0 0.0
      %3530 = vmatprep.subr.mxu0 0.0
      %3531 = vmatpush1.msra.mxu0 0.0
      %3532 = vmatprep.subr.mxu0 0.0
      %3533 = vmatpush1.msra.mxu0 0.0
      %3534 = vmatprep.subr.mxu0 0.0
      %3535 = vmatpush1.msra.mxu0 0.0
      %3536 = vmatprep.subr.mxu0 0.0
      %3537 = vmatpush1.msra.mxu0 0.0
      %3538 = vmatprep.subr.mxu0 0.0
      %3539 = vmatpush1.msra.mxu0 0.0
      %3540 = vmatprep.mubr.f32.mxu0 0.0
      %3541 = vmatmul.mubr.f32.gmra.mrb[0].mxu0 %v3378
      %v3542 = vpop.f32.mrb[0].mxu0
      %v3543 = vadd.f32 0.0, %v3542
      %v3544 = vpop.f32.mrb[0].mxu0
      %3545 = vmatprep.mubr.f32.mxu0 0.0
      %3546 = vmatmul.mubr.f32.gmra.mrb[0].mxu0 %v3381
      %v3547 = vpop.f32.mrb[0].mxu0
      %v3548 = vadd.f32 0.0, %v3547
      %v3549 = vpop.f32.mrb[0].mxu0
      %3550 = vmatprep.mubr.f32.mxu0 0.0
      %3551 = vmatmul.mubr.f32.gmra.mrb[0].mxu0 %v3384
      %v3552 = vpop.f32.mrb[0].mxu0
      %v3553 = vadd.f32 0.0, %v3552
      %v3554 = vpop.f32.mrb[0].mxu0
      %3555 = vmatprep.mubr.f32.mxu0 0.0
      %3556 = vmatmul.mubr.f32.gmra.mrb[0].mxu0 %v3387
      %v3557 = vpop.f32.mrb[0].mxu0
      %v3558 = vadd.f32 0.0, %v3557
      %v3559 = vpop.f32.mrb[0].mxu0
      %3560 = vmatprep.mubr.f32.mxu0 0.0
      %3561 = vmatmul.mubr.f32.gmra.mrb[0].mxu0 %v3390
      %v3562 = vpop.f32.mrb[0].mxu0
      %v3563 = vadd.f32 0.0, %v3562
      %v3564 = vpop.f32.mrb[0].mxu0
      %3565 = vmatprep.mubr.f32.mxu0 0.0
      %3566 = vmatmul.mubr.f32.gmra.mrb[0].mxu0 %v3393
      %v3567 = vpop.f32.mrb[0].mxu0
      %v3568 = vadd.f32 0.0, %v3567
      %v3569 = vpop.f32.mrb[0].mxu0
      %3570 = vmatprep.mubr.f32.mxu0 0.0
      %3571 = vmatmul.mubr.f32.gmra.mrb[0].mxu0 %v3396
      %v3572 = vpop.f32.mrb[0].mxu0
      %v3573 = vadd.f32 0.0, %v3572
      %v3574 = vpop.f32.mrb[0].mxu0
      %3575 = vmatprep.mubr.f32.mxu0 0.0
      %3576 = vmatmul.mubr.f32.gmra.mrb[0].mxu0 %v3399
      %v3577 = vpop.f32.mrb[0].mxu0
      %v3578 = vadd.f32 0.0, %v3577
      %v3579 = vpop.f32.mrb[0].mxu0
      %3580 = vmatprep.mubr.f32.mxu0 0.0
      %3581 = vmatmul.mubr.f32.gmra.mrb[0].mxu0 %v3402
      %v3582 = vpop.f32.mrb[0].mxu0
      %v3583 = vadd.f32 0.0, %v3582
      %v3584 = vpop.f32.mrb[0].mxu0
      %3585 = vmatprep.mubr.f32.mxu0 0.0
      %3586 = vmatmul.mubr.f32.gmra.mrb[0].mxu0 %v3405
      %v3587 = vpop.f32.mrb[0].mxu0
      %v3588 = vadd.f32 0.0, %v3587
      %v3589 = vpop.f32.mrb[0].mxu0
      %3590 = vmatprep.mubr.f32.mxu0 0.0
      %3591 = vmatmul.mubr.f32.gmra.mrb[0].mxu0 %v3408
      %v3592 = vpop.f32.mrb[0].mxu0
      %v3593 = vadd.f32 0.0, %v3592
      %v3594 = vpop.f32.mrb[0].mxu0
      %3595 = vmatprep.mubr.f32.mxu0 0.0
      %3596 = vmatmul.mubr.f32.gmra.mrb[0].mxu0 %v3411
      %v3597 = vpop.f32.mrb[0].mxu0
      %v3598 = vadd.f32 0.0, %v3597
      %v3599 = vpop.f32.mrb[0].mxu0
      %3600 = vmatprep.mubr.f32.mxu0 0.0
      %3601 = vmatmul.mubr.f32.gmra.mrb[0].mxu0 %v3414
      %v3602 = vpop.f32.mrb[0].mxu0
      %v3603 = vadd.f32 0.0, %v3602
      %v3604 = vpop.f32.mrb[0].mxu0
      %3605 = vmatprep.mubr.f32.mxu0 0.0
      %3606 = vmatmul.mubr.f32.gmra.mrb[0].mxu0 %v3417
      %v3607 = vpop.f32.mrb[0].mxu0
      %v3608 = vadd.f32 0.0, %v3607
      %v3609 = vpop.f32.mrb[0].mxu0
      %3610 = vmatprep.mubr.f32.mxu0 0.0
      %3611 = vmatmul.mubr.f32.gmra.mrb[0].mxu0 %v3420
      %v3612 = vpop.f32.mrb[0].mxu0
      %v3613 = vadd.f32 0.0, %v3612
      %v3614 = vpop.f32.mrb[0].mxu0
      %3615 = vmatprep.mubr.f32.mxu0 0.0
      %3616 = vmatmul.mubr.f32.gmra.mrb[0].mxu0 %v3423
      %v3617 = vpop.f32.mrb[0].mxu0
      %v3618 = vadd.f32 0.0, %v3617
      %v3619 = vpop.f32.mrb[0].mxu0
      %3620 = vmatprep.mubr.f32.mxu0 0.0
      %3621 = vmatmul.mubr.f32.gmra.mrb[0].mxu0 %v3426
      %v3622 = vpop.f32.mrb[0].mxu0
      %v3623 = vadd.f32 0.0, %v3622
      %v3624 = vpop.f32.mrb[0].mxu0
      %3625 = vmatprep.mubr.f32.mxu0 0.0
      %3626 = vmatmul.mubr.f32.gmra.mrb[0].mxu0 %v3429
      %v3627 = vpop.f32.mrb[0].mxu0
      %v3628 = vadd.f32 0.0, %v3627
      %v3629 = vpop.f32.mrb[0].mxu0
      %3630 = vmatprep.mubr.f32.mxu0 0.0
      %3631 = vmatmul.mubr.f32.gmra.mrb[0].mxu0 %v3432
      %v3632 = vpop.f32.mrb[0].mxu0
      %v3633 = vadd.f32 0.0, %v3632
      %v3634 = vpop.f32.mrb[0].mxu0
      %3635 = vmatprep.mubr.f32.mxu0 0.0
      %3636 = vmatmul.mubr.f32.gmra.mrb[0].mxu0 %v3435
      %v3637 = vpop.f32.mrb[0].mxu0
      %v3638 = vadd.f32 0.0, %v3637
      %v3639 = vpop.f32.mrb[0].mxu0
      %3640 = vmatprep.mubr.f32.mxu0 0.0
      %3641 = vmatmul.mubr.f32.gmra.mrb[0].mxu0 %v3438
      %v3642 = vpop.f32.mrb[0].mxu0
      %v3643 = vadd.f32 0.0, %v3642
      %v3644 = vpop.f32.mrb[0].mxu0
      %3645 = vmatprep.mubr.f32.mxu0 0.0
      %3646 = vmatmul.mubr.f32.gmra.mrb[0].mxu0 %v3441
      %v3647 = vpop.f32.mrb[0].mxu0
      %v3648 = vadd.f32 0.0, %v3647
      %v3649 = vpop.f32.mrb[0].mxu0
      %3650 = vmatprep.mubr.f32.mxu0 0.0
      %3651 = vmatmul.mubr.f32.gmra.mrb[0].mxu0 %v3444
      %v3652 = vpop.f32.mrb[0].mxu0
      %v3653 = vadd.f32 0.0, %v3652
      %v3654 = vpop.f32.mrb[0].mxu0
      %3655 = vmatprep.mubr.f32.mxu0 0.0
      %3656 = vmatmul.mubr.f32.gmra.mrb[0].mxu0 %v3447
      %v3657 = vpop.f32.mrb[0].mxu0
      %v3658 = vadd.f32 0.0, %v3657
      %v3659 = vpop.f32.mrb[0].mxu0
      %3660 = vmatprep.mubr.f32.mxu0 0.0
      %3661 = vmatmul.mubr.f32.gmra.mrb[0].mxu0 %v3450
      %v3662 = vpop.f32.mrb[0].mxu0
      %v3663 = vadd.f32 0.0, %v3662
      %v3664 = vpop.f32.mrb[0].mxu0
      %3665 = vmatprep.mubr.f32.mxu0 0.0
      %3666 = vmatmul.mubr.f32.gmra.mrb[0].mxu0 %v3453
      %v3667 = vpop.f32.mrb[0].mxu0
      %v3668 = vadd.f32 0.0, %v3667
      %v3669 = vpop.f32.mrb[0].mxu0
      %3670 = vmatprep.mubr.f32.mxu0 0.0
      %3671 = vmatmul.mubr.f32.gmra.mrb[0].mxu0 %v3456
      %v3672 = vpop.f32.mrb[0].mxu0
      %v3673 = vadd.f32 0.0, %v3672
      %v3674 = vpop.f32.mrb[0].mxu0
      %3675 = vmatprep.mubr.f32.mxu0 0.0
      %3676 = vmatmul.mubr.f32.gmra.mrb[0].mxu0 %v3459
      %v3677 = vpop.f32.mrb[0].mxu0
      %v3678 = vadd.f32 0.0, %v3677
      %v3679 = vpop.f32.mrb[0].mxu0
      %3680 = vmatprep.mubr.f32.mxu0 0.0
      %3681 = vmatmul.mubr.f32.gmra.mrb[0].mxu0 %v3462
      %v3682 = vpop.f32.mrb[0].mxu0
      %v3683 = vadd.f32 0.0, %v3682
      %v3684 = vpop.f32.mrb[0].mxu0
      %3685 = vmatprep.mubr.f32.mxu0 0.0
      %3686 = vmatmul.mubr.f32.gmra.mrb[0].mxu0 %v3465
      %v3687 = vpop.f32.mrb[0].mxu0
      %v3688 = vadd.f32 0.0, %v3687
      %v3689 = vpop.f32.mrb[0].mxu0
      %3690 = vmatprep.mubr.f32.mxu0 0.0
      %3691 = vmatmul.mubr.f32.gmra.mrb[0].mxu0 %v3468
      %v3692 = vpop.f32.mrb[0].mxu0
      %v3693 = vadd.f32 0.0, %v3692
      %v3694 = vpop.f32.mrb[0].mxu0
      %3695 = vmatprep.mubr.f32.mxu0 0.0
      %3696 = vmatmul.mubr.f32.gmra.mrb[0].mxu0 %v3471
      %v3697 = vpop.f32.mrb[0].mxu0
      %v3698 = vadd.f32 0.0, %v3697
      %v3699 = vpop.f32.mrb[0].mxu0
      %3700 = vdwg.mxu0
      %v3702 = vsel %vm465, %v3310, 0
      %v3705 = vsel %vm465, %v3311, 0
      %v3708 = vsel %vm465, %v3312, 0
      %v3711 = vsel %vm465, %v3313, 0
      %v3714 = vsel %vm465, %v3314, 0
      %v3717 = vsel %vm465, %v3315, 0
      %v3720 = vsel %vm465, %v3316, 0
      %v3723 = vsel %vm465, %v3317, 0
      %v3726 = vsel %vm465, %v3318, 0
      %v3729 = vsel %vm465, %v3319, 0
      %v3732 = vsel %vm465, %v3320, 0
      %v3735 = vsel %vm465, %v3321, 0
      %v3738 = vsel %vm465, %v3322, 0
      %v3741 = vsel %vm465, %v3323, 0
      %v3744 = vsel %vm465, %v3324, 0
      %v3747 = vsel %vm465, %v3325, 0
      %v3750 = vsel %vm465, %v3326, 0
      %v3753 = vsel %vm465, %v3327, 0
      %v3756 = vsel %vm465, %v3328, 0
      %v3759 = vsel %vm465, %v3329, 0
      %v3762 = vsel %vm465, %v3330, 0
      %v3765 = vsel %vm465, %v3331, 0
      %v3768 = vsel %vm465, %v3332, 0
      %v3771 = vsel %vm465, %v3333, 0
      %v3774 = vsel %vm465, %v3334, 0
      %v3777 = vsel %vm465, %v3335, 0
      %v3780 = vsel %vm465, %v3336, 0
      %v3783 = vsel %vm465, %v3337, 0
      %v3786 = vsel %vm465, %v3338, 0
      %v3789 = vsel %vm465, %v3339, 0
      %v3792 = vsel %vm465, %v3340, 0
      %v3795 = vsel %vm465, %v3341, 0
      %v3798 = vsel %vm530, %v3342, 0
      %3800 = vmatprep.subr.mxu0 0.0
      %3801 = vmatpush1.msra.mxu0 %v3798
      %3802 = vmatprep.subr.mxu0 0.0
      %3803 = vmatpush1.msra.mxu0 0.0
      %3804 = vmatprep.subr.mxu0 0.0
      %3805 = vmatpush1.msra.mxu0 0.0
      %3806 = vmatprep.subr.mxu0 0.0
      %3807 = vmatpush1.msra.mxu0 0.0
      %3808 = vmatprep.subr.mxu0 0.0
      %3809 = vmatpush1.msra.mxu0 0.0
      %3810 = vmatprep.subr.mxu0 0.0
      %3811 = vmatpush1.msra.mxu0 0.0
      %3812 = vmatprep.subr.mxu0 0.0
      %3813 = vmatpush1.msra.mxu0 0.0
      %3814 = vmatprep.subr.mxu0 0.0
      %3815 = vmatpush1.msra.mxu0 0.0
      %3816 = vmatprep.subr.mxu0 0.0
      %3817 = vmatpush1.msra.mxu0 0.0
      %3818 = vmatprep.subr.mxu0 0.0
      %3819 = vmatpush1.msra.mxu0 0.0
      %3820 = vmatprep.subr.mxu0 0.0
      %3821 = vmatpush1.msra.mxu0 0.0
      %3822 = vmatprep.subr.mxu0 0.0
      %3823 = vmatpush1.msra.mxu0 0.0
      %3824 = vmatprep.subr.mxu0 0.0
      %3825 = vmatpush1.msra.mxu0 0.0
      %3826 = vmatprep.subr.mxu0 0.0
      %3827 = vmatpush1.msra.mxu0 0.0
      %3828 = vmatprep.subr.mxu0 0.0
      %3829 = vmatpush1.msra.mxu0 0.0
      %3830 = vmatprep.subr.mxu0 0.0
      %3831 = vmatpush1.msra.mxu0 0.0
      %3832 = vmatprep.subr.mxu0 0.0
      %3833 = vmatpush1.msra.mxu0 0.0
      %3834 = vmatprep.subr.mxu0 0.0
      %3835 = vmatpush1.msra.mxu0 0.0
      %3836 = vmatprep.subr.mxu0 0.0
      %3837 = vmatpush1.msra.mxu0 0.0
      %3838 = vmatprep.subr.mxu0 0.0
      %3839 = vmatpush1.msra.mxu0 0.0
      %3840 = vmatprep.subr.mxu0 0.0
      %3841 = vmatpush1.msra.mxu0 0.0
      %3842 = vmatprep.subr.mxu0 0.0
      %3843 = vmatpush1.msra.mxu0 0.0
      %3844 = vmatprep.subr.mxu0 0.0
      %3845 = vmatpush1.msra.mxu0 0.0
      %3846 = vmatprep.subr.mxu0 0.0
      %3847 = vmatpush1.msra.mxu0 0.0
      %3848 = vmatprep.subr.mxu0 0.0
      %3849 = vmatpush1.msra.mxu0 0.0
      %3850 = vmatprep.subr.mxu0 0.0
      %3851 = vmatpush1.msra.mxu0 0.0
      %3852 = vmatprep.subr.mxu0 0.0
      %3853 = vmatpush1.msra.mxu0 0.0
      %3854 = vmatprep.subr.mxu0 0.0
      %3855 = vmatpush1.msra.mxu0 0.0
      %3856 = vmatprep.subr.mxu0 0.0
      %3857 = vmatpush1.msra.mxu0 0.0
      %3858 = vmatprep.subr.mxu0 0.0
      %3859 = vmatpush1.msra.mxu0 0.0
      %3860 = vmatprep.subr.mxu0 0.0
      %3861 = vmatpush1.msra.mxu0 0.0
      %3862 = vmatprep.subr.mxu0 0.0
      %3863 = vmatpush1.msra.mxu0 0.0
      %3864 = vmatprep.mubr.f32.mxu0 0.0
      %3865 = vmatmul.mubr.f32.gmra.mrb[0].mxu0 %v3702
      %v3866 = vpop.f32.mrb[0].mxu0
      %v3867 = vadd.f32 %v3543, %v3866
      %v3868 = vpop.f32.mrb[0].mxu0
      %3869 = vmatprep.mubr.f32.mxu0 0.0
      %3870 = vmatmul.mubr.f32.gmra.mrb[0].mxu0 %v3705
      %v3871 = vpop.f32.mrb[0].mxu0
      %v3872 = vadd.f32 %v3548, %v3871
      %v3873 = vpop.f32.mrb[0].mxu0
      %3874 = vmatprep.mubr.f32.mxu0 0.0
      %3875 = vmatmul.mubr.f32.gmra.mrb[0].mxu0 %v3708
      %v3876 = vpop.f32.mrb[0].mxu0
      %v3877 = vadd.f32 %v3553, %v3876
      %v3878 = vpop.f32.mrb[0].mxu0
      %3879 = vmatprep.mubr.f32.mxu0 0.0
      %3880 = vmatmul.mubr.f32.gmra.mrb[0].mxu0 %v3711
      %v3881 = vpop.f32.mrb[0].mxu0
      %v3882 = vadd.f32 %v3558, %v3881
      %v3883 = vpop.f32.mrb[0].mxu0
      %3884 = vmatprep.mubr.f32.mxu0 0.0
      %3885 = vmatmul.mubr.f32.gmra.mrb[0].mxu0 %v3714
      %v3886 = vpop.f32.mrb[0].mxu0
      %v3887 = vadd.f32 %v3563, %v3886
      %v3888 = vpop.f32.mrb[0].mxu0
      %3889 = vmatprep.mubr.f32.mxu0 0.0
      %3890 = vmatmul.mubr.f32.gmra.mrb[0].mxu0 %v3717
      %v3891 = vpop.f32.mrb[0].mxu0
      %v3892 = vadd.f32 %v3568, %v3891
      %v3893 = vpop.f32.mrb[0].mxu0
      %3894 = vmatprep.mubr.f32.mxu0 0.0
      %3895 = vmatmul.mubr.f32.gmra.mrb[0].mxu0 %v3720
      %v3896 = vpop.f32.mrb[0].mxu0
      %v3897 = vadd.f32 %v3573, %v3896
      %v3898 = vpop.f32.mrb[0].mxu0
      %3899 = vmatprep.mubr.f32.mxu0 0.0
      %3900 = vmatmul.mubr.f32.gmra.mrb[0].mxu0 %v3723
      %v3901 = vpop.f32.mrb[0].mxu0
      %v3902 = vadd.f32 %v3578, %v3901
      %v3903 = vpop.f32.mrb[0].mxu0
      %3904 = vmatprep.mubr.f32.mxu0 0.0
      %3905 = vmatmul.mubr.f32.gmra.mrb[0].mxu0 %v3726
      %v3906 = vpop.f32.mrb[0].mxu0
      %v3907 = vadd.f32 %v3583, %v3906
      %v3908 = vpop.f32.mrb[0].mxu0
      %3909 = vmatprep.mubr.f32.mxu0 0.0
      %3910 = vmatmul.mubr.f32.gmra.mrb[0].mxu0 %v3729
      %v3911 = vpop.f32.mrb[0].mxu0
      %v3912 = vadd.f32 %v3588, %v3911
      %v3913 = vpop.f32.mrb[0].mxu0
      %3914 = vmatprep.mubr.f32.mxu0 0.0
      %3915 = vmatmul.mubr.f32.gmra.mrb[0].mxu0 %v3732
      %v3916 = vpop.f32.mrb[0].mxu0
      %v3917 = vadd.f32 %v3593, %v3916
      %v3918 = vpop.f32.mrb[0].mxu0
      %3919 = vmatprep.mubr.f32.mxu0 0.0
      %3920 = vmatmul.mubr.f32.gmra.mrb[0].mxu0 %v3735
      %v3921 = vpop.f32.mrb[0].mxu0
      %v3922 = vadd.f32 %v3598, %v3921
      %v3923 = vpop.f32.mrb[0].mxu0
      %3924 = vmatprep.mubr.f32.mxu0 0.0
      %3925 = vmatmul.mubr.f32.gmra.mrb[0].mxu0 %v3738
      %v3926 = vpop.f32.mrb[0].mxu0
      %v3927 = vadd.f32 %v3603, %v3926
      %v3928 = vpop.f32.mrb[0].mxu0
      %3929 = vmatprep.mubr.f32.mxu0 0.0
      %3930 = vmatmul.mubr.f32.gmra.mrb[0].mxu0 %v3741
      %v3931 = vpop.f32.mrb[0].mxu0
      %v3932 = vadd.f32 %v3608, %v3931
      %v3933 = vpop.f32.mrb[0].mxu0
      %3934 = vmatprep.mubr.f32.mxu0 0.0
      %3935 = vmatmul.mubr.f32.gmra.mrb[0].mxu0 %v3744
      %v3936 = vpop.f32.mrb[0].mxu0
      %v3937 = vadd.f32 %v3613, %v3936
      %v3938 = vpop.f32.mrb[0].mxu0
      %3939 = vmatprep.mubr.f32.mxu0 0.0
      %3940 = vmatmul.mubr.f32.gmra.mrb[0].mxu0 %v3747
      %v3941 = vpop.f32.mrb[0].mxu0
      %v3942 = vadd.f32 %v3618, %v3941
      %v3943 = vpop.f32.mrb[0].mxu0
      %3944 = vmatprep.mubr.f32.mxu0 0.0
      %3945 = vmatmul.mubr.f32.gmra.mrb[0].mxu0 %v3750
      %v3946 = vpop.f32.mrb[0].mxu0
      %v3947 = vadd.f32 %v3623, %v3946
      %v3948 = vpop.f32.mrb[0].mxu0
      %3949 = vmatprep.mubr.f32.mxu0 0.0
      %3950 = vmatmul.mubr.f32.gmra.mrb[0].mxu0 %v3753
      %v3951 = vpop.f32.mrb[0].mxu0
      %v3952 = vadd.f32 %v3628, %v3951
      %v3953 = vpop.f32.mrb[0].mxu0
      %3954 = vmatprep.mubr.f32.mxu0 0.0
      %3955 = vmatmul.mubr.f32.gmra.mrb[0].mxu0 %v3756
      %v3956 = vpop.f32.mrb[0].mxu0
      %v3957 = vadd.f32 %v3633, %v3956
      %v3958 = vpop.f32.mrb[0].mxu0
      %3959 = vmatprep.mubr.f32.mxu0 0.0
      %3960 = vmatmul.mubr.f32.gmra.mrb[0].mxu0 %v3759
      %v3961 = vpop.f32.mrb[0].mxu0
      %v3962 = vadd.f32 %v3638, %v3961
      %v3963 = vpop.f32.mrb[0].mxu0
      %3964 = vmatprep.mubr.f32.mxu0 0.0
      %3965 = vmatmul.mubr.f32.gmra.mrb[0].mxu0 %v3762
      %v3966 = vpop.f32.mrb[0].mxu0
      %v3967 = vadd.f32 %v3643, %v3966
      %v3968 = vpop.f32.mrb[0].mxu0
      %3969 = vmatprep.mubr.f32.mxu0 0.0
      %3970 = vmatmul.mubr.f32.gmra.mrb[0].mxu0 %v3765
      %v3971 = vpop.f32.mrb[0].mxu0
      %v3972 = vadd.f32 %v3648, %v3971
      %v3973 = vpop.f32.mrb[0].mxu0
      %3974 = vmatprep.mubr.f32.mxu0 0.0
      %3975 = vmatmul.mubr.f32.gmra.mrb[0].mxu0 %v3768
      %v3976 = vpop.f32.mrb[0].mxu0
      %v3977 = vadd.f32 %v3653, %v3976
      %v3978 = vpop.f32.mrb[0].mxu0
      %3979 = vmatprep.mubr.f32.mxu0 0.0
      %3980 = vmatmul.mubr.f32.gmra.mrb[0].mxu0 %v3771
      %v3981 = vpop.f32.mrb[0].mxu0
      %v3982 = vadd.f32 %v3658, %v3981
      %v3983 = vpop.f32.mrb[0].mxu0
      %3984 = vmatprep.mubr.f32.mxu0 0.0
      %3985 = vmatmul.mubr.f32.gmra.mrb[0].mxu0 %v3774
      %v3986 = vpop.f32.mrb[0].mxu0
      %v3987 = vadd.f32 %v3663, %v3986
      %v3988 = vpop.f32.mrb[0].mxu0
      %3989 = vmatprep.mubr.f32.mxu0 0.0
      %3990 = vmatmul.mubr.f32.gmra.mrb[0].mxu0 %v3777
      %v3991 = vpop.f32.mrb[0].mxu0
      %v3992 = vadd.f32 %v3668, %v3991
      %v3993 = vpop.f32.mrb[0].mxu0
      %3994 = vmatprep.mubr.f32.mxu0 0.0
      %3995 = vmatmul.mubr.f32.gmra.mrb[0].mxu0 %v3780
      %v3996 = vpop.f32.mrb[0].mxu0
      %v3997 = vadd.f32 %v3673, %v3996
      %v3998 = vpop.f32.mrb[0].mxu0
      %3999 = vmatprep.mubr.f32.mxu0 0.0
      %4000 = vmatmul.mubr.f32.gmra.mrb[0].mxu0 %v3783
      %v4001 = vpop.f32.mrb[0].mxu0
      %v4002 = vadd.f32 %v3678, %v4001
      %v4003 = vpop.f32.mrb[0].mxu0
      %4004 = vmatprep.mubr.f32.mxu0 0.0
      %4005 = vmatmul.mubr.f32.gmra.mrb[0].mxu0 %v3786
      %v4006 = vpop.f32.mrb[0].mxu0
      %v4007 = vadd.f32 %v3683, %v4006
      %v4008 = vpop.f32.mrb[0].mxu0
      %4009 = vmatprep.mubr.f32.mxu0 0.0
      %4010 = vmatmul.mubr.f32.gmra.mrb[0].mxu0 %v3789
      %v4011 = vpop.f32.mrb[0].mxu0
      %v4012 = vadd.f32 %v3688, %v4011
      %v4013 = vpop.f32.mrb[0].mxu0
      %4014 = vmatprep.mubr.f32.mxu0 0.0
      %4015 = vmatmul.mubr.f32.gmra.mrb[0].mxu0 %v3792
      %v4016 = vpop.f32.mrb[0].mxu0
      %v4017 = vadd.f32 %v3693, %v4016
      %v4018 = vpop.f32.mrb[0].mxu0
      %4019 = vmatprep.mubr.f32.mxu0 0.0
      %4020 = vmatmul.mubr.f32.gmra.mrb[0].mxu0 %v3795
      %v4021 = vpop.f32.mrb[0].mxu0
      %v4022 = vadd.f32 %v3698, %v4021
      %v4023 = vpop.f32.mrb[0].mxu0
      %4024 = vdwg.mxu0
      %v4025 = vld [vmem:[#allocation2 + $0x2] sm:$0xff]
      %v4026 = vld [vmem:[#allocation2 + $0xa] sm:$0xff]
      %v4027 = vld [vmem:[#allocation2 + $0x1a] sm:$0xff]
      %v4028 = vld [vmem:[#allocation2 + $0x22] sm:$0xff]
      %v4029 = vld [vmem:[#allocation2 + $0x32] sm:$0xff]
      %v4030 = vld [vmem:[#allocation2 + $0x3a] sm:$0xff]
      %v4031 = vld [vmem:[#allocation2 + $0x4a] sm:$0xff]
      %v4032 = vld [vmem:[#allocation2 + $0x52] sm:$0xff]
      %v4033 = vld [vmem:[#allocation2 + $0x62] sm:$0xff]
      %v4034 = vld [vmem:[#allocation2 + $0x6a] sm:$0xff]
      %v4035 = vld [vmem:[#allocation2 + $0x7a] sm:$0xff]
      %v4036 = vld [vmem:[#allocation2 + $0x82] sm:$0xff]
      %v4037 = vld [vmem:[#allocation2 + $0x92] sm:$0xff]
      %v4038 = vld [vmem:[#allocation2 + $0x9a] sm:$0xff]
      %v4039 = vld [vmem:[#allocation2 + $0xaa] sm:$0xff]
      %v4040 = vld [vmem:[#allocation2 + $0xb2] sm:$0xff]
      %v4041 = vld [vmem:[#allocation2 + $0xc2] sm:$0xff]
      %v4042 = vld [vmem:[#allocation2 + $0xca] sm:$0xff]
      %v4043 = vld [vmem:[#allocation2 + $0xda] sm:$0xff]
      %v4044 = vld [vmem:[#allocation2 + $0xe2] sm:$0xff]
      %v4045 = vld [vmem:[#allocation2 + $0xf2] sm:$0xff]
      %v4046 = vld [vmem:[#allocation2 + $0xfa] sm:$0xff]
      %v4047 = vld [vmem:[#allocation2 + $0x10a] sm:$0xff]
      %v4048 = vld [vmem:[#allocation2 + $0x112] sm:$0xff]
      %v4049 = vld [vmem:[#allocation2 + $0x122] sm:$0xff]
      %v4050 = vld [vmem:[#allocation2 + $0x12a] sm:$0xff]
      %v4051 = vld [vmem:[#allocation2 + $0x13a] sm:$0xff]
      %v4052 = vld [vmem:[#allocation2 + $0x142] sm:$0xff]
      %v4053 = vld [vmem:[#allocation2 + $0x152] sm:$0xff]
      %v4054 = vld [vmem:[#allocation2 + $0x15a] sm:$0xff]
      %v4055 = vld [vmem:[#allocation2 + $0x16a] sm:$0xff]
      %v4056 = vld [vmem:[#allocation2 + $0x172] sm:$0xff]
      %s4057 = scalar_lea.vmem %s4, 8
      %v4058 = vld [vmem:[%s4057] sm:$0xf]
      %v4060 = vsel %vm465, %v4025, 0
      %v4063 = vsel %vm465, %v4026, 0
      %v4066 = vsel %vm465, %v4027, 0
      %v4069 = vsel %vm465, %v4028, 0
      %v4072 = vsel %vm465, %v4029, 0
      %v4075 = vsel %vm465, %v4030, 0
      %v4078 = vsel %vm465, %v4031, 0
      %v4081 = vsel %vm465, %v4032, 0
      %v4084 = vsel %vm465, %v4033, 0
      %v4087 = vsel %vm465, %v4034, 0
      %v4090 = vsel %vm465, %v4035, 0
      %v4093 = vsel %vm465, %v4036, 0
      %v4096 = vsel %vm465, %v4037, 0
      %v4099 = vsel %vm465, %v4038, 0
      %v4102 = vsel %vm465, %v4039, 0
      %v4105 = vsel %vm465, %v4040, 0
      %v4108 = vsel %vm465, %v4041, 0
      %v4111 = vsel %vm465, %v4042, 0
      %v4114 = vsel %vm465, %v4043, 0
      %v4117 = vsel %vm465, %v4044, 0
      %v4120 = vsel %vm465, %v4045, 0
      %v4123 = vsel %vm465, %v4046, 0
      %v4126 = vsel %vm465, %v4047, 0
      %v4129 = vsel %vm465, %v4048, 0
      %v4132 = vsel %vm465, %v4049, 0
      %v4135 = vsel %vm465, %v4050, 0
      %v4138 = vsel %vm465, %v4051, 0
      %v4141 = vsel %vm465, %v4052, 0
      %v4144 = vsel %vm465, %v4053, 0
      %v4147 = vsel %vm465, %v4054, 0
      %v4150 = vsel %vm465, %v4055, 0
      %v4153 = vsel %vm465, %v4056, 0
      %v4156 = vsel %vm530, %v4058, 0
      %4158 = vmatprep.subr.mxu0 0.0
      %4159 = vmatpush1.msra.mxu0 %v4156
      %4160 = vmatprep.subr.mxu0 0.0
      %4161 = vmatpush1.msra.mxu0 0.0
      %4162 = vmatprep.subr.mxu0 0.0
      %4163 = vmatpush1.msra.mxu0 0.0
      %4164 = vmatprep.subr.mxu0 0.0
      %4165 = vmatpush1.msra.mxu0 0.0
      %4166 = vmatprep.subr.mxu0 0.0
      %4167 = vmatpush1.msra.mxu0 0.0
      %4168 = vmatprep.subr.mxu0 0.0
      %4169 = vmatpush1.msra.mxu0 0.0
      %4170 = vmatprep.subr.mxu0 0.0
      %4171 = vmatpush1.msra.mxu0 0.0
      %4172 = vmatprep.subr.mxu0 0.0
      %4173 = vmatpush1.msra.mxu0 0.0
      %4174 = vmatprep.subr.mxu0 0.0
      %4175 = vmatpush1.msra.mxu0 0.0
      %4176 = vmatprep.subr.mxu0 0.0
      %4177 = vmatpush1.msra.mxu0 0.0
      %4178 = vmatprep.subr.mxu0 0.0
      %4179 = vmatpush1.msra.mxu0 0.0
      %4180 = vmatprep.subr.mxu0 0.0
      %4181 = vmatpush1.msra.mxu0 0.0
      %4182 = vmatprep.subr.mxu0 0.0
      %4183 = vmatpush1.msra.mxu0 0.0
      %4184 = vmatprep.subr.mxu0 0.0
      %4185 = vmatpush1.msra.mxu0 0.0
      %4186 = vmatprep.subr.mxu0 0.0
      %4187 = vmatpush1.msra.mxu0 0.0
      %4188 = vmatprep.subr.mxu0 0.0
      %4189 = vmatpush1.msra.mxu0 0.0
      %4190 = vmatprep.subr.mxu0 0.0
      %4191 = vmatpush1.msra.mxu0 0.0
      %4192 = vmatprep.subr.mxu0 0.0
      %4193 = vmatpush1.msra.mxu0 0.0
      %4194 = vmatprep.subr.mxu0 0.0
      %4195 = vmatpush1.msra.mxu0 0.0
      %4196 = vmatprep.subr.mxu0 0.0
      %4197 = vmatpush1.msra.mxu0 0.0
      %4198 = vmatprep.subr.mxu0 0.0
      %4199 = vmatpush1.msra.mxu0 0.0
      %4200 = vmatprep.subr.mxu0 0.0
      %4201 = vmatpush1.msra.mxu0 0.0
      %4202 = vmatprep.subr.mxu0 0.0
      %4203 = vmatpush1.msra.mxu0 0.0
      %4204 = vmatprep.subr.mxu0 0.0
      %4205 = vmatpush1.msra.mxu0 0.0
      %4206 = vmatprep.subr.mxu0 0.0
      %4207 = vmatpush1.msra.mxu0 0.0
      %4208 = vmatprep.subr.mxu0 0.0
      %4209 = vmatpush1.msra.mxu0 0.0
      %4210 = vmatprep.subr.mxu0 0.0
      %4211 = vmatpush1.msra.mxu0 0.0
      %4212 = vmatprep.subr.mxu0 0.0
      %4213 = vmatpush1.msra.mxu0 0.0
      %4214 = vmatprep.subr.mxu0 0.0
      %4215 = vmatpush1.msra.mxu0 0.0
      %4216 = vmatprep.subr.mxu0 0.0
      %4217 = vmatpush1.msra.mxu0 0.0
      %4218 = vmatprep.subr.mxu0 0.0
      %4219 = vmatpush1.msra.mxu0 0.0
      %4220 = vmatprep.subr.mxu0 0.0
      %4221 = vmatpush1.msra.mxu0 0.0
      %4222 = vmatprep.mubr.f32.mxu0 0.0
      %4223 = vmatmul.mubr.f32.gmra.mrb[0].mxu0 %v4060
      %v4224 = vpop.f32.mrb[0].mxu0
      %v4225 = vadd.f32 0.0, %v4224
      %v4226 = vpop.f32.mrb[0].mxu0
      %4227 = vmatprep.mubr.f32.mxu0 0.0
      %4228 = vmatmul.mubr.f32.gmra.mrb[0].mxu0 %v4063
      %v4229 = vpop.f32.mrb[0].mxu0
      %v4230 = vadd.f32 0.0, %v4229
      %v4231 = vpop.f32.mrb[0].mxu0
      %4232 = vmatprep.mubr.f32.mxu0 0.0
      %4233 = vmatmul.mubr.f32.gmra.mrb[0].mxu0 %v4066
      %v4234 = vpop.f32.mrb[0].mxu0
      %v4235 = vadd.f32 0.0, %v4234
      %v4236 = vpop.f32.mrb[0].mxu0
      %4237 = vmatprep.mubr.f32.mxu0 0.0
      %4238 = vmatmul.mubr.f32.gmra.mrb[0].mxu0 %v4069
      %v4239 = vpop.f32.mrb[0].mxu0
      %v4240 = vadd.f32 0.0, %v4239
      %v4241 = vpop.f32.mrb[0].mxu0
      %4242 = vmatprep.mubr.f32.mxu0 0.0
      %4243 = vmatmul.mubr.f32.gmra.mrb[0].mxu0 %v4072
      %v4244 = vpop.f32.mrb[0].mxu0
      %v4245 = vadd.f32 0.0, %v4244
      %v4246 = vpop.f32.mrb[0].mxu0
      %4247 = vmatprep.mubr.f32.mxu0 0.0
      %4248 = vmatmul.mubr.f32.gmra.mrb[0].mxu0 %v4075
      %v4249 = vpop.f32.mrb[0].mxu0
      %v4250 = vadd.f32 0.0, %v4249
      %v4251 = vpop.f32.mrb[0].mxu0
      %4252 = vmatprep.mubr.f32.mxu0 0.0
      %4253 = vmatmul.mubr.f32.gmra.mrb[0].mxu0 %v4078
      %v4254 = vpop.f32.mrb[0].mxu0
      %v4255 = vadd.f32 0.0, %v4254
      %v4256 = vpop.f32.mrb[0].mxu0
      %4257 = vmatprep.mubr.f32.mxu0 0.0
      %4258 = vmatmul.mubr.f32.gmra.mrb[0].mxu0 %v4081
      %v4259 = vpop.f32.mrb[0].mxu0
      %v4260 = vadd.f32 0.0, %v4259
      %v4261 = vpop.f32.mrb[0].mxu0
      %4262 = vmatprep.mubr.f32.mxu0 0.0
      %4263 = vmatmul.mubr.f32.gmra.mrb[0].mxu0 %v4084
      %v4264 = vpop.f32.mrb[0].mxu0
      %v4265 = vadd.f32 0.0, %v4264
      %v4266 = vpop.f32.mrb[0].mxu0
      %4267 = vmatprep.mubr.f32.mxu0 0.0
      %4268 = vmatmul.mubr.f32.gmra.mrb[0].mxu0 %v4087
      %v4269 = vpop.f32.mrb[0].mxu0
      %v4270 = vadd.f32 0.0, %v4269
      %v4271 = vpop.f32.mrb[0].mxu0
      %4272 = vmatprep.mubr.f32.mxu0 0.0
      %4273 = vmatmul.mubr.f32.gmra.mrb[0].mxu0 %v4090
      %v4274 = vpop.f32.mrb[0].mxu0
      %v4275 = vadd.f32 0.0, %v4274
      %v4276 = vpop.f32.mrb[0].mxu0
      %4277 = vmatprep.mubr.f32.mxu0 0.0
      %4278 = vmatmul.mubr.f32.gmra.mrb[0].mxu0 %v4093
      %v4279 = vpop.f32.mrb[0].mxu0
      %v4280 = vadd.f32 0.0, %v4279
      %v4281 = vpop.f32.mrb[0].mxu0
      %4282 = vmatprep.mubr.f32.mxu0 0.0
      %4283 = vmatmul.mubr.f32.gmra.mrb[0].mxu0 %v4096
      %v4284 = vpop.f32.mrb[0].mxu0
      %v4285 = vadd.f32 0.0, %v4284
      %v4286 = vpop.f32.mrb[0].mxu0
      %4287 = vmatprep.mubr.f32.mxu0 0.0
      %4288 = vmatmul.mubr.f32.gmra.mrb[0].mxu0 %v4099
      %v4289 = vpop.f32.mrb[0].mxu0
      %v4290 = vadd.f32 0.0, %v4289
      %v4291 = vpop.f32.mrb[0].mxu0
      %4292 = vmatprep.mubr.f32.mxu0 0.0
      %4293 = vmatmul.mubr.f32.gmra.mrb[0].mxu0 %v4102
      %v4294 = vpop.f32.mrb[0].mxu0
      %v4295 = vadd.f32 0.0, %v4294
      %v4296 = vpop.f32.mrb[0].mxu0
      %4297 = vmatprep.mubr.f32.mxu0 0.0
      %4298 = vmatmul.mubr.f32.gmra.mrb[0].mxu0 %v4105
      %v4299 = vpop.f32.mrb[0].mxu0
      %v4300 = vadd.f32 0.0, %v4299
      %v4301 = vpop.f32.mrb[0].mxu0
      %4302 = vmatprep.mubr.f32.mxu0 0.0
      %4303 = vmatmul.mubr.f32.gmra.mrb[0].mxu0 %v4108
      %v4304 = vpop.f32.mrb[0].mxu0
      %v4305 = vadd.f32 0.0, %v4304
      %v4306 = vpop.f32.mrb[0].mxu0
      %4307 = vmatprep.mubr.f32.mxu0 0.0
      %4308 = vmatmul.mubr.f32.gmra.mrb[0].mxu0 %v4111
      %v4309 = vpop.f32.mrb[0].mxu0
      %v4310 = vadd.f32 0.0, %v4309
      %v4311 = vpop.f32.mrb[0].mxu0
      %4312 = vmatprep.mubr.f32.mxu0 0.0
      %4313 = vmatmul.mubr.f32.gmra.mrb[0].mxu0 %v4114
      %v4314 = vpop.f32.mrb[0].mxu0
      %v4315 = vadd.f32 0.0, %v4314
      %v4316 = vpop.f32.mrb[0].mxu0
      %4317 = vmatprep.mubr.f32.mxu0 0.0
      %4318 = vmatmul.mubr.f32.gmra.mrb[0].mxu0 %v4117
      %v4319 = vpop.f32.mrb[0].mxu0
      %v4320 = vadd.f32 0.0, %v4319
      %v4321 = vpop.f32.mrb[0].mxu0
      %4322 = vmatprep.mubr.f32.mxu0 0.0
      %4323 = vmatmul.mubr.f32.gmra.mrb[0].mxu0 %v4120
      %v4324 = vpop.f32.mrb[0].mxu0
      %v4325 = vadd.f32 0.0, %v4324
      %v4326 = vpop.f32.mrb[0].mxu0
      %4327 = vmatprep.mubr.f32.mxu0 0.0
      %4328 = vmatmul.mubr.f32.gmra.mrb[0].mxu0 %v4123
      %v4329 = vpop.f32.mrb[0].mxu0
      %v4330 = vadd.f32 0.0, %v4329
      %v4331 = vpop.f32.mrb[0].mxu0
      %4332 = vmatprep.mubr.f32.mxu0 0.0
      %4333 = vmatmul.mubr.f32.gmra.mrb[0].mxu0 %v4126
      %v4334 = vpop.f32.mrb[0].mxu0
      %v4335 = vadd.f32 0.0, %v4334
      %v4336 = vpop.f32.mrb[0].mxu0
      %4337 = vmatprep.mubr.f32.mxu0 0.0
      %4338 = vmatmul.mubr.f32.gmra.mrb[0].mxu0 %v4129
      %v4339 = vpop.f32.mrb[0].mxu0
      %v4340 = vadd.f32 0.0, %v4339
      %v4341 = vpop.f32.mrb[0].mxu0
      %4342 = vmatprep.mubr.f32.mxu0 0.0
      %4343 = vmatmul.mubr.f32.gmra.mrb[0].mxu0 %v4132
      %v4344 = vpop.f32.mrb[0].mxu0
      %v4345 = vadd.f32 0.0, %v4344
      %v4346 = vpop.f32.mrb[0].mxu0
      %4347 = vmatprep.mubr.f32.mxu0 0.0
      %4348 = vmatmul.mubr.f32.gmra.mrb[0].mxu0 %v4135
      %v4349 = vpop.f32.mrb[0].mxu0
      %v4350 = vadd.f32 0.0, %v4349
      %v4351 = vpop.f32.mrb[0].mxu0
      %4352 = vmatprep.mubr.f32.mxu0 0.0
      %4353 = vmatmul.mubr.f32.gmra.mrb[0].mxu0 %v4138
      %v4354 = vpop.f32.mrb[0].mxu0
      %v4355 = vadd.f32 0.0, %v4354
      %v4356 = vpop.f32.mrb[0].mxu0
      %4357 = vmatprep.mubr.f32.mxu0 0.0
      %4358 = vmatmul.mubr.f32.gmra.mrb[0].mxu0 %v4141
      %v4359 = vpop.f32.mrb[0].mxu0
      %v4360 = vadd.f32 0.0, %v4359
      %v4361 = vpop.f32.mrb[0].mxu0
      %4362 = vmatprep.mubr.f32.mxu0 0.0
      %4363 = vmatmul.mubr.f32.gmra.mrb[0].mxu0 %v4144
      %v4364 = vpop.f32.mrb[0].mxu0
      %v4365 = vadd.f32 0.0, %v4364
      %v4366 = vpop.f32.mrb[0].mxu0
      %4367 = vmatprep.mubr.f32.mxu0 0.0
      %4368 = vmatmul.mubr.f32.gmra.mrb[0].mxu0 %v4147
      %v4369 = vpop.f32.mrb[0].mxu0
      %v4370 = vadd.f32 0.0, %v4369
      %v4371 = vpop.f32.mrb[0].mxu0
      %4372 = vmatprep.mubr.f32.mxu0 0.0
      %4373 = vmatmul.mubr.f32.gmra.mrb[0].mxu0 %v4150
      %v4374 = vpop.f32.mrb[0].mxu0
      %v4375 = vadd.f32 0.0, %v4374
      %v4376 = vpop.f32.mrb[0].mxu0
      %4377 = vmatprep.mubr.f32.mxu0 0.0
      %4378 = vmatmul.mubr.f32.gmra.mrb[0].mxu0 %v4153
      %v4379 = vpop.f32.mrb[0].mxu0
      %v4380 = vadd.f32 0.0, %v4379
      %v4381 = vpop.f32.mrb[0].mxu0
      %4382 = vdwg.mxu0
      %v4383 = vadd.f32 %v3867, %v4225
      %v4384 = vadd.f32 %v3872, %v4230
      %v4385 = vadd.f32 %v3877, %v4235
      %v4386 = vadd.f32 %v3882, %v4240
      %v4387 = vadd.f32 %v3887, %v4245
      %v4388 = vadd.f32 %v3892, %v4250
      %v4389 = vadd.f32 %v3897, %v4255
      %v4390 = vadd.f32 %v3902, %v4260
      %v4391 = vadd.f32 %v3907, %v4265
      %v4392 = vadd.f32 %v3912, %v4270
      %v4393 = vadd.f32 %v3917, %v4275
      %v4394 = vadd.f32 %v3922, %v4280
      %v4395 = vadd.f32 %v3927, %v4285
      %v4396 = vadd.f32 %v3932, %v4290
      %v4397 = vadd.f32 %v3937, %v4295
      %v4398 = vadd.f32 %v3942, %v4300
      %v4399 = vadd.f32 %v3947, %v4305
      %v4400 = vadd.f32 %v3952, %v4310
      %v4401 = vadd.f32 %v3957, %v4315
      %v4402 = vadd.f32 %v3962, %v4320
      %v4403 = vadd.f32 %v3967, %v4325
      %v4404 = vadd.f32 %v3972, %v4330
      %v4405 = vadd.f32 %v3977, %v4335
      %v4406 = vadd.f32 %v3982, %v4340
      %v4407 = vadd.f32 %v3987, %v4345
      %v4408 = vadd.f32 %v3992, %v4350
      %v4409 = vadd.f32 %v3997, %v4355
      %v4410 = vadd.f32 %v4002, %v4360
      %v4411 = vadd.f32 %v4007, %v4365
      %v4412 = vadd.f32 %v4012, %v4370
      %v4413 = vadd.f32 %v4017, %v4375
      %v4414 = vadd.f32 %v4022, %v4380
      %v4415 = vld [vmem:[%s3277] sm:$0xff]
      %v4416 = vld [vmem:[%s3277 + $0x8] sm:$0xff]
      %v4417 = vld [vmem:[%s3277 + $0x18] sm:$0xff]
      %v4418 = vld [vmem:[%s3277 + $0x20] sm:$0xff]
      %v4419 = vld [vmem:[%s3277 + $0x30] sm:$0xff]
      %v4420 = vld [vmem:[%s3277 + $0x38] sm:$0xff]
      %v4421 = vld [vmem:[%s3277 + $0x48] sm:$0xff]
      %v4422 = vld [vmem:[%s3277 + $0x50] sm:$0xff]
      %v4423 = vld [vmem:[%s3277 + $0x60] sm:$0xff]
      %v4424 = vld [vmem:[%s3277 + $0x68] sm:$0xff]
      %v4425 = vld [vmem:[%s3277 + $0x78] sm:$0xff]
      %v4426 = vld [vmem:[%s3277 + $0x80] sm:$0xff]
      %v4427 = vld [vmem:[%s3277 + $0x90] sm:$0xff]
      %v4428 = vld [vmem:[%s3277 + $0x98] sm:$0xff]
      %v4429 = vld [vmem:[%s3277 + $0xa8] sm:$0xff]
      %v4430 = vld [vmem:[%s3277 + $0xb0] sm:$0xff]
      %v4431 = vld [vmem:[%s3277 + $0xc0] sm:$0xff]
      %v4432 = vld [vmem:[%s3277 + $0xc8] sm:$0xff]
      %v4433 = vld [vmem:[%s3277 + $0xd8] sm:$0xff]
      %v4434 = vld [vmem:[%s3277 + $0xe0] sm:$0xff]
      %v4435 = vld [vmem:[%s3277 + $0xf0] sm:$0xff]
      %v4436 = vld [vmem:[%s3277 + $0xf8] sm:$0xff]
      %v4437 = vld [vmem:[%s3277 + $0x108] sm:$0xff]
      %v4438 = vld [vmem:[%s3277 + $0x110] sm:$0xff]
      %v4439 = vld [vmem:[%s3277 + $0x120] sm:$0xff]
      %v4440 = vld [vmem:[%s3277 + $0x128] sm:$0xff]
      %v4441 = vld [vmem:[%s3277 + $0x138] sm:$0xff]
      %v4442 = vld [vmem:[%s3277 + $0x140] sm:$0xff]
      %v4443 = vld [vmem:[%s3277 + $0x150] sm:$0xff]
      %v4444 = vld [vmem:[%s3277 + $0x158] sm:$0xff]
      %v4445 = vld [vmem:[%s3277 + $0x168] sm:$0xff]
      %v4446 = vld [vmem:[%s3277 + $0x170] sm:$0xff]
      %s4447 = scalar_lea.vmem %s4, 12
      %v4448 = vld [vmem:[%s4447] sm:$0xf]
      %v4450 = vsel %vm465, %v4415, 0
      %v4453 = vsel %vm465, %v4416, 0
      %v4456 = vsel %vm465, %v4417, 0
      %v4459 = vsel %vm465, %v4418, 0
      %v4462 = vsel %vm465, %v4419, 0
      %v4465 = vsel %vm465, %v4420, 0
      %v4468 = vsel %vm465, %v4421, 0
      %v4471 = vsel %vm465, %v4422, 0
      %v4474 = vsel %vm465, %v4423, 0
      %v4477 = vsel %vm465, %v4424, 0
      %v4480 = vsel %vm465, %v4425, 0
      %v4483 = vsel %vm465, %v4426, 0
      %v4486 = vsel %vm465, %v4427, 0
      %v4489 = vsel %vm465, %v4428, 0
      %v4492 = vsel %vm465, %v4429, 0
      %v4495 = vsel %vm465, %v4430, 0
      %v4498 = vsel %vm465, %v4431, 0
      %v4501 = vsel %vm465, %v4432, 0
      %v4504 = vsel %vm465, %v4433, 0
      %v4507 = vsel %vm465, %v4434, 0
      %v4510 = vsel %vm465, %v4435, 0
      %v4513 = vsel %vm465, %v4436, 0
      %v4516 = vsel %vm465, %v4437, 0
      %v4519 = vsel %vm465, %v4438, 0
      %v4522 = vsel %vm465, %v4439, 0
      %v4525 = vsel %vm465, %v4440, 0
      %v4528 = vsel %vm465, %v4441, 0
      %v4531 = vsel %vm465, %v4442, 0
      %v4534 = vsel %vm465, %v4443, 0
      %v4537 = vsel %vm465, %v4444, 0
      %v4540 = vsel %vm465, %v4445, 0
      %v4543 = vsel %vm465, %v4446, 0
      %v4546 = vsel %vm530, %v4448, 0
      %4548 = vmatprep.subr.mxu0 0.0
      %4549 = vmatpush1.msra.mxu0 %v4546
      %4550 = vmatprep.subr.mxu0 0.0
      %4551 = vmatpush1.msra.mxu0 0.0
      %4552 = vmatprep.subr.mxu0 0.0
      %4553 = vmatpush1.msra.mxu0 0.0
      %4554 = vmatprep.subr.mxu0 0.0
      %4555 = vmatpush1.msra.mxu0 0.0
      %4556 = vmatprep.subr.mxu0 0.0
      %4557 = vmatpush1.msra.mxu0 0.0
      %4558 = vmatprep.subr.mxu0 0.0
      %4559 = vmatpush1.msra.mxu0 0.0
      %4560 = vmatprep.subr.mxu0 0.0
      %4561 = vmatpush1.msra.mxu0 0.0
      %4562 = vmatprep.subr.mxu0 0.0
      %4563 = vmatpush1.msra.mxu0 0.0
      %4564 = vmatprep.subr.mxu0 0.0
      %4565 = vmatpush1.msra.mxu0 0.0
      %4566 = vmatprep.subr.mxu0 0.0
      %4567 = vmatpush1.msra.mxu0 0.0
      %4568 = vmatprep.subr.mxu0 0.0
      %4569 = vmatpush1.msra.mxu0 0.0
      %4570 = vmatprep.subr.mxu0 0.0
      %4571 = vmatpush1.msra.mxu0 0.0
      %4572 = vmatprep.subr.mxu0 0.0
      %4573 = vmatpush1.msra.mxu0 0.0
      %4574 = vmatprep.subr.mxu0 0.0
      %4575 = vmatpush1.msra.mxu0 0.0
      %4576 = vmatprep.subr.mxu0 0.0
      %4577 = vmatpush1.msra.mxu0 0.0
      %4578 = vmatprep.subr.mxu0 0.0
      %4579 = vmatpush1.msra.mxu0 0.0
      %4580 = vmatprep.subr.mxu0 0.0
      %4581 = vmatpush1.msra.mxu0 0.0
      %4582 = vmatprep.subr.mxu0 0.0
      %4583 = vmatpush1.msra.mxu0 0.0
      %4584 = vmatprep.subr.mxu0 0.0
      %4585 = vmatpush1.msra.mxu0 0.0
      %4586 = vmatprep.subr.mxu0 0.0
      %4587 = vmatpush1.msra.mxu0 0.0
      %4588 = vmatprep.subr.mxu0 0.0
      %4589 = vmatpush1.msra.mxu0 0.0
      %4590 = vmatprep.subr.mxu0 0.0
      %4591 = vmatpush1.msra.mxu0 0.0
      %4592 = vmatprep.subr.mxu0 0.0
      %4593 = vmatpush1.msra.mxu0 0.0
      %4594 = vmatprep.subr.mxu0 0.0
      %4595 = vmatpush1.msra.mxu0 0.0
      %4596 = vmatprep.subr.mxu0 0.0
      %4597 = vmatpush1.msra.mxu0 0.0
      %4598 = vmatprep.subr.mxu0 0.0
      %4599 = vmatpush1.msra.mxu0 0.0
      %4600 = vmatprep.subr.mxu0 0.0
      %4601 = vmatpush1.msra.mxu0 0.0
      %4602 = vmatprep.subr.mxu0 0.0
      %4603 = vmatpush1.msra.mxu0 0.0
      %4604 = vmatprep.subr.mxu0 0.0
      %4605 = vmatpush1.msra.mxu0 0.0
      %4606 = vmatprep.subr.mxu0 0.0
      %4607 = vmatpush1.msra.mxu0 0.0
      %4608 = vmatprep.subr.mxu0 0.0
      %4609 = vmatpush1.msra.mxu0 0.0
      %4610 = vmatprep.subr.mxu0 0.0
      %4611 = vmatpush1.msra.mxu0 0.0
      %4612 = vmatprep.mubr.f32.mxu0 0.0
      %4613 = vmatmul.mubr.f32.gmra.mrb[0].mxu0 %v4450
      %v4614 = vpop.f32.mrb[0].mxu0
      %v4615 = vadd.f32 0.0, %v4614
      %v4616 = vpop.f32.mrb[0].mxu0
      %4617 = vmatprep.mubr.f32.mxu0 0.0
      %4618 = vmatmul.mubr.f32.gmra.mrb[0].mxu0 %v4453
      %v4619 = vpop.f32.mrb[0].mxu0
      %v4620 = vadd.f32 0.0, %v4619
      %v4621 = vpop.f32.mrb[0].mxu0
      %4622 = vmatprep.mubr.f32.mxu0 0.0
      %4623 = vmatmul.mubr.f32.gmra.mrb[0].mxu0 %v4456
      %v4624 = vpop.f32.mrb[0].mxu0
      %v4625 = vadd.f32 0.0, %v4624
      %v4626 = vpop.f32.mrb[0].mxu0
      %4627 = vmatprep.mubr.f32.mxu0 0.0
      %4628 = vmatmul.mubr.f32.gmra.mrb[0].mxu0 %v4459
      %v4629 = vpop.f32.mrb[0].mxu0
      %v4630 = vadd.f32 0.0, %v4629
      %v4631 = vpop.f32.mrb[0].mxu0
      %4632 = vmatprep.mubr.f32.mxu0 0.0
      %4633 = vmatmul.mubr.f32.gmra.mrb[0].mxu0 %v4462
      %v4634 = vpop.f32.mrb[0].mxu0
      %v4635 = vadd.f32 0.0, %v4634
      %v4636 = vpop.f32.mrb[0].mxu0
      %4637 = vmatprep.mubr.f32.mxu0 0.0
      %4638 = vmatmul.mubr.f32.gmra.mrb[0].mxu0 %v4465
      %v4639 = vpop.f32.mrb[0].mxu0
      %v4640 = vadd.f32 0.0, %v4639
      %v4641 = vpop.f32.mrb[0].mxu0
      %4642 = vmatprep.mubr.f32.mxu0 0.0
      %4643 = vmatmul.mubr.f32.gmra.mrb[0].mxu0 %v4468
      %v4644 = vpop.f32.mrb[0].mxu0
      %v4645 = vadd.f32 0.0, %v4644
      %v4646 = vpop.f32.mrb[0].mxu0
      %4647 = vmatprep.mubr.f32.mxu0 0.0
      %4648 = vmatmul.mubr.f32.gmra.mrb[0].mxu0 %v4471
      %v4649 = vpop.f32.mrb[0].mxu0
      %v4650 = vadd.f32 0.0, %v4649
      %v4651 = vpop.f32.mrb[0].mxu0
      %4652 = vmatprep.mubr.f32.mxu0 0.0
      %4653 = vmatmul.mubr.f32.gmra.mrb[0].mxu0 %v4474
      %v4654 = vpop.f32.mrb[0].mxu0
      %v4655 = vadd.f32 0.0, %v4654
      %v4656 = vpop.f32.mrb[0].mxu0
      %4657 = vmatprep.mubr.f32.mxu0 0.0
      %4658 = vmatmul.mubr.f32.gmra.mrb[0].mxu0 %v4477
      %v4659 = vpop.f32.mrb[0].mxu0
      %v4660 = vadd.f32 0.0, %v4659
      %v4661 = vpop.f32.mrb[0].mxu0
      %4662 = vmatprep.mubr.f32.mxu0 0.0
      %4663 = vmatmul.mubr.f32.gmra.mrb[0].mxu0 %v4480
      %v4664 = vpop.f32.mrb[0].mxu0
      %v4665 = vadd.f32 0.0, %v4664
      %v4666 = vpop.f32.mrb[0].mxu0
      %4667 = vmatprep.mubr.f32.mxu0 0.0
      %4668 = vmatmul.mubr.f32.gmra.mrb[0].mxu0 %v4483
      %v4669 = vpop.f32.mrb[0].mxu0
      %v4670 = vadd.f32 0.0, %v4669
      %v4671 = vpop.f32.mrb[0].mxu0
      %4672 = vmatprep.mubr.f32.mxu0 0.0
      %4673 = vmatmul.mubr.f32.gmra.mrb[0].mxu0 %v4486
      %v4674 = vpop.f32.mrb[0].mxu0
      %v4675 = vadd.f32 0.0, %v4674
      %v4676 = vpop.f32.mrb[0].mxu0
      %4677 = vmatprep.mubr.f32.mxu0 0.0
      %4678 = vmatmul.mubr.f32.gmra.mrb[0].mxu0 %v4489
      %v4679 = vpop.f32.mrb[0].mxu0
      %v4680 = vadd.f32 0.0, %v4679
      %v4681 = vpop.f32.mrb[0].mxu0
      %4682 = vmatprep.mubr.f32.mxu0 0.0
      %4683 = vmatmul.mubr.f32.gmra.mrb[0].mxu0 %v4492
      %v4684 = vpop.f32.mrb[0].mxu0
      %v4685 = vadd.f32 0.0, %v4684
      %v4686 = vpop.f32.mrb[0].mxu0
      %4687 = vmatprep.mubr.f32.mxu0 0.0
      %4688 = vmatmul.mubr.f32.gmra.mrb[0].mxu0 %v4495
      %v4689 = vpop.f32.mrb[0].mxu0
      %v4690 = vadd.f32 0.0, %v4689
      %v4691 = vpop.f32.mrb[0].mxu0
      %4692 = vmatprep.mubr.f32.mxu0 0.0
      %4693 = vmatmul.mubr.f32.gmra.mrb[0].mxu0 %v4498
      %v4694 = vpop.f32.mrb[0].mxu0
      %v4695 = vadd.f32 0.0, %v4694
      %v4696 = vpop.f32.mrb[0].mxu0
      %4697 = vmatprep.mubr.f32.mxu0 0.0
      %4698 = vmatmul.mubr.f32.gmra.mrb[0].mxu0 %v4501
      %v4699 = vpop.f32.mrb[0].mxu0
      %v4700 = vadd.f32 0.0, %v4699
      %v4701 = vpop.f32.mrb[0].mxu0
      %4702 = vmatprep.mubr.f32.mxu0 0.0
      %4703 = vmatmul.mubr.f32.gmra.mrb[0].mxu0 %v4504
      %v4704 = vpop.f32.mrb[0].mxu0
      %v4705 = vadd.f32 0.0, %v4704
      %v4706 = vpop.f32.mrb[0].mxu0
      %4707 = vmatprep.mubr.f32.mxu0 0.0
      %4708 = vmatmul.mubr.f32.gmra.mrb[0].mxu0 %v4507
      %v4709 = vpop.f32.mrb[0].mxu0
      %v4710 = vadd.f32 0.0, %v4709
      %v4711 = vpop.f32.mrb[0].mxu0
      %4712 = vmatprep.mubr.f32.mxu0 0.0
      %4713 = vmatmul.mubr.f32.gmra.mrb[0].mxu0 %v4510
      %v4714 = vpop.f32.mrb[0].mxu0
      %v4715 = vadd.f32 0.0, %v4714
      %v4716 = vpop.f32.mrb[0].mxu0
      %4717 = vmatprep.mubr.f32.mxu0 0.0
      %4718 = vmatmul.mubr.f32.gmra.mrb[0].mxu0 %v4513
      %v4719 = vpop.f32.mrb[0].mxu0
      %v4720 = vadd.f32 0.0, %v4719
      %v4721 = vpop.f32.mrb[0].mxu0
      %4722 = vmatprep.mubr.f32.mxu0 0.0
      %4723 = vmatmul.mubr.f32.gmra.mrb[0].mxu0 %v4516
      %v4724 = vpop.f32.mrb[0].mxu0
      %v4725 = vadd.f32 0.0, %v4724
      %v4726 = vpop.f32.mrb[0].mxu0
      %4727 = vmatprep.mubr.f32.mxu0 0.0
      %4728 = vmatmul.mubr.f32.gmra.mrb[0].mxu0 %v4519
      %v4729 = vpop.f32.mrb[0].mxu0
      %v4730 = vadd.f32 0.0, %v4729
      %v4731 = vpop.f32.mrb[0].mxu0
      %4732 = vmatprep.mubr.f32.mxu0 0.0
      %4733 = vmatmul.mubr.f32.gmra.mrb[0].mxu0 %v4522
      %v4734 = vpop.f32.mrb[0].mxu0
      %v4735 = vadd.f32 0.0, %v4734
      %v4736 = vpop.f32.mrb[0].mxu0
      %4737 = vmatprep.mubr.f32.mxu0 0.0
      %4738 = vmatmul.mubr.f32.gmra.mrb[0].mxu0 %v4525
      %v4739 = vpop.f32.mrb[0].mxu0
      %v4740 = vadd.f32 0.0, %v4739
      %v4741 = vpop.f32.mrb[0].mxu0
      %4742 = vmatprep.mubr.f32.mxu0 0.0
      %4743 = vmatmul.mubr.f32.gmra.mrb[0].mxu0 %v4528
      %v4744 = vpop.f32.mrb[0].mxu0
      %v4745 = vadd.f32 0.0, %v4744
      %v4746 = vpop.f32.mrb[0].mxu0
      %4747 = vmatprep.mubr.f32.mxu0 0.0
      %4748 = vmatmul.mubr.f32.gmra.mrb[0].mxu0 %v4531
      %v4749 = vpop.f32.mrb[0].mxu0
      %v4750 = vadd.f32 0.0, %v4749
      %v4751 = vpop.f32.mrb[0].mxu0
      %4752 = vmatprep.mubr.f32.mxu0 0.0
      %4753 = vmatmul.mubr.f32.gmra.mrb[0].mxu0 %v4534
      %v4754 = vpop.f32.mrb[0].mxu0
      %v4755 = vadd.f32 0.0, %v4754
      %v4756 = vpop.f32.mrb[0].mxu0
      %4757 = vmatprep.mubr.f32.mxu0 0.0
      %4758 = vmatmul.mubr.f32.gmra.mrb[0].mxu0 %v4537
      %v4759 = vpop.f32.mrb[0].mxu0
      %v4760 = vadd.f32 0.0, %v4759
      %v4761 = vpop.f32.mrb[0].mxu0
      %4762 = vmatprep.mubr.f32.mxu0 0.0
      %4763 = vmatmul.mubr.f32.gmra.mrb[0].mxu0 %v4540
      %v4764 = vpop.f32.mrb[0].mxu0
      %v4765 = vadd.f32 0.0, %v4764
      %v4766 = vpop.f32.mrb[0].mxu0
      %4767 = vmatprep.mubr.f32.mxu0 0.0
      %4768 = vmatmul.mubr.f32.gmra.mrb[0].mxu0 %v4543
      %v4769 = vpop.f32.mrb[0].mxu0
      %v4770 = vadd.f32 0.0, %v4769
      %v4771 = vpop.f32.mrb[0].mxu0
      %4772 = vdwg.mxu0
      %v4773 = vadd.f32 %v4383, %v4615
      %v4774 = vadd.f32 %v4384, %v4620
      %v4775 = vadd.f32 %v4385, %v4625
      %v4776 = vadd.f32 %v4386, %v4630
      %v4777 = vadd.f32 %v4387, %v4635
      %v4778 = vadd.f32 %v4388, %v4640
      %v4779 = vadd.f32 %v4389, %v4645
      %v4780 = vadd.f32 %v4390, %v4650
      %v4781 = vadd.f32 %v4391, %v4655
      %v4782 = vadd.f32 %v4392, %v4660
      %v4783 = vadd.f32 %v4393, %v4665
      %v4784 = vadd.f32 %v4394, %v4670
      %v4785 = vadd.f32 %v4395, %v4675
      %v4786 = vadd.f32 %v4396, %v4680
      %v4787 = vadd.f32 %v4397, %v4685
      %v4788 = vadd.f32 %v4398, %v4690
      %v4789 = vadd.f32 %v4399, %v4695
      %v4790 = vadd.f32 %v4400, %v4700
      %v4791 = vadd.f32 %v4401, %v4705
      %v4792 = vadd.f32 %v4402, %v4710
      %v4793 = vadd.f32 %v4403, %v4715
      %v4794 = vadd.f32 %v4404, %v4720
      %v4795 = vadd.f32 %v4405, %v4725
      %v4796 = vadd.f32 %v4406, %v4730
      %v4797 = vadd.f32 %v4407, %v4735
      %v4798 = vadd.f32 %v4408, %v4740
      %v4799 = vadd.f32 %v4409, %v4745
      %v4800 = vadd.f32 %v4410, %v4750
      %v4801 = vadd.f32 %v4411, %v4755
      %v4802 = vadd.f32 %v4412, %v4760
      %v4803 = vadd.f32 %v4413, %v4765
      %v4804 = vadd.f32 %v4414, %v4770
      %v4805 = vld [vmem:[%s3277 + $0x1] sm:$0xff]
      %v4806 = vld [vmem:[%s3277 + $0x9] sm:$0xff]
      %v4807 = vld [vmem:[%s3277 + $0x19] sm:$0xff]
      %v4808 = vld [vmem:[%s3277 + $0x21] sm:$0xff]
      %v4809 = vld [vmem:[%s3277 + $0x31] sm:$0xff]
      %v4810 = vld [vmem:[%s3277 + $0x39] sm:$0xff]
      %v4811 = vld [vmem:[%s3277 + $0x49] sm:$0xff]
      %v4812 = vld [vmem:[%s3277 + $0x51] sm:$0xff]
      %v4813 = vld [vmem:[%s3277 + $0x61] sm:$0xff]
      %v4814 = vld [vmem:[%s3277 + $0x69] sm:$0xff]
      %v4815 = vld [vmem:[%s3277 + $0x79] sm:$0xff]
      %v4816 = vld [vmem:[%s3277 + $0x81] sm:$0xff]
      %v4817 = vld [vmem:[%s3277 + $0x91] sm:$0xff]
      %v4818 = vld [vmem:[%s3277 + $0x99] sm:$0xff]
      %v4819 = vld [vmem:[%s3277 + $0xa9] sm:$0xff]
      %v4820 = vld [vmem:[%s3277 + $0xb1] sm:$0xff]
      %v4821 = vld [vmem:[%s3277 + $0xc1] sm:$0xff]
      %v4822 = vld [vmem:[%s3277 + $0xc9] sm:$0xff]
      %v4823 = vld [vmem:[%s3277 + $0xd9] sm:$0xff]
      %v4824 = vld [vmem:[%s3277 + $0xe1] sm:$0xff]
      %v4825 = vld [vmem:[%s3277 + $0xf1] sm:$0xff]
      %v4826 = vld [vmem:[%s3277 + $0xf9] sm:$0xff]
      %v4827 = vld [vmem:[%s3277 + $0x109] sm:$0xff]
      %v4828 = vld [vmem:[%s3277 + $0x111] sm:$0xff]
      %v4829 = vld [vmem:[%s3277 + $0x121] sm:$0xff]
      %v4830 = vld [vmem:[%s3277 + $0x129] sm:$0xff]
      %v4831 = vld [vmem:[%s3277 + $0x139] sm:$0xff]
      %v4832 = vld [vmem:[%s3277 + $0x141] sm:$0xff]
      %v4833 = vld [vmem:[%s3277 + $0x151] sm:$0xff]
      %v4834 = vld [vmem:[%s3277 + $0x159] sm:$0xff]
      %v4835 = vld [vmem:[%s3277 + $0x169] sm:$0xff]
      %v4836 = vld [vmem:[%s3277 + $0x171] sm:$0xff]
      %s4837 = scalar_lea.vmem %s4, 16
      %v4838 = vld [vmem:[%s4837] sm:$0xf]
      %v4840 = vsel %vm465, %v4805, 0
      %v4843 = vsel %vm465, %v4806, 0
      %v4846 = vsel %vm465, %v4807, 0
      %v4849 = vsel %vm465, %v4808, 0
      %v4852 = vsel %vm465, %v4809, 0
      %v4855 = vsel %vm465, %v4810, 0
      %v4858 = vsel %vm465, %v4811, 0
      %v4861 = vsel %vm465, %v4812, 0
      %v4864 = vsel %vm465, %v4813, 0
      %v4867 = vsel %vm465, %v4814, 0
      %v4870 = vsel %vm465, %v4815, 0
      %v4873 = vsel %vm465, %v4816, 0
      %v4876 = vsel %vm465, %v4817, 0
      %v4879 = vsel %vm465, %v4818, 0
      %v4882 = vsel %vm465, %v4819, 0
      %v4885 = vsel %vm465, %v4820, 0
      %v4888 = vsel %vm465, %v4821, 0
      %v4891 = vsel %vm465, %v4822, 0
      %v4894 = vsel %vm465, %v4823, 0
      %v4897 = vsel %vm465, %v4824, 0
      %v4900 = vsel %vm465, %v4825, 0
      %v4903 = vsel %vm465, %v4826, 0
      %v4906 = vsel %vm465, %v4827, 0
      %v4909 = vsel %vm465, %v4828, 0
      %v4912 = vsel %vm465, %v4829, 0
      %v4915 = vsel %vm465, %v4830, 0
      %v4918 = vsel %vm465, %v4831, 0
      %v4921 = vsel %vm465, %v4832, 0
      %v4924 = vsel %vm465, %v4833, 0
      %v4927 = vsel %vm465, %v4834, 0
      %v4930 = vsel %vm465, %v4835, 0
      %v4933 = vsel %vm465, %v4836, 0
      %v4936 = vsel %vm530, %v4838, 0
      %4938 = vmatprep.subr.mxu0 0.0
      %4939 = vmatpush1.msra.mxu0 %v4936
      %4940 = vmatprep.subr.mxu0 0.0
      %4941 = vmatpush1.msra.mxu0 0.0
      %4942 = vmatprep.subr.mxu0 0.0
      %4943 = vmatpush1.msra.mxu0 0.0
      %4944 = vmatprep.subr.mxu0 0.0
      %4945 = vmatpush1.msra.mxu0 0.0
      %4946 = vmatprep.subr.mxu0 0.0
      %4947 = vmatpush1.msra.mxu0 0.0
      %4948 = vmatprep.subr.mxu0 0.0
      %4949 = vmatpush1.msra.mxu0 0.0
      %4950 = vmatprep.subr.mxu0 0.0
      %4951 = vmatpush1.msra.mxu0 0.0
      %4952 = vmatprep.subr.mxu0 0.0
      %4953 = vmatpush1.msra.mxu0 0.0
      %4954 = vmatprep.subr.mxu0 0.0
      %4955 = vmatpush1.msra.mxu0 0.0
      %4956 = vmatprep.subr.mxu0 0.0
      %4957 = vmatpush1.msra.mxu0 0.0
      %4958 = vmatprep.subr.mxu0 0.0
      %4959 = vmatpush1.msra.mxu0 0.0
      %4960 = vmatprep.subr.mxu0 0.0
      %4961 = vmatpush1.msra.mxu0 0.0
      %4962 = vmatprep.subr.mxu0 0.0
      %4963 = vmatpush1.msra.mxu0 0.0
      %4964 = vmatprep.subr.mxu0 0.0
      %4965 = vmatpush1.msra.mxu0 0.0
      %4966 = vmatprep.subr.mxu0 0.0
      %4967 = vmatpush1.msra.mxu0 0.0
      %4968 = vmatprep.subr.mxu0 0.0
      %4969 = vmatpush1.msra.mxu0 0.0
      %4970 = vmatprep.subr.mxu0 0.0
      %4971 = vmatpush1.msra.mxu0 0.0
      %4972 = vmatprep.subr.mxu0 0.0
      %4973 = vmatpush1.msra.mxu0 0.0
      %4974 = vmatprep.subr.mxu0 0.0
      %4975 = vmatpush1.msra.mxu0 0.0
      %4976 = vmatprep.subr.mxu0 0.0
      %4977 = vmatpush1.msra.mxu0 0.0
      %4978 = vmatprep.subr.mxu0 0.0
      %4979 = vmatpush1.msra.mxu0 0.0
      %4980 = vmatprep.subr.mxu0 0.0
      %4981 = vmatpush1.msra.mxu0 0.0
      %4982 = vmatprep.subr.mxu0 0.0
      %4983 = vmatpush1.msra.mxu0 0.0
      %4984 = vmatprep.subr.mxu0 0.0
      %4985 = vmatpush1.msra.mxu0 0.0
      %4986 = vmatprep.subr.mxu0 0.0
      %4987 = vmatpush1.msra.mxu0 0.0
      %4988 = vmatprep.subr.mxu0 0.0
      %4989 = vmatpush1.msra.mxu0 0.0
      %4990 = vmatprep.subr.mxu0 0.0
      %4991 = vmatpush1.msra.mxu0 0.0
      %4992 = vmatprep.subr.mxu0 0.0
      %4993 = vmatpush1.msra.mxu0 0.0
      %4994 = vmatprep.subr.mxu0 0.0
      %4995 = vmatpush1.msra.mxu0 0.0
      %4996 = vmatprep.subr.mxu0 0.0
      %4997 = vmatpush1.msra.mxu0 0.0
      %4998 = vmatprep.subr.mxu0 0.0
      %4999 = vmatpush1.msra.mxu0 0.0
      %5000 = vmatprep.subr.mxu0 0.0
      %5001 = vmatpush1.msra.mxu0 0.0
      %5002 = vmatprep.mubr.f32.mxu0 0.0
      %5003 = vmatmul.mubr.f32.gmra.mrb[0].mxu0 %v4840
      %v5004 = vpop.f32.mrb[0].mxu0
      %v5005 = vadd.f32 0.0, %v5004
      %v5006 = vpop.f32.mrb[0].mxu0
      %5007 = vmatprep.mubr.f32.mxu0 0.0
      %5008 = vmatmul.mubr.f32.gmra.mrb[0].mxu0 %v4843
      %v5009 = vpop.f32.mrb[0].mxu0
      %v5010 = vadd.f32 0.0, %v5009
      %v5011 = vpop.f32.mrb[0].mxu0
      %5012 = vmatprep.mubr.f32.mxu0 0.0
      %5013 = vmatmul.mubr.f32.gmra.mrb[0].mxu0 %v4846
      %v5014 = vpop.f32.mrb[0].mxu0
      %v5015 = vadd.f32 0.0, %v5014
      %v5016 = vpop.f32.mrb[0].mxu0
      %5017 = vmatprep.mubr.f32.mxu0 0.0
      %5018 = vmatmul.mubr.f32.gmra.mrb[0].mxu0 %v4849
      %v5019 = vpop.f32.mrb[0].mxu0
      %v5020 = vadd.f32 0.0, %v5019
      %v5021 = vpop.f32.mrb[0].mxu0
      %5022 = vmatprep.mubr.f32.mxu0 0.0
      %5023 = vmatmul.mubr.f32.gmra.mrb[0].mxu0 %v4852
      %v5024 = vpop.f32.mrb[0].mxu0
      %v5025 = vadd.f32 0.0, %v5024
      %v5026 = vpop.f32.mrb[0].mxu0
      %5027 = vmatprep.mubr.f32.mxu0 0.0
      %5028 = vmatmul.mubr.f32.gmra.mrb[0].mxu0 %v4855
      %v5029 = vpop.f32.mrb[0].mxu0
      %v5030 = vadd.f32 0.0, %v5029
      %v5031 = vpop.f32.mrb[0].mxu0
      %5032 = vmatprep.mubr.f32.mxu0 0.0
      %5033 = vmatmul.mubr.f32.gmra.mrb[0].mxu0 %v4858
      %v5034 = vpop.f32.mrb[0].mxu0
      %v5035 = vadd.f32 0.0, %v5034
      %v5036 = vpop.f32.mrb[0].mxu0
      %5037 = vmatprep.mubr.f32.mxu0 0.0
      %5038 = vmatmul.mubr.f32.gmra.mrb[0].mxu0 %v4861
      %v5039 = vpop.f32.mrb[0].mxu0
      %v5040 = vadd.f32 0.0, %v5039
      %v5041 = vpop.f32.mrb[0].mxu0
      %5042 = vmatprep.mubr.f32.mxu0 0.0
      %5043 = vmatmul.mubr.f32.gmra.mrb[0].mxu0 %v4864
      %v5044 = vpop.f32.mrb[0].mxu0
      %v5045 = vadd.f32 0.0, %v5044
      %v5046 = vpop.f32.mrb[0].mxu0
      %5047 = vmatprep.mubr.f32.mxu0 0.0
      %5048 = vmatmul.mubr.f32.gmra.mrb[0].mxu0 %v4867
      %v5049 = vpop.f32.mrb[0].mxu0
      %v5050 = vadd.f32 0.0, %v5049
      %v5051 = vpop.f32.mrb[0].mxu0
      %5052 = vmatprep.mubr.f32.mxu0 0.0
      %5053 = vmatmul.mubr.f32.gmra.mrb[0].mxu0 %v4870
      %v5054 = vpop.f32.mrb[0].mxu0
      %v5055 = vadd.f32 0.0, %v5054
      %v5056 = vpop.f32.mrb[0].mxu0
      %5057 = vmatprep.mubr.f32.mxu0 0.0
      %5058 = vmatmul.mubr.f32.gmra.mrb[0].mxu0 %v4873
      %v5059 = vpop.f32.mrb[0].mxu0
      %v5060 = vadd.f32 0.0, %v5059
      %v5061 = vpop.f32.mrb[0].mxu0
      %5062 = vmatprep.mubr.f32.mxu0 0.0
      %5063 = vmatmul.mubr.f32.gmra.mrb[0].mxu0 %v4876
      %v5064 = vpop.f32.mrb[0].mxu0
      %v5065 = vadd.f32 0.0, %v5064
      %v5066 = vpop.f32.mrb[0].mxu0
      %5067 = vmatprep.mubr.f32.mxu0 0.0
      %5068 = vmatmul.mubr.f32.gmra.mrb[0].mxu0 %v4879
      %v5069 = vpop.f32.mrb[0].mxu0
      %v5070 = vadd.f32 0.0, %v5069
      %v5071 = vpop.f32.mrb[0].mxu0
      %5072 = vmatprep.mubr.f32.mxu0 0.0
      %5073 = vmatmul.mubr.f32.gmra.mrb[0].mxu0 %v4882
      %v5074 = vpop.f32.mrb[0].mxu0
      %v5075 = vadd.f32 0.0, %v5074
      %v5076 = vpop.f32.mrb[0].mxu0
      %5077 = vmatprep.mubr.f32.mxu0 0.0
      %5078 = vmatmul.mubr.f32.gmra.mrb[0].mxu0 %v4885
      %v5079 = vpop.f32.mrb[0].mxu0
      %v5080 = vadd.f32 0.0, %v5079
      %v5081 = vpop.f32.mrb[0].mxu0
      %5082 = vmatprep.mubr.f32.mxu0 0.0
      %5083 = vmatmul.mubr.f32.gmra.mrb[0].mxu0 %v4888
      %v5084 = vpop.f32.mrb[0].mxu0
      %v5085 = vadd.f32 0.0, %v5084
      %v5086 = vpop.f32.mrb[0].mxu0
      %5087 = vmatprep.mubr.f32.mxu0 0.0
      %5088 = vmatmul.mubr.f32.gmra.mrb[0].mxu0 %v4891
      %v5089 = vpop.f32.mrb[0].mxu0
      %v5090 = vadd.f32 0.0, %v5089
      %v5091 = vpop.f32.mrb[0].mxu0
      %5092 = vmatprep.mubr.f32.mxu0 0.0
      %5093 = vmatmul.mubr.f32.gmra.mrb[0].mxu0 %v4894
      %v5094 = vpop.f32.mrb[0].mxu0
      %v5095 = vadd.f32 0.0, %v5094
      %v5096 = vpop.f32.mrb[0].mxu0
      %5097 = vmatprep.mubr.f32.mxu0 0.0
      %5098 = vmatmul.mubr.f32.gmra.mrb[0].mxu0 %v4897
      %v5099 = vpop.f32.mrb[0].mxu0
      %v5100 = vadd.f32 0.0, %v5099
      %v5101 = vpop.f32.mrb[0].mxu0
      %5102 = vmatprep.mubr.f32.mxu0 0.0
      %5103 = vmatmul.mubr.f32.gmra.mrb[0].mxu0 %v4900
      %v5104 = vpop.f32.mrb[0].mxu0
      %v5105 = vadd.f32 0.0, %v5104
      %v5106 = vpop.f32.mrb[0].mxu0
      %5107 = vmatprep.mubr.f32.mxu0 0.0
      %5108 = vmatmul.mubr.f32.gmra.mrb[0].mxu0 %v4903
      %v5109 = vpop.f32.mrb[0].mxu0
      %v5110 = vadd.f32 0.0, %v5109
      %v5111 = vpop.f32.mrb[0].mxu0
      %5112 = vmatprep.mubr.f32.mxu0 0.0
      %5113 = vmatmul.mubr.f32.gmra.mrb[0].mxu0 %v4906
      %v5114 = vpop.f32.mrb[0].mxu0
      %v5115 = vadd.f32 0.0, %v5114
      %v5116 = vpop.f32.mrb[0].mxu0
      %5117 = vmatprep.mubr.f32.mxu0 0.0
      %5118 = vmatmul.mubr.f32.gmra.mrb[0].mxu0 %v4909
      %v5119 = vpop.f32.mrb[0].mxu0
      %v5120 = vadd.f32 0.0, %v5119
      %v5121 = vpop.f32.mrb[0].mxu0
      %5122 = vmatprep.mubr.f32.mxu0 0.0
      %5123 = vmatmul.mubr.f32.gmra.mrb[0].mxu0 %v4912
      %v5124 = vpop.f32.mrb[0].mxu0
      %v5125 = vadd.f32 0.0, %v5124
      %v5126 = vpop.f32.mrb[0].mxu0
      %5127 = vmatprep.mubr.f32.mxu0 0.0
      %5128 = vmatmul.mubr.f32.gmra.mrb[0].mxu0 %v4915
      %v5129 = vpop.f32.mrb[0].mxu0
      %v5130 = vadd.f32 0.0, %v5129
      %v5131 = vpop.f32.mrb[0].mxu0
      %5132 = vmatprep.mubr.f32.mxu0 0.0
      %5133 = vmatmul.mubr.f32.gmra.mrb[0].mxu0 %v4918
      %v5134 = vpop.f32.mrb[0].mxu0
      %v5135 = vadd.f32 0.0, %v5134
      %v5136 = vpop.f32.mrb[0].mxu0
      %5137 = vmatprep.mubr.f32.mxu0 0.0
      %5138 = vmatmul.mubr.f32.gmra.mrb[0].mxu0 %v4921
      %v5139 = vpop.f32.mrb[0].mxu0
      %v5140 = vadd.f32 0.0, %v5139
      %v5141 = vpop.f32.mrb[0].mxu0
      %5142 = vmatprep.mubr.f32.mxu0 0.0
      %5143 = vmatmul.mubr.f32.gmra.mrb[0].mxu0 %v4924
      %v5144 = vpop.f32.mrb[0].mxu0
      %v5145 = vadd.f32 0.0, %v5144
      %v5146 = vpop.f32.mrb[0].mxu0
      %5147 = vmatprep.mubr.f32.mxu0 0.0
      %5148 = vmatmul.mubr.f32.gmra.mrb[0].mxu0 %v4927
      %v5149 = vpop.f32.mrb[0].mxu0
      %v5150 = vadd.f32 0.0, %v5149
      %v5151 = vpop.f32.mrb[0].mxu0
      %5152 = vmatprep.mubr.f32.mxu0 0.0
      %5153 = vmatmul.mubr.f32.gmra.mrb[0].mxu0 %v4930
      %v5154 = vpop.f32.mrb[0].mxu0
      %v5155 = vadd.f32 0.0, %v5154
      %v5156 = vpop.f32.mrb[0].mxu0
      %5157 = vmatprep.mubr.f32.mxu0 0.0
      %5158 = vmatmul.mubr.f32.gmra.mrb[0].mxu0 %v4933
      %v5159 = vpop.f32.mrb[0].mxu0
      %v5160 = vadd.f32 0.0, %v5159
      %v5161 = vpop.f32.mrb[0].mxu0
      %5162 = vdwg.mxu0
      %v5163 = vadd.f32 %v4773, %v5005
      %v5164 = vadd.f32 %v4774, %v5010
      %v5165 = vadd.f32 %v4775, %v5015
      %v5166 = vadd.f32 %v4776, %v5020
      %v5167 = vadd.f32 %v4777, %v5025
      %v5168 = vadd.f32 %v4778, %v5030
      %v5169 = vadd.f32 %v4779, %v5035
      %v5170 = vadd.f32 %v4780, %v5040
      %v5171 = vadd.f32 %v4781, %v5045
      %v5172 = vadd.f32 %v4782, %v5050
      %v5173 = vadd.f32 %v4783, %v5055
      %v5174 = vadd.f32 %v4784, %v5060
      %v5175 = vadd.f32 %v4785, %v5065
      %v5176 = vadd.f32 %v4786, %v5070
      %v5177 = vadd.f32 %v4787, %v5075
      %v5178 = vadd.f32 %v4788, %v5080
      %v5179 = vadd.f32 %v4789, %v5085
      %v5180 = vadd.f32 %v4790, %v5090
      %v5181 = vadd.f32 %v4791, %v5095
      %v5182 = vadd.f32 %v4792, %v5100
      %v5183 = vadd.f32 %v4793, %v5105
      %v5184 = vadd.f32 %v4794, %v5110
      %v5185 = vadd.f32 %v4795, %v5115
      %v5186 = vadd.f32 %v4796, %v5120
      %v5187 = vadd.f32 %v4797, %v5125
      %v5188 = vadd.f32 %v4798, %v5130
      %v5189 = vadd.f32 %v4799, %v5135
      %v5190 = vadd.f32 %v4800, %v5140
      %v5191 = vadd.f32 %v4801, %v5145
      %v5192 = vadd.f32 %v4802, %v5150
      %v5193 = vadd.f32 %v4803, %v5155
      %v5194 = vadd.f32 %v4804, %v5160
      %v5195 = vld [vmem:[%s3277 + $0x2] sm:$0xff]
      %v5196 = vld [vmem:[%s3277 + $0xa] sm:$0xff]
      %v5197 = vld [vmem:[%s3277 + $0x1a] sm:$0xff]
      %v5198 = vld [vmem:[%s3277 + $0x22] sm:$0xff]
      %v5199 = vld [vmem:[%s3277 + $0x32] sm:$0xff]
      %v5200 = vld [vmem:[%s3277 + $0x3a] sm:$0xff]
      %v5201 = vld [vmem:[%s3277 + $0x4a] sm:$0xff]
      %v5202 = vld [vmem:[%s3277 + $0x52] sm:$0xff]
      %v5203 = vld [vmem:[%s3277 + $0x62] sm:$0xff]
      %v5204 = vld [vmem:[%s3277 + $0x6a] sm:$0xff]
      %v5205 = vld [vmem:[%s3277 + $0x7a] sm:$0xff]
      %v5206 = vld [vmem:[%s3277 + $0x82] sm:$0xff]
      %v5207 = vld [vmem:[%s3277 + $0x92] sm:$0xff]
      %v5208 = vld [vmem:[%s3277 + $0x9a] sm:$0xff]
      %v5209 = vld [vmem:[%s3277 + $0xaa] sm:$0xff]
      %v5210 = vld [vmem:[%s3277 + $0xb2] sm:$0xff]
      %v5211 = vld [vmem:[%s3277 + $0xc2] sm:$0xff]
      %v5212 = vld [vmem:[%s3277 + $0xca] sm:$0xff]
      %v5213 = vld [vmem:[%s3277 + $0xda] sm:$0xff]
      %v5214 = vld [vmem:[%s3277 + $0xe2] sm:$0xff]
      %v5215 = vld [vmem:[%s3277 + $0xf2] sm:$0xff]
      %v5216 = vld [vmem:[%s3277 + $0xfa] sm:$0xff]
      %v5217 = vld [vmem:[%s3277 + $0x10a] sm:$0xff]
      %v5218 = vld [vmem:[%s3277 + $0x112] sm:$0xff]
      %v5219 = vld [vmem:[%s3277 + $0x122] sm:$0xff]
      %v5220 = vld [vmem:[%s3277 + $0x12a] sm:$0xff]
      %v5221 = vld [vmem:[%s3277 + $0x13a] sm:$0xff]
      %v5222 = vld [vmem:[%s3277 + $0x142] sm:$0xff]
      %v5223 = vld [vmem:[%s3277 + $0x152] sm:$0xff]
      %v5224 = vld [vmem:[%s3277 + $0x15a] sm:$0xff]
      %v5225 = vld [vmem:[%s3277 + $0x16a] sm:$0xff]
      %v5226 = vld [vmem:[%s3277 + $0x172] sm:$0xff]
      %s5227 = scalar_lea.vmem %s4, 20
      %v5228 = vld [vmem:[%s5227] sm:$0xf]
      %v5230 = vsel %vm465, %v5195, 0
      %v5233 = vsel %vm465, %v5196, 0
      %v5236 = vsel %vm465, %v5197, 0
      %v5239 = vsel %vm465, %v5198, 0
      %v5242 = vsel %vm465, %v5199, 0
      %v5245 = vsel %vm465, %v5200, 0
      %v5248 = vsel %vm465, %v5201, 0
      %v5251 = vsel %vm465, %v5202, 0
      %v5254 = vsel %vm465, %v5203, 0
      %v5257 = vsel %vm465, %v5204, 0
      %v5260 = vsel %vm465, %v5205, 0
      %v5263 = vsel %vm465, %v5206, 0
      %v5266 = vsel %vm465, %v5207, 0
      %v5269 = vsel %vm465, %v5208, 0
      %v5272 = vsel %vm465, %v5209, 0
      %v5275 = vsel %vm465, %v5210, 0
      %v5278 = vsel %vm465, %v5211, 0
      %v5281 = vsel %vm465, %v5212, 0
      %v5284 = vsel %vm465, %v5213, 0
      %v5287 = vsel %vm465, %v5214, 0
      %v5290 = vsel %vm465, %v5215, 0
      %v5293 = vsel %vm465, %v5216, 0
      %v5296 = vsel %vm465, %v5217, 0
      %v5299 = vsel %vm465, %v5218, 0
      %v5302 = vsel %vm465, %v5219, 0
      %v5305 = vsel %vm465, %v5220, 0
      %v5308 = vsel %vm465, %v5221, 0
      %v5311 = vsel %vm465, %v5222, 0
      %v5314 = vsel %vm465, %v5223, 0
      %v5317 = vsel %vm465, %v5224, 0
      %v5320 = vsel %vm465, %v5225, 0
      %v5323 = vsel %vm465, %v5226, 0
      %v5326 = vsel %vm530, %v5228, 0
      %5328 = vmatprep.subr.mxu0 0.0
      %5329 = vmatpush1.msra.mxu0 %v5326
      %5330 = vmatprep.subr.mxu0 0.0
      %5331 = vmatpush1.msra.mxu0 0.0
      %5332 = vmatprep.subr.mxu0 0.0
      %5333 = vmatpush1.msra.mxu0 0.0
      %5334 = vmatprep.subr.mxu0 0.0
      %5335 = vmatpush1.msra.mxu0 0.0
      %5336 = vmatprep.subr.mxu0 0.0
      %5337 = vmatpush1.msra.mxu0 0.0
      %5338 = vmatprep.subr.mxu0 0.0
      %5339 = vmatpush1.msra.mxu0 0.0
      %5340 = vmatprep.subr.mxu0 0.0
      %5341 = vmatpush1.msra.mxu0 0.0
      %5342 = vmatprep.subr.mxu0 0.0
      %5343 = vmatpush1.msra.mxu0 0.0
      %5344 = vmatprep.subr.mxu0 0.0
      %5345 = vmatpush1.msra.mxu0 0.0
      %5346 = vmatprep.subr.mxu0 0.0
      %5347 = vmatpush1.msra.mxu0 0.0
      %5348 = vmatprep.subr.mxu0 0.0
      %5349 = vmatpush1.msra.mxu0 0.0
      %5350 = vmatprep.subr.mxu0 0.0
      %5351 = vmatpush1.msra.mxu0 0.0
      %5352 = vmatprep.subr.mxu0 0.0
      %5353 = vmatpush1.msra.mxu0 0.0
      %5354 = vmatprep.subr.mxu0 0.0
      %5355 = vmatpush1.msra.mxu0 0.0
      %5356 = vmatprep.subr.mxu0 0.0
      %5357 = vmatpush1.msra.mxu0 0.0
      %5358 = vmatprep.subr.mxu0 0.0
      %5359 = vmatpush1.msra.mxu0 0.0
      %5360 = vmatprep.subr.mxu0 0.0
      %5361 = vmatpush1.msra.mxu0 0.0
      %5362 = vmatprep.subr.mxu0 0.0
      %5363 = vmatpush1.msra.mxu0 0.0
      %5364 = vmatprep.subr.mxu0 0.0
      %5365 = vmatpush1.msra.mxu0 0.0
      %5366 = vmatprep.subr.mxu0 0.0
      %5367 = vmatpush1.msra.mxu0 0.0
      %5368 = vmatprep.subr.mxu0 0.0
      %5369 = vmatpush1.msra.mxu0 0.0
      %5370 = vmatprep.subr.mxu0 0.0
      %5371 = vmatpush1.msra.mxu0 0.0
      %5372 = vmatprep.subr.mxu0 0.0
      %5373 = vmatpush1.msra.mxu0 0.0
      %5374 = vmatprep.subr.mxu0 0.0
      %5375 = vmatpush1.msra.mxu0 0.0
      %5376 = vmatprep.subr.mxu0 0.0
      %5377 = vmatpush1.msra.mxu0 0.0
      %5378 = vmatprep.subr.mxu0 0.0
      %5379 = vmatpush1.msra.mxu0 0.0
      %5380 = vmatprep.subr.mxu0 0.0
      %5381 = vmatpush1.msra.mxu0 0.0
      %5382 = vmatprep.subr.mxu0 0.0
      %5383 = vmatpush1.msra.mxu0 0.0
      %5384 = vmatprep.subr.mxu0 0.0
      %5385 = vmatpush1.msra.mxu0 0.0
      %5386 = vmatprep.subr.mxu0 0.0
      %5387 = vmatpush1.msra.mxu0 0.0
      %5388 = vmatprep.subr.mxu0 0.0
      %5389 = vmatpush1.msra.mxu0 0.0
      %5390 = vmatprep.subr.mxu0 0.0
      %5391 = vmatpush1.msra.mxu0 0.0
      %5392 = vmatprep.mubr.f32.mxu0 0.0
      %5393 = vmatmul.mubr.f32.gmra.mrb[0].mxu0 %v5230
      %v5394 = vpop.f32.mrb[0].mxu0
      %v5395 = vadd.f32 0.0, %v5394
      %v5396 = vpop.f32.mrb[0].mxu0
      %5397 = vmatprep.mubr.f32.mxu0 0.0
      %5398 = vmatmul.mubr.f32.gmra.mrb[0].mxu0 %v5233
      %v5399 = vpop.f32.mrb[0].mxu0
      %v5400 = vadd.f32 0.0, %v5399
      %v5401 = vpop.f32.mrb[0].mxu0
      %5402 = vmatprep.mubr.f32.mxu0 0.0
      %5403 = vmatmul.mubr.f32.gmra.mrb[0].mxu0 %v5236
      %v5404 = vpop.f32.mrb[0].mxu0
      %v5405 = vadd.f32 0.0, %v5404
      %v5406 = vpop.f32.mrb[0].mxu0
      %5407 = vmatprep.mubr.f32.mxu0 0.0
      %5408 = vmatmul.mubr.f32.gmra.mrb[0].mxu0 %v5239
      %v5409 = vpop.f32.mrb[0].mxu0
      %v5410 = vadd.f32 0.0, %v5409
      %v5411 = vpop.f32.mrb[0].mxu0
      %5412 = vmatprep.mubr.f32.mxu0 0.0
      %5413 = vmatmul.mubr.f32.gmra.mrb[0].mxu0 %v5242
      %v5414 = vpop.f32.mrb[0].mxu0
      %v5415 = vadd.f32 0.0, %v5414
      %v5416 = vpop.f32.mrb[0].mxu0
      %5417 = vmatprep.mubr.f32.mxu0 0.0
      %5418 = vmatmul.mubr.f32.gmra.mrb[0].mxu0 %v5245
      %v5419 = vpop.f32.mrb[0].mxu0
      %v5420 = vadd.f32 0.0, %v5419
      %v5421 = vpop.f32.mrb[0].mxu0
      %5422 = vmatprep.mubr.f32.mxu0 0.0
      %5423 = vmatmul.mubr.f32.gmra.mrb[0].mxu0 %v5248
      %v5424 = vpop.f32.mrb[0].mxu0
      %v5425 = vadd.f32 0.0, %v5424
      %v5426 = vpop.f32.mrb[0].mxu0
      %5427 = vmatprep.mubr.f32.mxu0 0.0
      %5428 = vmatmul.mubr.f32.gmra.mrb[0].mxu0 %v5251
      %v5429 = vpop.f32.mrb[0].mxu0
      %v5430 = vadd.f32 0.0, %v5429
      %v5431 = vpop.f32.mrb[0].mxu0
      %5432 = vmatprep.mubr.f32.mxu0 0.0
      %5433 = vmatmul.mubr.f32.gmra.mrb[0].mxu0 %v5254
      %v5434 = vpop.f32.mrb[0].mxu0
      %v5435 = vadd.f32 0.0, %v5434
      %v5436 = vpop.f32.mrb[0].mxu0
      %5437 = vmatprep.mubr.f32.mxu0 0.0
      %5438 = vmatmul.mubr.f32.gmra.mrb[0].mxu0 %v5257
      %v5439 = vpop.f32.mrb[0].mxu0
      %v5440 = vadd.f32 0.0, %v5439
      %v5441 = vpop.f32.mrb[0].mxu0
      %5442 = vmatprep.mubr.f32.mxu0 0.0
      %5443 = vmatmul.mubr.f32.gmra.mrb[0].mxu0 %v5260
      %v5444 = vpop.f32.mrb[0].mxu0
      %v5445 = vadd.f32 0.0, %v5444
      %v5446 = vpop.f32.mrb[0].mxu0
      %5447 = vmatprep.mubr.f32.mxu0 0.0
      %5448 = vmatmul.mubr.f32.gmra.mrb[0].mxu0 %v5263
      %v5449 = vpop.f32.mrb[0].mxu0
      %v5450 = vadd.f32 0.0, %v5449
      %v5451 = vpop.f32.mrb[0].mxu0
      %5452 = vmatprep.mubr.f32.mxu0 0.0
      %5453 = vmatmul.mubr.f32.gmra.mrb[0].mxu0 %v5266
      %v5454 = vpop.f32.mrb[0].mxu0
      %v5455 = vadd.f32 0.0, %v5454
      %v5456 = vpop.f32.mrb[0].mxu0
      %5457 = vmatprep.mubr.f32.mxu0 0.0
      %5458 = vmatmul.mubr.f32.gmra.mrb[0].mxu0 %v5269
      %v5459 = vpop.f32.mrb[0].mxu0
      %v5460 = vadd.f32 0.0, %v5459
      %v5461 = vpop.f32.mrb[0].mxu0
      %5462 = vmatprep.mubr.f32.mxu0 0.0
      %5463 = vmatmul.mubr.f32.gmra.mrb[0].mxu0 %v5272
      %v5464 = vpop.f32.mrb[0].mxu0
      %v5465 = vadd.f32 0.0, %v5464
      %v5466 = vpop.f32.mrb[0].mxu0
      %5467 = vmatprep.mubr.f32.mxu0 0.0
      %5468 = vmatmul.mubr.f32.gmra.mrb[0].mxu0 %v5275
      %v5469 = vpop.f32.mrb[0].mxu0
      %v5470 = vadd.f32 0.0, %v5469
      %v5471 = vpop.f32.mrb[0].mxu0
      %5472 = vmatprep.mubr.f32.mxu0 0.0
      %5473 = vmatmul.mubr.f32.gmra.mrb[0].mxu0 %v5278
      %v5474 = vpop.f32.mrb[0].mxu0
      %v5475 = vadd.f32 0.0, %v5474
      %v5476 = vpop.f32.mrb[0].mxu0
      %5477 = vmatprep.mubr.f32.mxu0 0.0
      %5478 = vmatmul.mubr.f32.gmra.mrb[0].mxu0 %v5281
      %v5479 = vpop.f32.mrb[0].mxu0
      %v5480 = vadd.f32 0.0, %v5479
      %v5481 = vpop.f32.mrb[0].mxu0
      %5482 = vmatprep.mubr.f32.mxu0 0.0
      %5483 = vmatmul.mubr.f32.gmra.mrb[0].mxu0 %v5284
      %v5484 = vpop.f32.mrb[0].mxu0
      %v5485 = vadd.f32 0.0, %v5484
      %v5486 = vpop.f32.mrb[0].mxu0
      %5487 = vmatprep.mubr.f32.mxu0 0.0
      %5488 = vmatmul.mubr.f32.gmra.mrb[0].mxu0 %v5287
      %v5489 = vpop.f32.mrb[0].mxu0
      %v5490 = vadd.f32 0.0, %v5489
      %v5491 = vpop.f32.mrb[0].mxu0
      %5492 = vmatprep.mubr.f32.mxu0 0.0
      %5493 = vmatmul.mubr.f32.gmra.mrb[0].mxu0 %v5290
      %v5494 = vpop.f32.mrb[0].mxu0
      %v5495 = vadd.f32 0.0, %v5494
      %v5496 = vpop.f32.mrb[0].mxu0
      %5497 = vmatprep.mubr.f32.mxu0 0.0
      %5498 = vmatmul.mubr.f32.gmra.mrb[0].mxu0 %v5293
      %v5499 = vpop.f32.mrb[0].mxu0
      %v5500 = vadd.f32 0.0, %v5499
      %v5501 = vpop.f32.mrb[0].mxu0
      %5502 = vmatprep.mubr.f32.mxu0 0.0
      %5503 = vmatmul.mubr.f32.gmra.mrb[0].mxu0 %v5296
      %v5504 = vpop.f32.mrb[0].mxu0
      %v5505 = vadd.f32 0.0, %v5504
      %v5506 = vpop.f32.mrb[0].mxu0
      %5507 = vmatprep.mubr.f32.mxu0 0.0
      %5508 = vmatmul.mubr.f32.gmra.mrb[0].mxu0 %v5299
      %v5509 = vpop.f32.mrb[0].mxu0
      %v5510 = vadd.f32 0.0, %v5509
      %v5511 = vpop.f32.mrb[0].mxu0
      %5512 = vmatprep.mubr.f32.mxu0 0.0
      %5513 = vmatmul.mubr.f32.gmra.mrb[0].mxu0 %v5302
      %v5514 = vpop.f32.mrb[0].mxu0
      %v5515 = vadd.f32 0.0, %v5514
      %v5516 = vpop.f32.mrb[0].mxu0
      %5517 = vmatprep.mubr.f32.mxu0 0.0
      %5518 = vmatmul.mubr.f32.gmra.mrb[0].mxu0 %v5305
      %v5519 = vpop.f32.mrb[0].mxu0
      %v5520 = vadd.f32 0.0, %v5519
      %v5521 = vpop.f32.mrb[0].mxu0
      %5522 = vmatprep.mubr.f32.mxu0 0.0
      %5523 = vmatmul.mubr.f32.gmra.mrb[0].mxu0 %v5308
      %v5524 = vpop.f32.mrb[0].mxu0
      %v5525 = vadd.f32 0.0, %v5524
      %v5526 = vpop.f32.mrb[0].mxu0
      %5527 = vmatprep.mubr.f32.mxu0 0.0
      %5528 = vmatmul.mubr.f32.gmra.mrb[0].mxu0 %v5311
      %v5529 = vpop.f32.mrb[0].mxu0
      %v5530 = vadd.f32 0.0, %v5529
      %v5531 = vpop.f32.mrb[0].mxu0
      %5532 = vmatprep.mubr.f32.mxu0 0.0
      %5533 = vmatmul.mubr.f32.gmra.mrb[0].mxu0 %v5314
      %v5534 = vpop.f32.mrb[0].mxu0
      %v5535 = vadd.f32 0.0, %v5534
      %v5536 = vpop.f32.mrb[0].mxu0
      %5537 = vmatprep.mubr.f32.mxu0 0.0
      %5538 = vmatmul.mubr.f32.gmra.mrb[0].mxu0 %v5317
      %v5539 = vpop.f32.mrb[0].mxu0
      %v5540 = vadd.f32 0.0, %v5539
      %v5541 = vpop.f32.mrb[0].mxu0
      %5542 = vmatprep.mubr.f32.mxu0 0.0
      %5543 = vmatmul.mubr.f32.gmra.mrb[0].mxu0 %v5320
      %v5544 = vpop.f32.mrb[0].mxu0
      %v5545 = vadd.f32 0.0, %v5544
      %v5546 = vpop.f32.mrb[0].mxu0
      %5547 = vmatprep.mubr.f32.mxu0 0.0
      %5548 = vmatmul.mubr.f32.gmra.mrb[0].mxu0 %v5323
      %v5549 = vpop.f32.mrb[0].mxu0
      %v5550 = vadd.f32 0.0, %v5549
      %v5551 = vpop.f32.mrb[0].mxu0
      %5552 = vdwg.mxu0
      %v5553 = vadd.f32 %v5163, %v5395
      %v5554 = vadd.f32 %v5164, %v5400
      %v5555 = vadd.f32 %v5165, %v5405
      %v5556 = vadd.f32 %v5166, %v5410
      %v5557 = vadd.f32 %v5167, %v5415
      %v5558 = vadd.f32 %v5168, %v5420
      %v5559 = vadd.f32 %v5169, %v5425
      %v5560 = vadd.f32 %v5170, %v5430
      %v5561 = vadd.f32 %v5171, %v5435
      %v5562 = vadd.f32 %v5172, %v5440
      %v5563 = vadd.f32 %v5173, %v5445
      %v5564 = vadd.f32 %v5174, %v5450
      %v5565 = vadd.f32 %v5175, %v5455
      %v5566 = vadd.f32 %v5176, %v5460
      %v5567 = vadd.f32 %v5177, %v5465
      %v5568 = vadd.f32 %v5178, %v5470
      %v5569 = vadd.f32 %v5179, %v5475
      %v5570 = vadd.f32 %v5180, %v5480
      %v5571 = vadd.f32 %v5181, %v5485
      %v5572 = vadd.f32 %v5182, %v5490
      %v5573 = vadd.f32 %v5183, %v5495
      %v5574 = vadd.f32 %v5184, %v5500
      %v5575 = vadd.f32 %v5185, %v5505
      %v5576 = vadd.f32 %v5186, %v5510
      %v5577 = vadd.f32 %v5187, %v5515
      %v5578 = vadd.f32 %v5188, %v5520
      %v5579 = vadd.f32 %v5189, %v5525
      %v5580 = vadd.f32 %v5190, %v5530
      %v5581 = vadd.f32 %v5191, %v5535
      %v5582 = vadd.f32 %v5192, %v5540
      %v5583 = vadd.f32 %v5193, %v5545
      %v5584 = vadd.f32 %v5194, %v5550
      %s5585 = scalar_lea.vmem [#allocation2], 48
      %v5586 = vld [vmem:[%s5585] sm:$0xff]
      %v5587 = vld [vmem:[%s5585 + $0x8] sm:$0xff]
      %v5588 = vld [vmem:[%s5585 + $0x18] sm:$0xff]
      %v5589 = vld [vmem:[%s5585 + $0x20] sm:$0xff]
      %v5590 = vld [vmem:[%s5585 + $0x30] sm:$0xff]
      %v5591 = vld [vmem:[%s5585 + $0x38] sm:$0xff]
      %v5592 = vld [vmem:[%s5585 + $0x48] sm:$0xff]
      %v5593 = vld [vmem:[%s5585 + $0x50] sm:$0xff]
      %v5594 = vld [vmem:[%s5585 + $0x60] sm:$0xff]
      %v5595 = vld [vmem:[%s5585 + $0x68] sm:$0xff]
      %v5596 = vld [vmem:[%s5585 + $0x78] sm:$0xff]
      %v5597 = vld [vmem:[%s5585 + $0x80] sm:$0xff]
      %v5598 = vld [vmem:[%s5585 + $0x90] sm:$0xff]
      %v5599 = vld [vmem:[%s5585 + $0x98] sm:$0xff]
      %v5600 = vld [vmem:[%s5585 + $0xa8] sm:$0xff]
      %v5601 = vld [vmem:[%s5585 + $0xb0] sm:$0xff]
      %v5602 = vld [vmem:[%s5585 + $0xc0] sm:$0xff]
      %v5603 = vld [vmem:[%s5585 + $0xc8] sm:$0xff]
      %v5604 = vld [vmem:[%s5585 + $0xd8] sm:$0xff]
      %v5605 = vld [vmem:[%s5585 + $0xe0] sm:$0xff]
      %v5606 = vld [vmem:[%s5585 + $0xf0] sm:$0xff]
      %v5607 = vld [vmem:[%s5585 + $0xf8] sm:$0xff]
      %v5608 = vld [vmem:[%s5585 + $0x108] sm:$0xff]
      %v5609 = vld [vmem:[%s5585 + $0x110] sm:$0xff]
      %v5610 = vld [vmem:[%s5585 + $0x120] sm:$0xff]
      %v5611 = vld [vmem:[%s5585 + $0x128] sm:$0xff]
      %v5612 = vld [vmem:[%s5585 + $0x138] sm:$0xff]
      %v5613 = vld [vmem:[%s5585 + $0x140] sm:$0xff]
      %v5614 = vld [vmem:[%s5585 + $0x150] sm:$0xff]
      %v5615 = vld [vmem:[%s5585 + $0x158] sm:$0xff]
      %v5616 = vld [vmem:[%s5585 + $0x168] sm:$0xff]
      %v5617 = vld [vmem:[%s5585 + $0x170] sm:$0xff]
      %s5618 = scalar_lea.vmem %s4, 24
      %v5619 = vld [vmem:[%s5618] sm:$0xf]
      %v5621 = vsel %vm465, %v5586, 0
      %v5624 = vsel %vm465, %v5587, 0
      %v5627 = vsel %vm465, %v5588, 0
      %v5630 = vsel %vm465, %v5589, 0
      %v5633 = vsel %vm465, %v5590, 0
      %v5636 = vsel %vm465, %v5591, 0
      %v5639 = vsel %vm465, %v5592, 0
      %v5642 = vsel %vm465, %v5593, 0
      %v5645 = vsel %vm465, %v5594, 0
      %v5648 = vsel %vm465, %v5595, 0
      %v5651 = vsel %vm465, %v5596, 0
      %v5654 = vsel %vm465, %v5597, 0
      %v5657 = vsel %vm465, %v5598, 0
      %v5660 = vsel %vm465, %v5599, 0
      %v5663 = vsel %vm465, %v5600, 0
      %v5666 = vsel %vm465, %v5601, 0
      %v5669 = vsel %vm465, %v5602, 0
      %v5672 = vsel %vm465, %v5603, 0
      %v5675 = vsel %vm465, %v5604, 0
      %v5678 = vsel %vm465, %v5605, 0
      %v5681 = vsel %vm465, %v5606, 0
      %v5684 = vsel %vm465, %v5607, 0
      %v5687 = vsel %vm465, %v5608, 0
      %v5690 = vsel %vm465, %v5609, 0
      %v5693 = vsel %vm465, %v5610, 0
      %v5696 = vsel %vm465, %v5611, 0
      %v5699 = vsel %vm465, %v5612, 0
      %v5702 = vsel %vm465, %v5613, 0
      %v5705 = vsel %vm465, %v5614, 0
      %v5708 = vsel %vm465, %v5615, 0
      %v5711 = vsel %vm465, %v5616, 0
      %v5714 = vsel %vm465, %v5617, 0
      %v5717 = vsel %vm530, %v5619, 0
      %5719 = vmatprep.subr.mxu0 0.0
      %5720 = vmatpush1.msra.mxu0 %v5717
      %5721 = vmatprep.subr.mxu0 0.0
      %5722 = vmatpush1.msra.mxu0 0.0
      %5723 = vmatprep.subr.mxu0 0.0
      %5724 = vmatpush1.msra.mxu0 0.0
      %5725 = vmatprep.subr.mxu0 0.0
      %5726 = vmatpush1.msra.mxu0 0.0
      %5727 = vmatprep.subr.mxu0 0.0
      %5728 = vmatpush1.msra.mxu0 0.0
      %5729 = vmatprep.subr.mxu0 0.0
      %5730 = vmatpush1.msra.mxu0 0.0
      %5731 = vmatprep.subr.mxu0 0.0
      %5732 = vmatpush1.msra.mxu0 0.0
      %5733 = vmatprep.subr.mxu0 0.0
      %5734 = vmatpush1.msra.mxu0 0.0
      %5735 = vmatprep.subr.mxu0 0.0
      %5736 = vmatpush1.msra.mxu0 0.0
      %5737 = vmatprep.subr.mxu0 0.0
      %5738 = vmatpush1.msra.mxu0 0.0
      %5739 = vmatprep.subr.mxu0 0.0
      %5740 = vmatpush1.msra.mxu0 0.0
      %5741 = vmatprep.subr.mxu0 0.0
      %5742 = vmatpush1.msra.mxu0 0.0
      %5743 = vmatprep.subr.mxu0 0.0
      %5744 = vmatpush1.msra.mxu0 0.0
      %5745 = vmatprep.subr.mxu0 0.0
      %5746 = vmatpush1.msra.mxu0 0.0
      %5747 = vmatprep.subr.mxu0 0.0
      %5748 = vmatpush1.msra.mxu0 0.0
      %5749 = vmatprep.subr.mxu0 0.0
      %5750 = vmatpush1.msra.mxu0 0.0
      %5751 = vmatprep.subr.mxu0 0.0
      %5752 = vmatpush1.msra.mxu0 0.0
      %5753 = vmatprep.subr.mxu0 0.0
      %5754 = vmatpush1.msra.mxu0 0.0
      %5755 = vmatprep.subr.mxu0 0.0
      %5756 = vmatpush1.msra.mxu0 0.0
      %5757 = vmatprep.subr.mxu0 0.0
      %5758 = vmatpush1.msra.mxu0 0.0
      %5759 = vmatprep.subr.mxu0 0.0
      %5760 = vmatpush1.msra.mxu0 0.0
      %5761 = vmatprep.subr.mxu0 0.0
      %5762 = vmatpush1.msra.mxu0 0.0
      %5763 = vmatprep.subr.mxu0 0.0
      %5764 = vmatpush1.msra.mxu0 0.0
      %5765 = vmatprep.subr.mxu0 0.0
      %5766 = vmatpush1.msra.mxu0 0.0
      %5767 = vmatprep.subr.mxu0 0.0
      %5768 = vmatpush1.msra.mxu0 0.0
      %5769 = vmatprep.subr.mxu0 0.0
      %5770 = vmatpush1.msra.mxu0 0.0
      %5771 = vmatprep.subr.mxu0 0.0
      %5772 = vmatpush1.msra.mxu0 0.0
      %5773 = vmatprep.subr.mxu0 0.0
      %5774 = vmatpush1.msra.mxu0 0.0
      %5775 = vmatprep.subr.mxu0 0.0
      %5776 = vmatpush1.msra.mxu0 0.0
      %5777 = vmatprep.subr.mxu0 0.0
      %5778 = vmatpush1.msra.mxu0 0.0
      %5779 = vmatprep.subr.mxu0 0.0
      %5780 = vmatpush1.msra.mxu0 0.0
      %5781 = vmatprep.subr.mxu0 0.0
      %5782 = vmatpush1.msra.mxu0 0.0
      %5783 = vmatprep.mubr.f32.mxu0 0.0
      %5784 = vmatmul.mubr.f32.gmra.mrb[0].mxu0 %v5621
      %v5785 = vpop.f32.mrb[0].mxu0
      %v5786 = vadd.f32 0.0, %v5785
      %v5787 = vpop.f32.mrb[0].mxu0
      %5788 = vmatprep.mubr.f32.mxu0 0.0
      %5789 = vmatmul.mubr.f32.gmra.mrb[0].mxu0 %v5624
      %v5790 = vpop.f32.mrb[0].mxu0
      %v5791 = vadd.f32 0.0, %v5790
      %v5792 = vpop.f32.mrb[0].mxu0
      %5793 = vmatprep.mubr.f32.mxu0 0.0
      %5794 = vmatmul.mubr.f32.gmra.mrb[0].mxu0 %v5627
      %v5795 = vpop.f32.mrb[0].mxu0
      %v5796 = vadd.f32 0.0, %v5795
      %v5797 = vpop.f32.mrb[0].mxu0
      %5798 = vmatprep.mubr.f32.mxu0 0.0
      %5799 = vmatmul.mubr.f32.gmra.mrb[0].mxu0 %v5630
      %v5800 = vpop.f32.mrb[0].mxu0
      %v5801 = vadd.f32 0.0, %v5800
      %v5802 = vpop.f32.mrb[0].mxu0
      %5803 = vmatprep.mubr.f32.mxu0 0.0
      %5804 = vmatmul.mubr.f32.gmra.mrb[0].mxu0 %v5633
      %v5805 = vpop.f32.mrb[0].mxu0
      %v5806 = vadd.f32 0.0, %v5805
      %v5807 = vpop.f32.mrb[0].mxu0
      %5808 = vmatprep.mubr.f32.mxu0 0.0
      %5809 = vmatmul.mubr.f32.gmra.mrb[0].mxu0 %v5636
      %v5810 = vpop.f32.mrb[0].mxu0
      %v5811 = vadd.f32 0.0, %v5810
      %v5812 = vpop.f32.mrb[0].mxu0
      %5813 = vmatprep.mubr.f32.mxu0 0.0
      %5814 = vmatmul.mubr.f32.gmra.mrb[0].mxu0 %v5639
      %v5815 = vpop.f32.mrb[0].mxu0
      %v5816 = vadd.f32 0.0, %v5815
      %v5817 = vpop.f32.mrb[0].mxu0
      %5818 = vmatprep.mubr.f32.mxu0 0.0
      %5819 = vmatmul.mubr.f32.gmra.mrb[0].mxu0 %v5642
      %v5820 = vpop.f32.mrb[0].mxu0
      %v5821 = vadd.f32 0.0, %v5820
      %v5822 = vpop.f32.mrb[0].mxu0
      %5823 = vmatprep.mubr.f32.mxu0 0.0
      %5824 = vmatmul.mubr.f32.gmra.mrb[0].mxu0 %v5645
      %v5825 = vpop.f32.mrb[0].mxu0
      %v5826 = vadd.f32 0.0, %v5825
      %v5827 = vpop.f32.mrb[0].mxu0
      %5828 = vmatprep.mubr.f32.mxu0 0.0
      %5829 = vmatmul.mubr.f32.gmra.mrb[0].mxu0 %v5648
      %v5830 = vpop.f32.mrb[0].mxu0
      %v5831 = vadd.f32 0.0, %v5830
      %v5832 = vpop.f32.mrb[0].mxu0
      %5833 = vmatprep.mubr.f32.mxu0 0.0
      %5834 = vmatmul.mubr.f32.gmra.mrb[0].mxu0 %v5651
      %v5835 = vpop.f32.mrb[0].mxu0
      %v5836 = vadd.f32 0.0, %v5835
      %v5837 = vpop.f32.mrb[0].mxu0
      %5838 = vmatprep.mubr.f32.mxu0 0.0
      %5839 = vmatmul.mubr.f32.gmra.mrb[0].mxu0 %v5654
      %v5840 = vpop.f32.mrb[0].mxu0
      %v5841 = vadd.f32 0.0, %v5840
      %v5842 = vpop.f32.mrb[0].mxu0
      %5843 = vmatprep.mubr.f32.mxu0 0.0
      %5844 = vmatmul.mubr.f32.gmra.mrb[0].mxu0 %v5657
      %v5845 = vpop.f32.mrb[0].mxu0
      %v5846 = vadd.f32 0.0, %v5845
      %v5847 = vpop.f32.mrb[0].mxu0
      %5848 = vmatprep.mubr.f32.mxu0 0.0
      %5849 = vmatmul.mubr.f32.gmra.mrb[0].mxu0 %v5660
      %v5850 = vpop.f32.mrb[0].mxu0
      %v5851 = vadd.f32 0.0, %v5850
      %v5852 = vpop.f32.mrb[0].mxu0
      %5853 = vmatprep.mubr.f32.mxu0 0.0
      %5854 = vmatmul.mubr.f32.gmra.mrb[0].mxu0 %v5663
      %v5855 = vpop.f32.mrb[0].mxu0
      %v5856 = vadd.f32 0.0, %v5855
      %v5857 = vpop.f32.mrb[0].mxu0
      %5858 = vmatprep.mubr.f32.mxu0 0.0
      %5859 = vmatmul.mubr.f32.gmra.mrb[0].mxu0 %v5666
      %v5860 = vpop.f32.mrb[0].mxu0
      %v5861 = vadd.f32 0.0, %v5860
      %v5862 = vpop.f32.mrb[0].mxu0
      %5863 = vmatprep.mubr.f32.mxu0 0.0
      %5864 = vmatmul.mubr.f32.gmra.mrb[0].mxu0 %v5669
      %v5865 = vpop.f32.mrb[0].mxu0
      %v5866 = vadd.f32 0.0, %v5865
      %v5867 = vpop.f32.mrb[0].mxu0
      %5868 = vmatprep.mubr.f32.mxu0 0.0
      %5869 = vmatmul.mubr.f32.gmra.mrb[0].mxu0 %v5672
      %v5870 = vpop.f32.mrb[0].mxu0
      %v5871 = vadd.f32 0.0, %v5870
      %v5872 = vpop.f32.mrb[0].mxu0
      %5873 = vmatprep.mubr.f32.mxu0 0.0
      %5874 = vmatmul.mubr.f32.gmra.mrb[0].mxu0 %v5675
      %v5875 = vpop.f32.mrb[0].mxu0
      %v5876 = vadd.f32 0.0, %v5875
      %v5877 = vpop.f32.mrb[0].mxu0
      %5878 = vmatprep.mubr.f32.mxu0 0.0
      %5879 = vmatmul.mubr.f32.gmra.mrb[0].mxu0 %v5678
      %v5880 = vpop.f32.mrb[0].mxu0
      %v5881 = vadd.f32 0.0, %v5880
      %v5882 = vpop.f32.mrb[0].mxu0
      %5883 = vmatprep.mubr.f32.mxu0 0.0
      %5884 = vmatmul.mubr.f32.gmra.mrb[0].mxu0 %v5681
      %v5885 = vpop.f32.mrb[0].mxu0
      %v5886 = vadd.f32 0.0, %v5885
      %v5887 = vpop.f32.mrb[0].mxu0
      %5888 = vmatprep.mubr.f32.mxu0 0.0
      %5889 = vmatmul.mubr.f32.gmra.mrb[0].mxu0 %v5684
      %v5890 = vpop.f32.mrb[0].mxu0
      %v5891 = vadd.f32 0.0, %v5890
      %v5892 = vpop.f32.mrb[0].mxu0
      %5893 = vmatprep.mubr.f32.mxu0 0.0
      %5894 = vmatmul.mubr.f32.gmra.mrb[0].mxu0 %v5687
      %v5895 = vpop.f32.mrb[0].mxu0
      %v5896 = vadd.f32 0.0, %v5895
      %v5897 = vpop.f32.mrb[0].mxu0
      %5898 = vmatprep.mubr.f32.mxu0 0.0
      %5899 = vmatmul.mubr.f32.gmra.mrb[0].mxu0 %v5690
      %v5900 = vpop.f32.mrb[0].mxu0
      %v5901 = vadd.f32 0.0, %v5900
      %v5902 = vpop.f32.mrb[0].mxu0
      %5903 = vmatprep.mubr.f32.mxu0 0.0
      %5904 = vmatmul.mubr.f32.gmra.mrb[0].mxu0 %v5693
      %v5905 = vpop.f32.mrb[0].mxu0
      %v5906 = vadd.f32 0.0, %v5905
      %v5907 = vpop.f32.mrb[0].mxu0
      %5908 = vmatprep.mubr.f32.mxu0 0.0
      %5909 = vmatmul.mubr.f32.gmra.mrb[0].mxu0 %v5696
      %v5910 = vpop.f32.mrb[0].mxu0
      %v5911 = vadd.f32 0.0, %v5910
      %v5912 = vpop.f32.mrb[0].mxu0
      %5913 = vmatprep.mubr.f32.mxu0 0.0
      %5914 = vmatmul.mubr.f32.gmra.mrb[0].mxu0 %v5699
      %v5915 = vpop.f32.mrb[0].mxu0
      %v5916 = vadd.f32 0.0, %v5915
      %v5917 = vpop.f32.mrb[0].mxu0
      %5918 = vmatprep.mubr.f32.mxu0 0.0
      %5919 = vmatmul.mubr.f32.gmra.mrb[0].mxu0 %v5702
      %v5920 = vpop.f32.mrb[0].mxu0
      %v5921 = vadd.f32 0.0, %v5920
      %v5922 = vpop.f32.mrb[0].mxu0
      %5923 = vmatprep.mubr.f32.mxu0 0.0
      %5924 = vmatmul.mubr.f32.gmra.mrb[0].mxu0 %v5705
      %v5925 = vpop.f32.mrb[0].mxu0
      %v5926 = vadd.f32 0.0, %v5925
      %v5927 = vpop.f32.mrb[0].mxu0
      %5928 = vmatprep.mubr.f32.mxu0 0.0
      %5929 = vmatmul.mubr.f32.gmra.mrb[0].mxu0 %v5708
      %v5930 = vpop.f32.mrb[0].mxu0
      %v5931 = vadd.f32 0.0, %v5930
      %v5932 = vpop.f32.mrb[0].mxu0
      %5933 = vmatprep.mubr.f32.mxu0 0.0
      %5934 = vmatmul.mubr.f32.gmra.mrb[0].mxu0 %v5711
      %v5935 = vpop.f32.mrb[0].mxu0
      %v5936 = vadd.f32 0.0, %v5935
      %v5937 = vpop.f32.mrb[0].mxu0
      %5938 = vmatprep.mubr.f32.mxu0 0.0
      %5939 = vmatmul.mubr.f32.gmra.mrb[0].mxu0 %v5714
      %v5940 = vpop.f32.mrb[0].mxu0
      %v5941 = vadd.f32 0.0, %v5940
      %v5942 = vpop.f32.mrb[0].mxu0
      %5943 = vdwg.mxu0
      %v5944 = vadd.f32 %v5553, %v5786
      %v5945 = vadd.f32 %v5554, %v5791
      %v5946 = vadd.f32 %v5555, %v5796
      %v5947 = vadd.f32 %v5556, %v5801
      %v5948 = vadd.f32 %v5557, %v5806
      %v5949 = vadd.f32 %v5558, %v5811
      %v5950 = vadd.f32 %v5559, %v5816
      %v5951 = vadd.f32 %v5560, %v5821
      %v5952 = vadd.f32 %v5561, %v5826
      %v5953 = vadd.f32 %v5562, %v5831
      %v5954 = vadd.f32 %v5563, %v5836
      %v5955 = vadd.f32 %v5564, %v5841
      %v5956 = vadd.f32 %v5565, %v5846
      %v5957 = vadd.f32 %v5566, %v5851
      %v5958 = vadd.f32 %v5567, %v5856
      %v5959 = vadd.f32 %v5568, %v5861
      %v5960 = vadd.f32 %v5569, %v5866
      %v5961 = vadd.f32 %v5570, %v5871
      %v5962 = vadd.f32 %v5571, %v5876
      %v5963 = vadd.f32 %v5572, %v5881
      %v5964 = vadd.f32 %v5573, %v5886
      %v5965 = vadd.f32 %v5574, %v5891
      %v5966 = vadd.f32 %v5575, %v5896
      %v5967 = vadd.f32 %v5576, %v5901
      %v5968 = vadd.f32 %v5577, %v5906
      %v5969 = vadd.f32 %v5578, %v5911
      %v5970 = vadd.f32 %v5579, %v5916
      %v5971 = vadd.f32 %v5580, %v5921
      %v5972 = vadd.f32 %v5581, %v5926
      %v5973 = vadd.f32 %v5582, %v5931
      %v5974 = vadd.f32 %v5583, %v5936
      %v5975 = vadd.f32 %v5584, %v5941
      %v5976 = vld [vmem:[%s5585 + $0x1] sm:$0xff]
      %v5977 = vld [vmem:[%s5585 + $0x9] sm:$0xff]
      %v5978 = vld [vmem:[%s5585 + $0x19] sm:$0xff]
      %v5979 = vld [vmem:[%s5585 + $0x21] sm:$0xff]
      %v5980 = vld [vmem:[%s5585 + $0x31] sm:$0xff]
      %v5981 = vld [vmem:[%s5585 + $0x39] sm:$0xff]
      %v5982 = vld [vmem:[%s5585 + $0x49] sm:$0xff]
      %v5983 = vld [vmem:[%s5585 + $0x51] sm:$0xff]
      %v5984 = vld [vmem:[%s5585 + $0x61] sm:$0xff]
      %v5985 = vld [vmem:[%s5585 + $0x69] sm:$0xff]
      %v5986 = vld [vmem:[%s5585 + $0x79] sm:$0xff]
      %v5987 = vld [vmem:[%s5585 + $0x81] sm:$0xff]
      %v5988 = vld [vmem:[%s5585 + $0x91] sm:$0xff]
      %v5989 = vld [vmem:[%s5585 + $0x99] sm:$0xff]
      %v5990 = vld [vmem:[%s5585 + $0xa9] sm:$0xff]
      %v5991 = vld [vmem:[%s5585 + $0xb1] sm:$0xff]
      %v5992 = vld [vmem:[%s5585 + $0xc1] sm:$0xff]
      %v5993 = vld [vmem:[%s5585 + $0xc9] sm:$0xff]
      %v5994 = vld [vmem:[%s5585 + $0xd9] sm:$0xff]
      %v5995 = vld [vmem:[%s5585 + $0xe1] sm:$0xff]
      %v5996 = vld [vmem:[%s5585 + $0xf1] sm:$0xff]
      %v5997 = vld [vmem:[%s5585 + $0xf9] sm:$0xff]
      %v5998 = vld [vmem:[%s5585 + $0x109] sm:$0xff]
      %v5999 = vld [vmem:[%s5585 + $0x111] sm:$0xff]
      %v6000 = vld [vmem:[%s5585 + $0x121] sm:$0xff]
      %v6001 = vld [vmem:[%s5585 + $0x129] sm:$0xff]
      %v6002 = vld [vmem:[%s5585 + $0x139] sm:$0xff]
      %v6003 = vld [vmem:[%s5585 + $0x141] sm:$0xff]
      %v6004 = vld [vmem:[%s5585 + $0x151] sm:$0xff]
      %v6005 = vld [vmem:[%s5585 + $0x159] sm:$0xff]
      %v6006 = vld [vmem:[%s5585 + $0x169] sm:$0xff]
      %v6007 = vld [vmem:[%s5585 + $0x171] sm:$0xff]
      %s6008 = scalar_lea.vmem %s4, 28
      %v6009 = vld [vmem:[%s6008] sm:$0xf]
      %v6011 = vsel %vm465, %v5976, 0
      %v6014 = vsel %vm465, %v5977, 0
      %v6017 = vsel %vm465, %v5978, 0
      %v6020 = vsel %vm465, %v5979, 0
      %v6023 = vsel %vm465, %v5980, 0
      %v6026 = vsel %vm465, %v5981, 0
      %v6029 = vsel %vm465, %v5982, 0
      %v6032 = vsel %vm465, %v5983, 0
      %v6035 = vsel %vm465, %v5984, 0
      %v6038 = vsel %vm465, %v5985, 0
      %v6041 = vsel %vm465, %v5986, 0
      %v6044 = vsel %vm465, %v5987, 0
      %v6047 = vsel %vm465, %v5988, 0
      %v6050 = vsel %vm465, %v5989, 0
      %v6053 = vsel %vm465, %v5990, 0
      %v6056 = vsel %vm465, %v5991, 0
      %v6059 = vsel %vm465, %v5992, 0
      %v6062 = vsel %vm465, %v5993, 0
      %v6065 = vsel %vm465, %v5994, 0
      %v6068 = vsel %vm465, %v5995, 0
      %v6071 = vsel %vm465, %v5996, 0
      %v6074 = vsel %vm465, %v5997, 0
      %v6077 = vsel %vm465, %v5998, 0
      %v6080 = vsel %vm465, %v5999, 0
      %v6083 = vsel %vm465, %v6000, 0
      %v6086 = vsel %vm465, %v6001, 0
      %v6089 = vsel %vm465, %v6002, 0
      %v6092 = vsel %vm465, %v6003, 0
      %v6095 = vsel %vm465, %v6004, 0
      %v6098 = vsel %vm465, %v6005, 0
      %v6101 = vsel %vm465, %v6006, 0
      %v6104 = vsel %vm465, %v6007, 0
      %v6107 = vsel %vm530, %v6009, 0
      %6109 = vmatprep.subr.mxu0 0.0
      %6110 = vmatpush1.msra.mxu0 %v6107
      %6111 = vmatprep.subr.mxu0 0.0
      %6112 = vmatpush1.msra.mxu0 0.0
      %6113 = vmatprep.subr.mxu0 0.0
      %6114 = vmatpush1.msra.mxu0 0.0
      %6115 = vmatprep.subr.mxu0 0.0
      %6116 = vmatpush1.msra.mxu0 0.0
      %6117 = vmatprep.subr.mxu0 0.0
      %6118 = vmatpush1.msra.mxu0 0.0
      %6119 = vmatprep.subr.mxu0 0.0
      %6120 = vmatpush1.msra.mxu0 0.0
      %6121 = vmatprep.subr.mxu0 0.0
      %6122 = vmatpush1.msra.mxu0 0.0
      %6123 = vmatprep.subr.mxu0 0.0
      %6124 = vmatpush1.msra.mxu0 0.0
      %6125 = vmatprep.subr.mxu0 0.0
      %6126 = vmatpush1.msra.mxu0 0.0
      %6127 = vmatprep.subr.mxu0 0.0
      %6128 = vmatpush1.msra.mxu0 0.0
      %6129 = vmatprep.subr.mxu0 0.0
      %6130 = vmatpush1.msra.mxu0 0.0
      %6131 = vmatprep.subr.mxu0 0.0
      %6132 = vmatpush1.msra.mxu0 0.0
      %6133 = vmatprep.subr.mxu0 0.0
      %6134 = vmatpush1.msra.mxu0 0.0
      %6135 = vmatprep.subr.mxu0 0.0
      %6136 = vmatpush1.msra.mxu0 0.0
      %6137 = vmatprep.subr.mxu0 0.0
      %6138 = vmatpush1.msra.mxu0 0.0
      %6139 = vmatprep.subr.mxu0 0.0
      %6140 = vmatpush1.msra.mxu0 0.0
      %6141 = vmatprep.subr.mxu0 0.0
      %6142 = vmatpush1.msra.mxu0 0.0
      %6143 = vmatprep.subr.mxu0 0.0
      %6144 = vmatpush1.msra.mxu0 0.0
      %6145 = vmatprep.subr.mxu0 0.0
      %6146 = vmatpush1.msra.mxu0 0.0
      %6147 = vmatprep.subr.mxu0 0.0
      %6148 = vmatpush1.msra.mxu0 0.0
      %6149 = vmatprep.subr.mxu0 0.0
      %6150 = vmatpush1.msra.mxu0 0.0
      %6151 = vmatprep.subr.mxu0 0.0
      %6152 = vmatpush1.msra.mxu0 0.0
      %6153 = vmatprep.subr.mxu0 0.0
      %6154 = vmatpush1.msra.mxu0 0.0
      %6155 = vmatprep.subr.mxu0 0.0
      %6156 = vmatpush1.msra.mxu0 0.0
      %6157 = vmatprep.subr.mxu0 0.0
      %6158 = vmatpush1.msra.mxu0 0.0
      %6159 = vmatprep.subr.mxu0 0.0
      %6160 = vmatpush1.msra.mxu0 0.0
      %6161 = vmatprep.subr.mxu0 0.0
      %6162 = vmatpush1.msra.mxu0 0.0
      %6163 = vmatprep.subr.mxu0 0.0
      %6164 = vmatpush1.msra.mxu0 0.0
      %6165 = vmatprep.subr.mxu0 0.0
      %6166 = vmatpush1.msra.mxu0 0.0
      %6167 = vmatprep.subr.mxu0 0.0
      %6168 = vmatpush1.msra.mxu0 0.0
      %6169 = vmatprep.subr.mxu0 0.0
      %6170 = vmatpush1.msra.mxu0 0.0
      %6171 = vmatprep.subr.mxu0 0.0
      %6172 = vmatpush1.msra.mxu0 0.0
      %6173 = vmatprep.mubr.f32.mxu0 0.0
      %6174 = vmatmul.mubr.f32.gmra.mrb[0].mxu0 %v6011
      %v6175 = vpop.f32.mrb[0].mxu0
      %v6176 = vadd.f32 0.0, %v6175
      %v6177 = vpop.f32.mrb[0].mxu0
      %6178 = vmatprep.mubr.f32.mxu0 0.0
      %6179 = vmatmul.mubr.f32.gmra.mrb[0].mxu0 %v6014
      %v6180 = vpop.f32.mrb[0].mxu0
      %v6181 = vadd.f32 0.0, %v6180
      %v6182 = vpop.f32.mrb[0].mxu0
      %6183 = vmatprep.mubr.f32.mxu0 0.0
      %6184 = vmatmul.mubr.f32.gmra.mrb[0].mxu0 %v6017
      %v6185 = vpop.f32.mrb[0].mxu0
      %v6186 = vadd.f32 0.0, %v6185
      %v6187 = vpop.f32.mrb[0].mxu0
      %6188 = vmatprep.mubr.f32.mxu0 0.0
      %6189 = vmatmul.mubr.f32.gmra.mrb[0].mxu0 %v6020
      %v6190 = vpop.f32.mrb[0].mxu0
      %v6191 = vadd.f32 0.0, %v6190
      %v6192 = vpop.f32.mrb[0].mxu0
      %6193 = vmatprep.mubr.f32.mxu0 0.0
      %6194 = vmatmul.mubr.f32.gmra.mrb[0].mxu0 %v6023
      %v6195 = vpop.f32.mrb[0].mxu0
      %v6196 = vadd.f32 0.0, %v6195
      %v6197 = vpop.f32.mrb[0].mxu0
      %6198 = vmatprep.mubr.f32.mxu0 0.0
      %6199 = vmatmul.mubr.f32.gmra.mrb[0].mxu0 %v6026
      %v6200 = vpop.f32.mrb[0].mxu0
      %v6201 = vadd.f32 0.0, %v6200
      %v6202 = vpop.f32.mrb[0].mxu0
      %6203 = vmatprep.mubr.f32.mxu0 0.0
      %6204 = vmatmul.mubr.f32.gmra.mrb[0].mxu0 %v6029
      %v6205 = vpop.f32.mrb[0].mxu0
      %v6206 = vadd.f32 0.0, %v6205
      %v6207 = vpop.f32.mrb[0].mxu0
      %6208 = vmatprep.mubr.f32.mxu0 0.0
      %6209 = vmatmul.mubr.f32.gmra.mrb[0].mxu0 %v6032
      %v6210 = vpop.f32.mrb[0].mxu0
      %v6211 = vadd.f32 0.0, %v6210
      %v6212 = vpop.f32.mrb[0].mxu0
      %6213 = vmatprep.mubr.f32.mxu0 0.0
      %6214 = vmatmul.mubr.f32.gmra.mrb[0].mxu0 %v6035
      %v6215 = vpop.f32.mrb[0].mxu0
      %v6216 = vadd.f32 0.0, %v6215
      %v6217 = vpop.f32.mrb[0].mxu0
      %6218 = vmatprep.mubr.f32.mxu0 0.0
      %6219 = vmatmul.mubr.f32.gmra.mrb[0].mxu0 %v6038
      %v6220 = vpop.f32.mrb[0].mxu0
      %v6221 = vadd.f32 0.0, %v6220
      %v6222 = vpop.f32.mrb[0].mxu0
      %6223 = vmatprep.mubr.f32.mxu0 0.0
      %6224 = vmatmul.mubr.f32.gmra.mrb[0].mxu0 %v6041
      %v6225 = vpop.f32.mrb[0].mxu0
      %v6226 = vadd.f32 0.0, %v6225
      %v6227 = vpop.f32.mrb[0].mxu0
      %6228 = vmatprep.mubr.f32.mxu0 0.0
      %6229 = vmatmul.mubr.f32.gmra.mrb[0].mxu0 %v6044
      %v6230 = vpop.f32.mrb[0].mxu0
      %v6231 = vadd.f32 0.0, %v6230
      %v6232 = vpop.f32.mrb[0].mxu0
      %6233 = vmatprep.mubr.f32.mxu0 0.0
      %6234 = vmatmul.mubr.f32.gmra.mrb[0].mxu0 %v6047
      %v6235 = vpop.f32.mrb[0].mxu0
      %v6236 = vadd.f32 0.0, %v6235
      %v6237 = vpop.f32.mrb[0].mxu0
      %6238 = vmatprep.mubr.f32.mxu0 0.0
      %6239 = vmatmul.mubr.f32.gmra.mrb[0].mxu0 %v6050
      %v6240 = vpop.f32.mrb[0].mxu0
      %v6241 = vadd.f32 0.0, %v6240
      %v6242 = vpop.f32.mrb[0].mxu0
      %6243 = vmatprep.mubr.f32.mxu0 0.0
      %6244 = vmatmul.mubr.f32.gmra.mrb[0].mxu0 %v6053
      %v6245 = vpop.f32.mrb[0].mxu0
      %v6246 = vadd.f32 0.0, %v6245
      %v6247 = vpop.f32.mrb[0].mxu0
      %6248 = vmatprep.mubr.f32.mxu0 0.0
      %6249 = vmatmul.mubr.f32.gmra.mrb[0].mxu0 %v6056
      %v6250 = vpop.f32.mrb[0].mxu0
      %v6251 = vadd.f32 0.0, %v6250
      %v6252 = vpop.f32.mrb[0].mxu0
      %6253 = vmatprep.mubr.f32.mxu0 0.0
      %6254 = vmatmul.mubr.f32.gmra.mrb[0].mxu0 %v6059
      %v6255 = vpop.f32.mrb[0].mxu0
      %v6256 = vadd.f32 0.0, %v6255
      %v6257 = vpop.f32.mrb[0].mxu0
      %6258 = vmatprep.mubr.f32.mxu0 0.0
      %6259 = vmatmul.mubr.f32.gmra.mrb[0].mxu0 %v6062
      %v6260 = vpop.f32.mrb[0].mxu0
      %v6261 = vadd.f32 0.0, %v6260
      %v6262 = vpop.f32.mrb[0].mxu0
      %6263 = vmatprep.mubr.f32.mxu0 0.0
      %6264 = vmatmul.mubr.f32.gmra.mrb[0].mxu0 %v6065
      %v6265 = vpop.f32.mrb[0].mxu0
      %v6266 = vadd.f32 0.0, %v6265
      %v6267 = vpop.f32.mrb[0].mxu0
      %6268 = vmatprep.mubr.f32.mxu0 0.0
      %6269 = vmatmul.mubr.f32.gmra.mrb[0].mxu0 %v6068
      %v6270 = vpop.f32.mrb[0].mxu0
      %v6271 = vadd.f32 0.0, %v6270
      %v6272 = vpop.f32.mrb[0].mxu0
      %6273 = vmatprep.mubr.f32.mxu0 0.0
      %6274 = vmatmul.mubr.f32.gmra.mrb[0].mxu0 %v6071
      %v6275 = vpop.f32.mrb[0].mxu0
      %v6276 = vadd.f32 0.0, %v6275
      %v6277 = vpop.f32.mrb[0].mxu0
      %6278 = vmatprep.mubr.f32.mxu0 0.0
      %6279 = vmatmul.mubr.f32.gmra.mrb[0].mxu0 %v6074
      %v6280 = vpop.f32.mrb[0].mxu0
      %v6281 = vadd.f32 0.0, %v6280
      %v6282 = vpop.f32.mrb[0].mxu0
      %6283 = vmatprep.mubr.f32.mxu0 0.0
      %6284 = vmatmul.mubr.f32.gmra.mrb[0].mxu0 %v6077
      %v6285 = vpop.f32.mrb[0].mxu0
      %v6286 = vadd.f32 0.0, %v6285
      %v6287 = vpop.f32.mrb[0].mxu0
      %6288 = vmatprep.mubr.f32.mxu0 0.0
      %6289 = vmatmul.mubr.f32.gmra.mrb[0].mxu0 %v6080
      %v6290 = vpop.f32.mrb[0].mxu0
      %v6291 = vadd.f32 0.0, %v6290
      %v6292 = vpop.f32.mrb[0].mxu0
      %6293 = vmatprep.mubr.f32.mxu0 0.0
      %6294 = vmatmul.mubr.f32.gmra.mrb[0].mxu0 %v6083
      %v6295 = vpop.f32.mrb[0].mxu0
      %v6296 = vadd.f32 0.0, %v6295
      %v6297 = vpop.f32.mrb[0].mxu0
      %6298 = vmatprep.mubr.f32.mxu0 0.0
      %6299 = vmatmul.mubr.f32.gmra.mrb[0].mxu0 %v6086
      %v6300 = vpop.f32.mrb[0].mxu0
      %v6301 = vadd.f32 0.0, %v6300
      %v6302 = vpop.f32.mrb[0].mxu0
      %6303 = vmatprep.mubr.f32.mxu0 0.0
      %6304 = vmatmul.mubr.f32.gmra.mrb[0].mxu0 %v6089
      %v6305 = vpop.f32.mrb[0].mxu0
      %v6306 = vadd.f32 0.0, %v6305
      %v6307 = vpop.f32.mrb[0].mxu0
      %6308 = vmatprep.mubr.f32.mxu0 0.0
      %6309 = vmatmul.mubr.f32.gmra.mrb[0].mxu0 %v6092
      %v6310 = vpop.f32.mrb[0].mxu0
      %v6311 = vadd.f32 0.0, %v6310
      %v6312 = vpop.f32.mrb[0].mxu0
      %6313 = vmatprep.mubr.f32.mxu0 0.0
      %6314 = vmatmul.mubr.f32.gmra.mrb[0].mxu0 %v6095
      %v6315 = vpop.f32.mrb[0].mxu0
      %v6316 = vadd.f32 0.0, %v6315
      %v6317 = vpop.f32.mrb[0].mxu0
      %6318 = vmatprep.mubr.f32.mxu0 0.0
      %6319 = vmatmul.mubr.f32.gmra.mrb[0].mxu0 %v6098
      %v6320 = vpop.f32.mrb[0].mxu0
      %v6321 = vadd.f32 0.0, %v6320
      %v6322 = vpop.f32.mrb[0].mxu0
      %6323 = vmatprep.mubr.f32.mxu0 0.0
      %6324 = vmatmul.mubr.f32.gmra.mrb[0].mxu0 %v6101
      %v6325 = vpop.f32.mrb[0].mxu0
      %v6326 = vadd.f32 0.0, %v6325
      %v6327 = vpop.f32.mrb[0].mxu0
      %6328 = vmatprep.mubr.f32.mxu0 0.0
      %6329 = vmatmul.mubr.f32.gmra.mrb[0].mxu0 %v6104
      %v6330 = vpop.f32.mrb[0].mxu0
      %v6331 = vadd.f32 0.0, %v6330
      %v6332 = vpop.f32.mrb[0].mxu0
      %6333 = vdwg.mxu0
      %v6334 = vadd.f32 %v5944, %v6176
      %v6335 = vadd.f32 %v5945, %v6181
      %v6336 = vadd.f32 %v5946, %v6186
      %v6337 = vadd.f32 %v5947, %v6191
      %v6338 = vadd.f32 %v5948, %v6196
      %v6339 = vadd.f32 %v5949, %v6201
      %v6340 = vadd.f32 %v5950, %v6206
      %v6341 = vadd.f32 %v5951, %v6211
      %v6342 = vadd.f32 %v5952, %v6216
      %v6343 = vadd.f32 %v5953, %v6221
      %v6344 = vadd.f32 %v5954, %v6226
      %v6345 = vadd.f32 %v5955, %v6231
      %v6346 = vadd.f32 %v5956, %v6236
      %v6347 = vadd.f32 %v5957, %v6241
      %v6348 = vadd.f32 %v5958, %v6246
      %v6349 = vadd.f32 %v5959, %v6251
      %v6350 = vadd.f32 %v5960, %v6256
      %v6351 = vadd.f32 %v5961, %v6261
      %v6352 = vadd.f32 %v5962, %v6266
      %v6353 = vadd.f32 %v5963, %v6271
      %v6354 = vadd.f32 %v5964, %v6276
      %v6355 = vadd.f32 %v5965, %v6281
      %v6356 = vadd.f32 %v5966, %v6286
      %v6357 = vadd.f32 %v5967, %v6291
      %v6358 = vadd.f32 %v5968, %v6296
      %v6359 = vadd.f32 %v5969, %v6301
      %v6360 = vadd.f32 %v5970, %v6306
      %v6361 = vadd.f32 %v5971, %v6311
      %v6362 = vadd.f32 %v5972, %v6316
      %v6363 = vadd.f32 %v5973, %v6321
      %v6364 = vadd.f32 %v5974, %v6326
      %v6365 = vadd.f32 %v5975, %v6331
      %v6366 = vld [vmem:[%s5585 + $0x2] sm:$0xff]
      %v6367 = vld [vmem:[%s5585 + $0xa] sm:$0xff]
      %v6368 = vld [vmem:[%s5585 + $0x1a] sm:$0xff]
      %v6369 = vld [vmem:[%s5585 + $0x22] sm:$0xff]
      %v6370 = vld [vmem:[%s5585 + $0x32] sm:$0xff]
      %v6371 = vld [vmem:[%s5585 + $0x3a] sm:$0xff]
      %v6372 = vld [vmem:[%s5585 + $0x4a] sm:$0xff]
      %v6373 = vld [vmem:[%s5585 + $0x52] sm:$0xff]
      %v6374 = vld [vmem:[%s5585 + $0x62] sm:$0xff]
      %v6375 = vld [vmem:[%s5585 + $0x6a] sm:$0xff]
      %v6376 = vld [vmem:[%s5585 + $0x7a] sm:$0xff]
      %v6377 = vld [vmem:[%s5585 + $0x82] sm:$0xff]
      %v6378 = vld [vmem:[%s5585 + $0x92] sm:$0xff]
      %v6379 = vld [vmem:[%s5585 + $0x9a] sm:$0xff]
      %v6380 = vld [vmem:[%s5585 + $0xaa] sm:$0xff]
      %v6381 = vld [vmem:[%s5585 + $0xb2] sm:$0xff]
      %v6382 = vld [vmem:[%s5585 + $0xc2] sm:$0xff]
      %v6383 = vld [vmem:[%s5585 + $0xca] sm:$0xff]
      %v6384 = vld [vmem:[%s5585 + $0xda] sm:$0xff]
      %v6385 = vld [vmem:[%s5585 + $0xe2] sm:$0xff]
      %v6386 = vld [vmem:[%s5585 + $0xf2] sm:$0xff]
      %v6387 = vld [vmem:[%s5585 + $0xfa] sm:$0xff]
      %v6388 = vld [vmem:[%s5585 + $0x10a] sm:$0xff]
      %v6389 = vld [vmem:[%s5585 + $0x112] sm:$0xff]
      %v6390 = vld [vmem:[%s5585 + $0x122] sm:$0xff]
      %v6391 = vld [vmem:[%s5585 + $0x12a] sm:$0xff]
      %v6392 = vld [vmem:[%s5585 + $0x13a] sm:$0xff]
      %v6393 = vld [vmem:[%s5585 + $0x142] sm:$0xff]
      %v6394 = vld [vmem:[%s5585 + $0x152] sm:$0xff]
      %v6395 = vld [vmem:[%s5585 + $0x15a] sm:$0xff]
      %v6396 = vld [vmem:[%s5585 + $0x16a] sm:$0xff]
      %v6397 = vld [vmem:[%s5585 + $0x172] sm:$0xff]
      %s6398 = scalar_lea.vmem %s4, 32
      %v6399 = vld [vmem:[%s6398] sm:$0xf]
      %v6401 = vsel %vm465, %v6366, 0
      %v6404 = vsel %vm465, %v6367, 0
      %v6407 = vsel %vm465, %v6368, 0
      %v6410 = vsel %vm465, %v6369, 0
      %v6413 = vsel %vm465, %v6370, 0
      %v6416 = vsel %vm465, %v6371, 0
      %v6419 = vsel %vm465, %v6372, 0
      %v6422 = vsel %vm465, %v6373, 0
      %v6425 = vsel %vm465, %v6374, 0
      %v6428 = vsel %vm465, %v6375, 0
      %v6431 = vsel %vm465, %v6376, 0
      %v6434 = vsel %vm465, %v6377, 0
      %v6437 = vsel %vm465, %v6378, 0
      %v6440 = vsel %vm465, %v6379, 0
      %v6443 = vsel %vm465, %v6380, 0
      %v6446 = vsel %vm465, %v6381, 0
      %v6449 = vsel %vm465, %v6382, 0
      %v6452 = vsel %vm465, %v6383, 0
      %v6455 = vsel %vm465, %v6384, 0
      %v6458 = vsel %vm465, %v6385, 0
      %v6461 = vsel %vm465, %v6386, 0
      %v6464 = vsel %vm465, %v6387, 0
      %v6467 = vsel %vm465, %v6388, 0
      %v6470 = vsel %vm465, %v6389, 0
      %v6473 = vsel %vm465, %v6390, 0
      %v6476 = vsel %vm465, %v6391, 0
      %v6479 = vsel %vm465, %v6392, 0
      %v6482 = vsel %vm465, %v6393, 0
      %v6485 = vsel %vm465, %v6394, 0
      %v6488 = vsel %vm465, %v6395, 0
      %v6491 = vsel %vm465, %v6396, 0
      %v6494 = vsel %vm465, %v6397, 0
      %v6497 = vsel %vm530, %v6399, 0
      %6499 = vmatprep.subr.mxu0 0.0
      %6500 = vmatpush1.msra.mxu0 %v6497
      %6501 = vmatprep.subr.mxu0 0.0
      %6502 = vmatpush1.msra.mxu0 0.0
      %6503 = vmatprep.subr.mxu0 0.0
      %6504 = vmatpush1.msra.mxu0 0.0
      %6505 = vmatprep.subr.mxu0 0.0
      %6506 = vmatpush1.msra.mxu0 0.0
      %6507 = vmatprep.subr.mxu0 0.0
      %6508 = vmatpush1.msra.mxu0 0.0
      %6509 = vmatprep.subr.mxu0 0.0
      %6510 = vmatpush1.msra.mxu0 0.0
      %6511 = vmatprep.subr.mxu0 0.0
      %6512 = vmatpush1.msra.mxu0 0.0
      %6513 = vmatprep.subr.mxu0 0.0
      %6514 = vmatpush1.msra.mxu0 0.0
      %6515 = vmatprep.subr.mxu0 0.0
      %6516 = vmatpush1.msra.mxu0 0.0
      %6517 = vmatprep.subr.mxu0 0.0
      %6518 = vmatpush1.msra.mxu0 0.0
      %6519 = vmatprep.subr.mxu0 0.0
      %6520 = vmatpush1.msra.mxu0 0.0
      %6521 = vmatprep.subr.mxu0 0.0
      %6522 = vmatpush1.msra.mxu0 0.0
      %6523 = vmatprep.subr.mxu0 0.0
      %6524 = vmatpush1.msra.mxu0 0.0
      %6525 = vmatprep.subr.mxu0 0.0
      %6526 = vmatpush1.msra.mxu0 0.0
      %6527 = vmatprep.subr.mxu0 0.0
      %6528 = vmatpush1.msra.mxu0 0.0
      %6529 = vmatprep.subr.mxu0 0.0
      %6530 = vmatpush1.msra.mxu0 0.0
      %6531 = vmatprep.subr.mxu0 0.0
      %6532 = vmatpush1.msra.mxu0 0.0
      %6533 = vmatprep.subr.mxu0 0.0
      %6534 = vmatpush1.msra.mxu0 0.0
      %6535 = vmatprep.subr.mxu0 0.0
      %6536 = vmatpush1.msra.mxu0 0.0
      %6537 = vmatprep.subr.mxu0 0.0
      %6538 = vmatpush1.msra.mxu0 0.0
      %6539 = vmatprep.subr.mxu0 0.0
      %6540 = vmatpush1.msra.mxu0 0.0
      %6541 = vmatprep.subr.mxu0 0.0
      %6542 = vmatpush1.msra.mxu0 0.0
      %6543 = vmatprep.subr.mxu0 0.0
      %6544 = vmatpush1.msra.mxu0 0.0
      %6545 = vmatprep.subr.mxu0 0.0
      %6546 = vmatpush1.msra.mxu0 0.0
      %6547 = vmatprep.subr.mxu0 0.0
      %6548 = vmatpush1.msra.mxu0 0.0
      %6549 = vmatprep.subr.mxu0 0.0
      %6550 = vmatpush1.msra.mxu0 0.0
      %6551 = vmatprep.subr.mxu0 0.0
      %6552 = vmatpush1.msra.mxu0 0.0
      %6553 = vmatprep.subr.mxu0 0.0
      %6554 = vmatpush1.msra.mxu0 0.0
      %6555 = vmatprep.subr.mxu0 0.0
      %6556 = vmatpush1.msra.mxu0 0.0
      %6557 = vmatprep.subr.mxu0 0.0
      %6558 = vmatpush1.msra.mxu0 0.0
      %6559 = vmatprep.subr.mxu0 0.0
      %6560 = vmatpush1.msra.mxu0 0.0
      %6561 = vmatprep.subr.mxu0 0.0
      %6562 = vmatpush1.msra.mxu0 0.0
      %6563 = vmatprep.mubr.f32.mxu0 0.0
      %6564 = vmatmul.mubr.f32.gmra.mrb[0].mxu0 %v6401
      %v6565 = vpop.f32.mrb[0].mxu0
      %v6566 = vadd.f32 0.0, %v6565
      %v6567 = vpop.f32.mrb[0].mxu0
      %6568 = vmatprep.mubr.f32.mxu0 0.0
      %6569 = vmatmul.mubr.f32.gmra.mrb[0].mxu0 %v6404
      %v6570 = vpop.f32.mrb[0].mxu0
      %v6571 = vadd.f32 0.0, %v6570
      %v6572 = vpop.f32.mrb[0].mxu0
      %6573 = vmatprep.mubr.f32.mxu0 0.0
      %6574 = vmatmul.mubr.f32.gmra.mrb[0].mxu0 %v6407
      %v6575 = vpop.f32.mrb[0].mxu0
      %v6576 = vadd.f32 0.0, %v6575
      %v6577 = vpop.f32.mrb[0].mxu0
      %6578 = vmatprep.mubr.f32.mxu0 0.0
      %6579 = vmatmul.mubr.f32.gmra.mrb[0].mxu0 %v6410
      %v6580 = vpop.f32.mrb[0].mxu0
      %v6581 = vadd.f32 0.0, %v6580
      %v6582 = vpop.f32.mrb[0].mxu0
      %6583 = vmatprep.mubr.f32.mxu0 0.0
      %6584 = vmatmul.mubr.f32.gmra.mrb[0].mxu0 %v6413
      %v6585 = vpop.f32.mrb[0].mxu0
      %v6586 = vadd.f32 0.0, %v6585
      %v6587 = vpop.f32.mrb[0].mxu0
      %6588 = vmatprep.mubr.f32.mxu0 0.0
      %6589 = vmatmul.mubr.f32.gmra.mrb[0].mxu0 %v6416
      %v6590 = vpop.f32.mrb[0].mxu0
      %v6591 = vadd.f32 0.0, %v6590
      %v6592 = vpop.f32.mrb[0].mxu0
      %6593 = vmatprep.mubr.f32.mxu0 0.0
      %6594 = vmatmul.mubr.f32.gmra.mrb[0].mxu0 %v6419
      %v6595 = vpop.f32.mrb[0].mxu0
      %v6596 = vadd.f32 0.0, %v6595
      %v6597 = vpop.f32.mrb[0].mxu0
      %6598 = vmatprep.mubr.f32.mxu0 0.0
      %6599 = vmatmul.mubr.f32.gmra.mrb[0].mxu0 %v6422
      %v6600 = vpop.f32.mrb[0].mxu0
      %v6601 = vadd.f32 0.0, %v6600
      %v6602 = vpop.f32.mrb[0].mxu0
      %6603 = vmatprep.mubr.f32.mxu0 0.0
      %6604 = vmatmul.mubr.f32.gmra.mrb[0].mxu0 %v6425
      %v6605 = vpop.f32.mrb[0].mxu0
      %v6606 = vadd.f32 0.0, %v6605
      %v6607 = vpop.f32.mrb[0].mxu0
      %6608 = vmatprep.mubr.f32.mxu0 0.0
      %6609 = vmatmul.mubr.f32.gmra.mrb[0].mxu0 %v6428
      %v6610 = vpop.f32.mrb[0].mxu0
      %v6611 = vadd.f32 0.0, %v6610
      %v6612 = vpop.f32.mrb[0].mxu0
      %6613 = vmatprep.mubr.f32.mxu0 0.0
      %6614 = vmatmul.mubr.f32.gmra.mrb[0].mxu0 %v6431
      %v6615 = vpop.f32.mrb[0].mxu0
      %v6616 = vadd.f32 0.0, %v6615
      %v6617 = vpop.f32.mrb[0].mxu0
      %6618 = vmatprep.mubr.f32.mxu0 0.0
      %6619 = vmatmul.mubr.f32.gmra.mrb[0].mxu0 %v6434
      %v6620 = vpop.f32.mrb[0].mxu0
      %v6621 = vadd.f32 0.0, %v6620
      %v6622 = vpop.f32.mrb[0].mxu0
      %6623 = vmatprep.mubr.f32.mxu0 0.0
      %6624 = vmatmul.mubr.f32.gmra.mrb[0].mxu0 %v6437
      %v6625 = vpop.f32.mrb[0].mxu0
      %v6626 = vadd.f32 0.0, %v6625
      %v6627 = vpop.f32.mrb[0].mxu0
      %6628 = vmatprep.mubr.f32.mxu0 0.0
      %6629 = vmatmul.mubr.f32.gmra.mrb[0].mxu0 %v6440
      %v6630 = vpop.f32.mrb[0].mxu0
      %v6631 = vadd.f32 0.0, %v6630
      %v6632 = vpop.f32.mrb[0].mxu0
      %6633 = vmatprep.mubr.f32.mxu0 0.0
      %6634 = vmatmul.mubr.f32.gmra.mrb[0].mxu0 %v6443
      %v6635 = vpop.f32.mrb[0].mxu0
      %v6636 = vadd.f32 0.0, %v6635
      %v6637 = vpop.f32.mrb[0].mxu0
      %6638 = vmatprep.mubr.f32.mxu0 0.0
      %6639 = vmatmul.mubr.f32.gmra.mrb[0].mxu0 %v6446
      %v6640 = vpop.f32.mrb[0].mxu0
      %v6641 = vadd.f32 0.0, %v6640
      %v6642 = vpop.f32.mrb[0].mxu0
      %6643 = vmatprep.mubr.f32.mxu0 0.0
      %6644 = vmatmul.mubr.f32.gmra.mrb[0].mxu0 %v6449
      %v6645 = vpop.f32.mrb[0].mxu0
      %v6646 = vadd.f32 0.0, %v6645
      %v6647 = vpop.f32.mrb[0].mxu0
      %6648 = vmatprep.mubr.f32.mxu0 0.0
      %6649 = vmatmul.mubr.f32.gmra.mrb[0].mxu0 %v6452
      %v6650 = vpop.f32.mrb[0].mxu0
      %v6651 = vadd.f32 0.0, %v6650
      %v6652 = vpop.f32.mrb[0].mxu0
      %6653 = vmatprep.mubr.f32.mxu0 0.0
      %6654 = vmatmul.mubr.f32.gmra.mrb[0].mxu0 %v6455
      %v6655 = vpop.f32.mrb[0].mxu0
      %v6656 = vadd.f32 0.0, %v6655
      %v6657 = vpop.f32.mrb[0].mxu0
      %6658 = vmatprep.mubr.f32.mxu0 0.0
      %6659 = vmatmul.mubr.f32.gmra.mrb[0].mxu0 %v6458
      %v6660 = vpop.f32.mrb[0].mxu0
      %v6661 = vadd.f32 0.0, %v6660
      %v6662 = vpop.f32.mrb[0].mxu0
      %6663 = vmatprep.mubr.f32.mxu0 0.0
      %6664 = vmatmul.mubr.f32.gmra.mrb[0].mxu0 %v6461
      %v6665 = vpop.f32.mrb[0].mxu0
      %v6666 = vadd.f32 0.0, %v6665
      %v6667 = vpop.f32.mrb[0].mxu0
      %6668 = vmatprep.mubr.f32.mxu0 0.0
      %6669 = vmatmul.mubr.f32.gmra.mrb[0].mxu0 %v6464
      %v6670 = vpop.f32.mrb[0].mxu0
      %v6671 = vadd.f32 0.0, %v6670
      %v6672 = vpop.f32.mrb[0].mxu0
      %6673 = vmatprep.mubr.f32.mxu0 0.0
      %6674 = vmatmul.mubr.f32.gmra.mrb[0].mxu0 %v6467
      %v6675 = vpop.f32.mrb[0].mxu0
      %v6676 = vadd.f32 0.0, %v6675
      %v6677 = vpop.f32.mrb[0].mxu0
      %6678 = vmatprep.mubr.f32.mxu0 0.0
      %6679 = vmatmul.mubr.f32.gmra.mrb[0].mxu0 %v6470
      %v6680 = vpop.f32.mrb[0].mxu0
      %v6681 = vadd.f32 0.0, %v6680
      %v6682 = vpop.f32.mrb[0].mxu0
      %6683 = vmatprep.mubr.f32.mxu0 0.0
      %6684 = vmatmul.mubr.f32.gmra.mrb[0].mxu0 %v6473
      %v6685 = vpop.f32.mrb[0].mxu0
      %v6686 = vadd.f32 0.0, %v6685
      %v6687 = vpop.f32.mrb[0].mxu0
      %6688 = vmatprep.mubr.f32.mxu0 0.0
      %6689 = vmatmul.mubr.f32.gmra.mrb[0].mxu0 %v6476
      %v6690 = vpop.f32.mrb[0].mxu0
      %v6691 = vadd.f32 0.0, %v6690
      %v6692 = vpop.f32.mrb[0].mxu0
      %6693 = vmatprep.mubr.f32.mxu0 0.0
      %6694 = vmatmul.mubr.f32.gmra.mrb[0].mxu0 %v6479
      %v6695 = vpop.f32.mrb[0].mxu0
      %v6696 = vadd.f32 0.0, %v6695
      %v6697 = vpop.f32.mrb[0].mxu0
      %6698 = vmatprep.mubr.f32.mxu0 0.0
      %6699 = vmatmul.mubr.f32.gmra.mrb[0].mxu0 %v6482
      %v6700 = vpop.f32.mrb[0].mxu0
      %v6701 = vadd.f32 0.0, %v6700
      %v6702 = vpop.f32.mrb[0].mxu0
      %6703 = vmatprep.mubr.f32.mxu0 0.0
      %6704 = vmatmul.mubr.f32.gmra.mrb[0].mxu0 %v6485
      %v6705 = vpop.f32.mrb[0].mxu0
      %v6706 = vadd.f32 0.0, %v6705
      %v6707 = vpop.f32.mrb[0].mxu0
      %6708 = vmatprep.mubr.f32.mxu0 0.0
      %6709 = vmatmul.mubr.f32.gmra.mrb[0].mxu0 %v6488
      %v6710 = vpop.f32.mrb[0].mxu0
      %v6711 = vadd.f32 0.0, %v6710
      %v6712 = vpop.f32.mrb[0].mxu0
      %6713 = vmatprep.mubr.f32.mxu0 0.0
      %6714 = vmatmul.mubr.f32.gmra.mrb[0].mxu0 %v6491
      %v6715 = vpop.f32.mrb[0].mxu0
      %v6716 = vadd.f32 0.0, %v6715
      %v6717 = vpop.f32.mrb[0].mxu0
      %6718 = vmatprep.mubr.f32.mxu0 0.0
      %6719 = vmatmul.mubr.f32.gmra.mrb[0].mxu0 %v6494
      %v6720 = vpop.f32.mrb[0].mxu0
      %v6721 = vadd.f32 0.0, %v6720
      %v6722 = vpop.f32.mrb[0].mxu0
      %6723 = vdwg.mxu0
      %v6724 = vadd.f32 %v6334, %v6566
      %v6725 = vadd.f32 %v6335, %v6571
      %v6726 = vadd.f32 %v6336, %v6576
      %v6727 = vadd.f32 %v6337, %v6581
      %v6728 = vadd.f32 %v6338, %v6586
      %v6729 = vadd.f32 %v6339, %v6591
      %v6730 = vadd.f32 %v6340, %v6596
      %v6731 = vadd.f32 %v6341, %v6601
      %v6732 = vadd.f32 %v6342, %v6606
      %v6733 = vadd.f32 %v6343, %v6611
      %v6734 = vadd.f32 %v6344, %v6616
      %v6735 = vadd.f32 %v6345, %v6621
      %v6736 = vadd.f32 %v6346, %v6626
      %v6737 = vadd.f32 %v6347, %v6631
      %v6738 = vadd.f32 %v6348, %v6636
      %v6739 = vadd.f32 %v6349, %v6641
      %v6740 = vadd.f32 %v6350, %v6646
      %v6741 = vadd.f32 %v6351, %v6651
      %v6742 = vadd.f32 %v6352, %v6656
      %v6743 = vadd.f32 %v6353, %v6661
      %v6744 = vadd.f32 %v6354, %v6666
      %v6745 = vadd.f32 %v6355, %v6671
      %v6746 = vadd.f32 %v6356, %v6676
      %v6747 = vadd.f32 %v6357, %v6681
      %v6748 = vadd.f32 %v6358, %v6686
      %v6749 = vadd.f32 %v6359, %v6691
      %v6750 = vadd.f32 %v6360, %v6696
      %v6751 = vadd.f32 %v6361, %v6701
      %v6752 = vadd.f32 %v6362, %v6706
      %v6753 = vadd.f32 %v6363, %v6711
      %v6754 = vadd.f32 %v6364, %v6716
      %v6755 = vadd.f32 %v6365, %v6721
      %v6756 = vld [vmem:[%s5] sm:$0x1]
      %v6758 = vlaneseq
      %v6759 = vshrl.u32 %v6758, 7
      %v6760 = vsub.s32 0, %v6759
      %v6761 = vrot.slane %v6756, %v6760
      %v6763 = vmul.f32 %v6724, %v6761
      %v6764 = vmul.f32 %v6725, %v6761
      %v6765 = vmul.f32 %v6726, %v6761
      %v6766 = vmul.f32 %v6727, %v6761
      %v6767 = vmul.f32 %v6728, %v6761
      %v6768 = vmul.f32 %v6729, %v6761
      %v6769 = vmul.f32 %v6730, %v6761
      %v6770 = vmul.f32 %v6731, %v6761
      %v6771 = vmul.f32 %v6732, %v6761
      %v6772 = vmul.f32 %v6733, %v6761
      %v6773 = vmul.f32 %v6734, %v6761
      %v6774 = vmul.f32 %v6735, %v6761
      %v6775 = vmul.f32 %v6736, %v6761
      %v6776 = vmul.f32 %v6737, %v6761
      %v6777 = vmul.f32 %v6738, %v6761
      %v6778 = vmul.f32 %v6739, %v6761
      %v6779 = vmul.f32 %v6740, %v6761
      %v6780 = vmul.f32 %v6741, %v6761
      %v6781 = vmul.f32 %v6742, %v6761
      %v6782 = vmul.f32 %v6743, %v6761
      %v6783 = vmul.f32 %v6744, %v6761
      %v6784 = vmul.f32 %v6745, %v6761
      %v6785 = vmul.f32 %v6746, %v6761
      %v6786 = vmul.f32 %v6747, %v6761
      %v6787 = vmul.f32 %v6748, %v6761
      %v6788 = vmul.f32 %v6749, %v6761
      %v6789 = vmul.f32 %v6750, %v6761
      %v6790 = vmul.f32 %v6751, %v6761
      %v6791 = vmul.f32 %v6752, %v6761
      %v6792 = vmul.f32 %v6753, %v6761
      %v6793 = vmul.f32 %v6754, %v6761
      %v6794 = vmul.f32 %v6755, %v6761
      %v6795 = vld [vmem:[%s6] sm:$0x1]
      %v6797 = vlaneseq
      %v6798 = vshrl.u32 %v6797, 7
      %v6799 = vsub.s32 0, %v6798
      %v6800 = vrot.slane %v6795, %v6799
      %v6802 = vadd.f32 %v6763, %v6800
      %v6803 = vadd.f32 %v6764, %v6800
      %v6804 = vadd.f32 %v6765, %v6800
      %v6805 = vadd.f32 %v6766, %v6800
      %v6806 = vadd.f32 %v6767, %v6800
      %v6807 = vadd.f32 %v6768, %v6800
      %v6808 = vadd.f32 %v6769, %v6800
      %v6809 = vadd.f32 %v6770, %v6800
      %v6810 = vadd.f32 %v6771, %v6800
      %v6811 = vadd.f32 %v6772, %v6800
      %v6812 = vadd.f32 %v6773, %v6800
      %v6813 = vadd.f32 %v6774, %v6800
      %v6814 = vadd.f32 %v6775, %v6800
      %v6815 = vadd.f32 %v6776, %v6800
      %v6816 = vadd.f32 %v6777, %v6800
      %v6817 = vadd.f32 %v6778, %v6800
      %v6818 = vadd.f32 %v6779, %v6800
      %v6819 = vadd.f32 %v6780, %v6800
      %v6820 = vadd.f32 %v6781, %v6800
      %v6821 = vadd.f32 %v6782, %v6800
      %v6822 = vadd.f32 %v6783, %v6800
      %v6823 = vadd.f32 %v6784, %v6800
      %v6824 = vadd.f32 %v6785, %v6800
      %v6825 = vadd.f32 %v6786, %v6800
      %v6826 = vadd.f32 %v6787, %v6800
      %v6827 = vadd.f32 %v6788, %v6800
      %v6828 = vadd.f32 %v6789, %v6800
      %v6829 = vadd.f32 %v6790, %v6800
      %v6830 = vadd.f32 %v6791, %v6800
      %v6831 = vadd.f32 %v6792, %v6800
      %v6832 = vadd.f32 %v6793, %v6800
      %v6833 = vadd.f32 %v6794, %v6800
      %v6834 = vadd.f32 %v6802, %v390
      %v6835 = vadd.f32 %v6803, %v392
      %v6836 = vadd.f32 %v6804, %v395
      %v6837 = vadd.f32 %v6805, %v397
      %v6838 = vadd.f32 %v6806, %v400
      %v6839 = vadd.f32 %v6807, %v402
      %v6840 = vadd.f32 %v6808, %v405
      %v6841 = vadd.f32 %v6809, %v407
      %v6842 = vadd.f32 %v6810, %v410
      %v6843 = vadd.f32 %v6811, %v412
      %v6844 = vadd.f32 %v6812, %v415
      %v6845 = vadd.f32 %v6813, %v417
      %v6846 = vadd.f32 %v6814, %v420
      %v6847 = vadd.f32 %v6815, %v422
      %v6848 = vadd.f32 %v6816, %v425
      %v6849 = vadd.f32 %v6817, %v427
      %v6850 = vadd.f32 %v6818, %v430
      %v6851 = vadd.f32 %v6819, %v432
      %v6852 = vadd.f32 %v6820, %v435
      %v6853 = vadd.f32 %v6821, %v437
      %v6854 = vadd.f32 %v6822, %v440
      %v6855 = vadd.f32 %v6823, %v442
      %v6856 = vadd.f32 %v6824, %v445
      %v6857 = vadd.f32 %v6825, %v447
      %v6858 = vadd.f32 %v6826, %v450
      %v6859 = vadd.f32 %v6827, %v452
      %v6860 = vadd.f32 %v6828, %v455
      %v6861 = vadd.f32 %v6829, %v457
      %v6862 = vadd.f32 %v6830, %v460
      %v6863 = vadd.f32 %v6831, %v462
      %v6864 = vadd.f32 %v6832, %v1729
      %v6865 = vadd.f32 %v6833, %v1731
      %v6866 = vmax.f32 %v6834, 0.0
      %v6867 = vmax.f32 %v6835, 0.0
      %v6868 = vmax.f32 %v6836, 0.0
      %v6869 = vmax.f32 %v6837, 0.0
      %v6870 = vmax.f32 %v6838, 0.0
      %v6871 = vmax.f32 %v6839, 0.0
      %v6872 = vmax.f32 %v6840, 0.0
      %v6873 = vmax.f32 %v6841, 0.0
      %v6874 = vmax.f32 %v6842, 0.0
      %v6875 = vmax.f32 %v6843, 0.0
      %v6876 = vmax.f32 %v6844, 0.0
      %v6877 = vmax.f32 %v6845, 0.0
      %v6878 = vmax.f32 %v6846, 0.0
      %v6879 = vmax.f32 %v6847, 0.0
      %v6880 = vmax.f32 %v6848, 0.0
      %v6881 = vmax.f32 %v6849, 0.0
      %v6882 = vmax.f32 %v6850, 0.0
      %v6883 = vmax.f32 %v6851, 0.0
      %v6884 = vmax.f32 %v6852, 0.0
      %v6885 = vmax.f32 %v6853, 0.0
      %v6886 = vmax.f32 %v6854, 0.0
      %v6887 = vmax.f32 %v6855, 0.0
      %v6888 = vmax.f32 %v6856, 0.0
      %v6889 = vmax.f32 %v6857, 0.0
      %v6890 = vmax.f32 %v6858, 0.0
      %v6891 = vmax.f32 %v6859, 0.0
      %v6892 = vmax.f32 %v6860, 0.0
      %v6893 = vmax.f32 %v6861, 0.0
      %v6894 = vmax.f32 %v6862, 0.0
      %v6895 = vmax.f32 %v6863, 0.0
      %v6896 = vmax.f32 %v6864, 0.0
      %v6897 = vmax.f32 %v6865, 0.0
      %6898 = vst.msk [vmem:[%s278] sm:$0xff] %vm465, %v6866
      %6899 = vst.msk [vmem:[%s278 + $0x8] sm:$0xff] %vm465, %v6867
      %6900 = vst.msk [vmem:[%s278 + $0x10] sm:$0xff] %vm465, %v6868
      %6901 = vst.msk [vmem:[%s278 + $0x18] sm:$0xff] %vm465, %v6869
      %6902 = vst.msk [vmem:[%s278 + $0x20] sm:$0xff] %vm465, %v6870
      %6903 = vst.msk [vmem:[%s278 + $0x28] sm:$0xff] %vm465, %v6871
      %6904 = vst.msk [vmem:[%s278 + $0x30] sm:$0xff] %vm465, %v6872
      %6905 = vst.msk [vmem:[%s278 + $0x38] sm:$0xff] %vm465, %v6873
      %6906 = vst.msk [vmem:[%s278 + $0x40] sm:$0xff] %vm465, %v6874
      %6907 = vst.msk [vmem:[%s278 + $0x48] sm:$0xff] %vm465, %v6875
      %6908 = vst.msk [vmem:[%s278 + $0x50] sm:$0xff] %vm465, %v6876
      %6909 = vst.msk [vmem:[%s278 + $0x58] sm:$0xff] %vm465, %v6877
      %6910 = vst.msk [vmem:[%s278 + $0x60] sm:$0xff] %vm465, %v6878
      %6911 = vst.msk [vmem:[%s278 + $0x68] sm:$0xff] %vm465, %v6879
      %6912 = vst.msk [vmem:[%s278 + $0x70] sm:$0xff] %vm465, %v6880
      %6913 = vst.msk [vmem:[%s278 + $0x78] sm:$0xff] %vm465, %v6881
      %6914 = vst.msk [vmem:[%s278 + $0x80] sm:$0xff] %vm465, %v6882
      %6915 = vst.msk [vmem:[%s278 + $0x88] sm:$0xff] %vm465, %v6883
      %6916 = vst.msk [vmem:[%s278 + $0x90] sm:$0xff] %vm465, %v6884
      %6917 = vst.msk [vmem:[%s278 + $0x98] sm:$0xff] %vm465, %v6885
      %6918 = vst.msk [vmem:[%s278 + $0xa0] sm:$0xff] %vm465, %v6886
      %6919 = vst.msk [vmem:[%s278 + $0xa8] sm:$0xff] %vm465, %v6887
      %6920 = vst.msk [vmem:[%s278 + $0xb0] sm:$0xff] %vm465, %v6888
      %6921 = vst.msk [vmem:[%s278 + $0xb8] sm:$0xff] %vm465, %v6889
      %6922 = vst.msk [vmem:[%s278 + $0xc0] sm:$0xff] %vm465, %v6890
      %6923 = vst.msk [vmem:[%s278 + $0xc8] sm:$0xff] %vm465, %v6891
      %6924 = vst.msk [vmem:[%s278 + $0xd0] sm:$0xff] %vm465, %v6892
      %6925 = vst.msk [vmem:[%s278 + $0xd8] sm:$0xff] %vm465, %v6893
      %6926 = vst.msk [vmem:[%s278 + $0xe0] sm:$0xff] %vm465, %v6894
      %6927 = vst.msk [vmem:[%s278 + $0xe8] sm:$0xff] %vm465, %v6895
      %6928 = vst.msk [vmem:[%s278 + $0xf0] sm:$0xff] %vm465, %v6896
      %6929 = vst.msk [vmem:[%s278 + $0xf8] sm:$0xff] %vm465, %v6897
      %p6930 = scmp.lt.s32.totalorder %s18, 1
      %s6931 = scalar_select %p6930, %s18, 1
      %s6932 = smul.addr %s6931, 32
      %s6933 = smul.addr %s6932, 8
      %s6934 = scalar_lea.vmem %s7, %s6933
      // Predicated region
      $region49: #{tpu_custom_call.1} parent=47 // pred_check
        %p6935 = pneg %p188
      $region50: #{tpu_custom_call.1} parent=47 // pred_check_branch
        %6937 = sbr.rel (%p6935) target = $region52
      $region51: #{tpu_custom_call.1} parent=47 // pred_region
        _
      $region52: #{tpu_custom_call.1} parent=47 // pred_fallthru
        _
    $region48: #{tpu_custom_call.1} parent=5 // pred_fallthru
      _
    %p6938 = scmp.le.s32.totalorder 2, %s13
    // Predicated region
    $region53: #{tpu_custom_call.1} parent=5 // pred_check
      %p6939 = pneg %p6938
    $region54: #{tpu_custom_call.1} parent=5 // pred_check_branch
      %6941 = sbr.rel (%p6939) target = $region56
    $region55: #{tpu_custom_call.1} parent=5 // pred_region
      %s6942 = ssub.s32 %s13, 2
      // Predicated region
      $region57: #{tpu_custom_call.1} parent=55 // pred_check
        %p6943 = pneg %p194
      $region58: #{tpu_custom_call.1} parent=55 // pred_check_branch
        %6945 = sbr.rel (%p6943) target = $region60
      $region59: #{tpu_custom_call.1} parent=55 // pred_region
        %p6946 = scmp.lt.s32.totalorder %s19, 1
        %s6947 = scalar_select %p6946, %s19, 1
        %s6948 = smul.addr %s6947, 32
        %s6949 = smul.addr %s6948, 8
        %s6950 = scalar_lea.vmem %s7, %s6949
      $region60: #{tpu_custom_call.1} parent=55 // pred_fallthru
        _
    $region56: #{tpu_custom_call.1} parent=5 // pred_fallthru
      _
  $region6: #{tpu_custom_call.1} parent=0 // loop_footer
    %s17 = sadd.s32 1, %s13
  $region7: #{tpu_custom_call.1} parent=0 // loop_footer_branch
    %12 = sbr.rel target = $region3
  $region8: #{tpu_custom_call.1} parent=0 // loop_exit
    _

</llo_original>
